<compile_context>
chip_gen: v6e
topology: v6e:2x2x1
jax: 0.10.0
libtpu: 0.0.40
codegen_flags: <defaults>
</compile_context>

<pallas_src>
import jax
import jax.numpy as jnp
from jax.experimental import pallas as pl
from jax.experimental.pallas import tpu as pltpu

# ----------------------------- configuration -------------------------------
B, P, M = 2, 16, 8           # batch, window, n_series
HIDC, HIDR, HIDS = 16, 16, 8
CK, SKIP, HW = 4, 3, 4       # CNN kernel, skip, highway window
T = P - CK + 1               # conv output length (13)
PT = (P - CK) // SKIP        # skip recurrence length (4)
T0 = T - PT * SKIP           # first timestep used by the skip GRU (1)
NTB = T * B                  # time-major flattened rows (26)
NS = SKIP * B                # skip-GRU flattened batch (6)
# output_fun == 'sigmoid'


def _vmem():
    return pl.BlockSpec(memory_space=pltpu.MemorySpace.VMEM)


def _smem():
    return pl.BlockSpec(memory_space=pltpu.MemorySpace.SMEM)


# --------------------------- fused forward kernel ---------------------------
def lstnet_fused_kernel(
        patches_ref, xtail_ref,                        # activations
        wconv_ref, bconv_ref,                          # conv1
        wih1_ref, whh1_ref, bi1_ref, bhn1_ref,         # GRU1
        wihs_ref, whhs_ref, bis_ref, bhns_ref,         # GRUskip
        w1_ref, b1_ref, whw_ref, bhw_ref,              # linear1 + highway
        out_ref,                                       # (B, M) output
        gi1r, gi1z, gi1n, gisr, gisz, gisn, hs_scr):   # VMEM scratch
    f32 = jnp.float32

    # ---- conv1 + ReLU (im2col matmul), time-major rows: row = t*B + b -----
    c = jnp.maximum(
        jnp.dot(patches_ref[...], wconv_ref[...], preferred_element_type=f32)
        + bconv_ref[...], 0.0)                                   # (T*B, hidC)

    # ---- hoisted GRU input projections (off the serial chain) -------------
    # r/z gates carry bih+bhh pre-folded; n gate carries bih only.
    gi1r[...] = jnp.dot(c, wih1_ref[0], preferred_element_type=f32) + bi1_ref[0]
    gi1z[...] = jnp.dot(c, wih1_ref[1], preferred_element_type=f32) + bi1_ref[1]
    gi1n[...] = jnp.dot(c, wih1_ref[2], preferred_element_type=f32) + bi1_ref[2]
    gisr[...] = jnp.dot(c, wihs_ref[0], preferred_element_type=f32) + bis_ref[0]
    gisz[...] = jnp.dot(c, wihs_ref[1], preferred_element_type=f32) + bis_ref[1]
    gisn[...] = jnp.dot(c, wihs_ref[2], preferred_element_type=f32) + bis_ref[2]

    # ---- GRU1 recurrence over the full sequence -> (B, hidR) --------------
    w1r = whh1_ref[0]
    w1z = whh1_ref[1]
    w1n = whh1_ref[2]
    bn1 = bhn1_ref[...]                                          # (1, hidR)
    h1 = jnp.zeros((B, HIDR), f32)
    for t in range(T):                    # small static trip count -> unrolled
        row = t * B
        r = jax.nn.sigmoid(gi1r[pl.ds(row, B), :]
                           + jnp.dot(h1, w1r, preferred_element_type=f32))
        z = jax.nn.sigmoid(gi1z[pl.ds(row, B), :]
                           + jnp.dot(h1, w1z, preferred_element_type=f32))
        n = jnp.tanh(gi1n[pl.ds(row, B), :]
                     + r * (jnp.dot(h1, w1n, preferred_element_type=f32) + bn1))
        h1 = (1.0 - z) * n + z * h1

    # ---- GRUskip recurrence ------------------------------------------------
    # Flattened batch row = k*B + b, so step j's input projection is the
    # contiguous block of rows [(T0 + j*SKIP)*B , +SKIP*B) of the time-major
    # buffers (batch permutation is irrelevant to the recurrence).
    wsr = whhs_ref[0]
    wsz = whhs_ref[1]
    wsn = whhs_ref[2]
    bns = bhns_ref[...]                                          # (1, hidS)
    hs = jnp.zeros((NS, HIDS), f32)
    for j in range(PT):
        row = (T0 + j * SKIP) * B
        r = jax.nn.sigmoid(gisr[pl.ds(row, NS), :]
                           + jnp.dot(hs, wsr, preferred_element_type=f32))
        z = jax.nn.sigmoid(gisz[pl.ds(row, NS), :]
                           + jnp.dot(hs, wsz, preferred_element_type=f32))
        n = jnp.tanh(gisn[pl.ds(row, NS), :]
                     + r * (jnp.dot(hs, wsn, preferred_element_type=f32) + bns))
        hs = (1.0 - z) * n + z * hs
    hs_scr[...] = hs

    # ---- head: linear1 (block-wise, no lane concat) + highway + sigmoid ---
    res = jnp.dot(h1, w1_ref[0:HIDR, :], preferred_element_type=f32) + b1_ref[...]
    for k in range(SKIP):
        res = res + jnp.dot(hs_scr[pl.ds(k * B, B), :],
                            w1_ref[pl.ds(HIDR + k * HIDS, HIDS), :],
                            preferred_element_type=f32)
    # highway: z[b, j] = sum_k x[b, P-hw+k, j] * w_hw[k] + b_hw
    zhw = jnp.sum(xtail_ref[...] * whw_ref[...], axis=1) + bhw_ref[0, 0]
    out_ref[...] = jax.nn.sigmoid(res + zhw)


# ------------------------------- parameters ---------------------------------
def init_params(key):
    ks = jax.random.split(key, 14)

    def u(k, shape, bound):
        return jax.random.uniform(k, shape, jnp.float32, -bound, bound)

    p = {}
    k_conv = 1.0 / (CK * M) ** 0.5
    p['w_conv'] = u(ks[0], (HIDC, 1, CK, M), k_conv)   # PyTorch (out, in, Ck, m)
    p['b_conv'] = u(ks[1], (HIDC,), k_conv)

    k1 = 1.0 / HIDR ** 0.5
    p['gru1_wih'] = u(ks[2], (3, HIDC, HIDR), k1)      # gate order (r, z, n)
    p['gru1_whh'] = u(ks[3], (3, HIDR, HIDR), k1)
    p['gru1_bih'] = u(ks[4], (3, 1, HIDR), k1)
    p['gru1_bhh'] = u(ks[5], (3, 1, HIDR), k1)

    k2 = 1.0 / HIDS ** 0.5
    p['grus_wih'] = u(ks[6], (3, HIDC, HIDS), k2)
    p['grus_whh'] = u(ks[7], (3, HIDS, HIDS), k2)
    p['grus_bih'] = u(ks[8], (3, 1, HIDS), k2)
    p['grus_bhh'] = u(ks[9], (3, 1, HIDS), k2)

    fin = HIDR + SKIP * HIDS
    kl = 1.0 / fin ** 0.5
    p['w1'] = u(ks[10], (fin, M), kl)      # stored already transposed: (F, m)
    p['b1'] = u(ks[11], (1, M), kl)

    kh = 1.0 / HW ** 0.5
    p['w_hw'] = u(ks[12], (HW,), kh)       # Linear(hw, 1) weight
    p['b_hw'] = u(ks[13], (1, 1), kh)      # Linear(hw, 1) bias
    return p


def prepare_params(p):
    """One-time layout / bias-folding prep for the fused kernel."""
    pp = {}
    pp['wconv'] = p['w_conv'].reshape(HIDC, CK * M).T            # (Ck*m, hidC)
    pp['bconv'] = p['b_conv'].reshape(1, HIDC)

    pp['wih1'] = p['gru1_wih']                                   # (3, hidC, hidR)
    pp['whh1'] = p['gru1_whh']                                   # (3, hidR, hidR)
    pp['bi1'] = jnp.stack([p['gru1_bih'][0] + p['gru1_bhh'][0],  # r: bih+bhh
                           p['gru1_bih'][1] + p['gru1_bhh'][1],  # z: bih+bhh
                           p['gru1_bih'][2]])                    # n: bih only
    pp['bhn1'] = p['gru1_bhh'][2]                                # (1, hidR)

    pp['wihs'] = p['grus_wih']
    pp['whhs'] = p['grus_whh']
    pp['bis'] = jnp.stack([p['grus_bih'][0] + p['grus_bhh'][0],
                           p['grus_bih'][1] + p['grus_bhh'][1],
                           p['grus_bih'][2]])
    pp['bhns'] = p['grus_bhh'][2]                                # (1, hidS)

    pp['w1'] = p['w1']                                           # (F, m)
    pp['b1'] = p['b1']                                           # (1, m)
    pp['whw'] = p['w_hw'].reshape(1, HW, 1)
    pp['bhw'] = p['b_hw']                                        # (1, 1) scalar
    return pp


# ------------------------------ forward pass --------------------------------
def lstnet_forward(x, pp):
    # im2col gather, directly in time-major order (row = t*B + b).  This is
    # the only wrapper-side data op; it is tiny and fused by XLA.
    idx = jnp.arange(T)[:, None] + jnp.arange(CK)[None, :]          # (T, Ck)
    patches = jnp.transpose(x[:, idx, :], (1, 0, 2, 3)).reshape(NTB, CK * M)
    x_tail = x[:, P - HW:, :]                                        # (B, hw, m)

    return pl.pallas_call(
        lstnet_fused_kernel,
        out_shape=jax.ShapeDtypeStruct((B, M), jnp.float32),
        in_specs=[_vmem(), _vmem(),                      # patches, x_tail
                  _vmem(), _vmem(),                      # conv1
                  _vmem(), _vmem(), _vmem(), _vmem(),    # GRU1
                  _vmem(), _vmem(), _vmem(), _vmem(),    # GRUskip
                  _vmem(), _vmem(), _vmem(), _smem()],   # head (b_hw in SMEM)
        out_specs=_vmem(),
        scratch_shapes=[
            pltpu.VMEM((NTB, HIDR), jnp.float32),   # gi1r
            pltpu.VMEM((NTB, HIDR), jnp.float32),   # gi1z
            pltpu.VMEM((NTB, HIDR), jnp.float32),   # gi1n
            pltpu.VMEM((NTB, HIDS), jnp.float32),   # gisr
            pltpu.VMEM((NTB, HIDS), jnp.float32),   # gisz
            pltpu.VMEM((NTB, HIDS), jnp.float32),   # gisn
            pltpu.VMEM((NS, HIDS), jnp.float32),    # hs
        ],
    )(patches, x_tail,
      pp['wconv'], pp['bconv'],
      pp['wih1'], pp['whh1'], pp['bi1'], pp['bhn1'],
      pp['wihs'], pp['whhs'], pp['bis'], pp['bhns'],
      pp['w1'], pp['b1'], pp['whw'], pp['bhw'])


# ------------------------- pure-JAX reference (check) ------------------------
def reference_forward(x, p):
    Bn = x.shape[0]
    idx = jnp.arange(T)[:, None] + jnp.arange(CK)[None, :]
    patches = x[:, idx, :].reshape(Bn * T, CK * M)
    w_flat = p['w_conv'].reshape(HIDC, CK * M).T
    c = jnp.maximum(patches @ w_flat + p['b_conv'][None, :], 0.0).reshape(Bn, T, HIDC)

    def gru(seq, wih, whh, bih, bhh):
        N = seq.shape[1]
        H = whh.shape[1]
        h = jnp.zeros((N, H), jnp.float32)
        for t in range(seq.shape[0]):
            xt = seq[t]
            r = jax.nn.sigmoid(xt @ wih[0] + bih[0] + h @ whh[0] + bhh[0])
            z = jax.nn.sigmoid(xt @ wih[1] + bih[1] + h @ whh[1] + bhh[1])
            n = jnp.tanh(xt @ wih[2] + bih[2] + r * (h @ whh[2] + bhh[2]))
            h = (1.0 - z) * n + z * h
        return h

    r = gru(jnp.transpose(c, (1, 0, 2)),
            p['gru1_wih'], p['gru1_whh'], p['gru1_bih'], p['gru1_bhh'])
    s = c[:, T - PT * SKIP:, :].reshape(Bn, PT, SKIP, HIDC)
    s = jnp.transpose(s, (1, 0, 2, 3)).reshape(PT, Bn * SKIP, HIDC)
    s = gru(s, p['grus_wih'], p['grus_whh'],
            p['grus_bih'], p['grus_bhh']).reshape(Bn, SKIP * HIDS)
    rs = jnp.concatenate([r, s], axis=1)
    res = rs @ p['w1'] + p['b1']
    z = jnp.sum(x[:, P - HW:, :] * p['w_hw'].reshape(1, HW, 1), axis=1) + p['b_hw'][0, 0]
    return jax.nn.sigmoid(res + z)


# ----------------------------------- main ------------------------------------
if __name__ == "__main__":
    key = jax.random.PRNGKey(0)
    kx, kp = jax.random.split(key)
    x = jax.random.normal(kx, (B, P, M), jnp.float32)
    params = init_params(kp)
    pp = prepare_params(params)

    out = jax.jit(lstnet_forward)(x, pp)
    out = jax.block_until_ready(out)

    ref = reference_forward(x, params)
    assert out.shape == (B, M), out.shape
    assert bool(jnp.all(jnp.isfinite(out)))
    assert bool(jnp.allclose(out, ref, atol=1e-5, rtol=1e-5)), (out, ref)

    print("KERNEL_OK")
</pallas_src>

<mosaic_0001>
module attributes {stable_mosaic.version = 11 : i64} {
  func.func @lstnet_fused_kernel(%arg0: memref<26x32xf32, #tpu.memory_space<vmem>>, %arg1: memref<2x4x8xf32, #tpu.memory_space<vmem>>, %arg2: memref<32x16xf32, #tpu.memory_space<vmem>>, %arg3: memref<1x16xf32, #tpu.memory_space<vmem>>, %arg4: memref<3x16x16xf32, #tpu.memory_space<vmem>>, %arg5: memref<3x16x16xf32, #tpu.memory_space<vmem>>, %arg6: memref<3x1x16xf32, #tpu.memory_space<vmem>>, %arg7: memref<1x16xf32, #tpu.memory_space<vmem>>, %arg8: memref<3x16x8xf32, #tpu.memory_space<vmem>>, %arg9: memref<3x8x8xf32, #tpu.memory_space<vmem>>, %arg10: memref<3x1x8xf32, #tpu.memory_space<vmem>>, %arg11: memref<1x8xf32, #tpu.memory_space<vmem>>, %arg12: memref<40x8xf32, #tpu.memory_space<vmem>>, %arg13: memref<1x8xf32, #tpu.memory_space<vmem>>, %arg14: memref<1x4x1xf32, #tpu.memory_space<vmem>>, %arg15: memref<1x1xf32, #tpu.memory_space<smem>>, %arg16: memref<2x8xf32, #tpu.memory_space<vmem>>, %arg17: memref<26x16xf32, #tpu.memory_space<vmem>>, %arg18: memref<26x16xf32, #tpu.memory_space<vmem>>, %arg19: memref<26x16xf32, #tpu.memory_space<vmem>>, %arg20: memref<26x8xf32, #tpu.memory_space<vmem>>, %arg21: memref<26x8xf32, #tpu.memory_space<vmem>>, %arg22: memref<26x8xf32, #tpu.memory_space<vmem>>, %arg23: memref<6x8xf32, #tpu.memory_space<vmem>>) attributes {dimension_semantics = [], scalar_prefetch = 0 : i64, scratch_operands = 7 : i64, tpu.core_type = #tpu.core_type<tc>} {
    %c0 = arith.constant 0 : index
    %c0_0 = arith.constant 0 : index
    %0 = vector.load %arg0[%c0, %c0_0] : memref<26x32xf32, #tpu.memory_space<vmem>>, vector<26x32xf32>
    %c0_1 = arith.constant 0 : index
    %c0_2 = arith.constant 0 : index
    %1 = vector.load %arg2[%c0_1, %c0_2] : memref<32x16xf32, #tpu.memory_space<vmem>>, vector<32x16xf32>
    %cst = arith.constant dense<0.000000e+00> : vector<26x16xf32>
    %2 = tpu.matmul %0, %1, %cst {dimension_numbers = #tpu.dot_dimension_numbers<[1], [0], [0], [1], [0, 0, 1, 1], [], []>} : vector<26x32xf32>, vector<32x16xf32>, vector<26x16xf32> -> vector<26x16xf32>
    %c0_3 = arith.constant 0 : index
    %c0_4 = arith.constant 0 : index
    %3 = vector.load %arg3[%c0_3, %c0_4] : memref<1x16xf32, #tpu.memory_space<vmem>>, vector<1x16xf32>
    %4 = vector.broadcast %3 : vector<1x16xf32> to vector<26x16xf32>
    %5 = arith.addf %2, %4 : vector<26x16xf32>
    %cst_5 = arith.constant 0.000000e+00 : f32
    %6 = vector.broadcast %cst_5 : f32 to vector<26x16xf32>
    %7 = arith.maximumf %5, %6 : vector<26x16xf32>
    %c0_6 = arith.constant 0 : index
    %c0_7 = arith.constant 0 : index
    %c0_8 = arith.constant 0 : index
    %8 = vector.load %arg4[%c0_6, %c0_7, %c0_8] : memref<3x16x16xf32, #tpu.memory_space<vmem>>, vector<1x16x16xf32>
    %9 = vector.shape_cast %8 : vector<1x16x16xf32> to vector<16x16xf32>
    %cst_9 = arith.constant dense<0.000000e+00> : vector<26x16xf32>
    %10 = tpu.matmul %7, %9, %cst_9 {dimension_numbers = #tpu.dot_dimension_numbers<[1], [0], [0], [1], [0, 0, 1, 1], [], []>} : vector<26x16xf32>, vector<16x16xf32>, vector<26x16xf32> -> vector<26x16xf32>
    %c0_10 = arith.constant 0 : index
    %c0_11 = arith.constant 0 : index
    %c0_12 = arith.constant 0 : index
    %11 = vector.load %arg6[%c0_10, %c0_11, %c0_12] : memref<3x1x16xf32, #tpu.memory_space<vmem>>, vector<1x1x16xf32>
    %12 = vector.shape_cast %11 : vector<1x1x16xf32> to vector<1x16xf32>
    %13 = vector.broadcast %12 : vector<1x16xf32> to vector<26x16xf32>
    %14 = arith.addf %10, %13 : vector<26x16xf32>
    %c0_13 = arith.constant 0 : index
    %c0_14 = arith.constant 0 : index
    %15 = vector.load %arg17[%c0_13, %c0_14] : memref<26x16xf32, #tpu.memory_space<vmem>>, vector<26x16xf32>
    tpu.vector_store %arg17[%c0_13, %c0_14], %14 {strides = array<i32>} : memref<26x16xf32, #tpu.memory_space<vmem>>, vector<26x16xf32>,
    %c1 = arith.constant 1 : index
    %c0_15 = arith.constant 0 : index
    %c0_16 = arith.constant 0 : index
    %16 = vector.load %arg4[%c1, %c0_15, %c0_16] : memref<3x16x16xf32, #tpu.memory_space<vmem>>, vector<1x16x16xf32>
    %17 = vector.shape_cast %16 : vector<1x16x16xf32> to vector<16x16xf32>
    %cst_17 = arith.constant dense<0.000000e+00> : vector<26x16xf32>
    %18 = tpu.matmul %7, %17, %cst_17 {dimension_numbers = #tpu.dot_dimension_numbers<[1], [0], [0], [1], [0, 0, 1, 1], [], []>} : vector<26x16xf32>, vector<16x16xf32>, vector<26x16xf32> -> vector<26x16xf32>
    %c1_18 = arith.constant 1 : index
    %c0_19 = arith.constant 0 : index
    %c0_20 = arith.constant 0 : index
    %19 = vector.load %arg6[%c1_18, %c0_19, %c0_20] : memref<3x1x16xf32, #tpu.memory_space<vmem>>, vector<1x1x16xf32>
    %20 = vector.shape_cast %19 : vector<1x1x16xf32> to vector<1x16xf32>
    %21 = vector.broadcast %20 : vector<1x16xf32> to vector<26x16xf32>
    %22 = arith.addf %18, %21 : vector<26x16xf32>
    %c0_21 = arith.constant 0 : index
    %c0_22 = arith.constant 0 : index
    %23 = vector.load %arg18[%c0_21, %c0_22] : memref<26x16xf32, #tpu.memory_space<vmem>>, vector<26x16xf32>
    tpu.vector_store %arg18[%c0_21, %c0_22], %22 {strides = array<i32>} : memref<26x16xf32, #tpu.memory_space<vmem>>, vector<26x16xf32>,
    %c2 = arith.constant 2 : index
    %c0_23 = arith.constant 0 : index
    %c0_24 = arith.constant 0 : index
    %24 = vector.load %arg4[%c2, %c0_23, %c0_24] : memref<3x16x16xf32, #tpu.memory_space<vmem>>, vector<1x16x16xf32>
    %25 = vector.shape_cast %24 : vector<1x16x16xf32> to vector<16x16xf32>
    %cst_25 = arith.constant dense<0.000000e+00> : vector<26x16xf32>
    %26 = tpu.matmul %7, %25, %cst_25 {dimension_numbers = #tpu.dot_dimension_numbers<[1], [0], [0], [1], [0, 0, 1, 1], [], []>} : vector<26x16xf32>, vector<16x16xf32>, vector<26x16xf32> -> vector<26x16xf32>
    %c2_26 = arith.constant 2 : index
    %c0_27 = arith.constant 0 : index
    %c0_28 = arith.constant 0 : index
    %27 = vector.load %arg6[%c2_26, %c0_27, %c0_28] : memref<3x1x16xf32, #tpu.memory_space<vmem>>, vector<1x1x16xf32>
    %28 = vector.shape_cast %27 : vector<1x1x16xf32> to vector<1x16xf32>
    %29 = vector.broadcast %28 : vector<1x16xf32> to vector<26x16xf32>
    %30 = arith.addf %26, %29 : vector<26x16xf32>
    %c0_29 = arith.constant 0 : index
    %c0_30 = arith.constant 0 : index
    %31 = vector.load %arg19[%c0_29, %c0_30] : memref<26x16xf32, #tpu.memory_space<vmem>>, vector<26x16xf32>
    tpu.vector_store %arg19[%c0_29, %c0_30], %30 {strides = array<i32>} : memref<26x16xf32, #tpu.memory_space<vmem>>, vector<26x16xf32>,
    %c0_31 = arith.constant 0 : index
    %c0_32 = arith.constant 0 : index
    %c0_33 = arith.constant 0 : index
    %32 = vector.load %arg8[%c0_31, %c0_32, %c0_33] : memref<3x16x8xf32, #tpu.memory_space<vmem>>, vector<1x16x8xf32>
    %33 = vector.shape_cast %32 : vector<1x16x8xf32> to vector<16x8xf32>
    %cst_34 = arith.constant dense<0.000000e+00> : vector<26x8xf32>
    %34 = tpu.matmul %7, %33, %cst_34 {dimension_numbers = #tpu.dot_dimension_numbers<[1], [0], [0], [1], [0, 0, 1, 1], [], []>} : vector<26x16xf32>, vector<16x8xf32>, vector<26x8xf32> -> vector<26x8xf32>
    %c0_35 = arith.constant 0 : index
    %c0_36 = arith.constant 0 : index
    %c0_37 = arith.constant 0 : index
    %35 = vector.load %arg10[%c0_35, %c0_36, %c0_37] : memref<3x1x8xf32, #tpu.memory_space<vmem>>, vector<1x1x8xf32>
    %36 = vector.shape_cast %35 : vector<1x1x8xf32> to vector<1x8xf32>
    %37 = vector.broadcast %36 : vector<1x8xf32> to vector<26x8xf32>
    %38 = arith.addf %34, %37 : vector<26x8xf32>
    %c0_38 = arith.constant 0 : index
    %c0_39 = arith.constant 0 : index
    %39 = vector.load %arg20[%c0_38, %c0_39] : memref<26x8xf32, #tpu.memory_space<vmem>>, vector<26x8xf32>
    tpu.vector_store %arg20[%c0_38, %c0_39], %38 {strides = array<i32>} : memref<26x8xf32, #tpu.memory_space<vmem>>, vector<26x8xf32>,
    %c1_40 = arith.constant 1 : index
    %c0_41 = arith.constant 0 : index
    %c0_42 = arith.constant 0 : index
    %40 = vector.load %arg8[%c1_40, %c0_41, %c0_42] : memref<3x16x8xf32, #tpu.memory_space<vmem>>, vector<1x16x8xf32>
    %41 = vector.shape_cast %40 : vector<1x16x8xf32> to vector<16x8xf32>
    %cst_43 = arith.constant dense<0.000000e+00> : vector<26x8xf32>
    %42 = tpu.matmul %7, %41, %cst_43 {dimension_numbers = #tpu.dot_dimension_numbers<[1], [0], [0], [1], [0, 0, 1, 1], [], []>} : vector<26x16xf32>, vector<16x8xf32>, vector<26x8xf32> -> vector<26x8xf32>
    %c1_44 = arith.constant 1 : index
    %c0_45 = arith.constant 0 : index
    %c0_46 = arith.constant 0 : index
    %43 = vector.load %arg10[%c1_44, %c0_45, %c0_46] : memref<3x1x8xf32, #tpu.memory_space<vmem>>, vector<1x1x8xf32>
    %44 = vector.shape_cast %43 : vector<1x1x8xf32> to vector<1x8xf32>
    %45 = vector.broadcast %44 : vector<1x8xf32> to vector<26x8xf32>
    %46 = arith.addf %42, %45 : vector<26x8xf32>
    %c0_47 = arith.constant 0 : index
    %c0_48 = arith.constant 0 : index
    %47 = vector.load %arg21[%c0_47, %c0_48] : memref<26x8xf32, #tpu.memory_space<vmem>>, vector<26x8xf32>
    tpu.vector_store %arg21[%c0_47, %c0_48], %46 {strides = array<i32>} : memref<26x8xf32, #tpu.memory_space<vmem>>, vector<26x8xf32>,
    %c2_49 = arith.constant 2 : index
    %c0_50 = arith.constant 0 : index
    %c0_51 = arith.constant 0 : index
    %48 = vector.load %arg8[%c2_49, %c0_50, %c0_51] : memref<3x16x8xf32, #tpu.memory_space<vmem>>, vector<1x16x8xf32>
    %49 = vector.shape_cast %48 : vector<1x16x8xf32> to vector<16x8xf32>
    %cst_52 = arith.constant dense<0.000000e+00> : vector<26x8xf32>
    %50 = tpu.matmul %7, %49, %cst_52 {dimension_numbers = #tpu.dot_dimension_numbers<[1], [0], [0], [1], [0, 0, 1, 1], [], []>} : vector<26x16xf32>, vector<16x8xf32>, vector<26x8xf32> -> vector<26x8xf32>
    %c2_53 = arith.constant 2 : index
    %c0_54 = arith.constant 0 : index
    %c0_55 = arith.constant 0 : index
    %51 = vector.load %arg10[%c2_53, %c0_54, %c0_55] : memref<3x1x8xf32, #tpu.memory_space<vmem>>, vector<1x1x8xf32>
    %52 = vector.shape_cast %51 : vector<1x1x8xf32> to vector<1x8xf32>
    %53 = vector.broadcast %52 : vector<1x8xf32> to vector<26x8xf32>
    %54 = arith.addf %50, %53 : vector<26x8xf32>
    %c0_56 = arith.constant 0 : index
    %c0_57 = arith.constant 0 : index
    %55 = vector.load %arg22[%c0_56, %c0_57] : memref<26x8xf32, #tpu.memory_space<vmem>>, vector<26x8xf32>
    tpu.vector_store %arg22[%c0_56, %c0_57], %54 {strides = array<i32>} : memref<26x8xf32, #tpu.memory_space<vmem>>, vector<26x8xf32>,
    %c0_58 = arith.constant 0 : index
    %c0_59 = arith.constant 0 : index
    %c0_60 = arith.constant 0 : index
    %56 = vector.load %arg5[%c0_58, %c0_59, %c0_60] : memref<3x16x16xf32, #tpu.memory_space<vmem>>, vector<1x16x16xf32>
    %57 = vector.shape_cast %56 : vector<1x16x16xf32> to vector<16x16xf32>
    %c1_61 = arith.constant 1 : index
    %c0_62 = arith.constant 0 : index
    %c0_63 = arith.constant 0 : index
    %58 = vector.load %arg5[%c1_61, %c0_62, %c0_63] : memref<3x16x16xf32, #tpu.memory_space<vmem>>, vector<1x16x16xf32>
    %59 = vector.shape_cast %58 : vector<1x16x16xf32> to vector<16x16xf32>
    %c2_64 = arith.constant 2 : index
    %c0_65 = arith.constant 0 : index
    %c0_66 = arith.constant 0 : index
    %60 = vector.load %arg5[%c2_64, %c0_65, %c0_66] : memref<3x16x16xf32, #tpu.memory_space<vmem>>, vector<1x16x16xf32>
    %61 = vector.shape_cast %60 : vector<1x16x16xf32> to vector<16x16xf32>
    %c0_67 = arith.constant 0 : index
    %c0_68 = arith.constant 0 : index
    %62 = vector.load %arg7[%c0_67, %c0_68] : memref<1x16xf32, #tpu.memory_space<vmem>>, vector<1x16xf32>
    %cst_69 = arith.constant 0.000000e+00 : f32
    %63 = vector.broadcast %cst_69 : f32 to vector<2x16xf32>
    %c0_70 = arith.constant 0 : index
    %c0_71 = arith.constant 0 : index
    %64 = vector.load %arg17[%c0_70, %c0_71] : memref<26x16xf32, #tpu.memory_space<vmem>>, vector<2x16xf32>
    %cst_72 = arith.constant dense<0.000000e+00> : vector<2x16xf32>
    %65 = tpu.matmul %63, %57, %cst_72 {dimension_numbers = #tpu.dot_dimension_numbers<[1], [0], [0], [1], [0, 0, 1, 1], [], []>} : vector<2x16xf32>, vector<16x16xf32>, vector<2x16xf32> -> vector<2x16xf32>
    %66 = arith.addf %64, %65 : vector<2x16xf32>
    %67 = arith.negf %66 : vector<2x16xf32>
    %68 = math.exp %67 : vector<2x16xf32>
    %cst_73 = arith.constant 1.000000e+00 : f32
    %69 = vector.broadcast %cst_73 : f32 to vector<2x16xf32>
    %70 = arith.addf %69, %68 : vector<2x16xf32>
    %71 = arith.divf %69, %70 : vector<2x16xf32>
    %c0_74 = arith.constant 0 : index
    %c0_75 = arith.constant 0 : index
    %72 = vector.load %arg18[%c0_74, %c0_75] : memref<26x16xf32, #tpu.memory_space<vmem>>, vector<2x16xf32>
    %cst_76 = arith.constant dense<0.000000e+00> : vector<2x16xf32>
    %73 = tpu.matmul %63, %59, %cst_76 {dimension_numbers = #tpu.dot_dimension_numbers<[1], [0], [0], [1], [0, 0, 1, 1], [], []>} : vector<2x16xf32>, vector<16x16xf32>, vector<2x16xf32> -> vector<2x16xf32>
    %74 = arith.addf %72, %73 : vector<2x16xf32>
    %75 = arith.negf %74 : vector<2x16xf32>
    %76 = math.exp %75 : vector<2x16xf32>
    %cst_77 = arith.constant 1.000000e+00 : f32
    %77 = vector.broadcast %cst_77 : f32 to vector<2x16xf32>
    %78 = arith.addf %77, %76 : vector<2x16xf32>
    %79 = arith.divf %77, %78 : vector<2x16xf32>
    %c0_78 = arith.constant 0 : index
    %c0_79 = arith.constant 0 : index
    %80 = vector.load %arg19[%c0_78, %c0_79] : memref<26x16xf32, #tpu.memory_space<vmem>>, vector<2x16xf32>
    %cst_80 = arith.constant dense<0.000000e+00> : vector<2x16xf32>
    %81 = tpu.matmul %63, %61, %cst_80 {dimension_numbers = #tpu.dot_dimension_numbers<[1], [0], [0], [1], [0, 0, 1, 1], [], []>} : vector<2x16xf32>, vector<16x16xf32>, vector<2x16xf32> -> vector<2x16xf32>
    %82 = vector.broadcast %62 : vector<1x16xf32> to vector<2x16xf32>
    %83 = arith.addf %81, %82 : vector<2x16xf32>
    %84 = arith.mulf %71, %83 : vector<2x16xf32>
    %85 = arith.addf %80, %84 : vector<2x16xf32>
    %86 = math.tanh %85 : vector<2x16xf32>
    %cst_81 = arith.constant 1.000000e+00 : f32
    %87 = vector.broadcast %cst_81 : f32 to vector<2x16xf32>
    %88 = arith.subf %87, %79 : vector<2x16xf32>
    %89 = arith.mulf %88, %86 : vector<2x16xf32>
    %90 = arith.mulf %79, %63 : vector<2x16xf32>
    %91 = arith.addf %89, %90 : vector<2x16xf32>
    %c2_82 = arith.constant 2 : index
    %c0_83 = arith.constant 0 : index
    %92 = vector.load %arg17[%c2_82, %c0_83] : memref<26x16xf32, #tpu.memory_space<vmem>>, vector<2x16xf32>
    %cst_84 = arith.constant dense<0.000000e+00> : vector<2x16xf32>
    %93 = tpu.matmul %91, %57, %cst_84 {dimension_numbers = #tpu.dot_dimension_numbers<[1], [0], [0], [1], [0, 0, 1, 1], [], []>} : vector<2x16xf32>, vector<16x16xf32>, vector<2x16xf32> -> vector<2x16xf32>
    %94 = arith.addf %92, %93 : vector<2x16xf32>
    %95 = arith.negf %94 : vector<2x16xf32>
    %96 = math.exp %95 : vector<2x16xf32>
    %cst_85 = arith.constant 1.000000e+00 : f32
    %97 = vector.broadcast %cst_85 : f32 to vector<2x16xf32>
    %98 = arith.addf %97, %96 : vector<2x16xf32>
    %99 = arith.divf %97, %98 : vector<2x16xf32>
    %c2_86 = arith.constant 2 : index
    %c0_87 = arith.constant 0 : index
    %100 = vector.load %arg18[%c2_86, %c0_87] : memref<26x16xf32, #tpu.memory_space<vmem>>, vector<2x16xf32>
    %cst_88 = arith.constant dense<0.000000e+00> : vector<2x16xf32>
    %101 = tpu.matmul %91, %59, %cst_88 {dimension_numbers = #tpu.dot_dimension_numbers<[1], [0], [0], [1], [0, 0, 1, 1], [], []>} : vector<2x16xf32>, vector<16x16xf32>, vector<2x16xf32> -> vector<2x16xf32>
    %102 = arith.addf %100, %101 : vector<2x16xf32>
    %103 = arith.negf %102 : vector<2x16xf32>
    %104 = math.exp %103 : vector<2x16xf32>
    %cst_89 = arith.constant 1.000000e+00 : f32
    %105 = vector.broadcast %cst_89 : f32 to vector<2x16xf32>
    %106 = arith.addf %105, %104 : vector<2x16xf32>
    %107 = arith.divf %105, %106 : vector<2x16xf32>
    %c2_90 = arith.constant 2 : index
    %c0_91 = arith.constant 0 : index
    %108 = vector.load %arg19[%c2_90, %c0_91] : memref<26x16xf32, #tpu.memory_space<vmem>>, vector<2x16xf32>
    %cst_92 = arith.constant dense<0.000000e+00> : vector<2x16xf32>
    %109 = tpu.matmul %91, %61, %cst_92 {dimension_numbers = #tpu.dot_dimension_numbers<[1], [0], [0], [1], [0, 0, 1, 1], [], []>} : vector<2x16xf32>, vector<16x16xf32>, vector<2x16xf32> -> vector<2x16xf32>
    %110 = vector.broadcast %62 : vector<1x16xf32> to vector<2x16xf32>
    %111 = arith.addf %109, %110 : vector<2x16xf32>
    %112 = arith.mulf %99, %111 : vector<2x16xf32>
    %113 = arith.addf %108, %112 : vector<2x16xf32>
    %114 = math.tanh %113 : vector<2x16xf32>
    %cst_93 = arith.constant 1.000000e+00 : f32
    %115 = vector.broadcast %cst_93 : f32 to vector<2x16xf32>
    %116 = arith.subf %115, %107 : vector<2x16xf32>
    %117 = arith.mulf %116, %114 : vector<2x16xf32>
    %118 = arith.mulf %107, %91 : vector<2x16xf32>
    %119 = arith.addf %117, %118 : vector<2x16xf32>
    %c4 = arith.constant 4 : index
    %c0_94 = arith.constant 0 : index
    %120 = vector.load %arg17[%c4, %c0_94] : memref<26x16xf32, #tpu.memory_space<vmem>>, vector<2x16xf32>
    %cst_95 = arith.constant dense<0.000000e+00> : vector<2x16xf32>
    %121 = tpu.matmul %119, %57, %cst_95 {dimension_numbers = #tpu.dot_dimension_numbers<[1], [0], [0], [1], [0, 0, 1, 1], [], []>} : vector<2x16xf32>, vector<16x16xf32>, vector<2x16xf32> -> vector<2x16xf32>
    %122 = arith.addf %120, %121 : vector<2x16xf32>
    %123 = arith.negf %122 : vector<2x16xf32>
    %124 = math.exp %123 : vector<2x16xf32>
    %cst_96 = arith.constant 1.000000e+00 : f32
    %125 = vector.broadcast %cst_96 : f32 to vector<2x16xf32>
    %126 = arith.addf %125, %124 : vector<2x16xf32>
    %127 = arith.divf %125, %126 : vector<2x16xf32>
    %c4_97 = arith.constant 4 : index
    %c0_98 = arith.constant 0 : index
    %128 = vector.load %arg18[%c4_97, %c0_98] : memref<26x16xf32, #tpu.memory_space<vmem>>, vector<2x16xf32>
    %cst_99 = arith.constant dense<0.000000e+00> : vector<2x16xf32>
    %129 = tpu.matmul %119, %59, %cst_99 {dimension_numbers = #tpu.dot_dimension_numbers<[1], [0], [0], [1], [0, 0, 1, 1], [], []>} : vector<2x16xf32>, vector<16x16xf32>, vector<2x16xf32> -> vector<2x16xf32>
    %130 = arith.addf %128, %129 : vector<2x16xf32>
    %131 = arith.negf %130 : vector<2x16xf32>
    %132 = math.exp %131 : vector<2x16xf32>
    %cst_100 = arith.constant 1.000000e+00 : f32
    %133 = vector.broadcast %cst_100 : f32 to vector<2x16xf32>
    %134 = arith.addf %133, %132 : vector<2x16xf32>
    %135 = arith.divf %133, %134 : vector<2x16xf32>
    %c4_101 = arith.constant 4 : index
    %c0_102 = arith.constant 0 : index
    %136 = vector.load %arg19[%c4_101, %c0_102] : memref<26x16xf32, #tpu.memory_space<vmem>>, vector<2x16xf32>
    %cst_103 = arith.constant dense<0.000000e+00> : vector<2x16xf32>
    %137 = tpu.matmul %119, %61, %cst_103 {dimension_numbers = #tpu.dot_dimension_numbers<[1], [0], [0], [1], [0, 0, 1, 1], [], []>} : vector<2x16xf32>, vector<16x16xf32>, vector<2x16xf32> -> vector<2x16xf32>
    %138 = vector.broadcast %62 : vector<1x16xf32> to vector<2x16xf32>
    %139 = arith.addf %137, %138 : vector<2x16xf32>
    %140 = arith.mulf %127, %139 : vector<2x16xf32>
    %141 = arith.addf %136, %140 : vector<2x16xf32>
    %142 = math.tanh %141 : vector<2x16xf32>
    %cst_104 = arith.constant 1.000000e+00 : f32
    %143 = vector.broadcast %cst_104 : f32 to vector<2x16xf32>
    %144 = arith.subf %143, %135 : vector<2x16xf32>
    %145 = arith.mulf %144, %142 : vector<2x16xf32>
    %146 = arith.mulf %135, %119 : vector<2x16xf32>
    %147 = arith.addf %145, %146 : vector<2x16xf32>
    %c6 = arith.constant 6 : index
    %c0_105 = arith.constant 0 : index
    %148 = vector.load %arg17[%c6, %c0_105] : memref<26x16xf32, #tpu.memory_space<vmem>>, vector<2x16xf32>
    %cst_106 = arith.constant dense<0.000000e+00> : vector<2x16xf32>
    %149 = tpu.matmul %147, %57, %cst_106 {dimension_numbers = #tpu.dot_dimension_numbers<[1], [0], [0], [1], [0, 0, 1, 1], [], []>} : vector<2x16xf32>, vector<16x16xf32>, vector<2x16xf32> -> vector<2x16xf32>
    %150 = arith.addf %148, %149 : vector<2x16xf32>
    %151 = arith.negf %150 : vector<2x16xf32>
    %152 = math.exp %151 : vector<2x16xf32>
    %cst_107 = arith.constant 1.000000e+00 : f32
    %153 = vector.broadcast %cst_107 : f32 to vector<2x16xf32>
    %154 = arith.addf %153, %152 : vector<2x16xf32>
    %155 = arith.divf %153, %154 : vector<2x16xf32>
    %c6_108 = arith.constant 6 : index
    %c0_109 = arith.constant 0 : index
    %156 = vector.load %arg18[%c6_108, %c0_109] : memref<26x16xf32, #tpu.memory_space<vmem>>, vector<2x16xf32>
    %cst_110 = arith.constant dense<0.000000e+00> : vector<2x16xf32>
    %157 = tpu.matmul %147, %59, %cst_110 {dimension_numbers = #tpu.dot_dimension_numbers<[1], [0], [0], [1], [0, 0, 1, 1], [], []>} : vector<2x16xf32>, vector<16x16xf32>, vector<2x16xf32> -> vector<2x16xf32>
    %158 = arith.addf %156, %157 : vector<2x16xf32>
    %159 = arith.negf %158 : vector<2x16xf32>
    %160 = math.exp %159 : vector<2x16xf32>
    %cst_111 = arith.constant 1.000000e+00 : f32
    %161 = vector.broadcast %cst_111 : f32 to vector<2x16xf32>
    %162 = arith.addf %161, %160 : vector<2x16xf32>
    %163 = arith.divf %161, %162 : vector<2x16xf32>
    %c6_112 = arith.constant 6 : index
    %c0_113 = arith.constant 0 : index
    %164 = vector.load %arg19[%c6_112, %c0_113] : memref<26x16xf32, #tpu.memory_space<vmem>>, vector<2x16xf32>
    %cst_114 = arith.constant dense<0.000000e+00> : vector<2x16xf32>
    %165 = tpu.matmul %147, %61, %cst_114 {dimension_numbers = #tpu.dot_dimension_numbers<[1], [0], [0], [1], [0, 0, 1, 1], [], []>} : vector<2x16xf32>, vector<16x16xf32>, vector<2x16xf32> -> vector<2x16xf32>
    %166 = vector.broadcast %62 : vector<1x16xf32> to vector<2x16xf32>
    %167 = arith.addf %165, %166 : vector<2x16xf32>
    %168 = arith.mulf %155, %167 : vector<2x16xf32>
    %169 = arith.addf %164, %168 : vector<2x16xf32>
    %170 = math.tanh %169 : vector<2x16xf32>
    %cst_115 = arith.constant 1.000000e+00 : f32
    %171 = vector.broadcast %cst_115 : f32 to vector<2x16xf32>
    %172 = arith.subf %171, %163 : vector<2x16xf32>
    %173 = arith.mulf %172, %170 : vector<2x16xf32>
    %174 = arith.mulf %163, %147 : vector<2x16xf32>
    %175 = arith.addf %173, %174 : vector<2x16xf32>
    %c8 = arith.constant 8 : index
    %c0_116 = arith.constant 0 : index
    %176 = vector.load %arg17[%c8, %c0_116] : memref<26x16xf32, #tpu.memory_space<vmem>>, vector<2x16xf32>
    %cst_117 = arith.constant dense<0.000000e+00> : vector<2x16xf32>
    %177 = tpu.matmul %175, %57, %cst_117 {dimension_numbers = #tpu.dot_dimension_numbers<[1], [0], [0], [1], [0, 0, 1, 1], [], []>} : vector<2x16xf32>, vector<16x16xf32>, vector<2x16xf32> -> vector<2x16xf32>
    %178 = arith.addf %176, %177 : vector<2x16xf32>
    %179 = arith.negf %178 : vector<2x16xf32>
    %180 = math.exp %179 : vector<2x16xf32>
    %cst_118 = arith.constant 1.000000e+00 : f32
    %181 = vector.broadcast %cst_118 : f32 to vector<2x16xf32>
    %182 = arith.addf %181, %180 : vector<2x16xf32>
    %183 = arith.divf %181, %182 : vector<2x16xf32>
    %c8_119 = arith.constant 8 : index
    %c0_120 = arith.constant 0 : index
    %184 = vector.load %arg18[%c8_119, %c0_120] : memref<26x16xf32, #tpu.memory_space<vmem>>, vector<2x16xf32>
    %cst_121 = arith.constant dense<0.000000e+00> : vector<2x16xf32>
    %185 = tpu.matmul %175, %59, %cst_121 {dimension_numbers = #tpu.dot_dimension_numbers<[1], [0], [0], [1], [0, 0, 1, 1], [], []>} : vector<2x16xf32>, vector<16x16xf32>, vector<2x16xf32> -> vector<2x16xf32>
    %186 = arith.addf %184, %185 : vector<2x16xf32>
    %187 = arith.negf %186 : vector<2x16xf32>
    %188 = math.exp %187 : vector<2x16xf32>
    %cst_122 = arith.constant 1.000000e+00 : f32
    %189 = vector.broadcast %cst_122 : f32 to vector<2x16xf32>
    %190 = arith.addf %189, %188 : vector<2x16xf32>
    %191 = arith.divf %189, %190 : vector<2x16xf32>
    %c8_123 = arith.constant 8 : index
    %c0_124 = arith.constant 0 : index
    %192 = vector.load %arg19[%c8_123, %c0_124] : memref<26x16xf32, #tpu.memory_space<vmem>>, vector<2x16xf32>
    %cst_125 = arith.constant dense<0.000000e+00> : vector<2x16xf32>
    %193 = tpu.matmul %175, %61, %cst_125 {dimension_numbers = #tpu.dot_dimension_numbers<[1], [0], [0], [1], [0, 0, 1, 1], [], []>} : vector<2x16xf32>, vector<16x16xf32>, vector<2x16xf32> -> vector<2x16xf32>
    %194 = vector.broadcast %62 : vector<1x16xf32> to vector<2x16xf32>
    %195 = arith.addf %193, %194 : vector<2x16xf32>
    %196 = arith.mulf %183, %195 : vector<2x16xf32>
    %197 = arith.addf %192, %196 : vector<2x16xf32>
    %198 = math.tanh %197 : vector<2x16xf32>
    %cst_126 = arith.constant 1.000000e+00 : f32
    %199 = vector.broadcast %cst_126 : f32 to vector<2x16xf32>
    %200 = arith.subf %199, %191 : vector<2x16xf32>
    %201 = arith.mulf %200, %198 : vector<2x16xf32>
    %202 = arith.mulf %191, %175 : vector<2x16xf32>
    %203 = arith.addf %201, %202 : vector<2x16xf32>
    %c10 = arith.constant 10 : index
    %c0_127 = arith.constant 0 : index
    %204 = vector.load %arg17[%c10, %c0_127] : memref<26x16xf32, #tpu.memory_space<vmem>>, vector<2x16xf32>
    %cst_128 = arith.constant dense<0.000000e+00> : vector<2x16xf32>
    %205 = tpu.matmul %203, %57, %cst_128 {dimension_numbers = #tpu.dot_dimension_numbers<[1], [0], [0], [1], [0, 0, 1, 1], [], []>} : vector<2x16xf32>, vector<16x16xf32>, vector<2x16xf32> -> vector<2x16xf32>
    %206 = arith.addf %204, %205 : vector<2x16xf32>
    %207 = arith.negf %206 : vector<2x16xf32>
    %208 = math.exp %207 : vector<2x16xf32>
    %cst_129 = arith.constant 1.000000e+00 : f32
    %209 = vector.broadcast %cst_129 : f32 to vector<2x16xf32>
    %210 = arith.addf %209, %208 : vector<2x16xf32>
    %211 = arith.divf %209, %210 : vector<2x16xf32>
    %c10_130 = arith.constant 10 : index
    %c0_131 = arith.constant 0 : index
    %212 = vector.load %arg18[%c10_130, %c0_131] : memref<26x16xf32, #tpu.memory_space<vmem>>, vector<2x16xf32>
    %cst_132 = arith.constant dense<0.000000e+00> : vector<2x16xf32>
    %213 = tpu.matmul %203, %59, %cst_132 {dimension_numbers = #tpu.dot_dimension_numbers<[1], [0], [0], [1], [0, 0, 1, 1], [], []>} : vector<2x16xf32>, vector<16x16xf32>, vector<2x16xf32> -> vector<2x16xf32>
    %214 = arith.addf %212, %213 : vector<2x16xf32>
    %215 = arith.negf %214 : vector<2x16xf32>
    %216 = math.exp %215 : vector<2x16xf32>
    %cst_133 = arith.constant 1.000000e+00 : f32
    %217 = vector.broadcast %cst_133 : f32 to vector<2x16xf32>
    %218 = arith.addf %217, %216 : vector<2x16xf32>
    %219 = arith.divf %217, %218 : vector<2x16xf32>
    %c10_134 = arith.constant 10 : index
    %c0_135 = arith.constant 0 : index
    %220 = vector.load %arg19[%c10_134, %c0_135] : memref<26x16xf32, #tpu.memory_space<vmem>>, vector<2x16xf32>
    %cst_136 = arith.constant dense<0.000000e+00> : vector<2x16xf32>
    %221 = tpu.matmul %203, %61, %cst_136 {dimension_numbers = #tpu.dot_dimension_numbers<[1], [0], [0], [1], [0, 0, 1, 1], [], []>} : vector<2x16xf32>, vector<16x16xf32>, vector<2x16xf32> -> vector<2x16xf32>
    %222 = vector.broadcast %62 : vector<1x16xf32> to vector<2x16xf32>
    %223 = arith.addf %221, %222 : vector<2x16xf32>
    %224 = arith.mulf %211, %223 : vector<2x16xf32>
    %225 = arith.addf %220, %224 : vector<2x16xf32>
    %226 = math.tanh %225 : vector<2x16xf32>
    %cst_137 = arith.constant 1.000000e+00 : f32
    %227 = vector.broadcast %cst_137 : f32 to vector<2x16xf32>
    %228 = arith.subf %227, %219 : vector<2x16xf32>
    %229 = arith.mulf %228, %226 : vector<2x16xf32>
    %230 = arith.mulf %219, %203 : vector<2x16xf32>
    %231 = arith.addf %229, %230 : vector<2x16xf32>
    %c12 = arith.constant 12 : index
    %c0_138 = arith.constant 0 : index
    %232 = vector.load %arg17[%c12, %c0_138] : memref<26x16xf32, #tpu.memory_space<vmem>>, vector<2x16xf32>
    %cst_139 = arith.constant dense<0.000000e+00> : vector<2x16xf32>
    %233 = tpu.matmul %231, %57, %cst_139 {dimension_numbers = #tpu.dot_dimension_numbers<[1], [0], [0], [1], [0, 0, 1, 1], [], []>} : vector<2x16xf32>, vector<16x16xf32>, vector<2x16xf32> -> vector<2x16xf32>
    %234 = arith.addf %232, %233 : vector<2x16xf32>
    %235 = arith.negf %234 : vector<2x16xf32>
    %236 = math.exp %235 : vector<2x16xf32>
    %cst_140 = arith.constant 1.000000e+00 : f32
    %237 = vector.broadcast %cst_140 : f32 to vector<2x16xf32>
    %238 = arith.addf %237, %236 : vector<2x16xf32>
    %239 = arith.divf %237, %238 : vector<2x16xf32>
    %c12_141 = arith.constant 12 : index
    %c0_142 = arith.constant 0 : index
    %240 = vector.load %arg18[%c12_141, %c0_142] : memref<26x16xf32, #tpu.memory_space<vmem>>, vector<2x16xf32>
    %cst_143 = arith.constant dense<0.000000e+00> : vector<2x16xf32>
    %241 = tpu.matmul %231, %59, %cst_143 {dimension_numbers = #tpu.dot_dimension_numbers<[1], [0], [0], [1], [0, 0, 1, 1], [], []>} : vector<2x16xf32>, vector<16x16xf32>, vector<2x16xf32> -> vector<2x16xf32>
    %242 = arith.addf %240, %241 : vector<2x16xf32>
    %243 = arith.negf %242 : vector<2x16xf32>
    %244 = math.exp %243 : vector<2x16xf32>
    %cst_144 = arith.constant 1.000000e+00 : f32
    %245 = vector.broadcast %cst_144 : f32 to vector<2x16xf32>
    %246 = arith.addf %245, %244 : vector<2x16xf32>
    %247 = arith.divf %245, %246 : vector<2x16xf32>
    %c12_145 = arith.constant 12 : index
    %c0_146 = arith.constant 0 : index
    %248 = vector.load %arg19[%c12_145, %c0_146] : memref<26x16xf32, #tpu.memory_space<vmem>>, vector<2x16xf32>
    %cst_147 = arith.constant dense<0.000000e+00> : vector<2x16xf32>
    %249 = tpu.matmul %231, %61, %cst_147 {dimension_numbers = #tpu.dot_dimension_numbers<[1], [0], [0], [1], [0, 0, 1, 1], [], []>} : vector<2x16xf32>, vector<16x16xf32>, vector<2x16xf32> -> vector<2x16xf32>
    %250 = vector.broadcast %62 : vector<1x16xf32> to vector<2x16xf32>
    %251 = arith.addf %249, %250 : vector<2x16xf32>
    %252 = arith.mulf %239, %251 : vector<2x16xf32>
    %253 = arith.addf %248, %252 : vector<2x16xf32>
    %254 = math.tanh %253 : vector<2x16xf32>
    %cst_148 = arith.constant 1.000000e+00 : f32
    %255 = vector.broadcast %cst_148 : f32 to vector<2x16xf32>
    %256 = arith.subf %255, %247 : vector<2x16xf32>
    %257 = arith.mulf %256, %254 : vector<2x16xf32>
    %258 = arith.mulf %247, %231 : vector<2x16xf32>
    %259 = arith.addf %257, %258 : vector<2x16xf32>
    %c14 = arith.constant 14 : index
    %c0_149 = arith.constant 0 : index
    %260 = vector.load %arg17[%c14, %c0_149] : memref<26x16xf32, #tpu.memory_space<vmem>>, vector<2x16xf32>
    %cst_150 = arith.constant dense<0.000000e+00> : vector<2x16xf32>
    %261 = tpu.matmul %259, %57, %cst_150 {dimension_numbers = #tpu.dot_dimension_numbers<[1], [0], [0], [1], [0, 0, 1, 1], [], []>} : vector<2x16xf32>, vector<16x16xf32>, vector<2x16xf32> -> vector<2x16xf32>
    %262 = arith.addf %260, %261 : vector<2x16xf32>
    %263 = arith.negf %262 : vector<2x16xf32>
    %264 = math.exp %263 : vector<2x16xf32>
    %cst_151 = arith.constant 1.000000e+00 : f32
    %265 = vector.broadcast %cst_151 : f32 to vector<2x16xf32>
    %266 = arith.addf %265, %264 : vector<2x16xf32>
    %267 = arith.divf %265, %266 : vector<2x16xf32>
    %c14_152 = arith.constant 14 : index
    %c0_153 = arith.constant 0 : index
    %268 = vector.load %arg18[%c14_152, %c0_153] : memref<26x16xf32, #tpu.memory_space<vmem>>, vector<2x16xf32>
    %cst_154 = arith.constant dense<0.000000e+00> : vector<2x16xf32>
    %269 = tpu.matmul %259, %59, %cst_154 {dimension_numbers = #tpu.dot_dimension_numbers<[1], [0], [0], [1], [0, 0, 1, 1], [], []>} : vector<2x16xf32>, vector<16x16xf32>, vector<2x16xf32> -> vector<2x16xf32>
    %270 = arith.addf %268, %269 : vector<2x16xf32>
    %271 = arith.negf %270 : vector<2x16xf32>
    %272 = math.exp %271 : vector<2x16xf32>
    %cst_155 = arith.constant 1.000000e+00 : f32
    %273 = vector.broadcast %cst_155 : f32 to vector<2x16xf32>
    %274 = arith.addf %273, %272 : vector<2x16xf32>
    %275 = arith.divf %273, %274 : vector<2x16xf32>
    %c14_156 = arith.constant 14 : index
    %c0_157 = arith.constant 0 : index
    %276 = vector.load %arg19[%c14_156, %c0_157] : memref<26x16xf32, #tpu.memory_space<vmem>>, vector<2x16xf32>
    %cst_158 = arith.constant dense<0.000000e+00> : vector<2x16xf32>
    %277 = tpu.matmul %259, %61, %cst_158 {dimension_numbers = #tpu.dot_dimension_numbers<[1], [0], [0], [1], [0, 0, 1, 1], [], []>} : vector<2x16xf32>, vector<16x16xf32>, vector<2x16xf32> -> vector<2x16xf32>
    %278 = vector.broadcast %62 : vector<1x16xf32> to vector<2x16xf32>
    %279 = arith.addf %277, %278 : vector<2x16xf32>
    %280 = arith.mulf %267, %279 : vector<2x16xf32>
    %281 = arith.addf %276, %280 : vector<2x16xf32>
    %282 = math.tanh %281 : vector<2x16xf32>
    %cst_159 = arith.constant 1.000000e+00 : f32
    %283 = vector.broadcast %cst_159 : f32 to vector<2x16xf32>
    %284 = arith.subf %283, %275 : vector<2x16xf32>
    %285 = arith.mulf %284, %282 : vector<2x16xf32>
    %286 = arith.mulf %275, %259 : vector<2x16xf32>
    %287 = arith.addf %285, %286 : vector<2x16xf32>
    %c16 = arith.constant 16 : index
    %c0_160 = arith.constant 0 : index
    %288 = vector.load %arg17[%c16, %c0_160] : memref<26x16xf32, #tpu.memory_space<vmem>>, vector<2x16xf32>
    %cst_161 = arith.constant dense<0.000000e+00> : vector<2x16xf32>
    %289 = tpu.matmul %287, %57, %cst_161 {dimension_numbers = #tpu.dot_dimension_numbers<[1], [0], [0], [1], [0, 0, 1, 1], [], []>} : vector<2x16xf32>, vector<16x16xf32>, vector<2x16xf32> -> vector<2x16xf32>
    %290 = arith.addf %288, %289 : vector<2x16xf32>
    %291 = arith.negf %290 : vector<2x16xf32>
    %292 = math.exp %291 : vector<2x16xf32>
    %cst_162 = arith.constant 1.000000e+00 : f32
    %293 = vector.broadcast %cst_162 : f32 to vector<2x16xf32>
    %294 = arith.addf %293, %292 : vector<2x16xf32>
    %295 = arith.divf %293, %294 : vector<2x16xf32>
    %c16_163 = arith.constant 16 : index
    %c0_164 = arith.constant 0 : index
    %296 = vector.load %arg18[%c16_163, %c0_164] : memref<26x16xf32, #tpu.memory_space<vmem>>, vector<2x16xf32>
    %cst_165 = arith.constant dense<0.000000e+00> : vector<2x16xf32>
    %297 = tpu.matmul %287, %59, %cst_165 {dimension_numbers = #tpu.dot_dimension_numbers<[1], [0], [0], [1], [0, 0, 1, 1], [], []>} : vector<2x16xf32>, vector<16x16xf32>, vector<2x16xf32> -> vector<2x16xf32>
    %298 = arith.addf %296, %297 : vector<2x16xf32>
    %299 = arith.negf %298 : vector<2x16xf32>
    %300 = math.exp %299 : vector<2x16xf32>
    %cst_166 = arith.constant 1.000000e+00 : f32
    %301 = vector.broadcast %cst_166 : f32 to vector<2x16xf32>
    %302 = arith.addf %301, %300 : vector<2x16xf32>
    %303 = arith.divf %301, %302 : vector<2x16xf32>
    %c16_167 = arith.constant 16 : index
    %c0_168 = arith.constant 0 : index
    %304 = vector.load %arg19[%c16_167, %c0_168] : memref<26x16xf32, #tpu.memory_space<vmem>>, vector<2x16xf32>
    %cst_169 = arith.constant dense<0.000000e+00> : vector<2x16xf32>
    %305 = tpu.matmul %287, %61, %cst_169 {dimension_numbers = #tpu.dot_dimension_numbers<[1], [0], [0], [1], [0, 0, 1, 1], [], []>} : vector<2x16xf32>, vector<16x16xf32>, vector<2x16xf32> -> vector<2x16xf32>
    %306 = vector.broadcast %62 : vector<1x16xf32> to vector<2x16xf32>
    %307 = arith.addf %305, %306 : vector<2x16xf32>
    %308 = arith.mulf %295, %307 : vector<2x16xf32>
    %309 = arith.addf %304, %308 : vector<2x16xf32>
    %310 = math.tanh %309 : vector<2x16xf32>
    %cst_170 = arith.constant 1.000000e+00 : f32
    %311 = vector.broadcast %cst_170 : f32 to vector<2x16xf32>
    %312 = arith.subf %311, %303 : vector<2x16xf32>
    %313 = arith.mulf %312, %310 : vector<2x16xf32>
    %314 = arith.mulf %303, %287 : vector<2x16xf32>
    %315 = arith.addf %313, %314 : vector<2x16xf32>
    %c18 = arith.constant 18 : index
    %c0_171 = arith.constant 0 : index
    %316 = vector.load %arg17[%c18, %c0_171] : memref<26x16xf32, #tpu.memory_space<vmem>>, vector<2x16xf32>
    %cst_172 = arith.constant dense<0.000000e+00> : vector<2x16xf32>
    %317 = tpu.matmul %315, %57, %cst_172 {dimension_numbers = #tpu.dot_dimension_numbers<[1], [0], [0], [1], [0, 0, 1, 1], [], []>} : vector<2x16xf32>, vector<16x16xf32>, vector<2x16xf32> -> vector<2x16xf32>
    %318 = arith.addf %316, %317 : vector<2x16xf32>
    %319 = arith.negf %318 : vector<2x16xf32>
    %320 = math.exp %319 : vector<2x16xf32>
    %cst_173 = arith.constant 1.000000e+00 : f32
    %321 = vector.broadcast %cst_173 : f32 to vector<2x16xf32>
    %322 = arith.addf %321, %320 : vector<2x16xf32>
    %323 = arith.divf %321, %322 : vector<2x16xf32>
    %c18_174 = arith.constant 18 : index
    %c0_175 = arith.constant 0 : index
    %324 = vector.load %arg18[%c18_174, %c0_175] : memref<26x16xf32, #tpu.memory_space<vmem>>, vector<2x16xf32>
    %cst_176 = arith.constant dense<0.000000e+00> : vector<2x16xf32>
    %325 = tpu.matmul %315, %59, %cst_176 {dimension_numbers = #tpu.dot_dimension_numbers<[1], [0], [0], [1], [0, 0, 1, 1], [], []>} : vector<2x16xf32>, vector<16x16xf32>, vector<2x16xf32> -> vector<2x16xf32>
    %326 = arith.addf %324, %325 : vector<2x16xf32>
    %327 = arith.negf %326 : vector<2x16xf32>
    %328 = math.exp %327 : vector<2x16xf32>
    %cst_177 = arith.constant 1.000000e+00 : f32
    %329 = vector.broadcast %cst_177 : f32 to vector<2x16xf32>
    %330 = arith.addf %329, %328 : vector<2x16xf32>
    %331 = arith.divf %329, %330 : vector<2x16xf32>
    %c18_178 = arith.constant 18 : index
    %c0_179 = arith.constant 0 : index
    %332 = vector.load %arg19[%c18_178, %c0_179] : memref<26x16xf32, #tpu.memory_space<vmem>>, vector<2x16xf32>
    %cst_180 = arith.constant dense<0.000000e+00> : vector<2x16xf32>
    %333 = tpu.matmul %315, %61, %cst_180 {dimension_numbers = #tpu.dot_dimension_numbers<[1], [0], [0], [1], [0, 0, 1, 1], [], []>} : vector<2x16xf32>, vector<16x16xf32>, vector<2x16xf32> -> vector<2x16xf32>
    %334 = vector.broadcast %62 : vector<1x16xf32> to vector<2x16xf32>
    %335 = arith.addf %333, %334 : vector<2x16xf32>
    %336 = arith.mulf %323, %335 : vector<2x16xf32>
    %337 = arith.addf %332, %336 : vector<2x16xf32>
    %338 = math.tanh %337 : vector<2x16xf32>
    %cst_181 = arith.constant 1.000000e+00 : f32
    %339 = vector.broadcast %cst_181 : f32 to vector<2x16xf32>
    %340 = arith.subf %339, %331 : vector<2x16xf32>
    %341 = arith.mulf %340, %338 : vector<2x16xf32>
    %342 = arith.mulf %331, %315 : vector<2x16xf32>
    %343 = arith.addf %341, %342 : vector<2x16xf32>
    %c20 = arith.constant 20 : index
    %c0_182 = arith.constant 0 : index
    %344 = vector.load %arg17[%c20, %c0_182] : memref<26x16xf32, #tpu.memory_space<vmem>>, vector<2x16xf32>
    %cst_183 = arith.constant dense<0.000000e+00> : vector<2x16xf32>
    %345 = tpu.matmul %343, %57, %cst_183 {dimension_numbers = #tpu.dot_dimension_numbers<[1], [0], [0], [1], [0, 0, 1, 1], [], []>} : vector<2x16xf32>, vector<16x16xf32>, vector<2x16xf32> -> vector<2x16xf32>
    %346 = arith.addf %344, %345 : vector<2x16xf32>
    %347 = arith.negf %346 : vector<2x16xf32>
    %348 = math.exp %347 : vector<2x16xf32>
    %cst_184 = arith.constant 1.000000e+00 : f32
    %349 = vector.broadcast %cst_184 : f32 to vector<2x16xf32>
    %350 = arith.addf %349, %348 : vector<2x16xf32>
    %351 = arith.divf %349, %350 : vector<2x16xf32>
    %c20_185 = arith.constant 20 : index
    %c0_186 = arith.constant 0 : index
    %352 = vector.load %arg18[%c20_185, %c0_186] : memref<26x16xf32, #tpu.memory_space<vmem>>, vector<2x16xf32>
    %cst_187 = arith.constant dense<0.000000e+00> : vector<2x16xf32>
    %353 = tpu.matmul %343, %59, %cst_187 {dimension_numbers = #tpu.dot_dimension_numbers<[1], [0], [0], [1], [0, 0, 1, 1], [], []>} : vector<2x16xf32>, vector<16x16xf32>, vector<2x16xf32> -> vector<2x16xf32>
    %354 = arith.addf %352, %353 : vector<2x16xf32>
    %355 = arith.negf %354 : vector<2x16xf32>
    %356 = math.exp %355 : vector<2x16xf32>
    %cst_188 = arith.constant 1.000000e+00 : f32
    %357 = vector.broadcast %cst_188 : f32 to vector<2x16xf32>
    %358 = arith.addf %357, %356 : vector<2x16xf32>
    %359 = arith.divf %357, %358 : vector<2x16xf32>
    %c20_189 = arith.constant 20 : index
    %c0_190 = arith.constant 0 : index
    %360 = vector.load %arg19[%c20_189, %c0_190] : memref<26x16xf32, #tpu.memory_space<vmem>>, vector<2x16xf32>
    %cst_191 = arith.constant dense<0.000000e+00> : vector<2x16xf32>
    %361 = tpu.matmul %343, %61, %cst_191 {dimension_numbers = #tpu.dot_dimension_numbers<[1], [0], [0], [1], [0, 0, 1, 1], [], []>} : vector<2x16xf32>, vector<16x16xf32>, vector<2x16xf32> -> vector<2x16xf32>
    %362 = vector.broadcast %62 : vector<1x16xf32> to vector<2x16xf32>
    %363 = arith.addf %361, %362 : vector<2x16xf32>
    %364 = arith.mulf %351, %363 : vector<2x16xf32>
    %365 = arith.addf %360, %364 : vector<2x16xf32>
    %366 = math.tanh %365 : vector<2x16xf32>
    %cst_192 = arith.constant 1.000000e+00 : f32
    %367 = vector.broadcast %cst_192 : f32 to vector<2x16xf32>
    %368 = arith.subf %367, %359 : vector<2x16xf32>
    %369 = arith.mulf %368, %366 : vector<2x16xf32>
    %370 = arith.mulf %359, %343 : vector<2x16xf32>
    %371 = arith.addf %369, %370 : vector<2x16xf32>
    %c22 = arith.constant 22 : index
    %c0_193 = arith.constant 0 : index
    %372 = vector.load %arg17[%c22, %c0_193] : memref<26x16xf32, #tpu.memory_space<vmem>>, vector<2x16xf32>
    %cst_194 = arith.constant dense<0.000000e+00> : vector<2x16xf32>
    %373 = tpu.matmul %371, %57, %cst_194 {dimension_numbers = #tpu.dot_dimension_numbers<[1], [0], [0], [1], [0, 0, 1, 1], [], []>} : vector<2x16xf32>, vector<16x16xf32>, vector<2x16xf32> -> vector<2x16xf32>
    %374 = arith.addf %372, %373 : vector<2x16xf32>
    %375 = arith.negf %374 : vector<2x16xf32>
    %376 = math.exp %375 : vector<2x16xf32>
    %cst_195 = arith.constant 1.000000e+00 : f32
    %377 = vector.broadcast %cst_195 : f32 to vector<2x16xf32>
    %378 = arith.addf %377, %376 : vector<2x16xf32>
    %379 = arith.divf %377, %378 : vector<2x16xf32>
    %c22_196 = arith.constant 22 : index
    %c0_197 = arith.constant 0 : index
    %380 = vector.load %arg18[%c22_196, %c0_197] : memref<26x16xf32, #tpu.memory_space<vmem>>, vector<2x16xf32>
    %cst_198 = arith.constant dense<0.000000e+00> : vector<2x16xf32>
    %381 = tpu.matmul %371, %59, %cst_198 {dimension_numbers = #tpu.dot_dimension_numbers<[1], [0], [0], [1], [0, 0, 1, 1], [], []>} : vector<2x16xf32>, vector<16x16xf32>, vector<2x16xf32> -> vector<2x16xf32>
    %382 = arith.addf %380, %381 : vector<2x16xf32>
    %383 = arith.negf %382 : vector<2x16xf32>
    %384 = math.exp %383 : vector<2x16xf32>
    %cst_199 = arith.constant 1.000000e+00 : f32
    %385 = vector.broadcast %cst_199 : f32 to vector<2x16xf32>
    %386 = arith.addf %385, %384 : vector<2x16xf32>
    %387 = arith.divf %385, %386 : vector<2x16xf32>
    %c22_200 = arith.constant 22 : index
    %c0_201 = arith.constant 0 : index
    %388 = vector.load %arg19[%c22_200, %c0_201] : memref<26x16xf32, #tpu.memory_space<vmem>>, vector<2x16xf32>
    %cst_202 = arith.constant dense<0.000000e+00> : vector<2x16xf32>
    %389 = tpu.matmul %371, %61, %cst_202 {dimension_numbers = #tpu.dot_dimension_numbers<[1], [0], [0], [1], [0, 0, 1, 1], [], []>} : vector<2x16xf32>, vector<16x16xf32>, vector<2x16xf32> -> vector<2x16xf32>
    %390 = vector.broadcast %62 : vector<1x16xf32> to vector<2x16xf32>
    %391 = arith.addf %389, %390 : vector<2x16xf32>
    %392 = arith.mulf %379, %391 : vector<2x16xf32>
    %393 = arith.addf %388, %392 : vector<2x16xf32>
    %394 = math.tanh %393 : vector<2x16xf32>
    %cst_203 = arith.constant 1.000000e+00 : f32
    %395 = vector.broadcast %cst_203 : f32 to vector<2x16xf32>
    %396 = arith.subf %395, %387 : vector<2x16xf32>
    %397 = arith.mulf %396, %394 : vector<2x16xf32>
    %398 = arith.mulf %387, %371 : vector<2x16xf32>
    %399 = arith.addf %397, %398 : vector<2x16xf32>
    %c24 = arith.constant 24 : index
    %c0_204 = arith.constant 0 : index
    %400 = vector.load %arg17[%c24, %c0_204] : memref<26x16xf32, #tpu.memory_space<vmem>>, vector<2x16xf32>
    %cst_205 = arith.constant dense<0.000000e+00> : vector<2x16xf32>
    %401 = tpu.matmul %399, %57, %cst_205 {dimension_numbers = #tpu.dot_dimension_numbers<[1], [0], [0], [1], [0, 0, 1, 1], [], []>} : vector<2x16xf32>, vector<16x16xf32>, vector<2x16xf32> -> vector<2x16xf32>
    %402 = arith.addf %400, %401 : vector<2x16xf32>
    %403 = arith.negf %402 : vector<2x16xf32>
    %404 = math.exp %403 : vector<2x16xf32>
    %cst_206 = arith.constant 1.000000e+00 : f32
    %405 = vector.broadcast %cst_206 : f32 to vector<2x16xf32>
    %406 = arith.addf %405, %404 : vector<2x16xf32>
    %407 = arith.divf %405, %406 : vector<2x16xf32>
    %c24_207 = arith.constant 24 : index
    %c0_208 = arith.constant 0 : index
    %408 = vector.load %arg18[%c24_207, %c0_208] : memref<26x16xf32, #tpu.memory_space<vmem>>, vector<2x16xf32>
    %cst_209 = arith.constant dense<0.000000e+00> : vector<2x16xf32>
    %409 = tpu.matmul %399, %59, %cst_209 {dimension_numbers = #tpu.dot_dimension_numbers<[1], [0], [0], [1], [0, 0, 1, 1], [], []>} : vector<2x16xf32>, vector<16x16xf32>, vector<2x16xf32> -> vector<2x16xf32>
    %410 = arith.addf %408, %409 : vector<2x16xf32>
    %411 = arith.negf %410 : vector<2x16xf32>
    %412 = math.exp %411 : vector<2x16xf32>
    %cst_210 = arith.constant 1.000000e+00 : f32
    %413 = vector.broadcast %cst_210 : f32 to vector<2x16xf32>
    %414 = arith.addf %413, %412 : vector<2x16xf32>
    %415 = arith.divf %413, %414 : vector<2x16xf32>
    %c24_211 = arith.constant 24 : index
    %c0_212 = arith.constant 0 : index
    %416 = vector.load %arg19[%c24_211, %c0_212] : memref<26x16xf32, #tpu.memory_space<vmem>>, vector<2x16xf32>
    %cst_213 = arith.constant dense<0.000000e+00> : vector<2x16xf32>
    %417 = tpu.matmul %399, %61, %cst_213 {dimension_numbers = #tpu.dot_dimension_numbers<[1], [0], [0], [1], [0, 0, 1, 1], [], []>} : vector<2x16xf32>, vector<16x16xf32>, vector<2x16xf32> -> vector<2x16xf32>
    %418 = vector.broadcast %62 : vector<1x16xf32> to vector<2x16xf32>
    %419 = arith.addf %417, %418 : vector<2x16xf32>
    %420 = arith.mulf %407, %419 : vector<2x16xf32>
    %421 = arith.addf %416, %420 : vector<2x16xf32>
    %422 = math.tanh %421 : vector<2x16xf32>
    %cst_214 = arith.constant 1.000000e+00 : f32
    %423 = vector.broadcast %cst_214 : f32 to vector<2x16xf32>
    %424 = arith.subf %423, %415 : vector<2x16xf32>
    %425 = arith.mulf %424, %422 : vector<2x16xf32>
    %426 = arith.mulf %415, %399 : vector<2x16xf32>
    %427 = arith.addf %425, %426 : vector<2x16xf32>
    %c0_215 = arith.constant 0 : index
    %c0_216 = arith.constant 0 : index
    %c0_217 = arith.constant 0 : index
    %428 = vector.load %arg9[%c0_215, %c0_216, %c0_217] : memref<3x8x8xf32, #tpu.memory_space<vmem>>, vector<1x8x8xf32>
    %429 = vector.shape_cast %428 : vector<1x8x8xf32> to vector<8x8xf32>
    %c1_218 = arith.constant 1 : index
    %c0_219 = arith.constant 0 : index
    %c0_220 = arith.constant 0 : index
    %430 = vector.load %arg9[%c1_218, %c0_219, %c0_220] : memref<3x8x8xf32, #tpu.memory_space<vmem>>, vector<1x8x8xf32>
    %431 = vector.shape_cast %430 : vector<1x8x8xf32> to vector<8x8xf32>
    %c2_221 = arith.constant 2 : index
    %c0_222 = arith.constant 0 : index
    %c0_223 = arith.constant 0 : index
    %432 = vector.load %arg9[%c2_221, %c0_222, %c0_223] : memref<3x8x8xf32, #tpu.memory_space<vmem>>, vector<1x8x8xf32>
    %433 = vector.shape_cast %432 : vector<1x8x8xf32> to vector<8x8xf32>
    %c0_224 = arith.constant 0 : index
    %c0_225 = arith.constant 0 : index
    %434 = vector.load %arg11[%c0_224, %c0_225] : memref<1x8xf32, #tpu.memory_space<vmem>>, vector<1x8xf32>
    %cst_226 = arith.constant 0.000000e+00 : f32
    %435 = vector.broadcast %cst_226 : f32 to vector<6x8xf32>
    %c2_227 = arith.constant 2 : index
    %c0_228 = arith.constant 0 : index
    %436 = vector.load %arg20[%c2_227, %c0_228] : memref<26x8xf32, #tpu.memory_space<vmem>>, vector<6x8xf32>
    %cst_229 = arith.constant dense<0.000000e+00> : vector<6x8xf32>
    %437 = tpu.matmul %435, %429, %cst_229 {dimension_numbers = #tpu.dot_dimension_numbers<[1], [0], [0], [1], [0, 0, 1, 1], [], []>} : vector<6x8xf32>, vector<8x8xf32>, vector<6x8xf32> -> vector<6x8xf32>
    %438 = arith.addf %436, %437 : vector<6x8xf32>
    %439 = arith.negf %438 : vector<6x8xf32>
    %440 = math.exp %439 : vector<6x8xf32>
    %cst_230 = arith.constant 1.000000e+00 : f32
    %441 = vector.broadcast %cst_230 : f32 to vector<6x8xf32>
    %442 = arith.addf %441, %440 : vector<6x8xf32>
    %443 = arith.divf %441, %442 : vector<6x8xf32>
    %c2_231 = arith.constant 2 : index
    %c0_232 = arith.constant 0 : index
    %444 = vector.load %arg21[%c2_231, %c0_232] : memref<26x8xf32, #tpu.memory_space<vmem>>, vector<6x8xf32>
    %cst_233 = arith.constant dense<0.000000e+00> : vector<6x8xf32>
    %445 = tpu.matmul %435, %431, %cst_233 {dimension_numbers = #tpu.dot_dimension_numbers<[1], [0], [0], [1], [0, 0, 1, 1], [], []>} : vector<6x8xf32>, vector<8x8xf32>, vector<6x8xf32> -> vector<6x8xf32>
    %446 = arith.addf %444, %445 : vector<6x8xf32>
    %447 = arith.negf %446 : vector<6x8xf32>
    %448 = math.exp %447 : vector<6x8xf32>
    %cst_234 = arith.constant 1.000000e+00 : f32
    %449 = vector.broadcast %cst_234 : f32 to vector<6x8xf32>
    %450 = arith.addf %449, %448 : vector<6x8xf32>
    %451 = arith.divf %449, %450 : vector<6x8xf32>
    %c2_235 = arith.constant 2 : index
    %c0_236 = arith.constant 0 : index
    %452 = vector.load %arg22[%c2_235, %c0_236] : memref<26x8xf32, #tpu.memory_space<vmem>>, vector<6x8xf32>
    %cst_237 = arith.constant dense<0.000000e+00> : vector<6x8xf32>
    %453 = tpu.matmul %435, %433, %cst_237 {dimension_numbers = #tpu.dot_dimension_numbers<[1], [0], [0], [1], [0, 0, 1, 1], [], []>} : vector<6x8xf32>, vector<8x8xf32>, vector<6x8xf32> -> vector<6x8xf32>
    %454 = vector.broadcast %434 : vector<1x8xf32> to vector<6x8xf32>
    %455 = arith.addf %453, %454 : vector<6x8xf32>
    %456 = arith.mulf %443, %455 : vector<6x8xf32>
    %457 = arith.addf %452, %456 : vector<6x8xf32>
    %458 = math.tanh %457 : vector<6x8xf32>
    %cst_238 = arith.constant 1.000000e+00 : f32
    %459 = vector.broadcast %cst_238 : f32 to vector<6x8xf32>
    %460 = arith.subf %459, %451 : vector<6x8xf32>
    %461 = arith.mulf %460, %458 : vector<6x8xf32>
    %462 = arith.mulf %451, %435 : vector<6x8xf32>
    %463 = arith.addf %461, %462 : vector<6x8xf32>
    %c8_239 = arith.constant 8 : index
    %c0_240 = arith.constant 0 : index
    %464 = vector.load %arg20[%c8_239, %c0_240] : memref<26x8xf32, #tpu.memory_space<vmem>>, vector<6x8xf32>
    %cst_241 = arith.constant dense<0.000000e+00> : vector<6x8xf32>
    %465 = tpu.matmul %463, %429, %cst_241 {dimension_numbers = #tpu.dot_dimension_numbers<[1], [0], [0], [1], [0, 0, 1, 1], [], []>} : vector<6x8xf32>, vector<8x8xf32>, vector<6x8xf32> -> vector<6x8xf32>
    %466 = arith.addf %464, %465 : vector<6x8xf32>
    %467 = arith.negf %466 : vector<6x8xf32>
    %468 = math.exp %467 : vector<6x8xf32>
    %cst_242 = arith.constant 1.000000e+00 : f32
    %469 = vector.broadcast %cst_242 : f32 to vector<6x8xf32>
    %470 = arith.addf %469, %468 : vector<6x8xf32>
    %471 = arith.divf %469, %470 : vector<6x8xf32>
    %c8_243 = arith.constant 8 : index
    %c0_244 = arith.constant 0 : index
    %472 = vector.load %arg21[%c8_243, %c0_244] : memref<26x8xf32, #tpu.memory_space<vmem>>, vector<6x8xf32>
    %cst_245 = arith.constant dense<0.000000e+00> : vector<6x8xf32>
    %473 = tpu.matmul %463, %431, %cst_245 {dimension_numbers = #tpu.dot_dimension_numbers<[1], [0], [0], [1], [0, 0, 1, 1], [], []>} : vector<6x8xf32>, vector<8x8xf32>, vector<6x8xf32> -> vector<6x8xf32>
    %474 = arith.addf %472, %473 : vector<6x8xf32>
    %475 = arith.negf %474 : vector<6x8xf32>
    %476 = math.exp %475 : vector<6x8xf32>
    %cst_246 = arith.constant 1.000000e+00 : f32
    %477 = vector.broadcast %cst_246 : f32 to vector<6x8xf32>
    %478 = arith.addf %477, %476 : vector<6x8xf32>
    %479 = arith.divf %477, %478 : vector<6x8xf32>
    %c8_247 = arith.constant 8 : index
    %c0_248 = arith.constant 0 : index
    %480 = vector.load %arg22[%c8_247, %c0_248] : memref<26x8xf32, #tpu.memory_space<vmem>>, vector<6x8xf32>
    %cst_249 = arith.constant dense<0.000000e+00> : vector<6x8xf32>
    %481 = tpu.matmul %463, %433, %cst_249 {dimension_numbers = #tpu.dot_dimension_numbers<[1], [0], [0], [1], [0, 0, 1, 1], [], []>} : vector<6x8xf32>, vector<8x8xf32>, vector<6x8xf32> -> vector<6x8xf32>
    %482 = vector.broadcast %434 : vector<1x8xf32> to vector<6x8xf32>
    %483 = arith.addf %481, %482 : vector<6x8xf32>
    %484 = arith.mulf %471, %483 : vector<6x8xf32>
    %485 = arith.addf %480, %484 : vector<6x8xf32>
    %486 = math.tanh %485 : vector<6x8xf32>
    %cst_250 = arith.constant 1.000000e+00 : f32
    %487 = vector.broadcast %cst_250 : f32 to vector<6x8xf32>
    %488 = arith.subf %487, %479 : vector<6x8xf32>
    %489 = arith.mulf %488, %486 : vector<6x8xf32>
    %490 = arith.mulf %479, %463 : vector<6x8xf32>
    %491 = arith.addf %489, %490 : vector<6x8xf32>
    %c14_251 = arith.constant 14 : index
    %c0_252 = arith.constant 0 : index
    %492 = vector.load %arg20[%c14_251, %c0_252] : memref<26x8xf32, #tpu.memory_space<vmem>>, vector<6x8xf32>
    %cst_253 = arith.constant dense<0.000000e+00> : vector<6x8xf32>
    %493 = tpu.matmul %491, %429, %cst_253 {dimension_numbers = #tpu.dot_dimension_numbers<[1], [0], [0], [1], [0, 0, 1, 1], [], []>} : vector<6x8xf32>, vector<8x8xf32>, vector<6x8xf32> -> vector<6x8xf32>
    %494 = arith.addf %492, %493 : vector<6x8xf32>
    %495 = arith.negf %494 : vector<6x8xf32>
    %496 = math.exp %495 : vector<6x8xf32>
    %cst_254 = arith.constant 1.000000e+00 : f32
    %497 = vector.broadcast %cst_254 : f32 to vector<6x8xf32>
    %498 = arith.addf %497, %496 : vector<6x8xf32>
    %499 = arith.divf %497, %498 : vector<6x8xf32>
    %c14_255 = arith.constant 14 : index
    %c0_256 = arith.constant 0 : index
    %500 = vector.load %arg21[%c14_255, %c0_256] : memref<26x8xf32, #tpu.memory_space<vmem>>, vector<6x8xf32>
    %cst_257 = arith.constant dense<0.000000e+00> : vector<6x8xf32>
    %501 = tpu.matmul %491, %431, %cst_257 {dimension_numbers = #tpu.dot_dimension_numbers<[1], [0], [0], [1], [0, 0, 1, 1], [], []>} : vector<6x8xf32>, vector<8x8xf32>, vector<6x8xf32> -> vector<6x8xf32>
    %502 = arith.addf %500, %501 : vector<6x8xf32>
    %503 = arith.negf %502 : vector<6x8xf32>
    %504 = math.exp %503 : vector<6x8xf32>
    %cst_258 = arith.constant 1.000000e+00 : f32
    %505 = vector.broadcast %cst_258 : f32 to vector<6x8xf32>
    %506 = arith.addf %505, %504 : vector<6x8xf32>
    %507 = arith.divf %505, %506 : vector<6x8xf32>
    %c14_259 = arith.constant 14 : index
    %c0_260 = arith.constant 0 : index
    %508 = vector.load %arg22[%c14_259, %c0_260] : memref<26x8xf32, #tpu.memory_space<vmem>>, vector<6x8xf32>
    %cst_261 = arith.constant dense<0.000000e+00> : vector<6x8xf32>
    %509 = tpu.matmul %491, %433, %cst_261 {dimension_numbers = #tpu.dot_dimension_numbers<[1], [0], [0], [1], [0, 0, 1, 1], [], []>} : vector<6x8xf32>, vector<8x8xf32>, vector<6x8xf32> -> vector<6x8xf32>
    %510 = vector.broadcast %434 : vector<1x8xf32> to vector<6x8xf32>
    %511 = arith.addf %509, %510 : vector<6x8xf32>
    %512 = arith.mulf %499, %511 : vector<6x8xf32>
    %513 = arith.addf %508, %512 : vector<6x8xf32>
    %514 = math.tanh %513 : vector<6x8xf32>
    %cst_262 = arith.constant 1.000000e+00 : f32
    %515 = vector.broadcast %cst_262 : f32 to vector<6x8xf32>
    %516 = arith.subf %515, %507 : vector<6x8xf32>
    %517 = arith.mulf %516, %514 : vector<6x8xf32>
    %518 = arith.mulf %507, %491 : vector<6x8xf32>
    %519 = arith.addf %517, %518 : vector<6x8xf32>
    %c20_263 = arith.constant 20 : index
    %c0_264 = arith.constant 0 : index
    %520 = vector.load %arg20[%c20_263, %c0_264] : memref<26x8xf32, #tpu.memory_space<vmem>>, vector<6x8xf32>
    %cst_265 = arith.constant dense<0.000000e+00> : vector<6x8xf32>
    %521 = tpu.matmul %519, %429, %cst_265 {dimension_numbers = #tpu.dot_dimension_numbers<[1], [0], [0], [1], [0, 0, 1, 1], [], []>} : vector<6x8xf32>, vector<8x8xf32>, vector<6x8xf32> -> vector<6x8xf32>
    %522 = arith.addf %520, %521 : vector<6x8xf32>
    %523 = arith.negf %522 : vector<6x8xf32>
    %524 = math.exp %523 : vector<6x8xf32>
    %cst_266 = arith.constant 1.000000e+00 : f32
    %525 = vector.broadcast %cst_266 : f32 to vector<6x8xf32>
    %526 = arith.addf %525, %524 : vector<6x8xf32>
    %527 = arith.divf %525, %526 : vector<6x8xf32>
    %c20_267 = arith.constant 20 : index
    %c0_268 = arith.constant 0 : index
    %528 = vector.load %arg21[%c20_267, %c0_268] : memref<26x8xf32, #tpu.memory_space<vmem>>, vector<6x8xf32>
    %cst_269 = arith.constant dense<0.000000e+00> : vector<6x8xf32>
    %529 = tpu.matmul %519, %431, %cst_269 {dimension_numbers = #tpu.dot_dimension_numbers<[1], [0], [0], [1], [0, 0, 1, 1], [], []>} : vector<6x8xf32>, vector<8x8xf32>, vector<6x8xf32> -> vector<6x8xf32>
    %530 = arith.addf %528, %529 : vector<6x8xf32>
    %531 = arith.negf %530 : vector<6x8xf32>
    %532 = math.exp %531 : vector<6x8xf32>
    %cst_270 = arith.constant 1.000000e+00 : f32
    %533 = vector.broadcast %cst_270 : f32 to vector<6x8xf32>
    %534 = arith.addf %533, %532 : vector<6x8xf32>
    %535 = arith.divf %533, %534 : vector<6x8xf32>
    %c20_271 = arith.constant 20 : index
    %c0_272 = arith.constant 0 : index
    %536 = vector.load %arg22[%c20_271, %c0_272] : memref<26x8xf32, #tpu.memory_space<vmem>>, vector<6x8xf32>
    %cst_273 = arith.constant dense<0.000000e+00> : vector<6x8xf32>
    %537 = tpu.matmul %519, %433, %cst_273 {dimension_numbers = #tpu.dot_dimension_numbers<[1], [0], [0], [1], [0, 0, 1, 1], [], []>} : vector<6x8xf32>, vector<8x8xf32>, vector<6x8xf32> -> vector<6x8xf32>
    %538 = vector.broadcast %434 : vector<1x8xf32> to vector<6x8xf32>
    %539 = arith.addf %537, %538 : vector<6x8xf32>
    %540 = arith.mulf %527, %539 : vector<6x8xf32>
    %541 = arith.addf %536, %540 : vector<6x8xf32>
    %542 = math.tanh %541 : vector<6x8xf32>
    %cst_274 = arith.constant 1.000000e+00 : f32
    %543 = vector.broadcast %cst_274 : f32 to vector<6x8xf32>
    %544 = arith.subf %543, %535 : vector<6x8xf32>
    %545 = arith.mulf %544, %542 : vector<6x8xf32>
    %546 = arith.mulf %535, %519 : vector<6x8xf32>
    %547 = arith.addf %545, %546 : vector<6x8xf32>
    %c0_275 = arith.constant 0 : index
    %c0_276 = arith.constant 0 : index
    %548 = vector.load %arg23[%c0_275, %c0_276] : memref<6x8xf32, #tpu.memory_space<vmem>>, vector<6x8xf32>
    tpu.vector_store %arg23[%c0_275, %c0_276], %547 {strides = array<i32>} : memref<6x8xf32, #tpu.memory_space<vmem>>, vector<6x8xf32>,
    %c0_277 = arith.constant 0 : index
    %c0_278 = arith.constant 0 : index
    %549 = vector.load %arg12[%c0_277, %c0_278] : memref<40x8xf32, #tpu.memory_space<vmem>>, vector<16x8xf32>
    %cst_279 = arith.constant dense<0.000000e+00> : vector<2x8xf32>
    %550 = tpu.matmul %427, %549, %cst_279 {dimension_numbers = #tpu.dot_dimension_numbers<[1], [0], [0], [1], [0, 0, 1, 1], [], []>} : vector<2x16xf32>, vector<16x8xf32>, vector<2x8xf32> -> vector<2x8xf32>
    %c0_280 = arith.constant 0 : index
    %c0_281 = arith.constant 0 : index
    %551 = vector.load %arg13[%c0_280, %c0_281] : memref<1x8xf32, #tpu.memory_space<vmem>>, vector<1x8xf32>
    %552 = vector.broadcast %551 : vector<1x8xf32> to vector<2x8xf32>
    %553 = arith.addf %550, %552 : vector<2x8xf32>
    %c0_282 = arith.constant 0 : index
    %c0_283 = arith.constant 0 : index
    %554 = vector.load %arg23[%c0_282, %c0_283] : memref<6x8xf32, #tpu.memory_space<vmem>>, vector<2x8xf32>
    %c16_284 = arith.constant 16 : index
    %c0_285 = arith.constant 0 : index
    %555 = vector.load %arg12[%c16_284, %c0_285] : memref<40x8xf32, #tpu.memory_space<vmem>>, vector<8x8xf32>
    %cst_286 = arith.constant dense<0.000000e+00> : vector<2x8xf32>
    %556 = tpu.matmul %554, %555, %cst_286 {dimension_numbers = #tpu.dot_dimension_numbers<[1], [0], [0], [1], [0, 0, 1, 1], [], []>} : vector<2x8xf32>, vector<8x8xf32>, vector<2x8xf32> -> vector<2x8xf32>
    %557 = arith.addf %553, %556 : vector<2x8xf32>
    %c2_287 = arith.constant 2 : index
    %c0_288 = arith.constant 0 : index
    %558 = vector.load %arg23[%c2_287, %c0_288] : memref<6x8xf32, #tpu.memory_space<vmem>>, vector<2x8xf32>
    %c24_289 = arith.constant 24 : index
    %c0_290 = arith.constant 0 : index
    %559 = vector.load %arg12[%c24_289, %c0_290] : memref<40x8xf32, #tpu.memory_space<vmem>>, vector<8x8xf32>
    %cst_291 = arith.constant dense<0.000000e+00> : vector<2x8xf32>
    %560 = tpu.matmul %558, %559, %cst_291 {dimension_numbers = #tpu.dot_dimension_numbers<[1], [0], [0], [1], [0, 0, 1, 1], [], []>} : vector<2x8xf32>, vector<8x8xf32>, vector<2x8xf32> -> vector<2x8xf32>
    %561 = arith.addf %557, %560 : vector<2x8xf32>
    %c4_292 = arith.constant 4 : index
    %c0_293 = arith.constant 0 : index
    %562 = vector.load %arg23[%c4_292, %c0_293] : memref<6x8xf32, #tpu.memory_space<vmem>>, vector<2x8xf32>
    %c32 = arith.constant 32 : index
    %c0_294 = arith.constant 0 : index
    %563 = vector.load %arg12[%c32, %c0_294] : memref<40x8xf32, #tpu.memory_space<vmem>>, vector<8x8xf32>
    %cst_295 = arith.constant dense<0.000000e+00> : vector<2x8xf32>
    %564 = tpu.matmul %562, %563, %cst_295 {dimension_numbers = #tpu.dot_dimension_numbers<[1], [0], [0], [1], [0, 0, 1, 1], [], []>} : vector<2x8xf32>, vector<8x8xf32>, vector<2x8xf32> -> vector<2x8xf32>
    %565 = arith.addf %561, %564 : vector<2x8xf32>
    %c0_296 = arith.constant 0 : index
    %c0_297 = arith.constant 0 : index
    %c0_298 = arith.constant 0 : index
    %566 = vector.load %arg1[%c0_296, %c0_297, %c0_298] : memref<2x4x8xf32, #tpu.memory_space<vmem>>, vector<2x4x8xf32>
    %c0_299 = arith.constant 0 : index
    %c0_300 = arith.constant 0 : index
    %c0_301 = arith.constant 0 : index
    %567 = vector.load %arg14[%c0_299, %c0_300, %c0_301] : memref<1x4x1xf32, #tpu.memory_space<vmem>>, vector<1x4x1xf32>
    %568 = vector.broadcast %567 : vector<1x4x1xf32> to vector<2x4x8xf32>
    %569 = arith.mulf %566, %568 : vector<2x4x8xf32>
    %cst_302 = arith.constant dense<0.000000e+00> : vector<2x8xf32>
    %570 = vector.multi_reduction <add>, %569, %cst_302 [1] : vector<2x4x8xf32> to vector<2x8xf32>
    %c0_303 = arith.constant 0 : index
    %c0_304 = arith.constant 0 : index
    %571 = memref.load %arg15[%c0_303, %c0_304] : memref<1x1xf32, #tpu.memory_space<smem>>
    %572 = vector.broadcast %571 : f32 to vector<2x8xf32>
    %573 = arith.addf %570, %572 : vector<2x8xf32>
    %574 = arith.addf %565, %573 : vector<2x8xf32>
    %575 = arith.negf %574 : vector<2x8xf32>
    %576 = math.exp %575 : vector<2x8xf32>
    %cst_305 = arith.constant 1.000000e+00 : f32
    %577 = vector.broadcast %cst_305 : f32 to vector<2x8xf32>
    %578 = arith.addf %577, %576 : vector<2x8xf32>
    %579 = arith.divf %577, %578 : vector<2x8xf32>
    %c0_306 = arith.constant 0 : index
    %c0_307 = arith.constant 0 : index
    %580 = vector.load %arg16[%c0_306, %c0_307] : memref<2x8xf32, #tpu.memory_space<vmem>>, vector<2x8xf32>
    tpu.vector_store %arg16[%c0_306, %c0_307], %579 {strides = array<i32>} : memref<2x8xf32, #tpu.memory_space<vmem>>, vector<2x8xf32>,
    return
  }
}

</mosaic_0001>

<llo_original>
// kernel: lstnet_forward.1
$region0: #{lstnet_forward.1}
  #allocation0 [shape = 'u32[]', space=smem, size = 0x4, offset = 0x4, fixed_abs, tag = 'smem constant byte address 0x4 - core index']
  #allocation1 [shape = 'u32[144,128]{1,0:T(1,128)}', space=vmem, size = 0x12000, scoped, tag = 'internal scratch']
  #allocation2 [shape = 'f32[26,16]{1,0:T(8,128)}', space=vmem, size = 0x4000, scoped, tag = 'scratch operand']
  #allocation3 [shape = 'f32[26,16]{1,0:T(8,128)}', space=vmem, size = 0x4000, scoped, tag = 'scratch operand']
  #allocation4 [shape = 'f32[26,16]{1,0:T(8,128)}', space=vmem, size = 0x4000, scoped, tag = 'scratch operand']
  #allocation5 [shape = 'f32[26,8]{1,0:T(8,128)}', space=vmem, size = 0x4000, scoped, tag = 'scratch operand']
  #allocation6 [shape = 'f32[26,8]{1,0:T(8,128)}', space=vmem, size = 0x4000, scoped, tag = 'scratch operand']
  #allocation7 [shape = 'f32[26,8]{1,0:T(8,128)}', space=vmem, size = 0x4000, scoped, tag = 'scratch operand']
  #allocation8 [shape = 'f32[6,8]{1,0:T(8,128)}', space=vmem, size = 0x1000, scoped, tag = 'scratch operand']
  #allocation9 [shape = 'f32[1,1]{1,0:T(1,128)S(6)}', space=smem, size = 0x200, scoped, tag = 'scoped memory for lstnet_forward.1']
  %s0 = inlined_call_operand.vmem [shape: f32[26,32], index: 0, kind: input, shape index: {}]
  %s1 = inlined_call_operand.vmem [shape: f32[2,4,8], index: 1, kind: input, shape index: {}]
  %s2 = inlined_call_operand.vmem [shape: f32[32,16], index: 2, kind: input, shape index: {}]
  %s3 = inlined_call_operand.vmem [shape: f32[1,16], index: 3, kind: input, shape index: {}]
  %s4 = inlined_call_operand.vmem [shape: f32[3,16,16], index: 4, kind: input, shape index: {}]
  %s5 = inlined_call_operand.vmem [shape: f32[3,16,16], index: 5, kind: input, shape index: {}]
  %s6 = inlined_call_operand.vmem [shape: f32[3,1,16], index: 6, kind: input, shape index: {}]
  %s7 = inlined_call_operand.vmem [shape: f32[1,16], index: 7, kind: input, shape index: {}]
  %s8 = inlined_call_operand.vmem [shape: f32[3,16,8], index: 8, kind: input, shape index: {}]
  %s9 = inlined_call_operand.vmem [shape: f32[3,8,8], index: 9, kind: input, shape index: {}]
  %s10 = inlined_call_operand.vmem [shape: f32[3,1,8], index: 10, kind: input, shape index: {}]
  %s11 = inlined_call_operand.vmem [shape: f32[1,8], index: 11, kind: input, shape index: {}]
  %s12 = inlined_call_operand.vmem [shape: f32[40,8], index: 12, kind: input, shape index: {}]
  %s13 = inlined_call_operand.vmem [shape: f32[1,8], index: 13, kind: input, shape index: {}]
  %s14 = inlined_call_operand.vmem [shape: f32[1,4,1], index: 14, kind: input, shape index: {}]
  %s15 = inlined_call_operand.<no memory space> [shape: f32[1,1], index: 15, kind: input, shape index: {}]
  %s16 = inlined_call_operand.hbm [shape: f32[2,8], index: 16, kind: output, shape index: {}]
  %s17 = sld [smem:[#allocation0]]
  $region74: #{lstnet_forward.1} parent=0
    _
  %s19 = ssub.s32 1, %s17
  %s20 = scalar_select 0, %s19, %s17
  %21 = sst [smem:[#allocation9]] %s15
  $region1: #{lstnet_forward.1} parent=0
    #allocation10 [shape = 'u8[1024]{0}', space=vmem, size = 0x400, scoped, tag = 'output window, operand 0, single buffered']
    #allocation11 [shape = 's32[1]{0}', space=sflag, size = 0x4, scoped, tag = 'scoped memory for lstnet_forward.1']
    %22 = vsyncpa [#allocation11], 0
    // Predicated region
    $region2: #{lstnet_forward.1} parent=1 // pred_check
      _
    $region3: #{lstnet_forward.1} parent=1 // pred_check_branch
      %24 = sbr.rel (0) target = $region5
    $region4: #{lstnet_forward.1} parent=1 // pred_region
      _
    $region5: #{lstnet_forward.1} parent=1 // pred_fallthru
      _
    // Predicated region
    $region6: #{lstnet_forward.1} parent=1 // pred_check
      _
    $region7: #{lstnet_forward.1} parent=1 // pred_check_branch
      %26 = sbr.rel (0) target = $region9
    $region8: #{lstnet_forward.1} parent=1 // pred_region
      _
    $region9: #{lstnet_forward.1} parent=1 // pred_fallthru
      _
    // Predicated region
    $region10: #{lstnet_forward.1} parent=1 // pred_check
      _
    $region11: #{lstnet_forward.1} parent=1 // pred_check_branch
      %28 = sbr.rel (0) target = $region13
    $region12: #{lstnet_forward.1} parent=1 // pred_region
      _
    $region13: #{lstnet_forward.1} parent=1 // pred_fallthru
      _
    // Predicated region
    $region14: #{lstnet_forward.1} parent=1 // pred_check
      _
    $region15: #{lstnet_forward.1} parent=1 // pred_check_branch
      %30 = sbr.rel (0) target = $region17
    $region16: #{lstnet_forward.1} parent=1 // pred_region
      _
    $region17: #{lstnet_forward.1} parent=1 // pred_fallthru
      _
    // Predicated region
    $region18: #{lstnet_forward.1} parent=1 // pred_check
      _
    $region19: #{lstnet_forward.1} parent=1 // pred_check_branch
      %32 = sbr.rel (0) target = $region21
    $region20: #{lstnet_forward.1} parent=1 // pred_region
      _
    $region21: #{lstnet_forward.1} parent=1 // pred_fallthru
      _
    // Predicated region
    $region22: #{lstnet_forward.1} parent=1 // pred_check
      _
    $region23: #{lstnet_forward.1} parent=1 // pred_check_branch
      %34 = sbr.rel (0) target = $region25
    $region24: #{lstnet_forward.1} parent=1 // pred_region
      _
    $region25: #{lstnet_forward.1} parent=1 // pred_fallthru
      _
    // Predicated region
    $region26: #{lstnet_forward.1} parent=1 // pred_check
      _
    $region27: #{lstnet_forward.1} parent=1 // pred_check_branch
      %36 = sbr.rel (0) target = $region29
    $region28: #{lstnet_forward.1} parent=1 // pred_region
      _
    $region29: #{lstnet_forward.1} parent=1 // pred_fallthru
      _
    // Predicated region
    $region30: #{lstnet_forward.1} parent=1 // pred_check
      _
    $region31: #{lstnet_forward.1} parent=1 // pred_check_branch
      %38 = sbr.rel (0) target = $region33
    $region32: #{lstnet_forward.1} parent=1 // pred_region
      _
    $region33: #{lstnet_forward.1} parent=1 // pred_fallthru
      _
    // Predicated region
    $region34: #{lstnet_forward.1} parent=1 // pred_check
      _
    $region35: #{lstnet_forward.1} parent=1 // pred_check_branch
      %40 = sbr.rel (0) target = $region37
    $region36: #{lstnet_forward.1} parent=1 // pred_region
      _
    $region37: #{lstnet_forward.1} parent=1 // pred_fallthru
      _
    // Predicated region
    $region38: #{lstnet_forward.1} parent=1 // pred_check
      _
    $region39: #{lstnet_forward.1} parent=1 // pred_check_branch
      %42 = sbr.rel (0) target = $region41
    $region40: #{lstnet_forward.1} parent=1 // pred_region
      _
    $region41: #{lstnet_forward.1} parent=1 // pred_fallthru
      _
    // Predicated region
    $region42: #{lstnet_forward.1} parent=1 // pred_check
      _
    $region43: #{lstnet_forward.1} parent=1 // pred_check_branch
      %44 = sbr.rel (0) target = $region45
    $region44: #{lstnet_forward.1} parent=1 // pred_region
      _
    $region45: #{lstnet_forward.1} parent=1 // pred_fallthru
      _
    // Predicated region
    $region46: #{lstnet_forward.1} parent=1 // pred_check
      _
    $region47: #{lstnet_forward.1} parent=1 // pred_check_branch
      %46 = sbr.rel (0) target = $region49
    $region48: #{lstnet_forward.1} parent=1 // pred_region
      _
    $region49: #{lstnet_forward.1} parent=1 // pred_fallthru
      _
    // Predicated region
    $region50: #{lstnet_forward.1} parent=1 // pred_check
      _
    $region51: #{lstnet_forward.1} parent=1 // pred_check_branch
      %48 = sbr.rel (0) target = $region53
    $region52: #{lstnet_forward.1} parent=1 // pred_region
      _
    $region53: #{lstnet_forward.1} parent=1 // pred_fallthru
      _
    // Predicated region
    $region54: #{lstnet_forward.1} parent=1 // pred_check
      _
    $region55: #{lstnet_forward.1} parent=1 // pred_check_branch
      %50 = sbr.rel (0) target = $region57
    $region56: #{lstnet_forward.1} parent=1 // pred_region
      _
    $region57: #{lstnet_forward.1} parent=1 // pred_fallthru
      _
    // Predicated region
    $region58: #{lstnet_forward.1} parent=1 // pred_check
      _
    $region59: #{lstnet_forward.1} parent=1 // pred_check_branch
      %52 = sbr.rel (0) target = $region61
    $region60: #{lstnet_forward.1} parent=1 // pred_region
      _
    $region61: #{lstnet_forward.1} parent=1 // pred_fallthru
      _
    // Predicated region
    $region62: #{lstnet_forward.1} parent=1 // pred_check
      _
    $region63: #{lstnet_forward.1} parent=1 // pred_check_branch
      %54 = sbr.rel (0) target = $region65
    $region64: #{lstnet_forward.1} parent=1 // pred_region
      _
    $region65: #{lstnet_forward.1} parent=1 // pred_fallthru
      _
    %v55 = vld [vmem:[%s0] sm:$0xff]
    %v56 = vld [vmem:[%s0 + $0x8] sm:$0xff]
    %v57 = vld [vmem:[%s0 + $0x10] sm:$0xff]
    %v58 = vld [vmem:[%s0 + $0x18] sm:$0x3]
    %v59 = vld [vmem:[%s2] sm:$0xff]
    %v60 = vld [vmem:[%s2 + $0x8] sm:$0xff]
    %v61 = vld [vmem:[%s2 + $0x10] sm:$0xff]
    %v62 = vld [vmem:[%s2 + $0x18] sm:$0xff]
    %v63 = vld [vmem:[%s3] sm:$0x1]
    %v65 = vlaneseq
    %v66 = vshrl.u32 %v65, 7
    %v67 = vsub.s32 0, %v66
    %v68 = vrot.slane %v63, %v67
    %vm70 = vcmask 261120
    %v72 = vsel %vm70, %v55, 0
    %v75 = vsel %vm70, %v56, 0
    %v78 = vsel %vm70, %v57, 0
    %v81 = vsel %vm70, %v58, 0
    %83 = vmatprep.subr.mxu0 0.0
    %84 = vmatpush1.msra.mxu0 0.0
    %85 = vmatprep.subr.mxu0 0.0
    %86 = vmatpush1.msra.mxu0 0.0
    %87 = vmatprep.subr.mxu0 0.0
    %88 = vmatpush1.msra.mxu0 0.0
    %89 = vmatprep.subr.mxu0 0.0
    %90 = vmatpush1.msra.mxu0 0.0
    %91 = vmatprep.subr.mxu0 0.0
    %92 = vmatpush1.msra.mxu0 0.0
    %93 = vmatprep.subr.mxu0 0.0
    %94 = vmatpush1.msra.mxu0 0.0
    %95 = vmatprep.subr.mxu0 0.0
    %96 = vmatpush1.msra.mxu0 0.0
    %97 = vmatprep.subr.mxu0 0.0
    %98 = vmatpush1.msra.mxu0 0.0
    %99 = vmatprep.subr.mxu0 0.0
    %100 = vmatpush1.msra.mxu0 0.0
    %101 = vmatprep.subr.mxu0 0.0
    %102 = vmatpush1.msra.mxu0 0.0
    %103 = vmatprep.subr.mxu0 0.0
    %104 = vmatpush1.msra.mxu0 0.0
    %105 = vmatprep.subr.mxu0 0.0
    %106 = vmatpush1.msra.mxu0 0.0
    %107 = vmatprep.subr.mxu0 0.0
    %108 = vmatpush1.msra.mxu0 %v62
    %109 = vmatprep.subr.mxu0 0.0
    %110 = vmatpush1.msra.mxu0 %v61
    %111 = vmatprep.subr.mxu0 0.0
    %112 = vmatpush1.msra.mxu0 %v60
    %113 = vmatprep.subr.mxu0 0.0
    %114 = vmatpush1.msra.mxu0 %v59
    %115 = vmatprep.subr.mxu0 0.0
    %116 = vmatpush2.msra.mxu0 0.0
    %117 = vmatprep.subr.mxu0 0.0
    %118 = vmatpush2.msra.mxu0 0.0
    %119 = vmatprep.subr.mxu0 0.0
    %120 = vmatpush2.msra.mxu0 0.0
    %121 = vmatprep.subr.mxu0 0.0
    %122 = vmatpush2.msra.mxu0 0.0
    %123 = vmatprep.subr.mxu0 0.0
    %124 = vmatpush2.msra.mxu0 0.0
    %125 = vmatprep.subr.mxu0 0.0
    %126 = vmatpush2.msra.mxu0 0.0
    %127 = vmatprep.subr.mxu0 0.0
    %128 = vmatpush2.msra.mxu0 0.0
    %129 = vmatprep.subr.mxu0 0.0
    %130 = vmatpush2.msra.mxu0 0.0
    %131 = vmatprep.subr.mxu0 0.0
    %132 = vmatpush2.msra.mxu0 0.0
    %133 = vmatprep.subr.mxu0 0.0
    %134 = vmatpush2.msra.mxu0 0.0
    %135 = vmatprep.subr.mxu0 0.0
    %136 = vmatpush2.msra.mxu0 0.0
    %137 = vmatprep.subr.mxu0 0.0
    %138 = vmatpush2.msra.mxu0 0.0
    %139 = vmatprep.subr.mxu0 0.0
    %140 = vmatpush2.msra.mxu0 0.0
    %141 = vmatprep.subr.mxu0 0.0
    %142 = vmatpush2.msra.mxu0 0.0
    %143 = vmatprep.subr.mxu0 0.0
    %144 = vmatpush2.msra.mxu0 0.0
    %145 = vmatprep.subr.mxu0 0.0
    %146 = vmatpush2.msra.mxu0 0.0
    %147 = vmatprep.mubr.f32.mxu0 0.0
    %148 = vmatmul.mubr.f32.gmra.mxu0 %v72
    %v149 = vpop.f32.mrf.mxu0
    %v150 = vadd.f32 %v68, %v149
    %v151 = vpop.f32.mrf.mxu0
    %152 = vmatprep.mubr.f32.mxu0 0.0
    %153 = vmatmul.mubr.f32.gmra.mxu0 %v75
    %v154 = vpop.f32.mrf.mxu0
    %v155 = vadd.f32 %v68, %v154
    %v156 = vpop.f32.mrf.mxu0
    %157 = vmatprep.mubr.f32.mxu0 0.0
    %158 = vmatmul.mubr.f32.gmra.mxu0 %v78
    %v159 = vpop.f32.mrf.mxu0
    %v160 = vadd.f32 %v68, %v159
    %v161 = vpop.f32.mrf.mxu0
    %162 = vmatprep.mubr.f32.mxu0 0.0
    %163 = vmatmul.mubr.f32.gmra.mxu0 %v81
    %v164 = vpop.f32.mrf.mxu0
    %v165 = vadd.f32 %v68, %v164
    %v166 = vpop.f32.mrf.mxu0
    %167 = vdwg.mxu0
    %v168 = vmax.f32 %v150, 0.0
    %v169 = vmax.f32 %v155, 0.0
    %v170 = vmax.f32 %v160, 0.0
    %v171 = vmax.f32 %v165, 0.0
    %v172 = vld [vmem:[%s4] sm:$0xff]
    %v173 = vld [vmem:[%s4 + $0x8] sm:$0xff]
    %v174 = vld [vmem:[%s6] sm:$0x1]
    %v176 = vlaneseq
    %v177 = vshrl.u32 %v176, 7
    %v178 = vsub.s32 0, %v177
    %v179 = vrot.slane %v174, %v178
    %vm181 = vcmask 130048
    %v183 = vsel %vm181, %v168, 0
    %v186 = vsel %vm181, %v169, 0
    %v189 = vsel %vm181, %v170, 0
    %v192 = vsel %vm181, %v171, 0
    %194 = vmatprep.subr.mxu0 0.0
    %195 = vmatpush1.msra.mxu0 0.0
    %196 = vmatprep.subr.mxu0 0.0
    %197 = vmatpush1.msra.mxu0 0.0
    %198 = vmatprep.subr.mxu0 0.0
    %199 = vmatpush1.msra.mxu0 0.0
    %200 = vmatprep.subr.mxu0 0.0
    %201 = vmatpush1.msra.mxu0 0.0
    %202 = vmatprep.subr.mxu0 0.0
    %203 = vmatpush1.msra.mxu0 0.0
    %204 = vmatprep.subr.mxu0 0.0
    %205 = vmatpush1.msra.mxu0 0.0
    %206 = vmatprep.subr.mxu0 0.0
    %207 = vmatpush1.msra.mxu0 0.0
    %208 = vmatprep.subr.mxu0 0.0
    %209 = vmatpush1.msra.mxu0 0.0
    %210 = vmatprep.subr.mxu0 0.0
    %211 = vmatpush1.msra.mxu0 0.0
    %212 = vmatprep.subr.mxu0 0.0
    %213 = vmatpush1.msra.mxu0 0.0
    %214 = vmatprep.subr.mxu0 0.0
    %215 = vmatpush1.msra.mxu0 0.0
    %216 = vmatprep.subr.mxu0 0.0
    %217 = vmatpush1.msra.mxu0 0.0
    %218 = vmatprep.subr.mxu0 0.0
    %219 = vmatpush1.msra.mxu0 0.0
    %220 = vmatprep.subr.mxu0 0.0
    %221 = vmatpush1.msra.mxu0 0.0
    %222 = vmatprep.subr.mxu0 0.0
    %223 = vmatpush1.msra.mxu0 %v173
    %224 = vmatprep.subr.mxu0 0.0
    %225 = vmatpush1.msra.mxu0 %v172
    %226 = vmatprep.subr.mxu0 0.0
    %227 = vmatpush2.msra.mxu0 0.0
    %228 = vmatprep.subr.mxu0 0.0
    %229 = vmatpush2.msra.mxu0 0.0
    %230 = vmatprep.subr.mxu0 0.0
    %231 = vmatpush2.msra.mxu0 0.0
    %232 = vmatprep.subr.mxu0 0.0
    %233 = vmatpush2.msra.mxu0 0.0
    %234 = vmatprep.subr.mxu0 0.0
    %235 = vmatpush2.msra.mxu0 0.0
    %236 = vmatprep.subr.mxu0 0.0
    %237 = vmatpush2.msra.mxu0 0.0
    %238 = vmatprep.subr.mxu0 0.0
    %239 = vmatpush2.msra.mxu0 0.0
    %240 = vmatprep.subr.mxu0 0.0
    %241 = vmatpush2.msra.mxu0 0.0
    %242 = vmatprep.subr.mxu0 0.0
    %243 = vmatpush2.msra.mxu0 0.0
    %244 = vmatprep.subr.mxu0 0.0
    %245 = vmatpush2.msra.mxu0 0.0
    %246 = vmatprep.subr.mxu0 0.0
    %247 = vmatpush2.msra.mxu0 0.0
    %248 = vmatprep.subr.mxu0 0.0
    %249 = vmatpush2.msra.mxu0 0.0
    %250 = vmatprep.subr.mxu0 0.0
    %251 = vmatpush2.msra.mxu0 0.0
    %252 = vmatprep.subr.mxu0 0.0
    %253 = vmatpush2.msra.mxu0 0.0
    %254 = vmatprep.subr.mxu0 0.0
    %255 = vmatpush2.msra.mxu0 0.0
    %256 = vmatprep.subr.mxu0 0.0
    %257 = vmatpush2.msra.mxu0 0.0
    %258 = vmatprep.mubr.f32.mxu0 0.0
    %259 = vmatmul.mubr.f32.gmra.mxu0 %v183
    %v260 = vpop.f32.mrf.mxu0
    %v261 = vadd.f32 %v179, %v260
    %v262 = vpop.f32.mrf.mxu0
    %263 = vmatprep.mubr.f32.mxu0 0.0
    %264 = vmatmul.mubr.f32.gmra.mxu0 %v186
    %v265 = vpop.f32.mrf.mxu0
    %v266 = vadd.f32 %v179, %v265
    %v267 = vpop.f32.mrf.mxu0
    %268 = vmatprep.mubr.f32.mxu0 0.0
    %269 = vmatmul.mubr.f32.gmra.mxu0 %v189
    %v270 = vpop.f32.mrf.mxu0
    %v271 = vadd.f32 %v179, %v270
    %v272 = vpop.f32.mrf.mxu0
    %273 = vmatprep.mubr.f32.mxu0 0.0
    %274 = vmatmul.mubr.f32.gmra.mxu0 %v192
    %v275 = vpop.f32.mrf.mxu0
    %v276 = vadd.f32 %v179, %v275
    %v277 = vpop.f32.mrf.mxu0
    %278 = vdwg.mxu0
    %279 = vst.msk [vmem:[#allocation2] sm:$0xff] %vm181, %v261
    %280 = vst.msk [vmem:[#allocation2 + $0x8] sm:$0xff] %vm181, %v266
    %281 = vst.msk [vmem:[#allocation2 + $0x10] sm:$0xff] %vm181, %v271
    %vm282 = vcmask 123904
    %283 = vst.msk [vmem:[#allocation2 + $0x18] sm:$0x3] %vm282, %v276
    %s284 = scalar_lea.vmem %s4, 16
    %v285 = vld [vmem:[%s284] sm:$0xff]
    %v286 = vld [vmem:[%s284 + $0x8] sm:$0xff]
    %s287 = scalar_lea.vmem %s6, 1
    %v288 = vld [vmem:[%s287] sm:$0x1]
    %v290 = vlaneseq
    %v291 = vshrl.u32 %v290, 7
    %v292 = vsub.s32 0, %v291
    %v293 = vrot.slane %v288, %v292
    %295 = vmatprep.subr.mxu0 0.0
    %296 = vmatpush1.msra.mxu0 0.0
    %297 = vmatprep.subr.mxu0 0.0
    %298 = vmatpush1.msra.mxu0 0.0
    %299 = vmatprep.subr.mxu0 0.0
    %300 = vmatpush1.msra.mxu0 0.0
    %301 = vmatprep.subr.mxu0 0.0
    %302 = vmatpush1.msra.mxu0 0.0
    %303 = vmatprep.subr.mxu0 0.0
    %304 = vmatpush1.msra.mxu0 0.0
    %305 = vmatprep.subr.mxu0 0.0
    %306 = vmatpush1.msra.mxu0 0.0
    %307 = vmatprep.subr.mxu0 0.0
    %308 = vmatpush1.msra.mxu0 0.0
    %309 = vmatprep.subr.mxu0 0.0
    %310 = vmatpush1.msra.mxu0 0.0
    %311 = vmatprep.subr.mxu0 0.0
    %312 = vmatpush1.msra.mxu0 0.0
    %313 = vmatprep.subr.mxu0 0.0
    %314 = vmatpush1.msra.mxu0 0.0
    %315 = vmatprep.subr.mxu0 0.0
    %316 = vmatpush1.msra.mxu0 0.0
    %317 = vmatprep.subr.mxu0 0.0
    %318 = vmatpush1.msra.mxu0 0.0
    %319 = vmatprep.subr.mxu0 0.0
    %320 = vmatpush1.msra.mxu0 0.0
    %321 = vmatprep.subr.mxu0 0.0
    %322 = vmatpush1.msra.mxu0 0.0
    %323 = vmatprep.subr.mxu0 0.0
    %324 = vmatpush1.msra.mxu0 %v286
    %325 = vmatprep.subr.mxu0 0.0
    %326 = vmatpush1.msra.mxu0 %v285
    %327 = vmatprep.subr.mxu0 0.0
    %328 = vmatpush2.msra.mxu0 0.0
    %329 = vmatprep.subr.mxu0 0.0
    %330 = vmatpush2.msra.mxu0 0.0
    %331 = vmatprep.subr.mxu0 0.0
    %332 = vmatpush2.msra.mxu0 0.0
    %333 = vmatprep.subr.mxu0 0.0
    %334 = vmatpush2.msra.mxu0 0.0
    %335 = vmatprep.subr.mxu0 0.0
    %336 = vmatpush2.msra.mxu0 0.0
    %337 = vmatprep.subr.mxu0 0.0
    %338 = vmatpush2.msra.mxu0 0.0
    %339 = vmatprep.subr.mxu0 0.0
    %340 = vmatpush2.msra.mxu0 0.0
    %341 = vmatprep.subr.mxu0 0.0
    %342 = vmatpush2.msra.mxu0 0.0
    %343 = vmatprep.subr.mxu0 0.0
    %344 = vmatpush2.msra.mxu0 0.0
    %345 = vmatprep.subr.mxu0 0.0
    %346 = vmatpush2.msra.mxu0 0.0
    %347 = vmatprep.subr.mxu0 0.0
    %348 = vmatpush2.msra.mxu0 0.0
    %349 = vmatprep.subr.mxu0 0.0
    %350 = vmatpush2.msra.mxu0 0.0
    %351 = vmatprep.subr.mxu0 0.0
    %352 = vmatpush2.msra.mxu0 0.0
    %353 = vmatprep.subr.mxu0 0.0
    %354 = vmatpush2.msra.mxu0 0.0
    %355 = vmatprep.subr.mxu0 0.0
    %356 = vmatpush2.msra.mxu0 0.0
    %357 = vmatprep.subr.mxu0 0.0
    %358 = vmatpush2.msra.mxu0 0.0
    %359 = vmatprep.mubr.f32.mxu0 0.0
    %360 = vmatmul.mubr.f32.gmra.mxu0 %v183
    %v361 = vpop.f32.mrf.mxu0
    %v362 = vadd.f32 %v293, %v361
    %v363 = vpop.f32.mrf.mxu0
    %364 = vmatprep.mubr.f32.mxu0 0.0
    %365 = vmatmul.mubr.f32.gmra.mxu0 %v186
    %v366 = vpop.f32.mrf.mxu0
    %v367 = vadd.f32 %v293, %v366
    %v368 = vpop.f32.mrf.mxu0
    %369 = vmatprep.mubr.f32.mxu0 0.0
    %370 = vmatmul.mubr.f32.gmra.mxu0 %v189
    %v371 = vpop.f32.mrf.mxu0
    %v372 = vadd.f32 %v293, %v371
    %v373 = vpop.f32.mrf.mxu0
    %374 = vmatprep.mubr.f32.mxu0 0.0
    %375 = vmatmul.mubr.f32.gmra.mxu0 %v192
    %v376 = vpop.f32.mrf.mxu0
    %v377 = vadd.f32 %v293, %v376
    %v378 = vpop.f32.mrf.mxu0
    %379 = vdwg.mxu0
    %380 = vst.msk [vmem:[#allocation3] sm:$0xff] %vm181, %v362
    %381 = vst.msk [vmem:[#allocation3 + $0x8] sm:$0xff] %vm181, %v367
    %382 = vst.msk [vmem:[#allocation3 + $0x10] sm:$0xff] %vm181, %v372
    %383 = vst.msk [vmem:[#allocation3 + $0x18] sm:$0x3] %vm282, %v377
    %s384 = scalar_lea.vmem %s4, 32
    %v385 = vld [vmem:[%s384] sm:$0xff]
    %v386 = vld [vmem:[%s384 + $0x8] sm:$0xff]
    %s387 = scalar_lea.vmem %s6, 2
    %v388 = vld [vmem:[%s387] sm:$0x1]
    %v390 = vlaneseq
    %v391 = vshrl.u32 %v390, 7
    %v392 = vsub.s32 0, %v391
    %v393 = vrot.slane %v388, %v392
    %395 = vmatprep.subr.mxu0 0.0
    %396 = vmatpush1.msra.mxu0 0.0
    %397 = vmatprep.subr.mxu0 0.0
    %398 = vmatpush1.msra.mxu0 0.0
    %399 = vmatprep.subr.mxu0 0.0
    %400 = vmatpush1.msra.mxu0 0.0
    %401 = vmatprep.subr.mxu0 0.0
    %402 = vmatpush1.msra.mxu0 0.0
    %403 = vmatprep.subr.mxu0 0.0
    %404 = vmatpush1.msra.mxu0 0.0
    %405 = vmatprep.subr.mxu0 0.0
    %406 = vmatpush1.msra.mxu0 0.0
    %407 = vmatprep.subr.mxu0 0.0
    %408 = vmatpush1.msra.mxu0 0.0
    %409 = vmatprep.subr.mxu0 0.0
    %410 = vmatpush1.msra.mxu0 0.0
    %411 = vmatprep.subr.mxu0 0.0
    %412 = vmatpush1.msra.mxu0 0.0
    %413 = vmatprep.subr.mxu0 0.0
    %414 = vmatpush1.msra.mxu0 0.0
    %415 = vmatprep.subr.mxu0 0.0
    %416 = vmatpush1.msra.mxu0 0.0
    %417 = vmatprep.subr.mxu0 0.0
    %418 = vmatpush1.msra.mxu0 0.0
    %419 = vmatprep.subr.mxu0 0.0
    %420 = vmatpush1.msra.mxu0 0.0
    %421 = vmatprep.subr.mxu0 0.0
    %422 = vmatpush1.msra.mxu0 0.0
    %423 = vmatprep.subr.mxu0 0.0
    %424 = vmatpush1.msra.mxu0 %v386
    %425 = vmatprep.subr.mxu0 0.0
    %426 = vmatpush1.msra.mxu0 %v385
    %427 = vmatprep.subr.mxu0 0.0
    %428 = vmatpush2.msra.mxu0 0.0
    %429 = vmatprep.subr.mxu0 0.0
    %430 = vmatpush2.msra.mxu0 0.0
    %431 = vmatprep.subr.mxu0 0.0
    %432 = vmatpush2.msra.mxu0 0.0
    %433 = vmatprep.subr.mxu0 0.0
    %434 = vmatpush2.msra.mxu0 0.0
    %435 = vmatprep.subr.mxu0 0.0
    %436 = vmatpush2.msra.mxu0 0.0
    %437 = vmatprep.subr.mxu0 0.0
    %438 = vmatpush2.msra.mxu0 0.0
    %439 = vmatprep.subr.mxu0 0.0
    %440 = vmatpush2.msra.mxu0 0.0
    %441 = vmatprep.subr.mxu0 0.0
    %442 = vmatpush2.msra.mxu0 0.0
    %443 = vmatprep.subr.mxu0 0.0
    %444 = vmatpush2.msra.mxu0 0.0
    %445 = vmatprep.subr.mxu0 0.0
    %446 = vmatpush2.msra.mxu0 0.0
    %447 = vmatprep.subr.mxu0 0.0
    %448 = vmatpush2.msra.mxu0 0.0
    %449 = vmatprep.subr.mxu0 0.0
    %450 = vmatpush2.msra.mxu0 0.0
    %451 = vmatprep.subr.mxu0 0.0
    %452 = vmatpush2.msra.mxu0 0.0
    %453 = vmatprep.subr.mxu0 0.0
    %454 = vmatpush2.msra.mxu0 0.0
    %455 = vmatprep.subr.mxu0 0.0
    %456 = vmatpush2.msra.mxu0 0.0
    %457 = vmatprep.subr.mxu0 0.0
    %458 = vmatpush2.msra.mxu0 0.0
    %459 = vmatprep.mubr.f32.mxu0 0.0
    %460 = vmatmul.mubr.f32.gmra.mxu0 %v183
    %v461 = vpop.f32.mrf.mxu0
    %v462 = vadd.f32 %v393, %v461
    %v463 = vpop.f32.mrf.mxu0
    %464 = vmatprep.mubr.f32.mxu0 0.0
    %465 = vmatmul.mubr.f32.gmra.mxu0 %v186
    %v466 = vpop.f32.mrf.mxu0
    %v467 = vadd.f32 %v393, %v466
    %v468 = vpop.f32.mrf.mxu0
    %469 = vmatprep.mubr.f32.mxu0 0.0
    %470 = vmatmul.mubr.f32.gmra.mxu0 %v189
    %v471 = vpop.f32.mrf.mxu0
    %v472 = vadd.f32 %v393, %v471
    %v473 = vpop.f32.mrf.mxu0
    %474 = vmatprep.mubr.f32.mxu0 0.0
    %475 = vmatmul.mubr.f32.gmra.mxu0 %v192
    %v476 = vpop.f32.mrf.mxu0
    %v477 = vadd.f32 %v393, %v476
    %v478 = vpop.f32.mrf.mxu0
    %479 = vdwg.mxu0
    %480 = vst.msk [vmem:[#allocation4] sm:$0xff] %vm181, %v462
    %481 = vst.msk [vmem:[#allocation4 + $0x8] sm:$0xff] %vm181, %v467
    %482 = vst.msk [vmem:[#allocation4 + $0x10] sm:$0xff] %vm181, %v472
    %483 = vst.msk [vmem:[#allocation4 + $0x18] sm:$0x3] %vm282, %v477
    %v484 = vld [vmem:[%s8] sm:$0xff]
    %v485 = vld [vmem:[%s8 + $0x8] sm:$0xff]
    %v486 = vld [vmem:[%s10] sm:$0x1]
    %v488 = vlaneseq
    %v489 = vshrl.u32 %v488, 7
    %v490 = vsub.s32 0, %v489
    %v491 = vrot.slane %v486, %v490
    %493 = vmatprep.subr.mxu0 0.0
    %494 = vmatpush1.msra.mxu0 0.0
    %495 = vmatprep.subr.mxu0 0.0
    %496 = vmatpush1.msra.mxu0 0.0
    %497 = vmatprep.subr.mxu0 0.0
    %498 = vmatpush1.msra.mxu0 0.0
    %499 = vmatprep.subr.mxu0 0.0
    %500 = vmatpush1.msra.mxu0 0.0
    %501 = vmatprep.subr.mxu0 0.0
    %502 = vmatpush1.msra.mxu0 0.0
    %503 = vmatprep.subr.mxu0 0.0
    %504 = vmatpush1.msra.mxu0 0.0
    %505 = vmatprep.subr.mxu0 0.0
    %506 = vmatpush1.msra.mxu0 0.0
    %507 = vmatprep.subr.mxu0 0.0
    %508 = vmatpush1.msra.mxu0 0.0
    %509 = vmatprep.subr.mxu0 0.0
    %510 = vmatpush1.msra.mxu0 0.0
    %511 = vmatprep.subr.mxu0 0.0
    %512 = vmatpush1.msra.mxu0 0.0
    %513 = vmatprep.subr.mxu0 0.0
    %514 = vmatpush1.msra.mxu0 0.0
    %515 = vmatprep.subr.mxu0 0.0
    %516 = vmatpush1.msra.mxu0 0.0
    %517 = vmatprep.subr.mxu0 0.0
    %518 = vmatpush1.msra.mxu0 0.0
    %519 = vmatprep.subr.mxu0 0.0
    %520 = vmatpush1.msra.mxu0 0.0
    %521 = vmatprep.subr.mxu0 0.0
    %522 = vmatpush1.msra.mxu0 %v485
    %523 = vmatprep.subr.mxu0 0.0
    %524 = vmatpush1.msra.mxu0 %v484
    %525 = vmatprep.subr.mxu0 0.0
    %526 = vmatpush2.msra.mxu0 0.0
    %527 = vmatprep.subr.mxu0 0.0
    %528 = vmatpush2.msra.mxu0 0.0
    %529 = vmatprep.subr.mxu0 0.0
    %530 = vmatpush2.msra.mxu0 0.0
    %531 = vmatprep.subr.mxu0 0.0
    %532 = vmatpush2.msra.mxu0 0.0
    %533 = vmatprep.subr.mxu0 0.0
    %534 = vmatpush2.msra.mxu0 0.0
    %535 = vmatprep.subr.mxu0 0.0
    %536 = vmatpush2.msra.mxu0 0.0
    %537 = vmatprep.subr.mxu0 0.0
    %538 = vmatpush2.msra.mxu0 0.0
    %539 = vmatprep.subr.mxu0 0.0
    %540 = vmatpush2.msra.mxu0 0.0
    %541 = vmatprep.subr.mxu0 0.0
    %542 = vmatpush2.msra.mxu0 0.0
    %543 = vmatprep.subr.mxu0 0.0
    %544 = vmatpush2.msra.mxu0 0.0
    %545 = vmatprep.subr.mxu0 0.0
    %546 = vmatpush2.msra.mxu0 0.0
    %547 = vmatprep.subr.mxu0 0.0
    %548 = vmatpush2.msra.mxu0 0.0
    %549 = vmatprep.subr.mxu0 0.0
    %550 = vmatpush2.msra.mxu0 0.0
    %551 = vmatprep.subr.mxu0 0.0
    %552 = vmatpush2.msra.mxu0 0.0
    %553 = vmatprep.subr.mxu0 0.0
    %554 = vmatpush2.msra.mxu0 0.0
    %555 = vmatprep.subr.mxu0 0.0
    %556 = vmatpush2.msra.mxu0 0.0
    %557 = vmatprep.mubr.f32.mxu0 0.0
    %558 = vmatmul.mubr.f32.gmra.mxu0 %v183
    %v559 = vpop.f32.mrf.mxu0
    %v560 = vadd.f32 %v491, %v559
    %v561 = vpop.f32.mrf.mxu0
    %562 = vmatprep.mubr.f32.mxu0 0.0
    %563 = vmatmul.mubr.f32.gmra.mxu0 %v186
    %v564 = vpop.f32.mrf.mxu0
    %v565 = vadd.f32 %v491, %v564
    %v566 = vpop.f32.mrf.mxu0
    %567 = vmatprep.mubr.f32.mxu0 0.0
    %568 = vmatmul.mubr.f32.gmra.mxu0 %v189
    %v569 = vpop.f32.mrf.mxu0
    %v570 = vadd.f32 %v491, %v569
    %v571 = vpop.f32.mrf.mxu0
    %572 = vmatprep.mubr.f32.mxu0 0.0
    %573 = vmatmul.mubr.f32.gmra.mxu0 %v192
    %v574 = vpop.f32.mrf.mxu0
    %v575 = vadd.f32 %v491, %v574
    %v576 = vpop.f32.mrf.mxu0
    %577 = vdwg.mxu0
    %vm578 = vcmask 64512
    %579 = vst.msk [vmem:[#allocation5] sm:$0xff] %vm578, %v560
    %580 = vst.msk [vmem:[#allocation5 + $0x8] sm:$0xff] %vm578, %v565
    %581 = vst.msk [vmem:[#allocation5 + $0x10] sm:$0xff] %vm578, %v570
    %vm582 = vcmask 58368
    %583 = vst.msk [vmem:[#allocation5 + $0x18] sm:$0x3] %vm582, %v575
    %s584 = scalar_lea.vmem %s8, 16
    %v585 = vld [vmem:[%s584] sm:$0xff]
    %v586 = vld [vmem:[%s584 + $0x8] sm:$0xff]
    %s587 = scalar_lea.vmem %s10, 1
    %v588 = vld [vmem:[%s587] sm:$0x1]
    %v590 = vlaneseq
    %v591 = vshrl.u32 %v590, 7
    %v592 = vsub.s32 0, %v591
    %v593 = vrot.slane %v588, %v592
    %595 = vmatprep.subr.mxu0 0.0
    %596 = vmatpush1.msra.mxu0 0.0
    %597 = vmatprep.subr.mxu0 0.0
    %598 = vmatpush1.msra.mxu0 0.0
    %599 = vmatprep.subr.mxu0 0.0
    %600 = vmatpush1.msra.mxu0 0.0
    %601 = vmatprep.subr.mxu0 0.0
    %602 = vmatpush1.msra.mxu0 0.0
    %603 = vmatprep.subr.mxu0 0.0
    %604 = vmatpush1.msra.mxu0 0.0
    %605 = vmatprep.subr.mxu0 0.0
    %606 = vmatpush1.msra.mxu0 0.0
    %607 = vmatprep.subr.mxu0 0.0
    %608 = vmatpush1.msra.mxu0 0.0
    %609 = vmatprep.subr.mxu0 0.0
    %610 = vmatpush1.msra.mxu0 0.0
    %611 = vmatprep.subr.mxu0 0.0
    %612 = vmatpush1.msra.mxu0 0.0
    %613 = vmatprep.subr.mxu0 0.0
    %614 = vmatpush1.msra.mxu0 0.0
    %615 = vmatprep.subr.mxu0 0.0
    %616 = vmatpush1.msra.mxu0 0.0
    %617 = vmatprep.subr.mxu0 0.0
    %618 = vmatpush1.msra.mxu0 0.0
    %619 = vmatprep.subr.mxu0 0.0
    %620 = vmatpush1.msra.mxu0 0.0
    %621 = vmatprep.subr.mxu0 0.0
    %622 = vmatpush1.msra.mxu0 0.0
    %623 = vmatprep.subr.mxu0 0.0
    %624 = vmatpush1.msra.mxu0 %v586
    %625 = vmatprep.subr.mxu0 0.0
    %626 = vmatpush1.msra.mxu0 %v585
    %627 = vmatprep.subr.mxu0 0.0
    %628 = vmatpush2.msra.mxu0 0.0
    %629 = vmatprep.subr.mxu0 0.0
    %630 = vmatpush2.msra.mxu0 0.0
    %631 = vmatprep.subr.mxu0 0.0
    %632 = vmatpush2.msra.mxu0 0.0
    %633 = vmatprep.subr.mxu0 0.0
    %634 = vmatpush2.msra.mxu0 0.0
    %635 = vmatprep.subr.mxu0 0.0
    %636 = vmatpush2.msra.mxu0 0.0
    %637 = vmatprep.subr.mxu0 0.0
    %638 = vmatpush2.msra.mxu0 0.0
    %639 = vmatprep.subr.mxu0 0.0
    %640 = vmatpush2.msra.mxu0 0.0
    %641 = vmatprep.subr.mxu0 0.0
    %642 = vmatpush2.msra.mxu0 0.0
    %643 = vmatprep.subr.mxu0 0.0
    %644 = vmatpush2.msra.mxu0 0.0
    %645 = vmatprep.subr.mxu0 0.0
    %646 = vmatpush2.msra.mxu0 0.0
    %647 = vmatprep.subr.mxu0 0.0
    %648 = vmatpush2.msra.mxu0 0.0
    %649 = vmatprep.subr.mxu0 0.0
    %650 = vmatpush2.msra.mxu0 0.0
    %651 = vmatprep.subr.mxu0 0.0
    %652 = vmatpush2.msra.mxu0 0.0
    %653 = vmatprep.subr.mxu0 0.0
    %654 = vmatpush2.msra.mxu0 0.0
    %655 = vmatprep.subr.mxu0 0.0
    %656 = vmatpush2.msra.mxu0 0.0
    %657 = vmatprep.subr.mxu0 0.0
    %658 = vmatpush2.msra.mxu0 0.0
    %659 = vmatprep.mubr.f32.mxu0 0.0
    %660 = vmatmul.mubr.f32.gmra.mxu0 %v183
    %v661 = vpop.f32.mrf.mxu0
    %v662 = vadd.f32 %v593, %v661
    %v663 = vpop.f32.mrf.mxu0
    %664 = vmatprep.mubr.f32.mxu0 0.0
    %665 = vmatmul.mubr.f32.gmra.mxu0 %v186
    %v666 = vpop.f32.mrf.mxu0
    %v667 = vadd.f32 %v593, %v666
    %v668 = vpop.f32.mrf.mxu0
    %669 = vmatprep.mubr.f32.mxu0 0.0
    %670 = vmatmul.mubr.f32.gmra.mxu0 %v189
    %v671 = vpop.f32.mrf.mxu0
    %v672 = vadd.f32 %v593, %v671
    %v673 = vpop.f32.mrf.mxu0
    %674 = vmatprep.mubr.f32.mxu0 0.0
    %675 = vmatmul.mubr.f32.gmra.mxu0 %v192
    %v676 = vpop.f32.mrf.mxu0
    %v677 = vadd.f32 %v593, %v676
    %v678 = vpop.f32.mrf.mxu0
    %679 = vdwg.mxu0
    %680 = vst.msk [vmem:[#allocation6] sm:$0xff] %vm578, %v662
    %681 = vst.msk [vmem:[#allocation6 + $0x8] sm:$0xff] %vm578, %v667
    %682 = vst.msk [vmem:[#allocation6 + $0x10] sm:$0xff] %vm578, %v672
    %683 = vst.msk [vmem:[#allocation6 + $0x18] sm:$0x3] %vm582, %v677
    %s684 = scalar_lea.vmem %s8, 32
    %v685 = vld [vmem:[%s684] sm:$0xff]
    %v686 = vld [vmem:[%s684 + $0x8] sm:$0xff]
    %s687 = scalar_lea.vmem %s10, 2
    %v688 = vld [vmem:[%s687] sm:$0x1]
    %v690 = vlaneseq
    %v691 = vshrl.u32 %v690, 7
    %v692 = vsub.s32 0, %v691
    %v693 = vrot.slane %v688, %v692
    %695 = vmatprep.subr.mxu0 0.0
    %696 = vmatpush1.msra.mxu0 0.0
    %697 = vmatprep.subr.mxu0 0.0
    %698 = vmatpush1.msra.mxu0 0.0
    %699 = vmatprep.subr.mxu0 0.0
    %700 = vmatpush1.msra.mxu0 0.0
    %701 = vmatprep.subr.mxu0 0.0
    %702 = vmatpush1.msra.mxu0 0.0
    %703 = vmatprep.subr.mxu0 0.0
    %704 = vmatpush1.msra.mxu0 0.0
    %705 = vmatprep.subr.mxu0 0.0
    %706 = vmatpush1.msra.mxu0 0.0
    %707 = vmatprep.subr.mxu0 0.0
    %708 = vmatpush1.msra.mxu0 0.0
    %709 = vmatprep.subr.mxu0 0.0
    %710 = vmatpush1.msra.mxu0 0.0
    %711 = vmatprep.subr.mxu0 0.0
    %712 = vmatpush1.msra.mxu0 0.0
    %713 = vmatprep.subr.mxu0 0.0
    %714 = vmatpush1.msra.mxu0 0.0
    %715 = vmatprep.subr.mxu0 0.0
    %716 = vmatpush1.msra.mxu0 0.0
    %717 = vmatprep.subr.mxu0 0.0
    %718 = vmatpush1.msra.mxu0 0.0
    %719 = vmatprep.subr.mxu0 0.0
    %720 = vmatpush1.msra.mxu0 0.0
    %721 = vmatprep.subr.mxu0 0.0
    %722 = vmatpush1.msra.mxu0 0.0
    %723 = vmatprep.subr.mxu0 0.0
    %724 = vmatpush1.msra.mxu0 %v686
    %725 = vmatprep.subr.mxu0 0.0
    %726 = vmatpush1.msra.mxu0 %v685
    %727 = vmatprep.subr.mxu0 0.0
    %728 = vmatpush2.msra.mxu0 0.0
    %729 = vmatprep.subr.mxu0 0.0
    %730 = vmatpush2.msra.mxu0 0.0
    %731 = vmatprep.subr.mxu0 0.0
    %732 = vmatpush2.msra.mxu0 0.0
    %733 = vmatprep.subr.mxu0 0.0
    %734 = vmatpush2.msra.mxu0 0.0
    %735 = vmatprep.subr.mxu0 0.0
    %736 = vmatpush2.msra.mxu0 0.0
    %737 = vmatprep.subr.mxu0 0.0
    %738 = vmatpush2.msra.mxu0 0.0
    %739 = vmatprep.subr.mxu0 0.0
    %740 = vmatpush2.msra.mxu0 0.0
    %741 = vmatprep.subr.mxu0 0.0
    %742 = vmatpush2.msra.mxu0 0.0
    %743 = vmatprep.subr.mxu0 0.0
    %744 = vmatpush2.msra.mxu0 0.0
    %745 = vmatprep.subr.mxu0 0.0
    %746 = vmatpush2.msra.mxu0 0.0
    %747 = vmatprep.subr.mxu0 0.0
    %748 = vmatpush2.msra.mxu0 0.0
    %749 = vmatprep.subr.mxu0 0.0
    %750 = vmatpush2.msra.mxu0 0.0
    %751 = vmatprep.subr.mxu0 0.0
    %752 = vmatpush2.msra.mxu0 0.0
    %753 = vmatprep.subr.mxu0 0.0
    %754 = vmatpush2.msra.mxu0 0.0
    %755 = vmatprep.subr.mxu0 0.0
    %756 = vmatpush2.msra.mxu0 0.0
    %757 = vmatprep.subr.mxu0 0.0
    %758 = vmatpush2.msra.mxu0 0.0
    %759 = vmatprep.mubr.f32.mxu0 0.0
    %760 = vmatmul.mubr.f32.gmra.mxu0 %v183
    %v761 = vpop.f32.mrf.mxu0
    %v762 = vadd.f32 %v693, %v761
    %v763 = vpop.f32.mrf.mxu0
    %764 = vmatprep.mubr.f32.mxu0 0.0
    %765 = vmatmul.mubr.f32.gmra.mxu0 %v186
    %v766 = vpop.f32.mrf.mxu0
    %v767 = vadd.f32 %v693, %v766
    %v768 = vpop.f32.mrf.mxu0
    %769 = vmatprep.mubr.f32.mxu0 0.0
    %770 = vmatmul.mubr.f32.gmra.mxu0 %v189
    %v771 = vpop.f32.mrf.mxu0
    %v772 = vadd.f32 %v693, %v771
    %v773 = vpop.f32.mrf.mxu0
    %774 = vmatprep.mubr.f32.mxu0 0.0
    %775 = vmatmul.mubr.f32.gmra.mxu0 %v192
    %v776 = vpop.f32.mrf.mxu0
    %v777 = vadd.f32 %v693, %v776
    %v778 = vpop.f32.mrf.mxu0
    %779 = vdwg.mxu0
    %780 = vst.msk [vmem:[#allocation7] sm:$0xff] %vm578, %v762
    %781 = vst.msk [vmem:[#allocation7 + $0x8] sm:$0xff] %vm578, %v767
    %782 = vst.msk [vmem:[#allocation7 + $0x10] sm:$0xff] %vm578, %v772
    %783 = vst.msk [vmem:[#allocation7 + $0x18] sm:$0x3] %vm582, %v777
    %v784 = vld [vmem:[%s5] sm:$0xff]
    %v785 = vld [vmem:[%s5 + $0x8] sm:$0xff]
    %s786 = scalar_lea.vmem %s5, 16
    %v787 = vld [vmem:[%s786] sm:$0xff]
    %v788 = vld [vmem:[%s786 + $0x8] sm:$0xff]
    %s789 = scalar_lea.vmem %s5, 32
    %v790 = vld [vmem:[%s789] sm:$0xff]
    %v791 = vld [vmem:[%s789 + $0x8] sm:$0xff]
    %v792 = vld [vmem:[%s7] sm:$0x1]
    %v793 = vld [vmem:[#allocation2] sm:$0x3]
    %v795 = vsel %vm181, 0.0, 0
    %797 = vmatprep.subr.mxu0 0.0
    %798 = vmatpush1.msra.mxu0 0.0
    %799 = vmatprep.subr.mxu0 0.0
    %800 = vmatpush1.msra.mxu0 0.0
    %801 = vmatprep.subr.mxu0 0.0
    %802 = vmatpush1.msra.mxu0 0.0
    %803 = vmatprep.subr.mxu0 0.0
    %804 = vmatpush1.msra.mxu0 0.0
    %805 = vmatprep.subr.mxu0 0.0
    %806 = vmatpush1.msra.mxu0 0.0
    %807 = vmatprep.subr.mxu0 0.0
    %808 = vmatpush1.msra.mxu0 0.0
    %809 = vmatprep.subr.mxu0 0.0
    %810 = vmatpush1.msra.mxu0 0.0
    %811 = vmatprep.subr.mxu0 0.0
    %812 = vmatpush1.msra.mxu0 0.0
    %813 = vmatprep.subr.mxu0 0.0
    %814 = vmatpush1.msra.mxu0 0.0
    %815 = vmatprep.subr.mxu0 0.0
    %816 = vmatpush1.msra.mxu0 0.0
    %817 = vmatprep.subr.mxu0 0.0
    %818 = vmatpush1.msra.mxu0 0.0
    %819 = vmatprep.subr.mxu0 0.0
    %820 = vmatpush1.msra.mxu0 0.0
    %821 = vmatprep.subr.mxu0 0.0
    %822 = vmatpush1.msra.mxu0 0.0
    %823 = vmatprep.subr.mxu0 0.0
    %824 = vmatpush1.msra.mxu0 0.0
    %825 = vmatprep.subr.mxu0 0.0
    %826 = vmatpush1.msra.mxu0 %v785
    %827 = vmatprep.subr.mxu0 0.0
    %828 = vmatpush1.msra.mxu0 %v784
    %829 = vmatprep.subr.mxu0 0.0
    %830 = vmatpush2.msra.mxu0 0.0
    %831 = vmatprep.subr.mxu0 0.0
    %832 = vmatpush2.msra.mxu0 0.0
    %833 = vmatprep.subr.mxu0 0.0
    %834 = vmatpush2.msra.mxu0 0.0
    %835 = vmatprep.subr.mxu0 0.0
    %836 = vmatpush2.msra.mxu0 0.0
    %837 = vmatprep.subr.mxu0 0.0
    %838 = vmatpush2.msra.mxu0 0.0
    %839 = vmatprep.subr.mxu0 0.0
    %840 = vmatpush2.msra.mxu0 0.0
    %841 = vmatprep.subr.mxu0 0.0
    %842 = vmatpush2.msra.mxu0 0.0
    %843 = vmatprep.subr.mxu0 0.0
    %844 = vmatpush2.msra.mxu0 0.0
    %845 = vmatprep.subr.mxu0 0.0
    %846 = vmatpush2.msra.mxu0 0.0
    %847 = vmatprep.subr.mxu0 0.0
    %848 = vmatpush2.msra.mxu0 0.0
    %849 = vmatprep.subr.mxu0 0.0
    %850 = vmatpush2.msra.mxu0 0.0
    %851 = vmatprep.subr.mxu0 0.0
    %852 = vmatpush2.msra.mxu0 0.0
    %853 = vmatprep.subr.mxu0 0.0
    %854 = vmatpush2.msra.mxu0 0.0
    %855 = vmatprep.subr.mxu0 0.0
    %856 = vmatpush2.msra.mxu0 0.0
    %857 = vmatprep.subr.mxu0 0.0
    %858 = vmatpush2.msra.mxu0 0.0
    %859 = vmatprep.subr.mxu0 0.0
    %860 = vmatpush2.msra.mxu0 0.0
    %861 = vmatprep.mubr.f32.mxu0 0.0
    %862 = vmatmul.mubr.f32.gmra.mxu0 %v795
    %v863 = vpop.f32.mrf.mxu0
    %v864 = vadd.f32 0.0, %v863
    %v865 = vpop.f32.mrf.mxu0
    %866 = vdwg.mxu0
    %v867 = vadd.f32 %v793, %v864
    %v868 = vxor.u32 %v867, 2147483648
    %v869 = vmul.f32 %v868, 1.442695
    %v870 = vpow.pop %v869
    %v871 = vadd.f32 %v870, 1.0
    %v872 = vrcp.pop %v871
    %v873 = vmul.f32 1.0, %v872
    %v874 = vld [vmem:[#allocation3] sm:$0x3]
    %875 = vmatprep.subr.mxu0 0.0
    %876 = vmatpush1.msra.mxu0 0.0
    %877 = vmatprep.subr.mxu0 0.0
    %878 = vmatpush1.msra.mxu0 0.0
    %879 = vmatprep.subr.mxu0 0.0
    %880 = vmatpush1.msra.mxu0 0.0
    %881 = vmatprep.subr.mxu0 0.0
    %882 = vmatpush1.msra.mxu0 0.0
    %883 = vmatprep.subr.mxu0 0.0
    %884 = vmatpush1.msra.mxu0 0.0
    %885 = vmatprep.subr.mxu0 0.0
    %886 = vmatpush1.msra.mxu0 0.0
    %887 = vmatprep.subr.mxu0 0.0
    %888 = vmatpush1.msra.mxu0 0.0
    %889 = vmatprep.subr.mxu0 0.0
    %890 = vmatpush1.msra.mxu0 0.0
    %891 = vmatprep.subr.mxu0 0.0
    %892 = vmatpush1.msra.mxu0 0.0
    %893 = vmatprep.subr.mxu0 0.0
    %894 = vmatpush1.msra.mxu0 0.0
    %895 = vmatprep.subr.mxu0 0.0
    %896 = vmatpush1.msra.mxu0 0.0
    %897 = vmatprep.subr.mxu0 0.0
    %898 = vmatpush1.msra.mxu0 0.0
    %899 = vmatprep.subr.mxu0 0.0
    %900 = vmatpush1.msra.mxu0 0.0
    %901 = vmatprep.subr.mxu0 0.0
    %902 = vmatpush1.msra.mxu0 0.0
    %903 = vmatprep.subr.mxu0 0.0
    %904 = vmatpush1.msra.mxu0 %v788
    %905 = vmatprep.subr.mxu0 0.0
    %906 = vmatpush1.msra.mxu0 %v787
    %907 = vmatprep.subr.mxu0 0.0
    %908 = vmatpush2.msra.mxu0 0.0
    %909 = vmatprep.subr.mxu0 0.0
    %910 = vmatpush2.msra.mxu0 0.0
    %911 = vmatprep.subr.mxu0 0.0
    %912 = vmatpush2.msra.mxu0 0.0
    %913 = vmatprep.subr.mxu0 0.0
    %914 = vmatpush2.msra.mxu0 0.0
    %915 = vmatprep.subr.mxu0 0.0
    %916 = vmatpush2.msra.mxu0 0.0
    %917 = vmatprep.subr.mxu0 0.0
    %918 = vmatpush2.msra.mxu0 0.0
    %919 = vmatprep.subr.mxu0 0.0
    %920 = vmatpush2.msra.mxu0 0.0
    %921 = vmatprep.subr.mxu0 0.0
    %922 = vmatpush2.msra.mxu0 0.0
    %923 = vmatprep.subr.mxu0 0.0
    %924 = vmatpush2.msra.mxu0 0.0
    %925 = vmatprep.subr.mxu0 0.0
    %926 = vmatpush2.msra.mxu0 0.0
    %927 = vmatprep.subr.mxu0 0.0
    %928 = vmatpush2.msra.mxu0 0.0
    %929 = vmatprep.subr.mxu0 0.0
    %930 = vmatpush2.msra.mxu0 0.0
    %931 = vmatprep.subr.mxu0 0.0
    %932 = vmatpush2.msra.mxu0 0.0
    %933 = vmatprep.subr.mxu0 0.0
    %934 = vmatpush2.msra.mxu0 0.0
    %935 = vmatprep.subr.mxu0 0.0
    %936 = vmatpush2.msra.mxu0 0.0
    %937 = vmatprep.subr.mxu0 0.0
    %938 = vmatpush2.msra.mxu0 0.0
    %939 = vmatprep.mubr.f32.mxu0 0.0
    %940 = vmatmul.mubr.f32.gmra.mxu0 %v795
    %v941 = vpop.f32.mrf.mxu0
    %v942 = vadd.f32 0.0, %v941
    %v943 = vpop.f32.mrf.mxu0
    %944 = vdwg.mxu0
    %v945 = vadd.f32 %v874, %v942
    %v946 = vxor.u32 %v945, 2147483648
    %v947 = vmul.f32 %v946, 1.442695
    %v948 = vpow.pop %v947
    %v949 = vadd.f32 %v948, 1.0
    %v950 = vrcp.pop %v949
    %v951 = vmul.f32 1.0, %v950
    %v952 = vld [vmem:[#allocation4] sm:$0x3]
    %v954 = vlaneseq
    %v955 = vshrl.u32 %v954, 7
    %v956 = vsub.s32 0, %v955
    %v957 = vrot.slane %v792, %v956
    %959 = vmatprep.subr.mxu0 0.0
    %960 = vmatpush1.msra.mxu0 0.0
    %961 = vmatprep.subr.mxu0 0.0
    %962 = vmatpush1.msra.mxu0 0.0
    %963 = vmatprep.subr.mxu0 0.0
    %964 = vmatpush1.msra.mxu0 0.0
    %965 = vmatprep.subr.mxu0 0.0
    %966 = vmatpush1.msra.mxu0 0.0
    %967 = vmatprep.subr.mxu0 0.0
    %968 = vmatpush1.msra.mxu0 0.0
    %969 = vmatprep.subr.mxu0 0.0
    %970 = vmatpush1.msra.mxu0 0.0
    %971 = vmatprep.subr.mxu0 0.0
    %972 = vmatpush1.msra.mxu0 0.0
    %973 = vmatprep.subr.mxu0 0.0
    %974 = vmatpush1.msra.mxu0 0.0
    %975 = vmatprep.subr.mxu0 0.0
    %976 = vmatpush1.msra.mxu0 0.0
    %977 = vmatprep.subr.mxu0 0.0
    %978 = vmatpush1.msra.mxu0 0.0
    %979 = vmatprep.subr.mxu0 0.0
    %980 = vmatpush1.msra.mxu0 0.0
    %981 = vmatprep.subr.mxu0 0.0
    %982 = vmatpush1.msra.mxu0 0.0
    %983 = vmatprep.subr.mxu0 0.0
    %984 = vmatpush1.msra.mxu0 0.0
    %985 = vmatprep.subr.mxu0 0.0
    %986 = vmatpush1.msra.mxu0 0.0
    %987 = vmatprep.subr.mxu0 0.0
    %988 = vmatpush1.msra.mxu0 %v791
    %989 = vmatprep.subr.mxu0 0.0
    %990 = vmatpush1.msra.mxu0 %v790
    %991 = vmatprep.subr.mxu0 0.0
    %992 = vmatpush2.msra.mxu0 0.0
    %993 = vmatprep.subr.mxu0 0.0
    %994 = vmatpush2.msra.mxu0 0.0
    %995 = vmatprep.subr.mxu0 0.0
    %996 = vmatpush2.msra.mxu0 0.0
    %997 = vmatprep.subr.mxu0 0.0
    %998 = vmatpush2.msra.mxu0 0.0
    %999 = vmatprep.subr.mxu0 0.0
    %1000 = vmatpush2.msra.mxu0 0.0
    %1001 = vmatprep.subr.mxu0 0.0
    %1002 = vmatpush2.msra.mxu0 0.0
    %1003 = vmatprep.subr.mxu0 0.0
    %1004 = vmatpush2.msra.mxu0 0.0
    %1005 = vmatprep.subr.mxu0 0.0
    %1006 = vmatpush2.msra.mxu0 0.0
    %1007 = vmatprep.subr.mxu0 0.0
    %1008 = vmatpush2.msra.mxu0 0.0
    %1009 = vmatprep.subr.mxu0 0.0
    %1010 = vmatpush2.msra.mxu0 0.0
    %1011 = vmatprep.subr.mxu0 0.0
    %1012 = vmatpush2.msra.mxu0 0.0
    %1013 = vmatprep.subr.mxu0 0.0
    %1014 = vmatpush2.msra.mxu0 0.0
    %1015 = vmatprep.subr.mxu0 0.0
    %1016 = vmatpush2.msra.mxu0 0.0
    %1017 = vmatprep.subr.mxu0 0.0
    %1018 = vmatpush2.msra.mxu0 0.0
    %1019 = vmatprep.subr.mxu0 0.0
    %1020 = vmatpush2.msra.mxu0 0.0
    %1021 = vmatprep.subr.mxu0 0.0
    %1022 = vmatpush2.msra.mxu0 0.0
    %1023 = vmatprep.mubr.f32.mxu0 0.0
    %1024 = vmatmul.mubr.f32.gmra.mxu0 %v795
    %v1025 = vpop.f32.mrf.mxu0
    %v1026 = vadd.f32 %v957, %v1025
    %v1027 = vpop.f32.mrf.mxu0
    %1028 = vdwg.mxu0
    %v1029 = vmul.f32 %v873, %v1026
    %v1030 = vadd.f32 %v952, %v1029
    %v1031 = vtanh.pop %v1030
    %v1032 = vsub.f32 1.0, %v951
    %v1033 = vmul.f32 %v1032, %v1031
    %v1034 = vmul.f32 %v951, 0.0
    %v1035 = vadd.f32 %v1033, %v1034
    %v1036 = vld [vmem:[#allocation2 + $0x2] sm:$0x3]
    %v1038 = vsel %vm181, %v1035, 0
    %1040 = vmatprep.subr.mxu0 0.0
    %1041 = vmatpush1.msra.mxu0 0.0
    %1042 = vmatprep.subr.mxu0 0.0
    %1043 = vmatpush1.msra.mxu0 0.0
    %1044 = vmatprep.subr.mxu0 0.0
    %1045 = vmatpush1.msra.mxu0 0.0
    %1046 = vmatprep.subr.mxu0 0.0
    %1047 = vmatpush1.msra.mxu0 0.0
    %1048 = vmatprep.subr.mxu0 0.0
    %1049 = vmatpush1.msra.mxu0 0.0
    %1050 = vmatprep.subr.mxu0 0.0
    %1051 = vmatpush1.msra.mxu0 0.0
    %1052 = vmatprep.subr.mxu0 0.0
    %1053 = vmatpush1.msra.mxu0 0.0
    %1054 = vmatprep.subr.mxu0 0.0
    %1055 = vmatpush1.msra.mxu0 0.0
    %1056 = vmatprep.subr.mxu0 0.0
    %1057 = vmatpush1.msra.mxu0 0.0
    %1058 = vmatprep.subr.mxu0 0.0
    %1059 = vmatpush1.msra.mxu0 0.0
    %1060 = vmatprep.subr.mxu0 0.0
    %1061 = vmatpush1.msra.mxu0 0.0
    %1062 = vmatprep.subr.mxu0 0.0
    %1063 = vmatpush1.msra.mxu0 0.0
    %1064 = vmatprep.subr.mxu0 0.0
    %1065 = vmatpush1.msra.mxu0 0.0
    %1066 = vmatprep.subr.mxu0 0.0
    %1067 = vmatpush1.msra.mxu0 0.0
    %1068 = vmatprep.subr.mxu0 0.0
    %1069 = vmatpush1.msra.mxu0 %v785
    %1070 = vmatprep.subr.mxu0 0.0
    %1071 = vmatpush1.msra.mxu0 %v784
    %1072 = vmatprep.subr.mxu0 0.0
    %1073 = vmatpush2.msra.mxu0 0.0
    %1074 = vmatprep.subr.mxu0 0.0
    %1075 = vmatpush2.msra.mxu0 0.0
    %1076 = vmatprep.subr.mxu0 0.0
    %1077 = vmatpush2.msra.mxu0 0.0
    %1078 = vmatprep.subr.mxu0 0.0
    %1079 = vmatpush2.msra.mxu0 0.0
    %1080 = vmatprep.subr.mxu0 0.0
    %1081 = vmatpush2.msra.mxu0 0.0
    %1082 = vmatprep.subr.mxu0 0.0
    %1083 = vmatpush2.msra.mxu0 0.0
    %1084 = vmatprep.subr.mxu0 0.0
    %1085 = vmatpush2.msra.mxu0 0.0
    %1086 = vmatprep.subr.mxu0 0.0
    %1087 = vmatpush2.msra.mxu0 0.0
    %1088 = vmatprep.subr.mxu0 0.0
    %1089 = vmatpush2.msra.mxu0 0.0
    %1090 = vmatprep.subr.mxu0 0.0
    %1091 = vmatpush2.msra.mxu0 0.0
    %1092 = vmatprep.subr.mxu0 0.0
    %1093 = vmatpush2.msra.mxu0 0.0
    %1094 = vmatprep.subr.mxu0 0.0
    %1095 = vmatpush2.msra.mxu0 0.0
    %1096 = vmatprep.subr.mxu0 0.0
    %1097 = vmatpush2.msra.mxu0 0.0
    %1098 = vmatprep.subr.mxu0 0.0
    %1099 = vmatpush2.msra.mxu0 0.0
    %1100 = vmatprep.subr.mxu0 0.0
    %1101 = vmatpush2.msra.mxu0 0.0
    %1102 = vmatprep.subr.mxu0 0.0
    %1103 = vmatpush2.msra.mxu0 0.0
    %1104 = vmatprep.mubr.f32.mxu0 0.0
    %1105 = vmatmul.mubr.f32.gmra.mxu0 %v1038
    %v1106 = vpop.f32.mrf.mxu0
    %v1107 = vadd.f32 0.0, %v1106
    %v1108 = vpop.f32.mrf.mxu0
    %1109 = vdwg.mxu0
    %v1110 = vadd.f32 %v1036, %v1107
    %v1111 = vxor.u32 %v1110, 2147483648
    %v1112 = vmul.f32 %v1111, 1.442695
    %v1113 = vpow.pop %v1112
    %v1114 = vadd.f32 %v1113, 1.0
    %v1115 = vrcp.pop %v1114
    %v1116 = vmul.f32 1.0, %v1115
    %v1117 = vld [vmem:[#allocation3 + $0x2] sm:$0x3]
    %1118 = vmatprep.subr.mxu0 0.0
    %1119 = vmatpush1.msra.mxu0 0.0
    %1120 = vmatprep.subr.mxu0 0.0
    %1121 = vmatpush1.msra.mxu0 0.0
    %1122 = vmatprep.subr.mxu0 0.0
    %1123 = vmatpush1.msra.mxu0 0.0
    %1124 = vmatprep.subr.mxu0 0.0
    %1125 = vmatpush1.msra.mxu0 0.0
    %1126 = vmatprep.subr.mxu0 0.0
    %1127 = vmatpush1.msra.mxu0 0.0
    %1128 = vmatprep.subr.mxu0 0.0
    %1129 = vmatpush1.msra.mxu0 0.0
    %1130 = vmatprep.subr.mxu0 0.0
    %1131 = vmatpush1.msra.mxu0 0.0
    %1132 = vmatprep.subr.mxu0 0.0
    %1133 = vmatpush1.msra.mxu0 0.0
    %1134 = vmatprep.subr.mxu0 0.0
    %1135 = vmatpush1.msra.mxu0 0.0
    %1136 = vmatprep.subr.mxu0 0.0
    %1137 = vmatpush1.msra.mxu0 0.0
    %1138 = vmatprep.subr.mxu0 0.0
    %1139 = vmatpush1.msra.mxu0 0.0
    %1140 = vmatprep.subr.mxu0 0.0
    %1141 = vmatpush1.msra.mxu0 0.0
    %1142 = vmatprep.subr.mxu0 0.0
    %1143 = vmatpush1.msra.mxu0 0.0
    %1144 = vmatprep.subr.mxu0 0.0
    %1145 = vmatpush1.msra.mxu0 0.0
    %1146 = vmatprep.subr.mxu0 0.0
    %1147 = vmatpush1.msra.mxu0 %v788
    %1148 = vmatprep.subr.mxu0 0.0
    %1149 = vmatpush1.msra.mxu0 %v787
    %1150 = vmatprep.subr.mxu0 0.0
    %1151 = vmatpush2.msra.mxu0 0.0
    %1152 = vmatprep.subr.mxu0 0.0
    %1153 = vmatpush2.msra.mxu0 0.0
    %1154 = vmatprep.subr.mxu0 0.0
    %1155 = vmatpush2.msra.mxu0 0.0
    %1156 = vmatprep.subr.mxu0 0.0
    %1157 = vmatpush2.msra.mxu0 0.0
    %1158 = vmatprep.subr.mxu0 0.0
    %1159 = vmatpush2.msra.mxu0 0.0
    %1160 = vmatprep.subr.mxu0 0.0
    %1161 = vmatpush2.msra.mxu0 0.0
    %1162 = vmatprep.subr.mxu0 0.0
    %1163 = vmatpush2.msra.mxu0 0.0
    %1164 = vmatprep.subr.mxu0 0.0
    %1165 = vmatpush2.msra.mxu0 0.0
    %1166 = vmatprep.subr.mxu0 0.0
    %1167 = vmatpush2.msra.mxu0 0.0
    %1168 = vmatprep.subr.mxu0 0.0
    %1169 = vmatpush2.msra.mxu0 0.0
    %1170 = vmatprep.subr.mxu0 0.0
    %1171 = vmatpush2.msra.mxu0 0.0
    %1172 = vmatprep.subr.mxu0 0.0
    %1173 = vmatpush2.msra.mxu0 0.0
    %1174 = vmatprep.subr.mxu0 0.0
    %1175 = vmatpush2.msra.mxu0 0.0
    %1176 = vmatprep.subr.mxu0 0.0
    %1177 = vmatpush2.msra.mxu0 0.0
    %1178 = vmatprep.subr.mxu0 0.0
    %1179 = vmatpush2.msra.mxu0 0.0
    %1180 = vmatprep.subr.mxu0 0.0
    %1181 = vmatpush2.msra.mxu0 0.0
    %1182 = vmatprep.mubr.f32.mxu0 0.0
    %1183 = vmatmul.mubr.f32.gmra.mxu0 %v1038
    %v1184 = vpop.f32.mrf.mxu0
    %v1185 = vadd.f32 0.0, %v1184
    %v1186 = vpop.f32.mrf.mxu0
    %1187 = vdwg.mxu0
    %v1188 = vadd.f32 %v1117, %v1185
    %v1189 = vxor.u32 %v1188, 2147483648
    %v1190 = vmul.f32 %v1189, 1.442695
    %v1191 = vpow.pop %v1190
    %v1192 = vadd.f32 %v1191, 1.0
    %v1193 = vrcp.pop %v1192
    %v1194 = vmul.f32 1.0, %v1193
    %v1195 = vld [vmem:[#allocation4 + $0x2] sm:$0x3]
    %1196 = vmatprep.subr.mxu0 0.0
    %1197 = vmatpush1.msra.mxu0 0.0
    %1198 = vmatprep.subr.mxu0 0.0
    %1199 = vmatpush1.msra.mxu0 0.0
    %1200 = vmatprep.subr.mxu0 0.0
    %1201 = vmatpush1.msra.mxu0 0.0
    %1202 = vmatprep.subr.mxu0 0.0
    %1203 = vmatpush1.msra.mxu0 0.0
    %1204 = vmatprep.subr.mxu0 0.0
    %1205 = vmatpush1.msra.mxu0 0.0
    %1206 = vmatprep.subr.mxu0 0.0
    %1207 = vmatpush1.msra.mxu0 0.0
    %1208 = vmatprep.subr.mxu0 0.0
    %1209 = vmatpush1.msra.mxu0 0.0
    %1210 = vmatprep.subr.mxu0 0.0
    %1211 = vmatpush1.msra.mxu0 0.0
    %1212 = vmatprep.subr.mxu0 0.0
    %1213 = vmatpush1.msra.mxu0 0.0
    %1214 = vmatprep.subr.mxu0 0.0
    %1215 = vmatpush1.msra.mxu0 0.0
    %1216 = vmatprep.subr.mxu0 0.0
    %1217 = vmatpush1.msra.mxu0 0.0
    %1218 = vmatprep.subr.mxu0 0.0
    %1219 = vmatpush1.msra.mxu0 0.0
    %1220 = vmatprep.subr.mxu0 0.0
    %1221 = vmatpush1.msra.mxu0 0.0
    %1222 = vmatprep.subr.mxu0 0.0
    %1223 = vmatpush1.msra.mxu0 0.0
    %1224 = vmatprep.subr.mxu0 0.0
    %1225 = vmatpush1.msra.mxu0 %v791
    %1226 = vmatprep.subr.mxu0 0.0
    %1227 = vmatpush1.msra.mxu0 %v790
    %1228 = vmatprep.subr.mxu0 0.0
    %1229 = vmatpush2.msra.mxu0 0.0
    %1230 = vmatprep.subr.mxu0 0.0
    %1231 = vmatpush2.msra.mxu0 0.0
    %1232 = vmatprep.subr.mxu0 0.0
    %1233 = vmatpush2.msra.mxu0 0.0
    %1234 = vmatprep.subr.mxu0 0.0
    %1235 = vmatpush2.msra.mxu0 0.0
    %1236 = vmatprep.subr.mxu0 0.0
    %1237 = vmatpush2.msra.mxu0 0.0
    %1238 = vmatprep.subr.mxu0 0.0
    %1239 = vmatpush2.msra.mxu0 0.0
    %1240 = vmatprep.subr.mxu0 0.0
    %1241 = vmatpush2.msra.mxu0 0.0
    %1242 = vmatprep.subr.mxu0 0.0
    %1243 = vmatpush2.msra.mxu0 0.0
    %1244 = vmatprep.subr.mxu0 0.0
    %1245 = vmatpush2.msra.mxu0 0.0
    %1246 = vmatprep.subr.mxu0 0.0
    %1247 = vmatpush2.msra.mxu0 0.0
    %1248 = vmatprep.subr.mxu0 0.0
    %1249 = vmatpush2.msra.mxu0 0.0
    %1250 = vmatprep.subr.mxu0 0.0
    %1251 = vmatpush2.msra.mxu0 0.0
    %1252 = vmatprep.subr.mxu0 0.0
    %1253 = vmatpush2.msra.mxu0 0.0
    %1254 = vmatprep.subr.mxu0 0.0
    %1255 = vmatpush2.msra.mxu0 0.0
    %1256 = vmatprep.subr.mxu0 0.0
    %1257 = vmatpush2.msra.mxu0 0.0
    %1258 = vmatprep.subr.mxu0 0.0
    %1259 = vmatpush2.msra.mxu0 0.0
    %1260 = vmatprep.mubr.f32.mxu0 0.0
    %1261 = vmatmul.mubr.f32.gmra.mxu0 %v1038
    %v1262 = vpop.f32.mrf.mxu0
    %v1263 = vadd.f32 %v957, %v1262
    %v1264 = vpop.f32.mrf.mxu0
    %1265 = vdwg.mxu0
    %v1266 = vmul.f32 %v1116, %v1263
    %v1267 = vadd.f32 %v1195, %v1266
    %v1268 = vtanh.pop %v1267
    %v1269 = vsub.f32 1.0, %v1194
    %v1270 = vmul.f32 %v1269, %v1268
    %v1271 = vmul.f32 %v1194, %v1035
    %v1272 = vadd.f32 %v1270, %v1271
    %v1273 = vld [vmem:[#allocation2 + $0x4] sm:$0x3]
    %v1275 = vsel %vm181, %v1272, 0
    %1277 = vmatprep.subr.mxu0 0.0
    %1278 = vmatpush1.msra.mxu0 0.0
    %1279 = vmatprep.subr.mxu0 0.0
    %1280 = vmatpush1.msra.mxu0 0.0
    %1281 = vmatprep.subr.mxu0 0.0
    %1282 = vmatpush1.msra.mxu0 0.0
    %1283 = vmatprep.subr.mxu0 0.0
    %1284 = vmatpush1.msra.mxu0 0.0
    %1285 = vmatprep.subr.mxu0 0.0
    %1286 = vmatpush1.msra.mxu0 0.0
    %1287 = vmatprep.subr.mxu0 0.0
    %1288 = vmatpush1.msra.mxu0 0.0
    %1289 = vmatprep.subr.mxu0 0.0
    %1290 = vmatpush1.msra.mxu0 0.0
    %1291 = vmatprep.subr.mxu0 0.0
    %1292 = vmatpush1.msra.mxu0 0.0
    %1293 = vmatprep.subr.mxu0 0.0
    %1294 = vmatpush1.msra.mxu0 0.0
    %1295 = vmatprep.subr.mxu0 0.0
    %1296 = vmatpush1.msra.mxu0 0.0
    %1297 = vmatprep.subr.mxu0 0.0
    %1298 = vmatpush1.msra.mxu0 0.0
    %1299 = vmatprep.subr.mxu0 0.0
    %1300 = vmatpush1.msra.mxu0 0.0
    %1301 = vmatprep.subr.mxu0 0.0
    %1302 = vmatpush1.msra.mxu0 0.0
    %1303 = vmatprep.subr.mxu0 0.0
    %1304 = vmatpush1.msra.mxu0 0.0
    %1305 = vmatprep.subr.mxu0 0.0
    %1306 = vmatpush1.msra.mxu0 %v785
    %1307 = vmatprep.subr.mxu0 0.0
    %1308 = vmatpush1.msra.mxu0 %v784
    %1309 = vmatprep.subr.mxu0 0.0
    %1310 = vmatpush2.msra.mxu0 0.0
    %1311 = vmatprep.subr.mxu0 0.0
    %1312 = vmatpush2.msra.mxu0 0.0
    %1313 = vmatprep.subr.mxu0 0.0
    %1314 = vmatpush2.msra.mxu0 0.0
    %1315 = vmatprep.subr.mxu0 0.0
    %1316 = vmatpush2.msra.mxu0 0.0
    %1317 = vmatprep.subr.mxu0 0.0
    %1318 = vmatpush2.msra.mxu0 0.0
    %1319 = vmatprep.subr.mxu0 0.0
    %1320 = vmatpush2.msra.mxu0 0.0
    %1321 = vmatprep.subr.mxu0 0.0
    %1322 = vmatpush2.msra.mxu0 0.0
    %1323 = vmatprep.subr.mxu0 0.0
    %1324 = vmatpush2.msra.mxu0 0.0
    %1325 = vmatprep.subr.mxu0 0.0
    %1326 = vmatpush2.msra.mxu0 0.0
    %1327 = vmatprep.subr.mxu0 0.0
    %1328 = vmatpush2.msra.mxu0 0.0
    %1329 = vmatprep.subr.mxu0 0.0
    %1330 = vmatpush2.msra.mxu0 0.0
    %1331 = vmatprep.subr.mxu0 0.0
    %1332 = vmatpush2.msra.mxu0 0.0
    %1333 = vmatprep.subr.mxu0 0.0
    %1334 = vmatpush2.msra.mxu0 0.0
    %1335 = vmatprep.subr.mxu0 0.0
    %1336 = vmatpush2.msra.mxu0 0.0
    %1337 = vmatprep.subr.mxu0 0.0
    %1338 = vmatpush2.msra.mxu0 0.0
    %1339 = vmatprep.subr.mxu0 0.0
    %1340 = vmatpush2.msra.mxu0 0.0
    %1341 = vmatprep.mubr.f32.mxu0 0.0
    %1342 = vmatmul.mubr.f32.gmra.mxu0 %v1275
    %v1343 = vpop.f32.mrf.mxu0
    %v1344 = vadd.f32 0.0, %v1343
    %v1345 = vpop.f32.mrf.mxu0
    %1346 = vdwg.mxu0
    %v1347 = vadd.f32 %v1273, %v1344
    %v1348 = vxor.u32 %v1347, 2147483648
    %v1349 = vmul.f32 %v1348, 1.442695
    %v1350 = vpow.pop %v1349
    %v1351 = vadd.f32 %v1350, 1.0
    %v1352 = vrcp.pop %v1351
    %v1353 = vmul.f32 1.0, %v1352
    %v1354 = vld [vmem:[#allocation3 + $0x4] sm:$0x3]
    %1355 = vmatprep.subr.mxu0 0.0
    %1356 = vmatpush1.msra.mxu0 0.0
    %1357 = vmatprep.subr.mxu0 0.0
    %1358 = vmatpush1.msra.mxu0 0.0
    %1359 = vmatprep.subr.mxu0 0.0
    %1360 = vmatpush1.msra.mxu0 0.0
    %1361 = vmatprep.subr.mxu0 0.0
    %1362 = vmatpush1.msra.mxu0 0.0
    %1363 = vmatprep.subr.mxu0 0.0
    %1364 = vmatpush1.msra.mxu0 0.0
    %1365 = vmatprep.subr.mxu0 0.0
    %1366 = vmatpush1.msra.mxu0 0.0
    %1367 = vmatprep.subr.mxu0 0.0
    %1368 = vmatpush1.msra.mxu0 0.0
    %1369 = vmatprep.subr.mxu0 0.0
    %1370 = vmatpush1.msra.mxu0 0.0
    %1371 = vmatprep.subr.mxu0 0.0
    %1372 = vmatpush1.msra.mxu0 0.0
    %1373 = vmatprep.subr.mxu0 0.0
    %1374 = vmatpush1.msra.mxu0 0.0
    %1375 = vmatprep.subr.mxu0 0.0
    %1376 = vmatpush1.msra.mxu0 0.0
    %1377 = vmatprep.subr.mxu0 0.0
    %1378 = vmatpush1.msra.mxu0 0.0
    %1379 = vmatprep.subr.mxu0 0.0
    %1380 = vmatpush1.msra.mxu0 0.0
    %1381 = vmatprep.subr.mxu0 0.0
    %1382 = vmatpush1.msra.mxu0 0.0
    %1383 = vmatprep.subr.mxu0 0.0
    %1384 = vmatpush1.msra.mxu0 %v788
    %1385 = vmatprep.subr.mxu0 0.0
    %1386 = vmatpush1.msra.mxu0 %v787
    %1387 = vmatprep.subr.mxu0 0.0
    %1388 = vmatpush2.msra.mxu0 0.0
    %1389 = vmatprep.subr.mxu0 0.0
    %1390 = vmatpush2.msra.mxu0 0.0
    %1391 = vmatprep.subr.mxu0 0.0
    %1392 = vmatpush2.msra.mxu0 0.0
    %1393 = vmatprep.subr.mxu0 0.0
    %1394 = vmatpush2.msra.mxu0 0.0
    %1395 = vmatprep.subr.mxu0 0.0
    %1396 = vmatpush2.msra.mxu0 0.0
    %1397 = vmatprep.subr.mxu0 0.0
    %1398 = vmatpush2.msra.mxu0 0.0
    %1399 = vmatprep.subr.mxu0 0.0
    %1400 = vmatpush2.msra.mxu0 0.0
    %1401 = vmatprep.subr.mxu0 0.0
    %1402 = vmatpush2.msra.mxu0 0.0
    %1403 = vmatprep.subr.mxu0 0.0
    %1404 = vmatpush2.msra.mxu0 0.0
    %1405 = vmatprep.subr.mxu0 0.0
    %1406 = vmatpush2.msra.mxu0 0.0
    %1407 = vmatprep.subr.mxu0 0.0
    %1408 = vmatpush2.msra.mxu0 0.0
    %1409 = vmatprep.subr.mxu0 0.0
    %1410 = vmatpush2.msra.mxu0 0.0
    %1411 = vmatprep.subr.mxu0 0.0
    %1412 = vmatpush2.msra.mxu0 0.0
    %1413 = vmatprep.subr.mxu0 0.0
    %1414 = vmatpush2.msra.mxu0 0.0
    %1415 = vmatprep.subr.mxu0 0.0
    %1416 = vmatpush2.msra.mxu0 0.0
    %1417 = vmatprep.subr.mxu0 0.0
    %1418 = vmatpush2.msra.mxu0 0.0
    %1419 = vmatprep.mubr.f32.mxu0 0.0
    %1420 = vmatmul.mubr.f32.gmra.mxu0 %v1275
    %v1421 = vpop.f32.mrf.mxu0
    %v1422 = vadd.f32 0.0, %v1421
    %v1423 = vpop.f32.mrf.mxu0
    %1424 = vdwg.mxu0
    %v1425 = vadd.f32 %v1354, %v1422
    %v1426 = vxor.u32 %v1425, 2147483648
    %v1427 = vmul.f32 %v1426, 1.442695
    %v1428 = vpow.pop %v1427
    %v1429 = vadd.f32 %v1428, 1.0
    %v1430 = vrcp.pop %v1429
    %v1431 = vmul.f32 1.0, %v1430
    %v1432 = vld [vmem:[#allocation4 + $0x4] sm:$0x3]
    %1433 = vmatprep.subr.mxu0 0.0
    %1434 = vmatpush1.msra.mxu0 0.0
    %1435 = vmatprep.subr.mxu0 0.0
    %1436 = vmatpush1.msra.mxu0 0.0
    %1437 = vmatprep.subr.mxu0 0.0
    %1438 = vmatpush1.msra.mxu0 0.0
    %1439 = vmatprep.subr.mxu0 0.0
    %1440 = vmatpush1.msra.mxu0 0.0
    %1441 = vmatprep.subr.mxu0 0.0
    %1442 = vmatpush1.msra.mxu0 0.0
    %1443 = vmatprep.subr.mxu0 0.0
    %1444 = vmatpush1.msra.mxu0 0.0
    %1445 = vmatprep.subr.mxu0 0.0
    %1446 = vmatpush1.msra.mxu0 0.0
    %1447 = vmatprep.subr.mxu0 0.0
    %1448 = vmatpush1.msra.mxu0 0.0
    %1449 = vmatprep.subr.mxu0 0.0
    %1450 = vmatpush1.msra.mxu0 0.0
    %1451 = vmatprep.subr.mxu0 0.0
    %1452 = vmatpush1.msra.mxu0 0.0
    %1453 = vmatprep.subr.mxu0 0.0
    %1454 = vmatpush1.msra.mxu0 0.0
    %1455 = vmatprep.subr.mxu0 0.0
    %1456 = vmatpush1.msra.mxu0 0.0
    %1457 = vmatprep.subr.mxu0 0.0
    %1458 = vmatpush1.msra.mxu0 0.0
    %1459 = vmatprep.subr.mxu0 0.0
    %1460 = vmatpush1.msra.mxu0 0.0
    %1461 = vmatprep.subr.mxu0 0.0
    %1462 = vmatpush1.msra.mxu0 %v791
    %1463 = vmatprep.subr.mxu0 0.0
    %1464 = vmatpush1.msra.mxu0 %v790
    %1465 = vmatprep.subr.mxu0 0.0
    %1466 = vmatpush2.msra.mxu0 0.0
    %1467 = vmatprep.subr.mxu0 0.0
    %1468 = vmatpush2.msra.mxu0 0.0
    %1469 = vmatprep.subr.mxu0 0.0
    %1470 = vmatpush2.msra.mxu0 0.0
    %1471 = vmatprep.subr.mxu0 0.0
    %1472 = vmatpush2.msra.mxu0 0.0
    %1473 = vmatprep.subr.mxu0 0.0
    %1474 = vmatpush2.msra.mxu0 0.0
    %1475 = vmatprep.subr.mxu0 0.0
    %1476 = vmatpush2.msra.mxu0 0.0
    %1477 = vmatprep.subr.mxu0 0.0
    %1478 = vmatpush2.msra.mxu0 0.0
    %1479 = vmatprep.subr.mxu0 0.0
    %1480 = vmatpush2.msra.mxu0 0.0
    %1481 = vmatprep.subr.mxu0 0.0
    %1482 = vmatpush2.msra.mxu0 0.0
    %1483 = vmatprep.subr.mxu0 0.0
    %1484 = vmatpush2.msra.mxu0 0.0
    %1485 = vmatprep.subr.mxu0 0.0
    %1486 = vmatpush2.msra.mxu0 0.0
    %1487 = vmatprep.subr.mxu0 0.0
    %1488 = vmatpush2.msra.mxu0 0.0
    %1489 = vmatprep.subr.mxu0 0.0
    %1490 = vmatpush2.msra.mxu0 0.0
    %1491 = vmatprep.subr.mxu0 0.0
    %1492 = vmatpush2.msra.mxu0 0.0
    %1493 = vmatprep.subr.mxu0 0.0
    %1494 = vmatpush2.msra.mxu0 0.0
    %1495 = vmatprep.subr.mxu0 0.0
    %1496 = vmatpush2.msra.mxu0 0.0
    %1497 = vmatprep.mubr.f32.mxu0 0.0
    %1498 = vmatmul.mubr.f32.gmra.mxu0 %v1275
    %v1499 = vpop.f32.mrf.mxu0
    %v1500 = vadd.f32 %v957, %v1499
    %v1501 = vpop.f32.mrf.mxu0
    %1502 = vdwg.mxu0
    %v1503 = vmul.f32 %v1353, %v1500
    %v1504 = vadd.f32 %v1432, %v1503
    %v1505 = vtanh.pop %v1504
    %v1506 = vsub.f32 1.0, %v1431
    %v1507 = vmul.f32 %v1506, %v1505
    %v1508 = vmul.f32 %v1431, %v1272
    %v1509 = vadd.f32 %v1507, %v1508
    %v1510 = vld [vmem:[#allocation2 + $0x6] sm:$0x3]
    %v1512 = vsel %vm181, %v1509, 0
    %1514 = vmatprep.subr.mxu0 0.0
    %1515 = vmatpush1.msra.mxu0 0.0
    %1516 = vmatprep.subr.mxu0 0.0
    %1517 = vmatpush1.msra.mxu0 0.0
    %1518 = vmatprep.subr.mxu0 0.0
    %1519 = vmatpush1.msra.mxu0 0.0
    %1520 = vmatprep.subr.mxu0 0.0
    %1521 = vmatpush1.msra.mxu0 0.0
    %1522 = vmatprep.subr.mxu0 0.0
    %1523 = vmatpush1.msra.mxu0 0.0
    %1524 = vmatprep.subr.mxu0 0.0
    %1525 = vmatpush1.msra.mxu0 0.0
    %1526 = vmatprep.subr.mxu0 0.0
    %1527 = vmatpush1.msra.mxu0 0.0
    %1528 = vmatprep.subr.mxu0 0.0
    %1529 = vmatpush1.msra.mxu0 0.0
    %1530 = vmatprep.subr.mxu0 0.0
    %1531 = vmatpush1.msra.mxu0 0.0
    %1532 = vmatprep.subr.mxu0 0.0
    %1533 = vmatpush1.msra.mxu0 0.0
    %1534 = vmatprep.subr.mxu0 0.0
    %1535 = vmatpush1.msra.mxu0 0.0
    %1536 = vmatprep.subr.mxu0 0.0
    %1537 = vmatpush1.msra.mxu0 0.0
    %1538 = vmatprep.subr.mxu0 0.0
    %1539 = vmatpush1.msra.mxu0 0.0
    %1540 = vmatprep.subr.mxu0 0.0
    %1541 = vmatpush1.msra.mxu0 0.0
    %1542 = vmatprep.subr.mxu0 0.0
    %1543 = vmatpush1.msra.mxu0 %v785
    %1544 = vmatprep.subr.mxu0 0.0
    %1545 = vmatpush1.msra.mxu0 %v784
    %1546 = vmatprep.subr.mxu0 0.0
    %1547 = vmatpush2.msra.mxu0 0.0
    %1548 = vmatprep.subr.mxu0 0.0
    %1549 = vmatpush2.msra.mxu0 0.0
    %1550 = vmatprep.subr.mxu0 0.0
    %1551 = vmatpush2.msra.mxu0 0.0
    %1552 = vmatprep.subr.mxu0 0.0
    %1553 = vmatpush2.msra.mxu0 0.0
    %1554 = vmatprep.subr.mxu0 0.0
    %1555 = vmatpush2.msra.mxu0 0.0
    %1556 = vmatprep.subr.mxu0 0.0
    %1557 = vmatpush2.msra.mxu0 0.0
    %1558 = vmatprep.subr.mxu0 0.0
    %1559 = vmatpush2.msra.mxu0 0.0
    %1560 = vmatprep.subr.mxu0 0.0
    %1561 = vmatpush2.msra.mxu0 0.0
    %1562 = vmatprep.subr.mxu0 0.0
    %1563 = vmatpush2.msra.mxu0 0.0
    %1564 = vmatprep.subr.mxu0 0.0
    %1565 = vmatpush2.msra.mxu0 0.0
    %1566 = vmatprep.subr.mxu0 0.0
    %1567 = vmatpush2.msra.mxu0 0.0
    %1568 = vmatprep.subr.mxu0 0.0
    %1569 = vmatpush2.msra.mxu0 0.0
    %1570 = vmatprep.subr.mxu0 0.0
    %1571 = vmatpush2.msra.mxu0 0.0
    %1572 = vmatprep.subr.mxu0 0.0
    %1573 = vmatpush2.msra.mxu0 0.0
    %1574 = vmatprep.subr.mxu0 0.0
    %1575 = vmatpush2.msra.mxu0 0.0
    %1576 = vmatprep.subr.mxu0 0.0
    %1577 = vmatpush2.msra.mxu0 0.0
    %1578 = vmatprep.mubr.f32.mxu0 0.0
    %1579 = vmatmul.mubr.f32.gmra.mxu0 %v1512
    %v1580 = vpop.f32.mrf.mxu0
    %v1581 = vadd.f32 0.0, %v1580
    %v1582 = vpop.f32.mrf.mxu0
    %1583 = vdwg.mxu0
    %v1584 = vadd.f32 %v1510, %v1581
    %v1585 = vxor.u32 %v1584, 2147483648
    %v1586 = vmul.f32 %v1585, 1.442695
    %v1587 = vpow.pop %v1586
    %v1588 = vadd.f32 %v1587, 1.0
    %v1589 = vrcp.pop %v1588
    %v1590 = vmul.f32 1.0, %v1589
    %v1591 = vld [vmem:[#allocation3 + $0x6] sm:$0x3]
    %1592 = vmatprep.subr.mxu0 0.0
    %1593 = vmatpush1.msra.mxu0 0.0
    %1594 = vmatprep.subr.mxu0 0.0
    %1595 = vmatpush1.msra.mxu0 0.0
    %1596 = vmatprep.subr.mxu0 0.0
    %1597 = vmatpush1.msra.mxu0 0.0
    %1598 = vmatprep.subr.mxu0 0.0
    %1599 = vmatpush1.msra.mxu0 0.0
    %1600 = vmatprep.subr.mxu0 0.0
    %1601 = vmatpush1.msra.mxu0 0.0
    %1602 = vmatprep.subr.mxu0 0.0
    %1603 = vmatpush1.msra.mxu0 0.0
    %1604 = vmatprep.subr.mxu0 0.0
    %1605 = vmatpush1.msra.mxu0 0.0
    %1606 = vmatprep.subr.mxu0 0.0
    %1607 = vmatpush1.msra.mxu0 0.0
    %1608 = vmatprep.subr.mxu0 0.0
    %1609 = vmatpush1.msra.mxu0 0.0
    %1610 = vmatprep.subr.mxu0 0.0
    %1611 = vmatpush1.msra.mxu0 0.0
    %1612 = vmatprep.subr.mxu0 0.0
    %1613 = vmatpush1.msra.mxu0 0.0
    %1614 = vmatprep.subr.mxu0 0.0
    %1615 = vmatpush1.msra.mxu0 0.0
    %1616 = vmatprep.subr.mxu0 0.0
    %1617 = vmatpush1.msra.mxu0 0.0
    %1618 = vmatprep.subr.mxu0 0.0
    %1619 = vmatpush1.msra.mxu0 0.0
    %1620 = vmatprep.subr.mxu0 0.0
    %1621 = vmatpush1.msra.mxu0 %v788
    %1622 = vmatprep.subr.mxu0 0.0
    %1623 = vmatpush1.msra.mxu0 %v787
    %1624 = vmatprep.subr.mxu0 0.0
    %1625 = vmatpush2.msra.mxu0 0.0
    %1626 = vmatprep.subr.mxu0 0.0
    %1627 = vmatpush2.msra.mxu0 0.0
    %1628 = vmatprep.subr.mxu0 0.0
    %1629 = vmatpush2.msra.mxu0 0.0
    %1630 = vmatprep.subr.mxu0 0.0
    %1631 = vmatpush2.msra.mxu0 0.0
    %1632 = vmatprep.subr.mxu0 0.0
    %1633 = vmatpush2.msra.mxu0 0.0
    %1634 = vmatprep.subr.mxu0 0.0
    %1635 = vmatpush2.msra.mxu0 0.0
    %1636 = vmatprep.subr.mxu0 0.0
    %1637 = vmatpush2.msra.mxu0 0.0
    %1638 = vmatprep.subr.mxu0 0.0
    %1639 = vmatpush2.msra.mxu0 0.0
    %1640 = vmatprep.subr.mxu0 0.0
    %1641 = vmatpush2.msra.mxu0 0.0
    %1642 = vmatprep.subr.mxu0 0.0
    %1643 = vmatpush2.msra.mxu0 0.0
    %1644 = vmatprep.subr.mxu0 0.0
    %1645 = vmatpush2.msra.mxu0 0.0
    %1646 = vmatprep.subr.mxu0 0.0
    %1647 = vmatpush2.msra.mxu0 0.0
    %1648 = vmatprep.subr.mxu0 0.0
    %1649 = vmatpush2.msra.mxu0 0.0
    %1650 = vmatprep.subr.mxu0 0.0
    %1651 = vmatpush2.msra.mxu0 0.0
    %1652 = vmatprep.subr.mxu0 0.0
    %1653 = vmatpush2.msra.mxu0 0.0
    %1654 = vmatprep.subr.mxu0 0.0
    %1655 = vmatpush2.msra.mxu0 0.0
    %1656 = vmatprep.mubr.f32.mxu0 0.0
    %1657 = vmatmul.mubr.f32.gmra.mxu0 %v1512
    %v1658 = vpop.f32.mrf.mxu0
    %v1659 = vadd.f32 0.0, %v1658
    %v1660 = vpop.f32.mrf.mxu0
    %1661 = vdwg.mxu0
    %v1662 = vadd.f32 %v1591, %v1659
    %v1663 = vxor.u32 %v1662, 2147483648
    %v1664 = vmul.f32 %v1663, 1.442695
    %v1665 = vpow.pop %v1664
    %v1666 = vadd.f32 %v1665, 1.0
    %v1667 = vrcp.pop %v1666
    %v1668 = vmul.f32 1.0, %v1667
    %v1669 = vld [vmem:[#allocation4 + $0x6] sm:$0x3]
    %1670 = vmatprep.subr.mxu0 0.0
    %1671 = vmatpush1.msra.mxu0 0.0
    %1672 = vmatprep.subr.mxu0 0.0
    %1673 = vmatpush1.msra.mxu0 0.0
    %1674 = vmatprep.subr.mxu0 0.0
    %1675 = vmatpush1.msra.mxu0 0.0
    %1676 = vmatprep.subr.mxu0 0.0
    %1677 = vmatpush1.msra.mxu0 0.0
    %1678 = vmatprep.subr.mxu0 0.0
    %1679 = vmatpush1.msra.mxu0 0.0
    %1680 = vmatprep.subr.mxu0 0.0
    %1681 = vmatpush1.msra.mxu0 0.0
    %1682 = vmatprep.subr.mxu0 0.0
    %1683 = vmatpush1.msra.mxu0 0.0
    %1684 = vmatprep.subr.mxu0 0.0
    %1685 = vmatpush1.msra.mxu0 0.0
    %1686 = vmatprep.subr.mxu0 0.0
    %1687 = vmatpush1.msra.mxu0 0.0
    %1688 = vmatprep.subr.mxu0 0.0
    %1689 = vmatpush1.msra.mxu0 0.0
    %1690 = vmatprep.subr.mxu0 0.0
    %1691 = vmatpush1.msra.mxu0 0.0
    %1692 = vmatprep.subr.mxu0 0.0
    %1693 = vmatpush1.msra.mxu0 0.0
    %1694 = vmatprep.subr.mxu0 0.0
    %1695 = vmatpush1.msra.mxu0 0.0
    %1696 = vmatprep.subr.mxu0 0.0
    %1697 = vmatpush1.msra.mxu0 0.0
    %1698 = vmatprep.subr.mxu0 0.0
    %1699 = vmatpush1.msra.mxu0 %v791
    %1700 = vmatprep.subr.mxu0 0.0
    %1701 = vmatpush1.msra.mxu0 %v790
    %1702 = vmatprep.subr.mxu0 0.0
    %1703 = vmatpush2.msra.mxu0 0.0
    %1704 = vmatprep.subr.mxu0 0.0
    %1705 = vmatpush2.msra.mxu0 0.0
    %1706 = vmatprep.subr.mxu0 0.0
    %1707 = vmatpush2.msra.mxu0 0.0
    %1708 = vmatprep.subr.mxu0 0.0
    %1709 = vmatpush2.msra.mxu0 0.0
    %1710 = vmatprep.subr.mxu0 0.0
    %1711 = vmatpush2.msra.mxu0 0.0
    %1712 = vmatprep.subr.mxu0 0.0
    %1713 = vmatpush2.msra.mxu0 0.0
    %1714 = vmatprep.subr.mxu0 0.0
    %1715 = vmatpush2.msra.mxu0 0.0
    %1716 = vmatprep.subr.mxu0 0.0
    %1717 = vmatpush2.msra.mxu0 0.0
    %1718 = vmatprep.subr.mxu0 0.0
    %1719 = vmatpush2.msra.mxu0 0.0
    %1720 = vmatprep.subr.mxu0 0.0
    %1721 = vmatpush2.msra.mxu0 0.0
    %1722 = vmatprep.subr.mxu0 0.0
    %1723 = vmatpush2.msra.mxu0 0.0
    %1724 = vmatprep.subr.mxu0 0.0
    %1725 = vmatpush2.msra.mxu0 0.0
    %1726 = vmatprep.subr.mxu0 0.0
    %1727 = vmatpush2.msra.mxu0 0.0
    %1728 = vmatprep.subr.mxu0 0.0
    %1729 = vmatpush2.msra.mxu0 0.0
    %1730 = vmatprep.subr.mxu0 0.0
    %1731 = vmatpush2.msra.mxu0 0.0
    %1732 = vmatprep.subr.mxu0 0.0
    %1733 = vmatpush2.msra.mxu0 0.0
    %1734 = vmatprep.mubr.f32.mxu0 0.0
    %1735 = vmatmul.mubr.f32.gmra.mxu0 %v1512
    %v1736 = vpop.f32.mrf.mxu0
    %v1737 = vadd.f32 %v957, %v1736
    %v1738 = vpop.f32.mrf.mxu0
    %1739 = vdwg.mxu0
    %v1740 = vmul.f32 %v1590, %v1737
    %v1741 = vadd.f32 %v1669, %v1740
    %v1742 = vtanh.pop %v1741
    %v1743 = vsub.f32 1.0, %v1668
    %v1744 = vmul.f32 %v1743, %v1742
    %v1745 = vmul.f32 %v1668, %v1509
    %v1746 = vadd.f32 %v1744, %v1745
    %v1747 = vld [vmem:[#allocation2 + $0x8] sm:$0x3]
    %v1749 = vsel %vm181, %v1746, 0
    %1751 = vmatprep.subr.mxu0 0.0
    %1752 = vmatpush1.msra.mxu0 0.0
    %1753 = vmatprep.subr.mxu0 0.0
    %1754 = vmatpush1.msra.mxu0 0.0
    %1755 = vmatprep.subr.mxu0 0.0
    %1756 = vmatpush1.msra.mxu0 0.0
    %1757 = vmatprep.subr.mxu0 0.0
    %1758 = vmatpush1.msra.mxu0 0.0
    %1759 = vmatprep.subr.mxu0 0.0
    %1760 = vmatpush1.msra.mxu0 0.0
    %1761 = vmatprep.subr.mxu0 0.0
    %1762 = vmatpush1.msra.mxu0 0.0
    %1763 = vmatprep.subr.mxu0 0.0
    %1764 = vmatpush1.msra.mxu0 0.0
    %1765 = vmatprep.subr.mxu0 0.0
    %1766 = vmatpush1.msra.mxu0 0.0
    %1767 = vmatprep.subr.mxu0 0.0
    %1768 = vmatpush1.msra.mxu0 0.0
    %1769 = vmatprep.subr.mxu0 0.0
    %1770 = vmatpush1.msra.mxu0 0.0
    %1771 = vmatprep.subr.mxu0 0.0
    %1772 = vmatpush1.msra.mxu0 0.0
    %1773 = vmatprep.subr.mxu0 0.0
    %1774 = vmatpush1.msra.mxu0 0.0
    %1775 = vmatprep.subr.mxu0 0.0
    %1776 = vmatpush1.msra.mxu0 0.0
    %1777 = vmatprep.subr.mxu0 0.0
    %1778 = vmatpush1.msra.mxu0 0.0
    %1779 = vmatprep.subr.mxu0 0.0
    %1780 = vmatpush1.msra.mxu0 %v785
    %1781 = vmatprep.subr.mxu0 0.0
    %1782 = vmatpush1.msra.mxu0 %v784
    %1783 = vmatprep.subr.mxu0 0.0
    %1784 = vmatpush2.msra.mxu0 0.0
    %1785 = vmatprep.subr.mxu0 0.0
    %1786 = vmatpush2.msra.mxu0 0.0
    %1787 = vmatprep.subr.mxu0 0.0
    %1788 = vmatpush2.msra.mxu0 0.0
    %1789 = vmatprep.subr.mxu0 0.0
    %1790 = vmatpush2.msra.mxu0 0.0
    %1791 = vmatprep.subr.mxu0 0.0
    %1792 = vmatpush2.msra.mxu0 0.0
    %1793 = vmatprep.subr.mxu0 0.0
    %1794 = vmatpush2.msra.mxu0 0.0
    %1795 = vmatprep.subr.mxu0 0.0
    %1796 = vmatpush2.msra.mxu0 0.0
    %1797 = vmatprep.subr.mxu0 0.0
    %1798 = vmatpush2.msra.mxu0 0.0
    %1799 = vmatprep.subr.mxu0 0.0
    %1800 = vmatpush2.msra.mxu0 0.0
    %1801 = vmatprep.subr.mxu0 0.0
    %1802 = vmatpush2.msra.mxu0 0.0
    %1803 = vmatprep.subr.mxu0 0.0
    %1804 = vmatpush2.msra.mxu0 0.0
    %1805 = vmatprep.subr.mxu0 0.0
    %1806 = vmatpush2.msra.mxu0 0.0
    %1807 = vmatprep.subr.mxu0 0.0
    %1808 = vmatpush2.msra.mxu0 0.0
    %1809 = vmatprep.subr.mxu0 0.0
    %1810 = vmatpush2.msra.mxu0 0.0
    %1811 = vmatprep.subr.mxu0 0.0
    %1812 = vmatpush2.msra.mxu0 0.0
    %1813 = vmatprep.subr.mxu0 0.0
    %1814 = vmatpush2.msra.mxu0 0.0
    %1815 = vmatprep.mubr.f32.mxu0 0.0
    %1816 = vmatmul.mubr.f32.gmra.mxu0 %v1749
    %v1817 = vpop.f32.mrf.mxu0
    %v1818 = vadd.f32 0.0, %v1817
    %v1819 = vpop.f32.mrf.mxu0
    %1820 = vdwg.mxu0
    %v1821 = vadd.f32 %v1747, %v1818
    %v1822 = vxor.u32 %v1821, 2147483648
    %v1823 = vmul.f32 %v1822, 1.442695
    %v1824 = vpow.pop %v1823
    %v1825 = vadd.f32 %v1824, 1.0
    %v1826 = vrcp.pop %v1825
    %v1827 = vmul.f32 1.0, %v1826
    %v1828 = vld [vmem:[#allocation3 + $0x8] sm:$0x3]
    %1829 = vmatprep.subr.mxu0 0.0
    %1830 = vmatpush1.msra.mxu0 0.0
    %1831 = vmatprep.subr.mxu0 0.0
    %1832 = vmatpush1.msra.mxu0 0.0
    %1833 = vmatprep.subr.mxu0 0.0
    %1834 = vmatpush1.msra.mxu0 0.0
    %1835 = vmatprep.subr.mxu0 0.0
    %1836 = vmatpush1.msra.mxu0 0.0
    %1837 = vmatprep.subr.mxu0 0.0
    %1838 = vmatpush1.msra.mxu0 0.0
    %1839 = vmatprep.subr.mxu0 0.0
    %1840 = vmatpush1.msra.mxu0 0.0
    %1841 = vmatprep.subr.mxu0 0.0
    %1842 = vmatpush1.msra.mxu0 0.0
    %1843 = vmatprep.subr.mxu0 0.0
    %1844 = vmatpush1.msra.mxu0 0.0
    %1845 = vmatprep.subr.mxu0 0.0
    %1846 = vmatpush1.msra.mxu0 0.0
    %1847 = vmatprep.subr.mxu0 0.0
    %1848 = vmatpush1.msra.mxu0 0.0
    %1849 = vmatprep.subr.mxu0 0.0
    %1850 = vmatpush1.msra.mxu0 0.0
    %1851 = vmatprep.subr.mxu0 0.0
    %1852 = vmatpush1.msra.mxu0 0.0
    %1853 = vmatprep.subr.mxu0 0.0
    %1854 = vmatpush1.msra.mxu0 0.0
    %1855 = vmatprep.subr.mxu0 0.0
    %1856 = vmatpush1.msra.mxu0 0.0
    %1857 = vmatprep.subr.mxu0 0.0
    %1858 = vmatpush1.msra.mxu0 %v788
    %1859 = vmatprep.subr.mxu0 0.0
    %1860 = vmatpush1.msra.mxu0 %v787
    %1861 = vmatprep.subr.mxu0 0.0
    %1862 = vmatpush2.msra.mxu0 0.0
    %1863 = vmatprep.subr.mxu0 0.0
    %1864 = vmatpush2.msra.mxu0 0.0
    %1865 = vmatprep.subr.mxu0 0.0
    %1866 = vmatpush2.msra.mxu0 0.0
    %1867 = vmatprep.subr.mxu0 0.0
    %1868 = vmatpush2.msra.mxu0 0.0
    %1869 = vmatprep.subr.mxu0 0.0
    %1870 = vmatpush2.msra.mxu0 0.0
    %1871 = vmatprep.subr.mxu0 0.0
    %1872 = vmatpush2.msra.mxu0 0.0
    %1873 = vmatprep.subr.mxu0 0.0
    %1874 = vmatpush2.msra.mxu0 0.0
    %1875 = vmatprep.subr.mxu0 0.0
    %1876 = vmatpush2.msra.mxu0 0.0
    %1877 = vmatprep.subr.mxu0 0.0
    %1878 = vmatpush2.msra.mxu0 0.0
    %1879 = vmatprep.subr.mxu0 0.0
    %1880 = vmatpush2.msra.mxu0 0.0
    %1881 = vmatprep.subr.mxu0 0.0
    %1882 = vmatpush2.msra.mxu0 0.0
    %1883 = vmatprep.subr.mxu0 0.0
    %1884 = vmatpush2.msra.mxu0 0.0
    %1885 = vmatprep.subr.mxu0 0.0
    %1886 = vmatpush2.msra.mxu0 0.0
    %1887 = vmatprep.subr.mxu0 0.0
    %1888 = vmatpush2.msra.mxu0 0.0
    %1889 = vmatprep.subr.mxu0 0.0
    %1890 = vmatpush2.msra.mxu0 0.0
    %1891 = vmatprep.subr.mxu0 0.0
    %1892 = vmatpush2.msra.mxu0 0.0
    %1893 = vmatprep.mubr.f32.mxu0 0.0
    %1894 = vmatmul.mubr.f32.gmra.mxu0 %v1749
    %v1895 = vpop.f32.mrf.mxu0
    %v1896 = vadd.f32 0.0, %v1895
    %v1897 = vpop.f32.mrf.mxu0
    %1898 = vdwg.mxu0
    %v1899 = vadd.f32 %v1828, %v1896
    %v1900 = vxor.u32 %v1899, 2147483648
    %v1901 = vmul.f32 %v1900, 1.442695
    %v1902 = vpow.pop %v1901
    %v1903 = vadd.f32 %v1902, 1.0
    %v1904 = vrcp.pop %v1903
    %v1905 = vmul.f32 1.0, %v1904
    %v1906 = vld [vmem:[#allocation4 + $0x8] sm:$0x3]
    %1907 = vmatprep.subr.mxu0 0.0
    %1908 = vmatpush1.msra.mxu0 0.0
    %1909 = vmatprep.subr.mxu0 0.0
    %1910 = vmatpush1.msra.mxu0 0.0
    %1911 = vmatprep.subr.mxu0 0.0
    %1912 = vmatpush1.msra.mxu0 0.0
    %1913 = vmatprep.subr.mxu0 0.0
    %1914 = vmatpush1.msra.mxu0 0.0
    %1915 = vmatprep.subr.mxu0 0.0
    %1916 = vmatpush1.msra.mxu0 0.0
    %1917 = vmatprep.subr.mxu0 0.0
    %1918 = vmatpush1.msra.mxu0 0.0
    %1919 = vmatprep.subr.mxu0 0.0
    %1920 = vmatpush1.msra.mxu0 0.0
    %1921 = vmatprep.subr.mxu0 0.0
    %1922 = vmatpush1.msra.mxu0 0.0
    %1923 = vmatprep.subr.mxu0 0.0
    %1924 = vmatpush1.msra.mxu0 0.0
    %1925 = vmatprep.subr.mxu0 0.0
    %1926 = vmatpush1.msra.mxu0 0.0
    %1927 = vmatprep.subr.mxu0 0.0
    %1928 = vmatpush1.msra.mxu0 0.0
    %1929 = vmatprep.subr.mxu0 0.0
    %1930 = vmatpush1.msra.mxu0 0.0
    %1931 = vmatprep.subr.mxu0 0.0
    %1932 = vmatpush1.msra.mxu0 0.0
    %1933 = vmatprep.subr.mxu0 0.0
    %1934 = vmatpush1.msra.mxu0 0.0
    %1935 = vmatprep.subr.mxu0 0.0
    %1936 = vmatpush1.msra.mxu0 %v791
    %1937 = vmatprep.subr.mxu0 0.0
    %1938 = vmatpush1.msra.mxu0 %v790
    %1939 = vmatprep.subr.mxu0 0.0
    %1940 = vmatpush2.msra.mxu0 0.0
    %1941 = vmatprep.subr.mxu0 0.0
    %1942 = vmatpush2.msra.mxu0 0.0
    %1943 = vmatprep.subr.mxu0 0.0
    %1944 = vmatpush2.msra.mxu0 0.0
    %1945 = vmatprep.subr.mxu0 0.0
    %1946 = vmatpush2.msra.mxu0 0.0
    %1947 = vmatprep.subr.mxu0 0.0
    %1948 = vmatpush2.msra.mxu0 0.0
    %1949 = vmatprep.subr.mxu0 0.0
    %1950 = vmatpush2.msra.mxu0 0.0
    %1951 = vmatprep.subr.mxu0 0.0
    %1952 = vmatpush2.msra.mxu0 0.0
    %1953 = vmatprep.subr.mxu0 0.0
    %1954 = vmatpush2.msra.mxu0 0.0
    %1955 = vmatprep.subr.mxu0 0.0
    %1956 = vmatpush2.msra.mxu0 0.0
    %1957 = vmatprep.subr.mxu0 0.0
    %1958 = vmatpush2.msra.mxu0 0.0
    %1959 = vmatprep.subr.mxu0 0.0
    %1960 = vmatpush2.msra.mxu0 0.0
    %1961 = vmatprep.subr.mxu0 0.0
    %1962 = vmatpush2.msra.mxu0 0.0
    %1963 = vmatprep.subr.mxu0 0.0
    %1964 = vmatpush2.msra.mxu0 0.0
    %1965 = vmatprep.subr.mxu0 0.0
    %1966 = vmatpush2.msra.mxu0 0.0
    %1967 = vmatprep.subr.mxu0 0.0
    %1968 = vmatpush2.msra.mxu0 0.0
    %1969 = vmatprep.subr.mxu0 0.0
    %1970 = vmatpush2.msra.mxu0 0.0
    %1971 = vmatprep.mubr.f32.mxu0 0.0
    %1972 = vmatmul.mubr.f32.gmra.mxu0 %v1749
    %v1973 = vpop.f32.mrf.mxu0
    %v1974 = vadd.f32 %v957, %v1973
    %v1975 = vpop.f32.mrf.mxu0
    %1976 = vdwg.mxu0
    %v1977 = vmul.f32 %v1827, %v1974
    %v1978 = vadd.f32 %v1906, %v1977
    %v1979 = vtanh.pop %v1978
    %v1980 = vsub.f32 1.0, %v1905
    %v1981 = vmul.f32 %v1980, %v1979
    %v1982 = vmul.f32 %v1905, %v1746
    %v1983 = vadd.f32 %v1981, %v1982
    %v1984 = vld [vmem:[#allocation2 + $0xa] sm:$0x3]
    %v1986 = vsel %vm181, %v1983, 0
    %1988 = vmatprep.subr.mxu0 0.0
    %1989 = vmatpush1.msra.mxu0 0.0
    %1990 = vmatprep.subr.mxu0 0.0
    %1991 = vmatpush1.msra.mxu0 0.0
    %1992 = vmatprep.subr.mxu0 0.0
    %1993 = vmatpush1.msra.mxu0 0.0
    %1994 = vmatprep.subr.mxu0 0.0
    %1995 = vmatpush1.msra.mxu0 0.0
    %1996 = vmatprep.subr.mxu0 0.0
    %1997 = vmatpush1.msra.mxu0 0.0
    %1998 = vmatprep.subr.mxu0 0.0
    %1999 = vmatpush1.msra.mxu0 0.0
    %2000 = vmatprep.subr.mxu0 0.0
    %2001 = vmatpush1.msra.mxu0 0.0
    %2002 = vmatprep.subr.mxu0 0.0
    %2003 = vmatpush1.msra.mxu0 0.0
    %2004 = vmatprep.subr.mxu0 0.0
    %2005 = vmatpush1.msra.mxu0 0.0
    %2006 = vmatprep.subr.mxu0 0.0
    %2007 = vmatpush1.msra.mxu0 0.0
    %2008 = vmatprep.subr.mxu0 0.0
    %2009 = vmatpush1.msra.mxu0 0.0
    %2010 = vmatprep.subr.mxu0 0.0
    %2011 = vmatpush1.msra.mxu0 0.0
    %2012 = vmatprep.subr.mxu0 0.0
    %2013 = vmatpush1.msra.mxu0 0.0
    %2014 = vmatprep.subr.mxu0 0.0
    %2015 = vmatpush1.msra.mxu0 0.0
    %2016 = vmatprep.subr.mxu0 0.0
    %2017 = vmatpush1.msra.mxu0 %v785
    %2018 = vmatprep.subr.mxu0 0.0
    %2019 = vmatpush1.msra.mxu0 %v784
    %2020 = vmatprep.subr.mxu0 0.0
    %2021 = vmatpush2.msra.mxu0 0.0
    %2022 = vmatprep.subr.mxu0 0.0
    %2023 = vmatpush2.msra.mxu0 0.0
    %2024 = vmatprep.subr.mxu0 0.0
    %2025 = vmatpush2.msra.mxu0 0.0
    %2026 = vmatprep.subr.mxu0 0.0
    %2027 = vmatpush2.msra.mxu0 0.0
    %2028 = vmatprep.subr.mxu0 0.0
    %2029 = vmatpush2.msra.mxu0 0.0
    %2030 = vmatprep.subr.mxu0 0.0
    %2031 = vmatpush2.msra.mxu0 0.0
    %2032 = vmatprep.subr.mxu0 0.0
    %2033 = vmatpush2.msra.mxu0 0.0
    %2034 = vmatprep.subr.mxu0 0.0
    %2035 = vmatpush2.msra.mxu0 0.0
    %2036 = vmatprep.subr.mxu0 0.0
    %2037 = vmatpush2.msra.mxu0 0.0
    %2038 = vmatprep.subr.mxu0 0.0
    %2039 = vmatpush2.msra.mxu0 0.0
    %2040 = vmatprep.subr.mxu0 0.0
    %2041 = vmatpush2.msra.mxu0 0.0
    %2042 = vmatprep.subr.mxu0 0.0
    %2043 = vmatpush2.msra.mxu0 0.0
    %2044 = vmatprep.subr.mxu0 0.0
    %2045 = vmatpush2.msra.mxu0 0.0
    %2046 = vmatprep.subr.mxu0 0.0
    %2047 = vmatpush2.msra.mxu0 0.0
    %2048 = vmatprep.subr.mxu0 0.0
    %2049 = vmatpush2.msra.mxu0 0.0
    %2050 = vmatprep.subr.mxu0 0.0
    %2051 = vmatpush2.msra.mxu0 0.0
    %2052 = vmatprep.mubr.f32.mxu0 0.0
    %2053 = vmatmul.mubr.f32.gmra.mxu0 %v1986
    %v2054 = vpop.f32.mrf.mxu0
    %v2055 = vadd.f32 0.0, %v2054
    %v2056 = vpop.f32.mrf.mxu0
    %2057 = vdwg.mxu0
    %v2058 = vadd.f32 %v1984, %v2055
    %v2059 = vxor.u32 %v2058, 2147483648
    %v2060 = vmul.f32 %v2059, 1.442695
    %v2061 = vpow.pop %v2060
    %v2062 = vadd.f32 %v2061, 1.0
    %v2063 = vrcp.pop %v2062
    %v2064 = vmul.f32 1.0, %v2063
    %v2065 = vld [vmem:[#allocation3 + $0xa] sm:$0x3]
    %2066 = vmatprep.subr.mxu0 0.0
    %2067 = vmatpush1.msra.mxu0 0.0
    %2068 = vmatprep.subr.mxu0 0.0
    %2069 = vmatpush1.msra.mxu0 0.0
    %2070 = vmatprep.subr.mxu0 0.0
    %2071 = vmatpush1.msra.mxu0 0.0
    %2072 = vmatprep.subr.mxu0 0.0
    %2073 = vmatpush1.msra.mxu0 0.0
    %2074 = vmatprep.subr.mxu0 0.0
    %2075 = vmatpush1.msra.mxu0 0.0
    %2076 = vmatprep.subr.mxu0 0.0
    %2077 = vmatpush1.msra.mxu0 0.0
    %2078 = vmatprep.subr.mxu0 0.0
    %2079 = vmatpush1.msra.mxu0 0.0
    %2080 = vmatprep.subr.mxu0 0.0
    %2081 = vmatpush1.msra.mxu0 0.0
    %2082 = vmatprep.subr.mxu0 0.0
    %2083 = vmatpush1.msra.mxu0 0.0
    %2084 = vmatprep.subr.mxu0 0.0
    %2085 = vmatpush1.msra.mxu0 0.0
    %2086 = vmatprep.subr.mxu0 0.0
    %2087 = vmatpush1.msra.mxu0 0.0
    %2088 = vmatprep.subr.mxu0 0.0
    %2089 = vmatpush1.msra.mxu0 0.0
    %2090 = vmatprep.subr.mxu0 0.0
    %2091 = vmatpush1.msra.mxu0 0.0
    %2092 = vmatprep.subr.mxu0 0.0
    %2093 = vmatpush1.msra.mxu0 0.0
    %2094 = vmatprep.subr.mxu0 0.0
    %2095 = vmatpush1.msra.mxu0 %v788
    %2096 = vmatprep.subr.mxu0 0.0
    %2097 = vmatpush1.msra.mxu0 %v787
    %2098 = vmatprep.subr.mxu0 0.0
    %2099 = vmatpush2.msra.mxu0 0.0
    %2100 = vmatprep.subr.mxu0 0.0
    %2101 = vmatpush2.msra.mxu0 0.0
    %2102 = vmatprep.subr.mxu0 0.0
    %2103 = vmatpush2.msra.mxu0 0.0
    %2104 = vmatprep.subr.mxu0 0.0
    %2105 = vmatpush2.msra.mxu0 0.0
    %2106 = vmatprep.subr.mxu0 0.0
    %2107 = vmatpush2.msra.mxu0 0.0
    %2108 = vmatprep.subr.mxu0 0.0
    %2109 = vmatpush2.msra.mxu0 0.0
    %2110 = vmatprep.subr.mxu0 0.0
    %2111 = vmatpush2.msra.mxu0 0.0
    %2112 = vmatprep.subr.mxu0 0.0
    %2113 = vmatpush2.msra.mxu0 0.0
    %2114 = vmatprep.subr.mxu0 0.0
    %2115 = vmatpush2.msra.mxu0 0.0
    %2116 = vmatprep.subr.mxu0 0.0
    %2117 = vmatpush2.msra.mxu0 0.0
    %2118 = vmatprep.subr.mxu0 0.0
    %2119 = vmatpush2.msra.mxu0 0.0
    %2120 = vmatprep.subr.mxu0 0.0
    %2121 = vmatpush2.msra.mxu0 0.0
    %2122 = vmatprep.subr.mxu0 0.0
    %2123 = vmatpush2.msra.mxu0 0.0
    %2124 = vmatprep.subr.mxu0 0.0
    %2125 = vmatpush2.msra.mxu0 0.0
    %2126 = vmatprep.subr.mxu0 0.0
    %2127 = vmatpush2.msra.mxu0 0.0
    %2128 = vmatprep.subr.mxu0 0.0
    %2129 = vmatpush2.msra.mxu0 0.0
    %2130 = vmatprep.mubr.f32.mxu0 0.0
    %2131 = vmatmul.mubr.f32.gmra.mxu0 %v1986
    %v2132 = vpop.f32.mrf.mxu0
    %v2133 = vadd.f32 0.0, %v2132
    %v2134 = vpop.f32.mrf.mxu0
    %2135 = vdwg.mxu0
    %v2136 = vadd.f32 %v2065, %v2133
    %v2137 = vxor.u32 %v2136, 2147483648
    %v2138 = vmul.f32 %v2137, 1.442695
    %v2139 = vpow.pop %v2138
    %v2140 = vadd.f32 %v2139, 1.0
    %v2141 = vrcp.pop %v2140
    %v2142 = vmul.f32 1.0, %v2141
    %v2143 = vld [vmem:[#allocation4 + $0xa] sm:$0x3]
    %2144 = vmatprep.subr.mxu0 0.0
    %2145 = vmatpush1.msra.mxu0 0.0
    %2146 = vmatprep.subr.mxu0 0.0
    %2147 = vmatpush1.msra.mxu0 0.0
    %2148 = vmatprep.subr.mxu0 0.0
    %2149 = vmatpush1.msra.mxu0 0.0
    %2150 = vmatprep.subr.mxu0 0.0
    %2151 = vmatpush1.msra.mxu0 0.0
    %2152 = vmatprep.subr.mxu0 0.0
    %2153 = vmatpush1.msra.mxu0 0.0
    %2154 = vmatprep.subr.mxu0 0.0
    %2155 = vmatpush1.msra.mxu0 0.0
    %2156 = vmatprep.subr.mxu0 0.0
    %2157 = vmatpush1.msra.mxu0 0.0
    %2158 = vmatprep.subr.mxu0 0.0
    %2159 = vmatpush1.msra.mxu0 0.0
    %2160 = vmatprep.subr.mxu0 0.0
    %2161 = vmatpush1.msra.mxu0 0.0
    %2162 = vmatprep.subr.mxu0 0.0
    %2163 = vmatpush1.msra.mxu0 0.0
    %2164 = vmatprep.subr.mxu0 0.0
    %2165 = vmatpush1.msra.mxu0 0.0
    %2166 = vmatprep.subr.mxu0 0.0
    %2167 = vmatpush1.msra.mxu0 0.0
    %2168 = vmatprep.subr.mxu0 0.0
    %2169 = vmatpush1.msra.mxu0 0.0
    %2170 = vmatprep.subr.mxu0 0.0
    %2171 = vmatpush1.msra.mxu0 0.0
    %2172 = vmatprep.subr.mxu0 0.0
    %2173 = vmatpush1.msra.mxu0 %v791
    %2174 = vmatprep.subr.mxu0 0.0
    %2175 = vmatpush1.msra.mxu0 %v790
    %2176 = vmatprep.subr.mxu0 0.0
    %2177 = vmatpush2.msra.mxu0 0.0
    %2178 = vmatprep.subr.mxu0 0.0
    %2179 = vmatpush2.msra.mxu0 0.0
    %2180 = vmatprep.subr.mxu0 0.0
    %2181 = vmatpush2.msra.mxu0 0.0
    %2182 = vmatprep.subr.mxu0 0.0
    %2183 = vmatpush2.msra.mxu0 0.0
    %2184 = vmatprep.subr.mxu0 0.0
    %2185 = vmatpush2.msra.mxu0 0.0
    %2186 = vmatprep.subr.mxu0 0.0
    %2187 = vmatpush2.msra.mxu0 0.0
    %2188 = vmatprep.subr.mxu0 0.0
    %2189 = vmatpush2.msra.mxu0 0.0
    %2190 = vmatprep.subr.mxu0 0.0
    %2191 = vmatpush2.msra.mxu0 0.0
    %2192 = vmatprep.subr.mxu0 0.0
    %2193 = vmatpush2.msra.mxu0 0.0
    %2194 = vmatprep.subr.mxu0 0.0
    %2195 = vmatpush2.msra.mxu0 0.0
    %2196 = vmatprep.subr.mxu0 0.0
    %2197 = vmatpush2.msra.mxu0 0.0
    %2198 = vmatprep.subr.mxu0 0.0
    %2199 = vmatpush2.msra.mxu0 0.0
    %2200 = vmatprep.subr.mxu0 0.0
    %2201 = vmatpush2.msra.mxu0 0.0
    %2202 = vmatprep.subr.mxu0 0.0
    %2203 = vmatpush2.msra.mxu0 0.0
    %2204 = vmatprep.subr.mxu0 0.0
    %2205 = vmatpush2.msra.mxu0 0.0
    %2206 = vmatprep.subr.mxu0 0.0
    %2207 = vmatpush2.msra.mxu0 0.0
    %2208 = vmatprep.mubr.f32.mxu0 0.0
    %2209 = vmatmul.mubr.f32.gmra.mxu0 %v1986
    %v2210 = vpop.f32.mrf.mxu0
    %v2211 = vadd.f32 %v957, %v2210
    %v2212 = vpop.f32.mrf.mxu0
    %2213 = vdwg.mxu0
    %v2214 = vmul.f32 %v2064, %v2211
    %v2215 = vadd.f32 %v2143, %v2214
    %v2216 = vtanh.pop %v2215
    %v2217 = vsub.f32 1.0, %v2142
    %v2218 = vmul.f32 %v2217, %v2216
    %v2219 = vmul.f32 %v2142, %v1983
    %v2220 = vadd.f32 %v2218, %v2219
    %v2221 = vld [vmem:[#allocation2 + $0xc] sm:$0x3]
    %v2223 = vsel %vm181, %v2220, 0
    %2225 = vmatprep.subr.mxu0 0.0
    %2226 = vmatpush1.msra.mxu0 0.0
    %2227 = vmatprep.subr.mxu0 0.0
    %2228 = vmatpush1.msra.mxu0 0.0
    %2229 = vmatprep.subr.mxu0 0.0
    %2230 = vmatpush1.msra.mxu0 0.0
    %2231 = vmatprep.subr.mxu0 0.0
    %2232 = vmatpush1.msra.mxu0 0.0
    %2233 = vmatprep.subr.mxu0 0.0
    %2234 = vmatpush1.msra.mxu0 0.0
    %2235 = vmatprep.subr.mxu0 0.0
    %2236 = vmatpush1.msra.mxu0 0.0
    %2237 = vmatprep.subr.mxu0 0.0
    %2238 = vmatpush1.msra.mxu0 0.0
    %2239 = vmatprep.subr.mxu0 0.0
    %2240 = vmatpush1.msra.mxu0 0.0
    %2241 = vmatprep.subr.mxu0 0.0
    %2242 = vmatpush1.msra.mxu0 0.0
    %2243 = vmatprep.subr.mxu0 0.0
    %2244 = vmatpush1.msra.mxu0 0.0
    %2245 = vmatprep.subr.mxu0 0.0
    %2246 = vmatpush1.msra.mxu0 0.0
    %2247 = vmatprep.subr.mxu0 0.0
    %2248 = vmatpush1.msra.mxu0 0.0
    %2249 = vmatprep.subr.mxu0 0.0
    %2250 = vmatpush1.msra.mxu0 0.0
    %2251 = vmatprep.subr.mxu0 0.0
    %2252 = vmatpush1.msra.mxu0 0.0
    %2253 = vmatprep.subr.mxu0 0.0
    %2254 = vmatpush1.msra.mxu0 %v785
    %2255 = vmatprep.subr.mxu0 0.0
    %2256 = vmatpush1.msra.mxu0 %v784
    %2257 = vmatprep.subr.mxu0 0.0
    %2258 = vmatpush2.msra.mxu0 0.0
    %2259 = vmatprep.subr.mxu0 0.0
    %2260 = vmatpush2.msra.mxu0 0.0
    %2261 = vmatprep.subr.mxu0 0.0
    %2262 = vmatpush2.msra.mxu0 0.0
    %2263 = vmatprep.subr.mxu0 0.0
    %2264 = vmatpush2.msra.mxu0 0.0
    %2265 = vmatprep.subr.mxu0 0.0
    %2266 = vmatpush2.msra.mxu0 0.0
    %2267 = vmatprep.subr.mxu0 0.0
    %2268 = vmatpush2.msra.mxu0 0.0
    %2269 = vmatprep.subr.mxu0 0.0
    %2270 = vmatpush2.msra.mxu0 0.0
    %2271 = vmatprep.subr.mxu0 0.0
    %2272 = vmatpush2.msra.mxu0 0.0
    %2273 = vmatprep.subr.mxu0 0.0
    %2274 = vmatpush2.msra.mxu0 0.0
    %2275 = vmatprep.subr.mxu0 0.0
    %2276 = vmatpush2.msra.mxu0 0.0
    %2277 = vmatprep.subr.mxu0 0.0
    %2278 = vmatpush2.msra.mxu0 0.0
    %2279 = vmatprep.subr.mxu0 0.0
    %2280 = vmatpush2.msra.mxu0 0.0
    %2281 = vmatprep.subr.mxu0 0.0
    %2282 = vmatpush2.msra.mxu0 0.0
    %2283 = vmatprep.subr.mxu0 0.0
    %2284 = vmatpush2.msra.mxu0 0.0
    %2285 = vmatprep.subr.mxu0 0.0
    %2286 = vmatpush2.msra.mxu0 0.0
    %2287 = vmatprep.subr.mxu0 0.0
    %2288 = vmatpush2.msra.mxu0 0.0
    %2289 = vmatprep.mubr.f32.mxu0 0.0
    %2290 = vmatmul.mubr.f32.gmra.mxu0 %v2223
    %v2291 = vpop.f32.mrf.mxu0
    %v2292 = vadd.f32 0.0, %v2291
    %v2293 = vpop.f32.mrf.mxu0
    %2294 = vdwg.mxu0
    %v2295 = vadd.f32 %v2221, %v2292
    %v2296 = vxor.u32 %v2295, 2147483648
    %v2297 = vmul.f32 %v2296, 1.442695
    %v2298 = vpow.pop %v2297
    %v2299 = vadd.f32 %v2298, 1.0
    %v2300 = vrcp.pop %v2299
    %v2301 = vmul.f32 1.0, %v2300
    %v2302 = vld [vmem:[#allocation3 + $0xc] sm:$0x3]
    %2303 = vmatprep.subr.mxu0 0.0
    %2304 = vmatpush1.msra.mxu0 0.0
    %2305 = vmatprep.subr.mxu0 0.0
    %2306 = vmatpush1.msra.mxu0 0.0
    %2307 = vmatprep.subr.mxu0 0.0
    %2308 = vmatpush1.msra.mxu0 0.0
    %2309 = vmatprep.subr.mxu0 0.0
    %2310 = vmatpush1.msra.mxu0 0.0
    %2311 = vmatprep.subr.mxu0 0.0
    %2312 = vmatpush1.msra.mxu0 0.0
    %2313 = vmatprep.subr.mxu0 0.0
    %2314 = vmatpush1.msra.mxu0 0.0
    %2315 = vmatprep.subr.mxu0 0.0
    %2316 = vmatpush1.msra.mxu0 0.0
    %2317 = vmatprep.subr.mxu0 0.0
    %2318 = vmatpush1.msra.mxu0 0.0
    %2319 = vmatprep.subr.mxu0 0.0
    %2320 = vmatpush1.msra.mxu0 0.0
    %2321 = vmatprep.subr.mxu0 0.0
    %2322 = vmatpush1.msra.mxu0 0.0
    %2323 = vmatprep.subr.mxu0 0.0
    %2324 = vmatpush1.msra.mxu0 0.0
    %2325 = vmatprep.subr.mxu0 0.0
    %2326 = vmatpush1.msra.mxu0 0.0
    %2327 = vmatprep.subr.mxu0 0.0
    %2328 = vmatpush1.msra.mxu0 0.0
    %2329 = vmatprep.subr.mxu0 0.0
    %2330 = vmatpush1.msra.mxu0 0.0
    %2331 = vmatprep.subr.mxu0 0.0
    %2332 = vmatpush1.msra.mxu0 %v788
    %2333 = vmatprep.subr.mxu0 0.0
    %2334 = vmatpush1.msra.mxu0 %v787
    %2335 = vmatprep.subr.mxu0 0.0
    %2336 = vmatpush2.msra.mxu0 0.0
    %2337 = vmatprep.subr.mxu0 0.0
    %2338 = vmatpush2.msra.mxu0 0.0
    %2339 = vmatprep.subr.mxu0 0.0
    %2340 = vmatpush2.msra.mxu0 0.0
    %2341 = vmatprep.subr.mxu0 0.0
    %2342 = vmatpush2.msra.mxu0 0.0
    %2343 = vmatprep.subr.mxu0 0.0
    %2344 = vmatpush2.msra.mxu0 0.0
    %2345 = vmatprep.subr.mxu0 0.0
    %2346 = vmatpush2.msra.mxu0 0.0
    %2347 = vmatprep.subr.mxu0 0.0
    %2348 = vmatpush2.msra.mxu0 0.0
    %2349 = vmatprep.subr.mxu0 0.0
    %2350 = vmatpush2.msra.mxu0 0.0
    %2351 = vmatprep.subr.mxu0 0.0
    %2352 = vmatpush2.msra.mxu0 0.0
    %2353 = vmatprep.subr.mxu0 0.0
    %2354 = vmatpush2.msra.mxu0 0.0
    %2355 = vmatprep.subr.mxu0 0.0
    %2356 = vmatpush2.msra.mxu0 0.0
    %2357 = vmatprep.subr.mxu0 0.0
    %2358 = vmatpush2.msra.mxu0 0.0
    %2359 = vmatprep.subr.mxu0 0.0
    %2360 = vmatpush2.msra.mxu0 0.0
    %2361 = vmatprep.subr.mxu0 0.0
    %2362 = vmatpush2.msra.mxu0 0.0
    %2363 = vmatprep.subr.mxu0 0.0
    %2364 = vmatpush2.msra.mxu0 0.0
    %2365 = vmatprep.subr.mxu0 0.0
    %2366 = vmatpush2.msra.mxu0 0.0
    %2367 = vmatprep.mubr.f32.mxu0 0.0
    %2368 = vmatmul.mubr.f32.gmra.mxu0 %v2223
    %v2369 = vpop.f32.mrf.mxu0
    %v2370 = vadd.f32 0.0, %v2369
    %v2371 = vpop.f32.mrf.mxu0
    %2372 = vdwg.mxu0
    %v2373 = vadd.f32 %v2302, %v2370
    %v2374 = vxor.u32 %v2373, 2147483648
    %v2375 = vmul.f32 %v2374, 1.442695
    %v2376 = vpow.pop %v2375
    %v2377 = vadd.f32 %v2376, 1.0
    %v2378 = vrcp.pop %v2377
    %v2379 = vmul.f32 1.0, %v2378
    %v2380 = vld [vmem:[#allocation4 + $0xc] sm:$0x3]
    %2381 = vmatprep.subr.mxu0 0.0
    %2382 = vmatpush1.msra.mxu0 0.0
    %2383 = vmatprep.subr.mxu0 0.0
    %2384 = vmatpush1.msra.mxu0 0.0
    %2385 = vmatprep.subr.mxu0 0.0
    %2386 = vmatpush1.msra.mxu0 0.0
    %2387 = vmatprep.subr.mxu0 0.0
    %2388 = vmatpush1.msra.mxu0 0.0
    %2389 = vmatprep.subr.mxu0 0.0
    %2390 = vmatpush1.msra.mxu0 0.0
    %2391 = vmatprep.subr.mxu0 0.0
    %2392 = vmatpush1.msra.mxu0 0.0
    %2393 = vmatprep.subr.mxu0 0.0
    %2394 = vmatpush1.msra.mxu0 0.0
    %2395 = vmatprep.subr.mxu0 0.0
    %2396 = vmatpush1.msra.mxu0 0.0
    %2397 = vmatprep.subr.mxu0 0.0
    %2398 = vmatpush1.msra.mxu0 0.0
    %2399 = vmatprep.subr.mxu0 0.0
    %2400 = vmatpush1.msra.mxu0 0.0
    %2401 = vmatprep.subr.mxu0 0.0
    %2402 = vmatpush1.msra.mxu0 0.0
    %2403 = vmatprep.subr.mxu0 0.0
    %2404 = vmatpush1.msra.mxu0 0.0
    %2405 = vmatprep.subr.mxu0 0.0
    %2406 = vmatpush1.msra.mxu0 0.0
    %2407 = vmatprep.subr.mxu0 0.0
    %2408 = vmatpush1.msra.mxu0 0.0
    %2409 = vmatprep.subr.mxu0 0.0
    %2410 = vmatpush1.msra.mxu0 %v791
    %2411 = vmatprep.subr.mxu0 0.0
    %2412 = vmatpush1.msra.mxu0 %v790
    %2413 = vmatprep.subr.mxu0 0.0
    %2414 = vmatpush2.msra.mxu0 0.0
    %2415 = vmatprep.subr.mxu0 0.0
    %2416 = vmatpush2.msra.mxu0 0.0
    %2417 = vmatprep.subr.mxu0 0.0
    %2418 = vmatpush2.msra.mxu0 0.0
    %2419 = vmatprep.subr.mxu0 0.0
    %2420 = vmatpush2.msra.mxu0 0.0
    %2421 = vmatprep.subr.mxu0 0.0
    %2422 = vmatpush2.msra.mxu0 0.0
    %2423 = vmatprep.subr.mxu0 0.0
    %2424 = vmatpush2.msra.mxu0 0.0
    %2425 = vmatprep.subr.mxu0 0.0
    %2426 = vmatpush2.msra.mxu0 0.0
    %2427 = vmatprep.subr.mxu0 0.0
    %2428 = vmatpush2.msra.mxu0 0.0
    %2429 = vmatprep.subr.mxu0 0.0
    %2430 = vmatpush2.msra.mxu0 0.0
    %2431 = vmatprep.subr.mxu0 0.0
    %2432 = vmatpush2.msra.mxu0 0.0
    %2433 = vmatprep.subr.mxu0 0.0
    %2434 = vmatpush2.msra.mxu0 0.0
    %2435 = vmatprep.subr.mxu0 0.0
    %2436 = vmatpush2.msra.mxu0 0.0
    %2437 = vmatprep.subr.mxu0 0.0
    %2438 = vmatpush2.msra.mxu0 0.0
    %2439 = vmatprep.subr.mxu0 0.0
    %2440 = vmatpush2.msra.mxu0 0.0
    %2441 = vmatprep.subr.mxu0 0.0
    %2442 = vmatpush2.msra.mxu0 0.0
    %2443 = vmatprep.subr.mxu0 0.0
    %2444 = vmatpush2.msra.mxu0 0.0
    %2445 = vmatprep.mubr.f32.mxu0 0.0
    %2446 = vmatmul.mubr.f32.gmra.mxu0 %v2223
    %v2447 = vpop.f32.mrf.mxu0
    %v2448 = vadd.f32 %v957, %v2447
    %v2449 = vpop.f32.mrf.mxu0
    %2450 = vdwg.mxu0
    %v2451 = vmul.f32 %v2301, %v2448
    %v2452 = vadd.f32 %v2380, %v2451
    %v2453 = vtanh.pop %v2452
    %v2454 = vsub.f32 1.0, %v2379
    %v2455 = vmul.f32 %v2454, %v2453
    %v2456 = vmul.f32 %v2379, %v2220
    %v2457 = vadd.f32 %v2455, %v2456
    %v2458 = vld [vmem:[#allocation2 + $0xe] sm:$0x3]
    %v2460 = vsel %vm181, %v2457, 0
    %2462 = vmatprep.subr.mxu0 0.0
    %2463 = vmatpush1.msra.mxu0 0.0
    %2464 = vmatprep.subr.mxu0 0.0
    %2465 = vmatpush1.msra.mxu0 0.0
    %2466 = vmatprep.subr.mxu0 0.0
    %2467 = vmatpush1.msra.mxu0 0.0
    %2468 = vmatprep.subr.mxu0 0.0
    %2469 = vmatpush1.msra.mxu0 0.0
    %2470 = vmatprep.subr.mxu0 0.0
    %2471 = vmatpush1.msra.mxu0 0.0
    %2472 = vmatprep.subr.mxu0 0.0
    %2473 = vmatpush1.msra.mxu0 0.0
    %2474 = vmatprep.subr.mxu0 0.0
    %2475 = vmatpush1.msra.mxu0 0.0
    %2476 = vmatprep.subr.mxu0 0.0
    %2477 = vmatpush1.msra.mxu0 0.0
    %2478 = vmatprep.subr.mxu0 0.0
    %2479 = vmatpush1.msra.mxu0 0.0
    %2480 = vmatprep.subr.mxu0 0.0
    %2481 = vmatpush1.msra.mxu0 0.0
    %2482 = vmatprep.subr.mxu0 0.0
    %2483 = vmatpush1.msra.mxu0 0.0
    %2484 = vmatprep.subr.mxu0 0.0
    %2485 = vmatpush1.msra.mxu0 0.0
    %2486 = vmatprep.subr.mxu0 0.0
    %2487 = vmatpush1.msra.mxu0 0.0
    %2488 = vmatprep.subr.mxu0 0.0
    %2489 = vmatpush1.msra.mxu0 0.0
    %2490 = vmatprep.subr.mxu0 0.0
    %2491 = vmatpush1.msra.mxu0 %v785
    %2492 = vmatprep.subr.mxu0 0.0
    %2493 = vmatpush1.msra.mxu0 %v784
    %2494 = vmatprep.subr.mxu0 0.0
    %2495 = vmatpush2.msra.mxu0 0.0
    %2496 = vmatprep.subr.mxu0 0.0
    %2497 = vmatpush2.msra.mxu0 0.0
    %2498 = vmatprep.subr.mxu0 0.0
    %2499 = vmatpush2.msra.mxu0 0.0
    %2500 = vmatprep.subr.mxu0 0.0
    %2501 = vmatpush2.msra.mxu0 0.0
    %2502 = vmatprep.subr.mxu0 0.0
    %2503 = vmatpush2.msra.mxu0 0.0
    %2504 = vmatprep.subr.mxu0 0.0
    %2505 = vmatpush2.msra.mxu0 0.0
    %2506 = vmatprep.subr.mxu0 0.0
    %2507 = vmatpush2.msra.mxu0 0.0
    %2508 = vmatprep.subr.mxu0 0.0
    %2509 = vmatpush2.msra.mxu0 0.0
    %2510 = vmatprep.subr.mxu0 0.0
    %2511 = vmatpush2.msra.mxu0 0.0
    %2512 = vmatprep.subr.mxu0 0.0
    %2513 = vmatpush2.msra.mxu0 0.0
    %2514 = vmatprep.subr.mxu0 0.0
    %2515 = vmatpush2.msra.mxu0 0.0
    %2516 = vmatprep.subr.mxu0 0.0
    %2517 = vmatpush2.msra.mxu0 0.0
    %2518 = vmatprep.subr.mxu0 0.0
    %2519 = vmatpush2.msra.mxu0 0.0
    %2520 = vmatprep.subr.mxu0 0.0
    %2521 = vmatpush2.msra.mxu0 0.0
    %2522 = vmatprep.subr.mxu0 0.0
    %2523 = vmatpush2.msra.mxu0 0.0
    %2524 = vmatprep.subr.mxu0 0.0
    %2525 = vmatpush2.msra.mxu0 0.0
    %2526 = vmatprep.mubr.f32.mxu0 0.0
    %2527 = vmatmul.mubr.f32.gmra.mxu0 %v2460
    %v2528 = vpop.f32.mrf.mxu0
    %v2529 = vadd.f32 0.0, %v2528
    %v2530 = vpop.f32.mrf.mxu0
    %2531 = vdwg.mxu0
    %v2532 = vadd.f32 %v2458, %v2529
    %v2533 = vxor.u32 %v2532, 2147483648
    %v2534 = vmul.f32 %v2533, 1.442695
    %v2535 = vpow.pop %v2534
    %v2536 = vadd.f32 %v2535, 1.0
    %v2537 = vrcp.pop %v2536
    %v2538 = vmul.f32 1.0, %v2537
    %v2539 = vld [vmem:[#allocation3 + $0xe] sm:$0x3]
    %2540 = vmatprep.subr.mxu0 0.0
    %2541 = vmatpush1.msra.mxu0 0.0
    %2542 = vmatprep.subr.mxu0 0.0
    %2543 = vmatpush1.msra.mxu0 0.0
    %2544 = vmatprep.subr.mxu0 0.0
    %2545 = vmatpush1.msra.mxu0 0.0
    %2546 = vmatprep.subr.mxu0 0.0
    %2547 = vmatpush1.msra.mxu0 0.0
    %2548 = vmatprep.subr.mxu0 0.0
    %2549 = vmatpush1.msra.mxu0 0.0
    %2550 = vmatprep.subr.mxu0 0.0
    %2551 = vmatpush1.msra.mxu0 0.0
    %2552 = vmatprep.subr.mxu0 0.0
    %2553 = vmatpush1.msra.mxu0 0.0
    %2554 = vmatprep.subr.mxu0 0.0
    %2555 = vmatpush1.msra.mxu0 0.0
    %2556 = vmatprep.subr.mxu0 0.0
    %2557 = vmatpush1.msra.mxu0 0.0
    %2558 = vmatprep.subr.mxu0 0.0
    %2559 = vmatpush1.msra.mxu0 0.0
    %2560 = vmatprep.subr.mxu0 0.0
    %2561 = vmatpush1.msra.mxu0 0.0
    %2562 = vmatprep.subr.mxu0 0.0
    %2563 = vmatpush1.msra.mxu0 0.0
    %2564 = vmatprep.subr.mxu0 0.0
    %2565 = vmatpush1.msra.mxu0 0.0
    %2566 = vmatprep.subr.mxu0 0.0
    %2567 = vmatpush1.msra.mxu0 0.0
    %2568 = vmatprep.subr.mxu0 0.0
    %2569 = vmatpush1.msra.mxu0 %v788
    %2570 = vmatprep.subr.mxu0 0.0
    %2571 = vmatpush1.msra.mxu0 %v787
    %2572 = vmatprep.subr.mxu0 0.0
    %2573 = vmatpush2.msra.mxu0 0.0
    %2574 = vmatprep.subr.mxu0 0.0
    %2575 = vmatpush2.msra.mxu0 0.0
    %2576 = vmatprep.subr.mxu0 0.0
    %2577 = vmatpush2.msra.mxu0 0.0
    %2578 = vmatprep.subr.mxu0 0.0
    %2579 = vmatpush2.msra.mxu0 0.0
    %2580 = vmatprep.subr.mxu0 0.0
    %2581 = vmatpush2.msra.mxu0 0.0
    %2582 = vmatprep.subr.mxu0 0.0
    %2583 = vmatpush2.msra.mxu0 0.0
    %2584 = vmatprep.subr.mxu0 0.0
    %2585 = vmatpush2.msra.mxu0 0.0
    %2586 = vmatprep.subr.mxu0 0.0
    %2587 = vmatpush2.msra.mxu0 0.0
    %2588 = vmatprep.subr.mxu0 0.0
    %2589 = vmatpush2.msra.mxu0 0.0
    %2590 = vmatprep.subr.mxu0 0.0
    %2591 = vmatpush2.msra.mxu0 0.0
    %2592 = vmatprep.subr.mxu0 0.0
    %2593 = vmatpush2.msra.mxu0 0.0
    %2594 = vmatprep.subr.mxu0 0.0
    %2595 = vmatpush2.msra.mxu0 0.0
    %2596 = vmatprep.subr.mxu0 0.0
    %2597 = vmatpush2.msra.mxu0 0.0
    %2598 = vmatprep.subr.mxu0 0.0
    %2599 = vmatpush2.msra.mxu0 0.0
    %2600 = vmatprep.subr.mxu0 0.0
    %2601 = vmatpush2.msra.mxu0 0.0
    %2602 = vmatprep.subr.mxu0 0.0
    %2603 = vmatpush2.msra.mxu0 0.0
    %2604 = vmatprep.mubr.f32.mxu0 0.0
    %2605 = vmatmul.mubr.f32.gmra.mxu0 %v2460
    %v2606 = vpop.f32.mrf.mxu0
    %v2607 = vadd.f32 0.0, %v2606
    %v2608 = vpop.f32.mrf.mxu0
    %2609 = vdwg.mxu0
    %v2610 = vadd.f32 %v2539, %v2607
    %v2611 = vxor.u32 %v2610, 2147483648
    %v2612 = vmul.f32 %v2611, 1.442695
    %v2613 = vpow.pop %v2612
    %v2614 = vadd.f32 %v2613, 1.0
    %v2615 = vrcp.pop %v2614
    %v2616 = vmul.f32 1.0, %v2615
    %v2617 = vld [vmem:[#allocation4 + $0xe] sm:$0x3]
    %2618 = vmatprep.subr.mxu0 0.0
    %2619 = vmatpush1.msra.mxu0 0.0
    %2620 = vmatprep.subr.mxu0 0.0
    %2621 = vmatpush1.msra.mxu0 0.0
    %2622 = vmatprep.subr.mxu0 0.0
    %2623 = vmatpush1.msra.mxu0 0.0
    %2624 = vmatprep.subr.mxu0 0.0
    %2625 = vmatpush1.msra.mxu0 0.0
    %2626 = vmatprep.subr.mxu0 0.0
    %2627 = vmatpush1.msra.mxu0 0.0
    %2628 = vmatprep.subr.mxu0 0.0
    %2629 = vmatpush1.msra.mxu0 0.0
    %2630 = vmatprep.subr.mxu0 0.0
    %2631 = vmatpush1.msra.mxu0 0.0
    %2632 = vmatprep.subr.mxu0 0.0
    %2633 = vmatpush1.msra.mxu0 0.0
    %2634 = vmatprep.subr.mxu0 0.0
    %2635 = vmatpush1.msra.mxu0 0.0
    %2636 = vmatprep.subr.mxu0 0.0
    %2637 = vmatpush1.msra.mxu0 0.0
    %2638 = vmatprep.subr.mxu0 0.0
    %2639 = vmatpush1.msra.mxu0 0.0
    %2640 = vmatprep.subr.mxu0 0.0
    %2641 = vmatpush1.msra.mxu0 0.0
    %2642 = vmatprep.subr.mxu0 0.0
    %2643 = vmatpush1.msra.mxu0 0.0
    %2644 = vmatprep.subr.mxu0 0.0
    %2645 = vmatpush1.msra.mxu0 0.0
    %2646 = vmatprep.subr.mxu0 0.0
    %2647 = vmatpush1.msra.mxu0 %v791
    %2648 = vmatprep.subr.mxu0 0.0
    %2649 = vmatpush1.msra.mxu0 %v790
    %2650 = vmatprep.subr.mxu0 0.0
    %2651 = vmatpush2.msra.mxu0 0.0
    %2652 = vmatprep.subr.mxu0 0.0
    %2653 = vmatpush2.msra.mxu0 0.0
    %2654 = vmatprep.subr.mxu0 0.0
    %2655 = vmatpush2.msra.mxu0 0.0
    %2656 = vmatprep.subr.mxu0 0.0
    %2657 = vmatpush2.msra.mxu0 0.0
    %2658 = vmatprep.subr.mxu0 0.0
    %2659 = vmatpush2.msra.mxu0 0.0
    %2660 = vmatprep.subr.mxu0 0.0
    %2661 = vmatpush2.msra.mxu0 0.0
    %2662 = vmatprep.subr.mxu0 0.0
    %2663 = vmatpush2.msra.mxu0 0.0
    %2664 = vmatprep.subr.mxu0 0.0
    %2665 = vmatpush2.msra.mxu0 0.0
    %2666 = vmatprep.subr.mxu0 0.0
    %2667 = vmatpush2.msra.mxu0 0.0
    %2668 = vmatprep.subr.mxu0 0.0
    %2669 = vmatpush2.msra.mxu0 0.0
    %2670 = vmatprep.subr.mxu0 0.0
    %2671 = vmatpush2.msra.mxu0 0.0
    %2672 = vmatprep.subr.mxu0 0.0
    %2673 = vmatpush2.msra.mxu0 0.0
    %2674 = vmatprep.subr.mxu0 0.0
    %2675 = vmatpush2.msra.mxu0 0.0
    %2676 = vmatprep.subr.mxu0 0.0
    %2677 = vmatpush2.msra.mxu0 0.0
    %2678 = vmatprep.subr.mxu0 0.0
    %2679 = vmatpush2.msra.mxu0 0.0
    %2680 = vmatprep.subr.mxu0 0.0
    %2681 = vmatpush2.msra.mxu0 0.0
    %2682 = vmatprep.mubr.f32.mxu0 0.0
    %2683 = vmatmul.mubr.f32.gmra.mxu0 %v2460
    %v2684 = vpop.f32.mrf.mxu0
    %v2685 = vadd.f32 %v957, %v2684
    %v2686 = vpop.f32.mrf.mxu0
    %2687 = vdwg.mxu0
    %v2688 = vmul.f32 %v2538, %v2685
    %v2689 = vadd.f32 %v2617, %v2688
    %v2690 = vtanh.pop %v2689
    %v2691 = vsub.f32 1.0, %v2616
    %v2692 = vmul.f32 %v2691, %v2690
    %v2693 = vmul.f32 %v2616, %v2457
    %v2694 = vadd.f32 %v2692, %v2693
    %v2695 = vld [vmem:[#allocation2 + $0x10] sm:$0x3]
    %v2697 = vsel %vm181, %v2694, 0
    %2699 = vmatprep.subr.mxu0 0.0
    %2700 = vmatpush1.msra.mxu0 0.0
    %2701 = vmatprep.subr.mxu0 0.0
    %2702 = vmatpush1.msra.mxu0 0.0
    %2703 = vmatprep.subr.mxu0 0.0
    %2704 = vmatpush1.msra.mxu0 0.0
    %2705 = vmatprep.subr.mxu0 0.0
    %2706 = vmatpush1.msra.mxu0 0.0
    %2707 = vmatprep.subr.mxu0 0.0
    %2708 = vmatpush1.msra.mxu0 0.0
    %2709 = vmatprep.subr.mxu0 0.0
    %2710 = vmatpush1.msra.mxu0 0.0
    %2711 = vmatprep.subr.mxu0 0.0
    %2712 = vmatpush1.msra.mxu0 0.0
    %2713 = vmatprep.subr.mxu0 0.0
    %2714 = vmatpush1.msra.mxu0 0.0
    %2715 = vmatprep.subr.mxu0 0.0
    %2716 = vmatpush1.msra.mxu0 0.0
    %2717 = vmatprep.subr.mxu0 0.0
    %2718 = vmatpush1.msra.mxu0 0.0
    %2719 = vmatprep.subr.mxu0 0.0
    %2720 = vmatpush1.msra.mxu0 0.0
    %2721 = vmatprep.subr.mxu0 0.0
    %2722 = vmatpush1.msra.mxu0 0.0
    %2723 = vmatprep.subr.mxu0 0.0
    %2724 = vmatpush1.msra.mxu0 0.0
    %2725 = vmatprep.subr.mxu0 0.0
    %2726 = vmatpush1.msra.mxu0 0.0
    %2727 = vmatprep.subr.mxu0 0.0
    %2728 = vmatpush1.msra.mxu0 %v785
    %2729 = vmatprep.subr.mxu0 0.0
    %2730 = vmatpush1.msra.mxu0 %v784
    %2731 = vmatprep.subr.mxu0 0.0
    %2732 = vmatpush2.msra.mxu0 0.0
    %2733 = vmatprep.subr.mxu0 0.0
    %2734 = vmatpush2.msra.mxu0 0.0
    %2735 = vmatprep.subr.mxu0 0.0
    %2736 = vmatpush2.msra.mxu0 0.0
    %2737 = vmatprep.subr.mxu0 0.0
    %2738 = vmatpush2.msra.mxu0 0.0
    %2739 = vmatprep.subr.mxu0 0.0
    %2740 = vmatpush2.msra.mxu0 0.0
    %2741 = vmatprep.subr.mxu0 0.0
    %2742 = vmatpush2.msra.mxu0 0.0
    %2743 = vmatprep.subr.mxu0 0.0
    %2744 = vmatpush2.msra.mxu0 0.0
    %2745 = vmatprep.subr.mxu0 0.0
    %2746 = vmatpush2.msra.mxu0 0.0
    %2747 = vmatprep.subr.mxu0 0.0
    %2748 = vmatpush2.msra.mxu0 0.0
    %2749 = vmatprep.subr.mxu0 0.0
    %2750 = vmatpush2.msra.mxu0 0.0
    %2751 = vmatprep.subr.mxu0 0.0
    %2752 = vmatpush2.msra.mxu0 0.0
    %2753 = vmatprep.subr.mxu0 0.0
    %2754 = vmatpush2.msra.mxu0 0.0
    %2755 = vmatprep.subr.mxu0 0.0
    %2756 = vmatpush2.msra.mxu0 0.0
    %2757 = vmatprep.subr.mxu0 0.0
    %2758 = vmatpush2.msra.mxu0 0.0
    %2759 = vmatprep.subr.mxu0 0.0
    %2760 = vmatpush2.msra.mxu0 0.0
    %2761 = vmatprep.subr.mxu0 0.0
    %2762 = vmatpush2.msra.mxu0 0.0
    %2763 = vmatprep.mubr.f32.mxu0 0.0
    %2764 = vmatmul.mubr.f32.gmra.mxu0 %v2697
    %v2765 = vpop.f32.mrf.mxu0
    %v2766 = vadd.f32 0.0, %v2765
    %v2767 = vpop.f32.mrf.mxu0
    %2768 = vdwg.mxu0
    %v2769 = vadd.f32 %v2695, %v2766
    %v2770 = vxor.u32 %v2769, 2147483648
    %v2771 = vmul.f32 %v2770, 1.442695
    %v2772 = vpow.pop %v2771
    %v2773 = vadd.f32 %v2772, 1.0
    %v2774 = vrcp.pop %v2773
    %v2775 = vmul.f32 1.0, %v2774
    %v2776 = vld [vmem:[#allocation3 + $0x10] sm:$0x3]
    %2777 = vmatprep.subr.mxu0 0.0
    %2778 = vmatpush1.msra.mxu0 0.0
    %2779 = vmatprep.subr.mxu0 0.0
    %2780 = vmatpush1.msra.mxu0 0.0
    %2781 = vmatprep.subr.mxu0 0.0
    %2782 = vmatpush1.msra.mxu0 0.0
    %2783 = vmatprep.subr.mxu0 0.0
    %2784 = vmatpush1.msra.mxu0 0.0
    %2785 = vmatprep.subr.mxu0 0.0
    %2786 = vmatpush1.msra.mxu0 0.0
    %2787 = vmatprep.subr.mxu0 0.0
    %2788 = vmatpush1.msra.mxu0 0.0
    %2789 = vmatprep.subr.mxu0 0.0
    %2790 = vmatpush1.msra.mxu0 0.0
    %2791 = vmatprep.subr.mxu0 0.0
    %2792 = vmatpush1.msra.mxu0 0.0
    %2793 = vmatprep.subr.mxu0 0.0
    %2794 = vmatpush1.msra.mxu0 0.0
    %2795 = vmatprep.subr.mxu0 0.0
    %2796 = vmatpush1.msra.mxu0 0.0
    %2797 = vmatprep.subr.mxu0 0.0
    %2798 = vmatpush1.msra.mxu0 0.0
    %2799 = vmatprep.subr.mxu0 0.0
    %2800 = vmatpush1.msra.mxu0 0.0
    %2801 = vmatprep.subr.mxu0 0.0
    %2802 = vmatpush1.msra.mxu0 0.0
    %2803 = vmatprep.subr.mxu0 0.0
    %2804 = vmatpush1.msra.mxu0 0.0
    %2805 = vmatprep.subr.mxu0 0.0
    %2806 = vmatpush1.msra.mxu0 %v788
    %2807 = vmatprep.subr.mxu0 0.0
    %2808 = vmatpush1.msra.mxu0 %v787
    %2809 = vmatprep.subr.mxu0 0.0
    %2810 = vmatpush2.msra.mxu0 0.0
    %2811 = vmatprep.subr.mxu0 0.0
    %2812 = vmatpush2.msra.mxu0 0.0
    %2813 = vmatprep.subr.mxu0 0.0
    %2814 = vmatpush2.msra.mxu0 0.0
    %2815 = vmatprep.subr.mxu0 0.0
    %2816 = vmatpush2.msra.mxu0 0.0
    %2817 = vmatprep.subr.mxu0 0.0
    %2818 = vmatpush2.msra.mxu0 0.0
    %2819 = vmatprep.subr.mxu0 0.0
    %2820 = vmatpush2.msra.mxu0 0.0
    %2821 = vmatprep.subr.mxu0 0.0
    %2822 = vmatpush2.msra.mxu0 0.0
    %2823 = vmatprep.subr.mxu0 0.0
    %2824 = vmatpush2.msra.mxu0 0.0
    %2825 = vmatprep.subr.mxu0 0.0
    %2826 = vmatpush2.msra.mxu0 0.0
    %2827 = vmatprep.subr.mxu0 0.0
    %2828 = vmatpush2.msra.mxu0 0.0
    %2829 = vmatprep.subr.mxu0 0.0
    %2830 = vmatpush2.msra.mxu0 0.0
    %2831 = vmatprep.subr.mxu0 0.0
    %2832 = vmatpush2.msra.mxu0 0.0
    %2833 = vmatprep.subr.mxu0 0.0
    %2834 = vmatpush2.msra.mxu0 0.0
    %2835 = vmatprep.subr.mxu0 0.0
    %2836 = vmatpush2.msra.mxu0 0.0
    %2837 = vmatprep.subr.mxu0 0.0
    %2838 = vmatpush2.msra.mxu0 0.0
    %2839 = vmatprep.subr.mxu0 0.0
    %2840 = vmatpush2.msra.mxu0 0.0
    %2841 = vmatprep.mubr.f32.mxu0 0.0
    %2842 = vmatmul.mubr.f32.gmra.mxu0 %v2697
    %v2843 = vpop.f32.mrf.mxu0
    %v2844 = vadd.f32 0.0, %v2843
    %v2845 = vpop.f32.mrf.mxu0
    %2846 = vdwg.mxu0
    %v2847 = vadd.f32 %v2776, %v2844
    %v2848 = vxor.u32 %v2847, 2147483648
    %v2849 = vmul.f32 %v2848, 1.442695
    %v2850 = vpow.pop %v2849
    %v2851 = vadd.f32 %v2850, 1.0
    %v2852 = vrcp.pop %v2851
    %v2853 = vmul.f32 1.0, %v2852
    %v2854 = vld [vmem:[#allocation4 + $0x10] sm:$0x3]
    %2855 = vmatprep.subr.mxu0 0.0
    %2856 = vmatpush1.msra.mxu0 0.0
    %2857 = vmatprep.subr.mxu0 0.0
    %2858 = vmatpush1.msra.mxu0 0.0
    %2859 = vmatprep.subr.mxu0 0.0
    %2860 = vmatpush1.msra.mxu0 0.0
    %2861 = vmatprep.subr.mxu0 0.0
    %2862 = vmatpush1.msra.mxu0 0.0
    %2863 = vmatprep.subr.mxu0 0.0
    %2864 = vmatpush1.msra.mxu0 0.0
    %2865 = vmatprep.subr.mxu0 0.0
    %2866 = vmatpush1.msra.mxu0 0.0
    %2867 = vmatprep.subr.mxu0 0.0
    %2868 = vmatpush1.msra.mxu0 0.0
    %2869 = vmatprep.subr.mxu0 0.0
    %2870 = vmatpush1.msra.mxu0 0.0
    %2871 = vmatprep.subr.mxu0 0.0
    %2872 = vmatpush1.msra.mxu0 0.0
    %2873 = vmatprep.subr.mxu0 0.0
    %2874 = vmatpush1.msra.mxu0 0.0
    %2875 = vmatprep.subr.mxu0 0.0
    %2876 = vmatpush1.msra.mxu0 0.0
    %2877 = vmatprep.subr.mxu0 0.0
    %2878 = vmatpush1.msra.mxu0 0.0
    %2879 = vmatprep.subr.mxu0 0.0
    %2880 = vmatpush1.msra.mxu0 0.0
    %2881 = vmatprep.subr.mxu0 0.0
    %2882 = vmatpush1.msra.mxu0 0.0
    %2883 = vmatprep.subr.mxu0 0.0
    %2884 = vmatpush1.msra.mxu0 %v791
    %2885 = vmatprep.subr.mxu0 0.0
    %2886 = vmatpush1.msra.mxu0 %v790
    %2887 = vmatprep.subr.mxu0 0.0
    %2888 = vmatpush2.msra.mxu0 0.0
    %2889 = vmatprep.subr.mxu0 0.0
    %2890 = vmatpush2.msra.mxu0 0.0
    %2891 = vmatprep.subr.mxu0 0.0
    %2892 = vmatpush2.msra.mxu0 0.0
    %2893 = vmatprep.subr.mxu0 0.0
    %2894 = vmatpush2.msra.mxu0 0.0
    %2895 = vmatprep.subr.mxu0 0.0
    %2896 = vmatpush2.msra.mxu0 0.0
    %2897 = vmatprep.subr.mxu0 0.0
    %2898 = vmatpush2.msra.mxu0 0.0
    %2899 = vmatprep.subr.mxu0 0.0
    %2900 = vmatpush2.msra.mxu0 0.0
    %2901 = vmatprep.subr.mxu0 0.0
    %2902 = vmatpush2.msra.mxu0 0.0
    %2903 = vmatprep.subr.mxu0 0.0
    %2904 = vmatpush2.msra.mxu0 0.0
    %2905 = vmatprep.subr.mxu0 0.0
    %2906 = vmatpush2.msra.mxu0 0.0
    %2907 = vmatprep.subr.mxu0 0.0
    %2908 = vmatpush2.msra.mxu0 0.0
    %2909 = vmatprep.subr.mxu0 0.0
    %2910 = vmatpush2.msra.mxu0 0.0
    %2911 = vmatprep.subr.mxu0 0.0
    %2912 = vmatpush2.msra.mxu0 0.0
    %2913 = vmatprep.subr.mxu0 0.0
    %2914 = vmatpush2.msra.mxu0 0.0
    %2915 = vmatprep.subr.mxu0 0.0
    %2916 = vmatpush2.msra.mxu0 0.0
    %2917 = vmatprep.subr.mxu0 0.0
    %2918 = vmatpush2.msra.mxu0 0.0
    %2919 = vmatprep.mubr.f32.mxu0 0.0
    %2920 = vmatmul.mubr.f32.gmra.mxu0 %v2697
    %v2921 = vpop.f32.mrf.mxu0
    %v2922 = vadd.f32 %v957, %v2921
    %v2923 = vpop.f32.mrf.mxu0
    %2924 = vdwg.mxu0
    %v2925 = vmul.f32 %v2775, %v2922
    %v2926 = vadd.f32 %v2854, %v2925
    %v2927 = vtanh.pop %v2926
    %v2928 = vsub.f32 1.0, %v2853
    %v2929 = vmul.f32 %v2928, %v2927
    %v2930 = vmul.f32 %v2853, %v2694
    %v2931 = vadd.f32 %v2929, %v2930
    %v2932 = vld [vmem:[#allocation2 + $0x12] sm:$0x3]
    %v2934 = vsel %vm181, %v2931, 0
    %2936 = vmatprep.subr.mxu0 0.0
    %2937 = vmatpush1.msra.mxu0 0.0
    %2938 = vmatprep.subr.mxu0 0.0
    %2939 = vmatpush1.msra.mxu0 0.0
    %2940 = vmatprep.subr.mxu0 0.0
    %2941 = vmatpush1.msra.mxu0 0.0
    %2942 = vmatprep.subr.mxu0 0.0
    %2943 = vmatpush1.msra.mxu0 0.0
    %2944 = vmatprep.subr.mxu0 0.0
    %2945 = vmatpush1.msra.mxu0 0.0
    %2946 = vmatprep.subr.mxu0 0.0
    %2947 = vmatpush1.msra.mxu0 0.0
    %2948 = vmatprep.subr.mxu0 0.0
    %2949 = vmatpush1.msra.mxu0 0.0
    %2950 = vmatprep.subr.mxu0 0.0
    %2951 = vmatpush1.msra.mxu0 0.0
    %2952 = vmatprep.subr.mxu0 0.0
    %2953 = vmatpush1.msra.mxu0 0.0
    %2954 = vmatprep.subr.mxu0 0.0
    %2955 = vmatpush1.msra.mxu0 0.0
    %2956 = vmatprep.subr.mxu0 0.0
    %2957 = vmatpush1.msra.mxu0 0.0
    %2958 = vmatprep.subr.mxu0 0.0
    %2959 = vmatpush1.msra.mxu0 0.0
    %2960 = vmatprep.subr.mxu0 0.0
    %2961 = vmatpush1.msra.mxu0 0.0
    %2962 = vmatprep.subr.mxu0 0.0
    %2963 = vmatpush1.msra.mxu0 0.0
    %2964 = vmatprep.subr.mxu0 0.0
    %2965 = vmatpush1.msra.mxu0 %v785
    %2966 = vmatprep.subr.mxu0 0.0
    %2967 = vmatpush1.msra.mxu0 %v784
    %2968 = vmatprep.subr.mxu0 0.0
    %2969 = vmatpush2.msra.mxu0 0.0
    %2970 = vmatprep.subr.mxu0 0.0
    %2971 = vmatpush2.msra.mxu0 0.0
    %2972 = vmatprep.subr.mxu0 0.0
    %2973 = vmatpush2.msra.mxu0 0.0
    %2974 = vmatprep.subr.mxu0 0.0
    %2975 = vmatpush2.msra.mxu0 0.0
    %2976 = vmatprep.subr.mxu0 0.0
    %2977 = vmatpush2.msra.mxu0 0.0
    %2978 = vmatprep.subr.mxu0 0.0
    %2979 = vmatpush2.msra.mxu0 0.0
    %2980 = vmatprep.subr.mxu0 0.0
    %2981 = vmatpush2.msra.mxu0 0.0
    %2982 = vmatprep.subr.mxu0 0.0
    %2983 = vmatpush2.msra.mxu0 0.0
    %2984 = vmatprep.subr.mxu0 0.0
    %2985 = vmatpush2.msra.mxu0 0.0
    %2986 = vmatprep.subr.mxu0 0.0
    %2987 = vmatpush2.msra.mxu0 0.0
    %2988 = vmatprep.subr.mxu0 0.0
    %2989 = vmatpush2.msra.mxu0 0.0
    %2990 = vmatprep.subr.mxu0 0.0
    %2991 = vmatpush2.msra.mxu0 0.0
    %2992 = vmatprep.subr.mxu0 0.0
    %2993 = vmatpush2.msra.mxu0 0.0
    %2994 = vmatprep.subr.mxu0 0.0
    %2995 = vmatpush2.msra.mxu0 0.0
    %2996 = vmatprep.subr.mxu0 0.0
    %2997 = vmatpush2.msra.mxu0 0.0
    %2998 = vmatprep.subr.mxu0 0.0
    %2999 = vmatpush2.msra.mxu0 0.0
    %3000 = vmatprep.mubr.f32.mxu0 0.0
    %3001 = vmatmul.mubr.f32.gmra.mxu0 %v2934
    %v3002 = vpop.f32.mrf.mxu0
    %v3003 = vadd.f32 0.0, %v3002
    %v3004 = vpop.f32.mrf.mxu0
    %3005 = vdwg.mxu0
    %v3006 = vadd.f32 %v2932, %v3003
    %v3007 = vxor.u32 %v3006, 2147483648
    %v3008 = vmul.f32 %v3007, 1.442695
    %v3009 = vpow.pop %v3008
    %v3010 = vadd.f32 %v3009, 1.0
    %v3011 = vrcp.pop %v3010
    %v3012 = vmul.f32 1.0, %v3011
    %v3013 = vld [vmem:[#allocation3 + $0x12] sm:$0x3]
    %3014 = vmatprep.subr.mxu0 0.0
    %3015 = vmatpush1.msra.mxu0 0.0
    %3016 = vmatprep.subr.mxu0 0.0
    %3017 = vmatpush1.msra.mxu0 0.0
    %3018 = vmatprep.subr.mxu0 0.0
    %3019 = vmatpush1.msra.mxu0 0.0
    %3020 = vmatprep.subr.mxu0 0.0
    %3021 = vmatpush1.msra.mxu0 0.0
    %3022 = vmatprep.subr.mxu0 0.0
    %3023 = vmatpush1.msra.mxu0 0.0
    %3024 = vmatprep.subr.mxu0 0.0
    %3025 = vmatpush1.msra.mxu0 0.0
    %3026 = vmatprep.subr.mxu0 0.0
    %3027 = vmatpush1.msra.mxu0 0.0
    %3028 = vmatprep.subr.mxu0 0.0
    %3029 = vmatpush1.msra.mxu0 0.0
    %3030 = vmatprep.subr.mxu0 0.0
    %3031 = vmatpush1.msra.mxu0 0.0
    %3032 = vmatprep.subr.mxu0 0.0
    %3033 = vmatpush1.msra.mxu0 0.0
    %3034 = vmatprep.subr.mxu0 0.0
    %3035 = vmatpush1.msra.mxu0 0.0
    %3036 = vmatprep.subr.mxu0 0.0
    %3037 = vmatpush1.msra.mxu0 0.0
    %3038 = vmatprep.subr.mxu0 0.0
    %3039 = vmatpush1.msra.mxu0 0.0
    %3040 = vmatprep.subr.mxu0 0.0
    %3041 = vmatpush1.msra.mxu0 0.0
    %3042 = vmatprep.subr.mxu0 0.0
    %3043 = vmatpush1.msra.mxu0 %v788
    %3044 = vmatprep.subr.mxu0 0.0
    %3045 = vmatpush1.msra.mxu0 %v787
    %3046 = vmatprep.subr.mxu0 0.0
    %3047 = vmatpush2.msra.mxu0 0.0
    %3048 = vmatprep.subr.mxu0 0.0
    %3049 = vmatpush2.msra.mxu0 0.0
    %3050 = vmatprep.subr.mxu0 0.0
    %3051 = vmatpush2.msra.mxu0 0.0
    %3052 = vmatprep.subr.mxu0 0.0
    %3053 = vmatpush2.msra.mxu0 0.0
    %3054 = vmatprep.subr.mxu0 0.0
    %3055 = vmatpush2.msra.mxu0 0.0
    %3056 = vmatprep.subr.mxu0 0.0
    %3057 = vmatpush2.msra.mxu0 0.0
    %3058 = vmatprep.subr.mxu0 0.0
    %3059 = vmatpush2.msra.mxu0 0.0
    %3060 = vmatprep.subr.mxu0 0.0
    %3061 = vmatpush2.msra.mxu0 0.0
    %3062 = vmatprep.subr.mxu0 0.0
    %3063 = vmatpush2.msra.mxu0 0.0
    %3064 = vmatprep.subr.mxu0 0.0
    %3065 = vmatpush2.msra.mxu0 0.0
    %3066 = vmatprep.subr.mxu0 0.0
    %3067 = vmatpush2.msra.mxu0 0.0
    %3068 = vmatprep.subr.mxu0 0.0
    %3069 = vmatpush2.msra.mxu0 0.0
    %3070 = vmatprep.subr.mxu0 0.0
    %3071 = vmatpush2.msra.mxu0 0.0
    %3072 = vmatprep.subr.mxu0 0.0
    %3073 = vmatpush2.msra.mxu0 0.0
    %3074 = vmatprep.subr.mxu0 0.0
    %3075 = vmatpush2.msra.mxu0 0.0
    %3076 = vmatprep.subr.mxu0 0.0
    %3077 = vmatpush2.msra.mxu0 0.0
    %3078 = vmatprep.mubr.f32.mxu0 0.0
    %3079 = vmatmul.mubr.f32.gmra.mxu0 %v2934
    %v3080 = vpop.f32.mrf.mxu0
    %v3081 = vadd.f32 0.0, %v3080
    %v3082 = vpop.f32.mrf.mxu0
    %3083 = vdwg.mxu0
    %v3084 = vadd.f32 %v3013, %v3081
    %v3085 = vxor.u32 %v3084, 2147483648
    %v3086 = vmul.f32 %v3085, 1.442695
    %v3087 = vpow.pop %v3086
    %v3088 = vadd.f32 %v3087, 1.0
    %v3089 = vrcp.pop %v3088
    %v3090 = vmul.f32 1.0, %v3089
    %v3091 = vld [vmem:[#allocation4 + $0x12] sm:$0x3]
    %3092 = vmatprep.subr.mxu0 0.0
    %3093 = vmatpush1.msra.mxu0 0.0
    %3094 = vmatprep.subr.mxu0 0.0
    %3095 = vmatpush1.msra.mxu0 0.0
    %3096 = vmatprep.subr.mxu0 0.0
    %3097 = vmatpush1.msra.mxu0 0.0
    %3098 = vmatprep.subr.mxu0 0.0
    %3099 = vmatpush1.msra.mxu0 0.0
    %3100 = vmatprep.subr.mxu0 0.0
    %3101 = vmatpush1.msra.mxu0 0.0
    %3102 = vmatprep.subr.mxu0 0.0
    %3103 = vmatpush1.msra.mxu0 0.0
    %3104 = vmatprep.subr.mxu0 0.0
    %3105 = vmatpush1.msra.mxu0 0.0
    %3106 = vmatprep.subr.mxu0 0.0
    %3107 = vmatpush1.msra.mxu0 0.0
    %3108 = vmatprep.subr.mxu0 0.0
    %3109 = vmatpush1.msra.mxu0 0.0
    %3110 = vmatprep.subr.mxu0 0.0
    %3111 = vmatpush1.msra.mxu0 0.0
    %3112 = vmatprep.subr.mxu0 0.0
    %3113 = vmatpush1.msra.mxu0 0.0
    %3114 = vmatprep.subr.mxu0 0.0
    %3115 = vmatpush1.msra.mxu0 0.0
    %3116 = vmatprep.subr.mxu0 0.0
    %3117 = vmatpush1.msra.mxu0 0.0
    %3118 = vmatprep.subr.mxu0 0.0
    %3119 = vmatpush1.msra.mxu0 0.0
    %3120 = vmatprep.subr.mxu0 0.0
    %3121 = vmatpush1.msra.mxu0 %v791
    %3122 = vmatprep.subr.mxu0 0.0
    %3123 = vmatpush1.msra.mxu0 %v790
    %3124 = vmatprep.subr.mxu0 0.0
    %3125 = vmatpush2.msra.mxu0 0.0
    %3126 = vmatprep.subr.mxu0 0.0
    %3127 = vmatpush2.msra.mxu0 0.0
    %3128 = vmatprep.subr.mxu0 0.0
    %3129 = vmatpush2.msra.mxu0 0.0
    %3130 = vmatprep.subr.mxu0 0.0
    %3131 = vmatpush2.msra.mxu0 0.0
    %3132 = vmatprep.subr.mxu0 0.0
    %3133 = vmatpush2.msra.mxu0 0.0
    %3134 = vmatprep.subr.mxu0 0.0
    %3135 = vmatpush2.msra.mxu0 0.0
    %3136 = vmatprep.subr.mxu0 0.0
    %3137 = vmatpush2.msra.mxu0 0.0
    %3138 = vmatprep.subr.mxu0 0.0
    %3139 = vmatpush2.msra.mxu0 0.0
    %3140 = vmatprep.subr.mxu0 0.0
    %3141 = vmatpush2.msra.mxu0 0.0
    %3142 = vmatprep.subr.mxu0 0.0
    %3143 = vmatpush2.msra.mxu0 0.0
    %3144 = vmatprep.subr.mxu0 0.0
    %3145 = vmatpush2.msra.mxu0 0.0
    %3146 = vmatprep.subr.mxu0 0.0
    %3147 = vmatpush2.msra.mxu0 0.0
    %3148 = vmatprep.subr.mxu0 0.0
    %3149 = vmatpush2.msra.mxu0 0.0
    %3150 = vmatprep.subr.mxu0 0.0
    %3151 = vmatpush2.msra.mxu0 0.0
    %3152 = vmatprep.subr.mxu0 0.0
    %3153 = vmatpush2.msra.mxu0 0.0
    %3154 = vmatprep.subr.mxu0 0.0
    %3155 = vmatpush2.msra.mxu0 0.0
    %3156 = vmatprep.mubr.f32.mxu0 0.0
    %3157 = vmatmul.mubr.f32.gmra.mxu0 %v2934
    %v3158 = vpop.f32.mrf.mxu0
    %v3159 = vadd.f32 %v957, %v3158
    %v3160 = vpop.f32.mrf.mxu0
    %3161 = vdwg.mxu0
    %v3162 = vmul.f32 %v3012, %v3159
    %v3163 = vadd.f32 %v3091, %v3162
    %v3164 = vtanh.pop %v3163
    %v3165 = vsub.f32 1.0, %v3090
    %v3166 = vmul.f32 %v3165, %v3164
    %v3167 = vmul.f32 %v3090, %v2931
    %v3168 = vadd.f32 %v3166, %v3167
    %v3169 = vld [vmem:[#allocation2 + $0x14] sm:$0x3]
    %v3171 = vsel %vm181, %v3168, 0
    %3173 = vmatprep.subr.mxu0 0.0
    %3174 = vmatpush1.msra.mxu0 0.0
    %3175 = vmatprep.subr.mxu0 0.0
    %3176 = vmatpush1.msra.mxu0 0.0
    %3177 = vmatprep.subr.mxu0 0.0
    %3178 = vmatpush1.msra.mxu0 0.0
    %3179 = vmatprep.subr.mxu0 0.0
    %3180 = vmatpush1.msra.mxu0 0.0
    %3181 = vmatprep.subr.mxu0 0.0
    %3182 = vmatpush1.msra.mxu0 0.0
    %3183 = vmatprep.subr.mxu0 0.0
    %3184 = vmatpush1.msra.mxu0 0.0
    %3185 = vmatprep.subr.mxu0 0.0
    %3186 = vmatpush1.msra.mxu0 0.0
    %3187 = vmatprep.subr.mxu0 0.0
    %3188 = vmatpush1.msra.mxu0 0.0
    %3189 = vmatprep.subr.mxu0 0.0
    %3190 = vmatpush1.msra.mxu0 0.0
    %3191 = vmatprep.subr.mxu0 0.0
    %3192 = vmatpush1.msra.mxu0 0.0
    %3193 = vmatprep.subr.mxu0 0.0
    %3194 = vmatpush1.msra.mxu0 0.0
    %3195 = vmatprep.subr.mxu0 0.0
    %3196 = vmatpush1.msra.mxu0 0.0
    %3197 = vmatprep.subr.mxu0 0.0
    %3198 = vmatpush1.msra.mxu0 0.0
    %3199 = vmatprep.subr.mxu0 0.0
    %3200 = vmatpush1.msra.mxu0 0.0
    %3201 = vmatprep.subr.mxu0 0.0
    %3202 = vmatpush1.msra.mxu0 %v785
    %3203 = vmatprep.subr.mxu0 0.0
    %3204 = vmatpush1.msra.mxu0 %v784
    %3205 = vmatprep.subr.mxu0 0.0
    %3206 = vmatpush2.msra.mxu0 0.0
    %3207 = vmatprep.subr.mxu0 0.0
    %3208 = vmatpush2.msra.mxu0 0.0
    %3209 = vmatprep.subr.mxu0 0.0
    %3210 = vmatpush2.msra.mxu0 0.0
    %3211 = vmatprep.subr.mxu0 0.0
    %3212 = vmatpush2.msra.mxu0 0.0
    %3213 = vmatprep.subr.mxu0 0.0
    %3214 = vmatpush2.msra.mxu0 0.0
    %3215 = vmatprep.subr.mxu0 0.0
    %3216 = vmatpush2.msra.mxu0 0.0
    %3217 = vmatprep.subr.mxu0 0.0
    %3218 = vmatpush2.msra.mxu0 0.0
    %3219 = vmatprep.subr.mxu0 0.0
    %3220 = vmatpush2.msra.mxu0 0.0
    %3221 = vmatprep.subr.mxu0 0.0
    %3222 = vmatpush2.msra.mxu0 0.0
    %3223 = vmatprep.subr.mxu0 0.0
    %3224 = vmatpush2.msra.mxu0 0.0
    %3225 = vmatprep.subr.mxu0 0.0
    %3226 = vmatpush2.msra.mxu0 0.0
    %3227 = vmatprep.subr.mxu0 0.0
    %3228 = vmatpush2.msra.mxu0 0.0
    %3229 = vmatprep.subr.mxu0 0.0
    %3230 = vmatpush2.msra.mxu0 0.0
    %3231 = vmatprep.subr.mxu0 0.0
    %3232 = vmatpush2.msra.mxu0 0.0
    %3233 = vmatprep.subr.mxu0 0.0
    %3234 = vmatpush2.msra.mxu0 0.0
    %3235 = vmatprep.subr.mxu0 0.0
    %3236 = vmatpush2.msra.mxu0 0.0
    %3237 = vmatprep.mubr.f32.mxu0 0.0
    %3238 = vmatmul.mubr.f32.gmra.mxu0 %v3171
    %v3239 = vpop.f32.mrf.mxu0
    %v3240 = vadd.f32 0.0, %v3239
    %v3241 = vpop.f32.mrf.mxu0
    %3242 = vdwg.mxu0
    %v3243 = vadd.f32 %v3169, %v3240
    %v3244 = vxor.u32 %v3243, 2147483648
    %v3245 = vmul.f32 %v3244, 1.442695
    %v3246 = vpow.pop %v3245
    %v3247 = vadd.f32 %v3246, 1.0
    %v3248 = vrcp.pop %v3247
    %v3249 = vmul.f32 1.0, %v3248
    %v3250 = vld [vmem:[#allocation3 + $0x14] sm:$0x3]
    %3251 = vmatprep.subr.mxu0 0.0
    %3252 = vmatpush1.msra.mxu0 0.0
    %3253 = vmatprep.subr.mxu0 0.0
    %3254 = vmatpush1.msra.mxu0 0.0
    %3255 = vmatprep.subr.mxu0 0.0
    %3256 = vmatpush1.msra.mxu0 0.0
    %3257 = vmatprep.subr.mxu0 0.0
    %3258 = vmatpush1.msra.mxu0 0.0
    %3259 = vmatprep.subr.mxu0 0.0
    %3260 = vmatpush1.msra.mxu0 0.0
    %3261 = vmatprep.subr.mxu0 0.0
    %3262 = vmatpush1.msra.mxu0 0.0
    %3263 = vmatprep.subr.mxu0 0.0
    %3264 = vmatpush1.msra.mxu0 0.0
    %3265 = vmatprep.subr.mxu0 0.0
    %3266 = vmatpush1.msra.mxu0 0.0
    %3267 = vmatprep.subr.mxu0 0.0
    %3268 = vmatpush1.msra.mxu0 0.0
    %3269 = vmatprep.subr.mxu0 0.0
    %3270 = vmatpush1.msra.mxu0 0.0
    %3271 = vmatprep.subr.mxu0 0.0
    %3272 = vmatpush1.msra.mxu0 0.0
    %3273 = vmatprep.subr.mxu0 0.0
    %3274 = vmatpush1.msra.mxu0 0.0
    %3275 = vmatprep.subr.mxu0 0.0
    %3276 = vmatpush1.msra.mxu0 0.0
    %3277 = vmatprep.subr.mxu0 0.0
    %3278 = vmatpush1.msra.mxu0 0.0
    %3279 = vmatprep.subr.mxu0 0.0
    %3280 = vmatpush1.msra.mxu0 %v788
    %3281 = vmatprep.subr.mxu0 0.0
    %3282 = vmatpush1.msra.mxu0 %v787
    %3283 = vmatprep.subr.mxu0 0.0
    %3284 = vmatpush2.msra.mxu0 0.0
    %3285 = vmatprep.subr.mxu0 0.0
    %3286 = vmatpush2.msra.mxu0 0.0
    %3287 = vmatprep.subr.mxu0 0.0
    %3288 = vmatpush2.msra.mxu0 0.0
    %3289 = vmatprep.subr.mxu0 0.0
    %3290 = vmatpush2.msra.mxu0 0.0
    %3291 = vmatprep.subr.mxu0 0.0
    %3292 = vmatpush2.msra.mxu0 0.0
    %3293 = vmatprep.subr.mxu0 0.0
    %3294 = vmatpush2.msra.mxu0 0.0
    %3295 = vmatprep.subr.mxu0 0.0
    %3296 = vmatpush2.msra.mxu0 0.0
    %3297 = vmatprep.subr.mxu0 0.0
    %3298 = vmatpush2.msra.mxu0 0.0
    %3299 = vmatprep.subr.mxu0 0.0
    %3300 = vmatpush2.msra.mxu0 0.0
    %3301 = vmatprep.subr.mxu0 0.0
    %3302 = vmatpush2.msra.mxu0 0.0
    %3303 = vmatprep.subr.mxu0 0.0
    %3304 = vmatpush2.msra.mxu0 0.0
    %3305 = vmatprep.subr.mxu0 0.0
    %3306 = vmatpush2.msra.mxu0 0.0
    %3307 = vmatprep.subr.mxu0 0.0
    %3308 = vmatpush2.msra.mxu0 0.0
    %3309 = vmatprep.subr.mxu0 0.0
    %3310 = vmatpush2.msra.mxu0 0.0
    %3311 = vmatprep.subr.mxu0 0.0
    %3312 = vmatpush2.msra.mxu0 0.0
    %3313 = vmatprep.subr.mxu0 0.0
    %3314 = vmatpush2.msra.mxu0 0.0
    %3315 = vmatprep.mubr.f32.mxu0 0.0
    %3316 = vmatmul.mubr.f32.gmra.mxu0 %v3171
    %v3317 = vpop.f32.mrf.mxu0
    %v3318 = vadd.f32 0.0, %v3317
    %v3319 = vpop.f32.mrf.mxu0
    %3320 = vdwg.mxu0
    %v3321 = vadd.f32 %v3250, %v3318
    %v3322 = vxor.u32 %v3321, 2147483648
    %v3323 = vmul.f32 %v3322, 1.442695
    %v3324 = vpow.pop %v3323
    %v3325 = vadd.f32 %v3324, 1.0
    %v3326 = vrcp.pop %v3325
    %v3327 = vmul.f32 1.0, %v3326
    %v3328 = vld [vmem:[#allocation4 + $0x14] sm:$0x3]
    %3329 = vmatprep.subr.mxu0 0.0
    %3330 = vmatpush1.msra.mxu0 0.0
    %3331 = vmatprep.subr.mxu0 0.0
    %3332 = vmatpush1.msra.mxu0 0.0
    %3333 = vmatprep.subr.mxu0 0.0
    %3334 = vmatpush1.msra.mxu0 0.0
    %3335 = vmatprep.subr.mxu0 0.0
    %3336 = vmatpush1.msra.mxu0 0.0
    %3337 = vmatprep.subr.mxu0 0.0
    %3338 = vmatpush1.msra.mxu0 0.0
    %3339 = vmatprep.subr.mxu0 0.0
    %3340 = vmatpush1.msra.mxu0 0.0
    %3341 = vmatprep.subr.mxu0 0.0
    %3342 = vmatpush1.msra.mxu0 0.0
    %3343 = vmatprep.subr.mxu0 0.0
    %3344 = vmatpush1.msra.mxu0 0.0
    %3345 = vmatprep.subr.mxu0 0.0
    %3346 = vmatpush1.msra.mxu0 0.0
    %3347 = vmatprep.subr.mxu0 0.0
    %3348 = vmatpush1.msra.mxu0 0.0
    %3349 = vmatprep.subr.mxu0 0.0
    %3350 = vmatpush1.msra.mxu0 0.0
    %3351 = vmatprep.subr.mxu0 0.0
    %3352 = vmatpush1.msra.mxu0 0.0
    %3353 = vmatprep.subr.mxu0 0.0
    %3354 = vmatpush1.msra.mxu0 0.0
    %3355 = vmatprep.subr.mxu0 0.0
    %3356 = vmatpush1.msra.mxu0 0.0
    %3357 = vmatprep.subr.mxu0 0.0
    %3358 = vmatpush1.msra.mxu0 %v791
    %3359 = vmatprep.subr.mxu0 0.0
    %3360 = vmatpush1.msra.mxu0 %v790
    %3361 = vmatprep.subr.mxu0 0.0
    %3362 = vmatpush2.msra.mxu0 0.0
    %3363 = vmatprep.subr.mxu0 0.0
    %3364 = vmatpush2.msra.mxu0 0.0
    %3365 = vmatprep.subr.mxu0 0.0
    %3366 = vmatpush2.msra.mxu0 0.0
    %3367 = vmatprep.subr.mxu0 0.0
    %3368 = vmatpush2.msra.mxu0 0.0
    %3369 = vmatprep.subr.mxu0 0.0
    %3370 = vmatpush2.msra.mxu0 0.0
    %3371 = vmatprep.subr.mxu0 0.0
    %3372 = vmatpush2.msra.mxu0 0.0
    %3373 = vmatprep.subr.mxu0 0.0
    %3374 = vmatpush2.msra.mxu0 0.0
    %3375 = vmatprep.subr.mxu0 0.0
    %3376 = vmatpush2.msra.mxu0 0.0
    %3377 = vmatprep.subr.mxu0 0.0
    %3378 = vmatpush2.msra.mxu0 0.0
    %3379 = vmatprep.subr.mxu0 0.0
    %3380 = vmatpush2.msra.mxu0 0.0
    %3381 = vmatprep.subr.mxu0 0.0
    %3382 = vmatpush2.msra.mxu0 0.0
    %3383 = vmatprep.subr.mxu0 0.0
    %3384 = vmatpush2.msra.mxu0 0.0
    %3385 = vmatprep.subr.mxu0 0.0
    %3386 = vmatpush2.msra.mxu0 0.0
    %3387 = vmatprep.subr.mxu0 0.0
    %3388 = vmatpush2.msra.mxu0 0.0
    %3389 = vmatprep.subr.mxu0 0.0
    %3390 = vmatpush2.msra.mxu0 0.0
    %3391 = vmatprep.subr.mxu0 0.0
    %3392 = vmatpush2.msra.mxu0 0.0
    %3393 = vmatprep.mubr.f32.mxu0 0.0
    %3394 = vmatmul.mubr.f32.gmra.mxu0 %v3171
    %v3395 = vpop.f32.mrf.mxu0
    %v3396 = vadd.f32 %v957, %v3395
    %v3397 = vpop.f32.mrf.mxu0
    %3398 = vdwg.mxu0
    %v3399 = vmul.f32 %v3249, %v3396
    %v3400 = vadd.f32 %v3328, %v3399
    %v3401 = vtanh.pop %v3400
    %v3402 = vsub.f32 1.0, %v3327
    %v3403 = vmul.f32 %v3402, %v3401
    %v3404 = vmul.f32 %v3327, %v3168
    %v3405 = vadd.f32 %v3403, %v3404
    %v3406 = vld [vmem:[#allocation2 + $0x16] sm:$0x3]
    %v3408 = vsel %vm181, %v3405, 0
    %3410 = vmatprep.subr.mxu0 0.0
    %3411 = vmatpush1.msra.mxu0 0.0
    %3412 = vmatprep.subr.mxu0 0.0
    %3413 = vmatpush1.msra.mxu0 0.0
    %3414 = vmatprep.subr.mxu0 0.0
    %3415 = vmatpush1.msra.mxu0 0.0
    %3416 = vmatprep.subr.mxu0 0.0
    %3417 = vmatpush1.msra.mxu0 0.0
    %3418 = vmatprep.subr.mxu0 0.0
    %3419 = vmatpush1.msra.mxu0 0.0
    %3420 = vmatprep.subr.mxu0 0.0
    %3421 = vmatpush1.msra.mxu0 0.0
    %3422 = vmatprep.subr.mxu0 0.0
    %3423 = vmatpush1.msra.mxu0 0.0
    %3424 = vmatprep.subr.mxu0 0.0
    %3425 = vmatpush1.msra.mxu0 0.0
    %3426 = vmatprep.subr.mxu0 0.0
    %3427 = vmatpush1.msra.mxu0 0.0
    %3428 = vmatprep.subr.mxu0 0.0
    %3429 = vmatpush1.msra.mxu0 0.0
    %3430 = vmatprep.subr.mxu0 0.0
    %3431 = vmatpush1.msra.mxu0 0.0
    %3432 = vmatprep.subr.mxu0 0.0
    %3433 = vmatpush1.msra.mxu0 0.0
    %3434 = vmatprep.subr.mxu0 0.0
    %3435 = vmatpush1.msra.mxu0 0.0
    %3436 = vmatprep.subr.mxu0 0.0
    %3437 = vmatpush1.msra.mxu0 0.0
    %3438 = vmatprep.subr.mxu0 0.0
    %3439 = vmatpush1.msra.mxu0 %v785
    %3440 = vmatprep.subr.mxu0 0.0
    %3441 = vmatpush1.msra.mxu0 %v784
    %3442 = vmatprep.subr.mxu0 0.0
    %3443 = vmatpush2.msra.mxu0 0.0
    %3444 = vmatprep.subr.mxu0 0.0
    %3445 = vmatpush2.msra.mxu0 0.0
    %3446 = vmatprep.subr.mxu0 0.0
    %3447 = vmatpush2.msra.mxu0 0.0
    %3448 = vmatprep.subr.mxu0 0.0
    %3449 = vmatpush2.msra.mxu0 0.0
    %3450 = vmatprep.subr.mxu0 0.0
    %3451 = vmatpush2.msra.mxu0 0.0
    %3452 = vmatprep.subr.mxu0 0.0
    %3453 = vmatpush2.msra.mxu0 0.0
    %3454 = vmatprep.subr.mxu0 0.0
    %3455 = vmatpush2.msra.mxu0 0.0
    %3456 = vmatprep.subr.mxu0 0.0
    %3457 = vmatpush2.msra.mxu0 0.0
    %3458 = vmatprep.subr.mxu0 0.0
    %3459 = vmatpush2.msra.mxu0 0.0
    %3460 = vmatprep.subr.mxu0 0.0
    %3461 = vmatpush2.msra.mxu0 0.0
    %3462 = vmatprep.subr.mxu0 0.0
    %3463 = vmatpush2.msra.mxu0 0.0
    %3464 = vmatprep.subr.mxu0 0.0
    %3465 = vmatpush2.msra.mxu0 0.0
    %3466 = vmatprep.subr.mxu0 0.0
    %3467 = vmatpush2.msra.mxu0 0.0
    %3468 = vmatprep.subr.mxu0 0.0
    %3469 = vmatpush2.msra.mxu0 0.0
    %3470 = vmatprep.subr.mxu0 0.0
    %3471 = vmatpush2.msra.mxu0 0.0
    %3472 = vmatprep.subr.mxu0 0.0
    %3473 = vmatpush2.msra.mxu0 0.0
    %3474 = vmatprep.mubr.f32.mxu0 0.0
    %3475 = vmatmul.mubr.f32.gmra.mxu0 %v3408
    %v3476 = vpop.f32.mrf.mxu0
    %v3477 = vadd.f32 0.0, %v3476
    %v3478 = vpop.f32.mrf.mxu0
    %3479 = vdwg.mxu0
    %v3480 = vadd.f32 %v3406, %v3477
    %v3481 = vxor.u32 %v3480, 2147483648
    %v3482 = vmul.f32 %v3481, 1.442695
    %v3483 = vpow.pop %v3482
    %v3484 = vadd.f32 %v3483, 1.0
    %v3485 = vrcp.pop %v3484
    %v3486 = vmul.f32 1.0, %v3485
    %v3487 = vld [vmem:[#allocation3 + $0x16] sm:$0x3]
    %3488 = vmatprep.subr.mxu0 0.0
    %3489 = vmatpush1.msra.mxu0 0.0
    %3490 = vmatprep.subr.mxu0 0.0
    %3491 = vmatpush1.msra.mxu0 0.0
    %3492 = vmatprep.subr.mxu0 0.0
    %3493 = vmatpush1.msra.mxu0 0.0
    %3494 = vmatprep.subr.mxu0 0.0
    %3495 = vmatpush1.msra.mxu0 0.0
    %3496 = vmatprep.subr.mxu0 0.0
    %3497 = vmatpush1.msra.mxu0 0.0
    %3498 = vmatprep.subr.mxu0 0.0
    %3499 = vmatpush1.msra.mxu0 0.0
    %3500 = vmatprep.subr.mxu0 0.0
    %3501 = vmatpush1.msra.mxu0 0.0
    %3502 = vmatprep.subr.mxu0 0.0
    %3503 = vmatpush1.msra.mxu0 0.0
    %3504 = vmatprep.subr.mxu0 0.0
    %3505 = vmatpush1.msra.mxu0 0.0
    %3506 = vmatprep.subr.mxu0 0.0
    %3507 = vmatpush1.msra.mxu0 0.0
    %3508 = vmatprep.subr.mxu0 0.0
    %3509 = vmatpush1.msra.mxu0 0.0
    %3510 = vmatprep.subr.mxu0 0.0
    %3511 = vmatpush1.msra.mxu0 0.0
    %3512 = vmatprep.subr.mxu0 0.0
    %3513 = vmatpush1.msra.mxu0 0.0
    %3514 = vmatprep.subr.mxu0 0.0
    %3515 = vmatpush1.msra.mxu0 0.0
    %3516 = vmatprep.subr.mxu0 0.0
    %3517 = vmatpush1.msra.mxu0 %v788
    %3518 = vmatprep.subr.mxu0 0.0
    %3519 = vmatpush1.msra.mxu0 %v787
    %3520 = vmatprep.subr.mxu0 0.0
    %3521 = vmatpush2.msra.mxu0 0.0
    %3522 = vmatprep.subr.mxu0 0.0
    %3523 = vmatpush2.msra.mxu0 0.0
    %3524 = vmatprep.subr.mxu0 0.0
    %3525 = vmatpush2.msra.mxu0 0.0
    %3526 = vmatprep.subr.mxu0 0.0
    %3527 = vmatpush2.msra.mxu0 0.0
    %3528 = vmatprep.subr.mxu0 0.0
    %3529 = vmatpush2.msra.mxu0 0.0
    %3530 = vmatprep.subr.mxu0 0.0
    %3531 = vmatpush2.msra.mxu0 0.0
    %3532 = vmatprep.subr.mxu0 0.0
    %3533 = vmatpush2.msra.mxu0 0.0
    %3534 = vmatprep.subr.mxu0 0.0
    %3535 = vmatpush2.msra.mxu0 0.0
    %3536 = vmatprep.subr.mxu0 0.0
    %3537 = vmatpush2.msra.mxu0 0.0
    %3538 = vmatprep.subr.mxu0 0.0
    %3539 = vmatpush2.msra.mxu0 0.0
    %3540 = vmatprep.subr.mxu0 0.0
    %3541 = vmatpush2.msra.mxu0 0.0
    %3542 = vmatprep.subr.mxu0 0.0
    %3543 = vmatpush2.msra.mxu0 0.0
    %3544 = vmatprep.subr.mxu0 0.0
    %3545 = vmatpush2.msra.mxu0 0.0
    %3546 = vmatprep.subr.mxu0 0.0
    %3547 = vmatpush2.msra.mxu0 0.0
    %3548 = vmatprep.subr.mxu0 0.0
    %3549 = vmatpush2.msra.mxu0 0.0
    %3550 = vmatprep.subr.mxu0 0.0
    %3551 = vmatpush2.msra.mxu0 0.0
    %3552 = vmatprep.mubr.f32.mxu0 0.0
    %3553 = vmatmul.mubr.f32.gmra.mxu0 %v3408
    %v3554 = vpop.f32.mrf.mxu0
    %v3555 = vadd.f32 0.0, %v3554
    %v3556 = vpop.f32.mrf.mxu0
    %3557 = vdwg.mxu0
    %v3558 = vadd.f32 %v3487, %v3555
    %v3559 = vxor.u32 %v3558, 2147483648
    %v3560 = vmul.f32 %v3559, 1.442695
    %v3561 = vpow.pop %v3560
    %v3562 = vadd.f32 %v3561, 1.0
    %v3563 = vrcp.pop %v3562
    %v3564 = vmul.f32 1.0, %v3563
    %v3565 = vld [vmem:[#allocation4 + $0x16] sm:$0x3]
    %3566 = vmatprep.subr.mxu0 0.0
    %3567 = vmatpush1.msra.mxu0 0.0
    %3568 = vmatprep.subr.mxu0 0.0
    %3569 = vmatpush1.msra.mxu0 0.0
    %3570 = vmatprep.subr.mxu0 0.0
    %3571 = vmatpush1.msra.mxu0 0.0
    %3572 = vmatprep.subr.mxu0 0.0
    %3573 = vmatpush1.msra.mxu0 0.0
    %3574 = vmatprep.subr.mxu0 0.0
    %3575 = vmatpush1.msra.mxu0 0.0
    %3576 = vmatprep.subr.mxu0 0.0
    %3577 = vmatpush1.msra.mxu0 0.0
    %3578 = vmatprep.subr.mxu0 0.0
    %3579 = vmatpush1.msra.mxu0 0.0
    %3580 = vmatprep.subr.mxu0 0.0
    %3581 = vmatpush1.msra.mxu0 0.0
    %3582 = vmatprep.subr.mxu0 0.0
    %3583 = vmatpush1.msra.mxu0 0.0
    %3584 = vmatprep.subr.mxu0 0.0
    %3585 = vmatpush1.msra.mxu0 0.0
    %3586 = vmatprep.subr.mxu0 0.0
    %3587 = vmatpush1.msra.mxu0 0.0
    %3588 = vmatprep.subr.mxu0 0.0
    %3589 = vmatpush1.msra.mxu0 0.0
    %3590 = vmatprep.subr.mxu0 0.0
    %3591 = vmatpush1.msra.mxu0 0.0
    %3592 = vmatprep.subr.mxu0 0.0
    %3593 = vmatpush1.msra.mxu0 0.0
    %3594 = vmatprep.subr.mxu0 0.0
    %3595 = vmatpush1.msra.mxu0 %v791
    %3596 = vmatprep.subr.mxu0 0.0
    %3597 = vmatpush1.msra.mxu0 %v790
    %3598 = vmatprep.subr.mxu0 0.0
    %3599 = vmatpush2.msra.mxu0 0.0
    %3600 = vmatprep.subr.mxu0 0.0
    %3601 = vmatpush2.msra.mxu0 0.0
    %3602 = vmatprep.subr.mxu0 0.0
    %3603 = vmatpush2.msra.mxu0 0.0
    %3604 = vmatprep.subr.mxu0 0.0
    %3605 = vmatpush2.msra.mxu0 0.0
    %3606 = vmatprep.subr.mxu0 0.0
    %3607 = vmatpush2.msra.mxu0 0.0
    %3608 = vmatprep.subr.mxu0 0.0
    %3609 = vmatpush2.msra.mxu0 0.0
    %3610 = vmatprep.subr.mxu0 0.0
    %3611 = vmatpush2.msra.mxu0 0.0
    %3612 = vmatprep.subr.mxu0 0.0
    %3613 = vmatpush2.msra.mxu0 0.0
    %3614 = vmatprep.subr.mxu0 0.0
    %3615 = vmatpush2.msra.mxu0 0.0
    %3616 = vmatprep.subr.mxu0 0.0
    %3617 = vmatpush2.msra.mxu0 0.0
    %3618 = vmatprep.subr.mxu0 0.0
    %3619 = vmatpush2.msra.mxu0 0.0
    %3620 = vmatprep.subr.mxu0 0.0
    %3621 = vmatpush2.msra.mxu0 0.0
    %3622 = vmatprep.subr.mxu0 0.0
    %3623 = vmatpush2.msra.mxu0 0.0
    %3624 = vmatprep.subr.mxu0 0.0
    %3625 = vmatpush2.msra.mxu0 0.0
    %3626 = vmatprep.subr.mxu0 0.0
    %3627 = vmatpush2.msra.mxu0 0.0
    %3628 = vmatprep.subr.mxu0 0.0
    %3629 = vmatpush2.msra.mxu0 0.0
    %3630 = vmatprep.mubr.f32.mxu0 0.0
    %3631 = vmatmul.mubr.f32.gmra.mxu0 %v3408
    %v3632 = vpop.f32.mrf.mxu0
    %v3633 = vadd.f32 %v957, %v3632
    %v3634 = vpop.f32.mrf.mxu0
    %3635 = vdwg.mxu0
    %v3636 = vmul.f32 %v3486, %v3633
    %v3637 = vadd.f32 %v3565, %v3636
    %v3638 = vtanh.pop %v3637
    %v3639 = vsub.f32 1.0, %v3564
    %v3640 = vmul.f32 %v3639, %v3638
    %v3641 = vmul.f32 %v3564, %v3405
    %v3642 = vadd.f32 %v3640, %v3641
    %v3643 = vld [vmem:[#allocation2 + $0x18] sm:$0x3]
    %v3645 = vsel %vm181, %v3642, 0
    %3647 = vmatprep.subr.mxu0 0.0
    %3648 = vmatpush1.msra.mxu0 0.0
    %3649 = vmatprep.subr.mxu0 0.0
    %3650 = vmatpush1.msra.mxu0 0.0
    %3651 = vmatprep.subr.mxu0 0.0
    %3652 = vmatpush1.msra.mxu0 0.0
    %3653 = vmatprep.subr.mxu0 0.0
    %3654 = vmatpush1.msra.mxu0 0.0
    %3655 = vmatprep.subr.mxu0 0.0
    %3656 = vmatpush1.msra.mxu0 0.0
    %3657 = vmatprep.subr.mxu0 0.0
    %3658 = vmatpush1.msra.mxu0 0.0
    %3659 = vmatprep.subr.mxu0 0.0
    %3660 = vmatpush1.msra.mxu0 0.0
    %3661 = vmatprep.subr.mxu0 0.0
    %3662 = vmatpush1.msra.mxu0 0.0
    %3663 = vmatprep.subr.mxu0 0.0
    %3664 = vmatpush1.msra.mxu0 0.0
    %3665 = vmatprep.subr.mxu0 0.0
    %3666 = vmatpush1.msra.mxu0 0.0
    %3667 = vmatprep.subr.mxu0 0.0
    %3668 = vmatpush1.msra.mxu0 0.0
    %3669 = vmatprep.subr.mxu0 0.0
    %3670 = vmatpush1.msra.mxu0 0.0
    %3671 = vmatprep.subr.mxu0 0.0
    %3672 = vmatpush1.msra.mxu0 0.0
    %3673 = vmatprep.subr.mxu0 0.0
    %3674 = vmatpush1.msra.mxu0 0.0
    %3675 = vmatprep.subr.mxu0 0.0
    %3676 = vmatpush1.msra.mxu0 %v785
    %3677 = vmatprep.subr.mxu0 0.0
    %3678 = vmatpush1.msra.mxu0 %v784
    %3679 = vmatprep.subr.mxu0 0.0
    %3680 = vmatpush2.msra.mxu0 0.0
    %3681 = vmatprep.subr.mxu0 0.0
    %3682 = vmatpush2.msra.mxu0 0.0
    %3683 = vmatprep.subr.mxu0 0.0
    %3684 = vmatpush2.msra.mxu0 0.0
    %3685 = vmatprep.subr.mxu0 0.0
    %3686 = vmatpush2.msra.mxu0 0.0
    %3687 = vmatprep.subr.mxu0 0.0
    %3688 = vmatpush2.msra.mxu0 0.0
    %3689 = vmatprep.subr.mxu0 0.0
    %3690 = vmatpush2.msra.mxu0 0.0
    %3691 = vmatprep.subr.mxu0 0.0
    %3692 = vmatpush2.msra.mxu0 0.0
    %3693 = vmatprep.subr.mxu0 0.0
    %3694 = vmatpush2.msra.mxu0 0.0
    %3695 = vmatprep.subr.mxu0 0.0
    %3696 = vmatpush2.msra.mxu0 0.0
    %3697 = vmatprep.subr.mxu0 0.0
    %3698 = vmatpush2.msra.mxu0 0.0
    %3699 = vmatprep.subr.mxu0 0.0
    %3700 = vmatpush2.msra.mxu0 0.0
    %3701 = vmatprep.subr.mxu0 0.0
    %3702 = vmatpush2.msra.mxu0 0.0
    %3703 = vmatprep.subr.mxu0 0.0
    %3704 = vmatpush2.msra.mxu0 0.0
    %3705 = vmatprep.subr.mxu0 0.0
    %3706 = vmatpush2.msra.mxu0 0.0
    %3707 = vmatprep.subr.mxu0 0.0
    %3708 = vmatpush2.msra.mxu0 0.0
    %3709 = vmatprep.subr.mxu0 0.0
    %3710 = vmatpush2.msra.mxu0 0.0
    %3711 = vmatprep.mubr.f32.mxu0 0.0
    %3712 = vmatmul.mubr.f32.gmra.mxu0 %v3645
    %v3713 = vpop.f32.mrf.mxu0
    %v3714 = vadd.f32 0.0, %v3713
    %v3715 = vpop.f32.mrf.mxu0
    %3716 = vdwg.mxu0
    %v3717 = vadd.f32 %v3643, %v3714
    %v3718 = vxor.u32 %v3717, 2147483648
    %v3719 = vmul.f32 %v3718, 1.442695
    %v3720 = vpow.pop %v3719
    %v3721 = vadd.f32 %v3720, 1.0
    %v3722 = vrcp.pop %v3721
    %v3723 = vmul.f32 1.0, %v3722
    %v3724 = vld [vmem:[#allocation3 + $0x18] sm:$0x3]
    %3725 = vmatprep.subr.mxu0 0.0
    %3726 = vmatpush1.msra.mxu0 0.0
    %3727 = vmatprep.subr.mxu0 0.0
    %3728 = vmatpush1.msra.mxu0 0.0
    %3729 = vmatprep.subr.mxu0 0.0
    %3730 = vmatpush1.msra.mxu0 0.0
    %3731 = vmatprep.subr.mxu0 0.0
    %3732 = vmatpush1.msra.mxu0 0.0
    %3733 = vmatprep.subr.mxu0 0.0
    %3734 = vmatpush1.msra.mxu0 0.0
    %3735 = vmatprep.subr.mxu0 0.0
    %3736 = vmatpush1.msra.mxu0 0.0
    %3737 = vmatprep.subr.mxu0 0.0
    %3738 = vmatpush1.msra.mxu0 0.0
    %3739 = vmatprep.subr.mxu0 0.0
    %3740 = vmatpush1.msra.mxu0 0.0
    %3741 = vmatprep.subr.mxu0 0.0
    %3742 = vmatpush1.msra.mxu0 0.0
    %3743 = vmatprep.subr.mxu0 0.0
    %3744 = vmatpush1.msra.mxu0 0.0
    %3745 = vmatprep.subr.mxu0 0.0
    %3746 = vmatpush1.msra.mxu0 0.0
    %3747 = vmatprep.subr.mxu0 0.0
    %3748 = vmatpush1.msra.mxu0 0.0
    %3749 = vmatprep.subr.mxu0 0.0
    %3750 = vmatpush1.msra.mxu0 0.0
    %3751 = vmatprep.subr.mxu0 0.0
    %3752 = vmatpush1.msra.mxu0 0.0
    %3753 = vmatprep.subr.mxu0 0.0
    %3754 = vmatpush1.msra.mxu0 %v788
    %3755 = vmatprep.subr.mxu0 0.0
    %3756 = vmatpush1.msra.mxu0 %v787
    %3757 = vmatprep.subr.mxu0 0.0
    %3758 = vmatpush2.msra.mxu0 0.0
    %3759 = vmatprep.subr.mxu0 0.0
    %3760 = vmatpush2.msra.mxu0 0.0
    %3761 = vmatprep.subr.mxu0 0.0
    %3762 = vmatpush2.msra.mxu0 0.0
    %3763 = vmatprep.subr.mxu0 0.0
    %3764 = vmatpush2.msra.mxu0 0.0
    %3765 = vmatprep.subr.mxu0 0.0
    %3766 = vmatpush2.msra.mxu0 0.0
    %3767 = vmatprep.subr.mxu0 0.0
    %3768 = vmatpush2.msra.mxu0 0.0
    %3769 = vmatprep.subr.mxu0 0.0
    %3770 = vmatpush2.msra.mxu0 0.0
    %3771 = vmatprep.subr.mxu0 0.0
    %3772 = vmatpush2.msra.mxu0 0.0
    %3773 = vmatprep.subr.mxu0 0.0
    %3774 = vmatpush2.msra.mxu0 0.0
    %3775 = vmatprep.subr.mxu0 0.0
    %3776 = vmatpush2.msra.mxu0 0.0
    %3777 = vmatprep.subr.mxu0 0.0
    %3778 = vmatpush2.msra.mxu0 0.0
    %3779 = vmatprep.subr.mxu0 0.0
    %3780 = vmatpush2.msra.mxu0 0.0
    %3781 = vmatprep.subr.mxu0 0.0
    %3782 = vmatpush2.msra.mxu0 0.0
    %3783 = vmatprep.subr.mxu0 0.0
    %3784 = vmatpush2.msra.mxu0 0.0
    %3785 = vmatprep.subr.mxu0 0.0
    %3786 = vmatpush2.msra.mxu0 0.0
    %3787 = vmatprep.subr.mxu0 0.0
    %3788 = vmatpush2.msra.mxu0 0.0
    %3789 = vmatprep.mubr.f32.mxu0 0.0
    %3790 = vmatmul.mubr.f32.gmra.mxu0 %v3645
    %v3791 = vpop.f32.mrf.mxu0
    %v3792 = vadd.f32 0.0, %v3791
    %v3793 = vpop.f32.mrf.mxu0
    %3794 = vdwg.mxu0
    %v3795 = vadd.f32 %v3724, %v3792
    %v3796 = vxor.u32 %v3795, 2147483648
    %v3797 = vmul.f32 %v3796, 1.442695
    %v3798 = vpow.pop %v3797
    %v3799 = vadd.f32 %v3798, 1.0
    %v3800 = vrcp.pop %v3799
    %v3801 = vmul.f32 1.0, %v3800
    %v3802 = vld [vmem:[#allocation4 + $0x18] sm:$0x3]
    %3803 = vmatprep.subr.mxu0 0.0
    %3804 = vmatpush1.msra.mxu0 0.0
    %3805 = vmatprep.subr.mxu0 0.0
    %3806 = vmatpush1.msra.mxu0 0.0
    %3807 = vmatprep.subr.mxu0 0.0
    %3808 = vmatpush1.msra.mxu0 0.0
    %3809 = vmatprep.subr.mxu0 0.0
    %3810 = vmatpush1.msra.mxu0 0.0
    %3811 = vmatprep.subr.mxu0 0.0
    %3812 = vmatpush1.msra.mxu0 0.0
    %3813 = vmatprep.subr.mxu0 0.0
    %3814 = vmatpush1.msra.mxu0 0.0
    %3815 = vmatprep.subr.mxu0 0.0
    %3816 = vmatpush1.msra.mxu0 0.0
    %3817 = vmatprep.subr.mxu0 0.0
    %3818 = vmatpush1.msra.mxu0 0.0
    %3819 = vmatprep.subr.mxu0 0.0
    %3820 = vmatpush1.msra.mxu0 0.0
    %3821 = vmatprep.subr.mxu0 0.0
    %3822 = vmatpush1.msra.mxu0 0.0
    %3823 = vmatprep.subr.mxu0 0.0
    %3824 = vmatpush1.msra.mxu0 0.0
    %3825 = vmatprep.subr.mxu0 0.0
    %3826 = vmatpush1.msra.mxu0 0.0
    %3827 = vmatprep.subr.mxu0 0.0
    %3828 = vmatpush1.msra.mxu0 0.0
    %3829 = vmatprep.subr.mxu0 0.0
    %3830 = vmatpush1.msra.mxu0 0.0
    %3831 = vmatprep.subr.mxu0 0.0
    %3832 = vmatpush1.msra.mxu0 %v791
    %3833 = vmatprep.subr.mxu0 0.0
    %3834 = vmatpush1.msra.mxu0 %v790
    %3835 = vmatprep.subr.mxu0 0.0
    %3836 = vmatpush2.msra.mxu0 0.0
    %3837 = vmatprep.subr.mxu0 0.0
    %3838 = vmatpush2.msra.mxu0 0.0
    %3839 = vmatprep.subr.mxu0 0.0
    %3840 = vmatpush2.msra.mxu0 0.0
    %3841 = vmatprep.subr.mxu0 0.0
    %3842 = vmatpush2.msra.mxu0 0.0
    %3843 = vmatprep.subr.mxu0 0.0
    %3844 = vmatpush2.msra.mxu0 0.0
    %3845 = vmatprep.subr.mxu0 0.0
    %3846 = vmatpush2.msra.mxu0 0.0
    %3847 = vmatprep.subr.mxu0 0.0
    %3848 = vmatpush2.msra.mxu0 0.0
    %3849 = vmatprep.subr.mxu0 0.0
    %3850 = vmatpush2.msra.mxu0 0.0
    %3851 = vmatprep.subr.mxu0 0.0
    %3852 = vmatpush2.msra.mxu0 0.0
    %3853 = vmatprep.subr.mxu0 0.0
    %3854 = vmatpush2.msra.mxu0 0.0
    %3855 = vmatprep.subr.mxu0 0.0
    %3856 = vmatpush2.msra.mxu0 0.0
    %3857 = vmatprep.subr.mxu0 0.0
    %3858 = vmatpush2.msra.mxu0 0.0
    %3859 = vmatprep.subr.mxu0 0.0
    %3860 = vmatpush2.msra.mxu0 0.0
    %3861 = vmatprep.subr.mxu0 0.0
    %3862 = vmatpush2.msra.mxu0 0.0
    %3863 = vmatprep.subr.mxu0 0.0
    %3864 = vmatpush2.msra.mxu0 0.0
    %3865 = vmatprep.subr.mxu0 0.0
    %3866 = vmatpush2.msra.mxu0 0.0
    %3867 = vmatprep.mubr.f32.mxu0 0.0
    %3868 = vmatmul.mubr.f32.gmra.mxu0 %v3645
    %v3869 = vpop.f32.mrf.mxu0
    %v3870 = vadd.f32 %v957, %v3869
    %v3871 = vpop.f32.mrf.mxu0
    %3872 = vdwg.mxu0
    %v3873 = vmul.f32 %v3723, %v3870
    %v3874 = vadd.f32 %v3802, %v3873
    %v3875 = vtanh.pop %v3874
    %v3876 = vsub.f32 1.0, %v3801
    %v3877 = vmul.f32 %v3876, %v3875
    %v3878 = vmul.f32 %v3801, %v3642
    %v3879 = vadd.f32 %v3877, %v3878
    %v3880 = vld [vmem:[%s9] sm:$0xff]
    %s3881 = scalar_lea.vmem %s9, 8
    %v3882 = vld [vmem:[%s3881] sm:$0xff]
    %s3883 = scalar_lea.vmem %s9, 16
    %v3884 = vld [vmem:[%s3883] sm:$0xff]
    %v3885 = vld [vmem:[%s11] sm:$0x1]
    %v3886 = vld [vmem:[#allocation5 + $0x2] sm:$0x3f]
    %v3887 = vsel %vm578, 0.0, 0
    %3889 = vmatprep.subr.mxu0 0.0
    %3890 = vmatpush1.msra.mxu0 0.0
    %3891 = vmatprep.subr.mxu0 0.0
    %3892 = vmatpush1.msra.mxu0 0.0
    %3893 = vmatprep.subr.mxu0 0.0
    %3894 = vmatpush1.msra.mxu0 0.0
    %3895 = vmatprep.subr.mxu0 0.0
    %3896 = vmatpush1.msra.mxu0 0.0
    %3897 = vmatprep.subr.mxu0 0.0
    %3898 = vmatpush1.msra.mxu0 0.0
    %3899 = vmatprep.subr.mxu0 0.0
    %3900 = vmatpush1.msra.mxu0 0.0
    %3901 = vmatprep.subr.mxu0 0.0
    %3902 = vmatpush1.msra.mxu0 0.0
    %3903 = vmatprep.subr.mxu0 0.0
    %3904 = vmatpush1.msra.mxu0 0.0
    %3905 = vmatprep.subr.mxu0 0.0
    %3906 = vmatpush1.msra.mxu0 0.0
    %3907 = vmatprep.subr.mxu0 0.0
    %3908 = vmatpush1.msra.mxu0 0.0
    %3909 = vmatprep.subr.mxu0 0.0
    %3910 = vmatpush1.msra.mxu0 0.0
    %3911 = vmatprep.subr.mxu0 0.0
    %3912 = vmatpush1.msra.mxu0 0.0
    %3913 = vmatprep.subr.mxu0 0.0
    %3914 = vmatpush1.msra.mxu0 0.0
    %3915 = vmatprep.subr.mxu0 0.0
    %3916 = vmatpush1.msra.mxu0 0.0
    %3917 = vmatprep.subr.mxu0 0.0
    %3918 = vmatpush1.msra.mxu0 0.0
    %3919 = vmatprep.subr.mxu0 0.0
    %3920 = vmatpush1.msra.mxu0 %v3880
    %3921 = vmatprep.subr.mxu0 0.0
    %3922 = vmatpush2.msra.mxu0 0.0
    %3923 = vmatprep.subr.mxu0 0.0
    %3924 = vmatpush2.msra.mxu0 0.0
    %3925 = vmatprep.subr.mxu0 0.0
    %3926 = vmatpush2.msra.mxu0 0.0
    %3927 = vmatprep.subr.mxu0 0.0
    %3928 = vmatpush2.msra.mxu0 0.0
    %3929 = vmatprep.subr.mxu0 0.0
    %3930 = vmatpush2.msra.mxu0 0.0
    %3931 = vmatprep.subr.mxu0 0.0
    %3932 = vmatpush2.msra.mxu0 0.0
    %3933 = vmatprep.subr.mxu0 0.0
    %3934 = vmatpush2.msra.mxu0 0.0
    %3935 = vmatprep.subr.mxu0 0.0
    %3936 = vmatpush2.msra.mxu0 0.0
    %3937 = vmatprep.subr.mxu0 0.0
    %3938 = vmatpush2.msra.mxu0 0.0
    %3939 = vmatprep.subr.mxu0 0.0
    %3940 = vmatpush2.msra.mxu0 0.0
    %3941 = vmatprep.subr.mxu0 0.0
    %3942 = vmatpush2.msra.mxu0 0.0
    %3943 = vmatprep.subr.mxu0 0.0
    %3944 = vmatpush2.msra.mxu0 0.0
    %3945 = vmatprep.subr.mxu0 0.0
    %3946 = vmatpush2.msra.mxu0 0.0
    %3947 = vmatprep.subr.mxu0 0.0
    %3948 = vmatpush2.msra.mxu0 0.0
    %3949 = vmatprep.subr.mxu0 0.0
    %3950 = vmatpush2.msra.mxu0 0.0
    %3951 = vmatprep.subr.mxu0 0.0
    %3952 = vmatpush2.msra.mxu0 0.0
    %3953 = vmatprep.mubr.f32.mxu0 0.0
    %3954 = vmatmul.mubr.f32.gmra.mxu0 %v3887
    %v3955 = vpop.f32.mrf.mxu0
    %v3956 = vadd.f32 0.0, %v3955
    %v3957 = vpop.f32.mrf.mxu0
    %3958 = vdwg.mxu0
    %v3959 = vadd.f32 %v3886, %v3956
    %v3960 = vxor.u32 %v3959, 2147483648
    %v3961 = vmul.f32 %v3960, 1.442695
    %v3962 = vpow.pop %v3961
    %v3963 = vadd.f32 %v3962, 1.0
    %v3964 = vrcp.pop %v3963
    %v3965 = vmul.f32 1.0, %v3964
    %v3966 = vld [vmem:[#allocation6 + $0x2] sm:$0x3f]
    %3967 = vmatprep.subr.mxu0 0.0
    %3968 = vmatpush1.msra.mxu0 0.0
    %3969 = vmatprep.subr.mxu0 0.0
    %3970 = vmatpush1.msra.mxu0 0.0
    %3971 = vmatprep.subr.mxu0 0.0
    %3972 = vmatpush1.msra.mxu0 0.0
    %3973 = vmatprep.subr.mxu0 0.0
    %3974 = vmatpush1.msra.mxu0 0.0
    %3975 = vmatprep.subr.mxu0 0.0
    %3976 = vmatpush1.msra.mxu0 0.0
    %3977 = vmatprep.subr.mxu0 0.0
    %3978 = vmatpush1.msra.mxu0 0.0
    %3979 = vmatprep.subr.mxu0 0.0
    %3980 = vmatpush1.msra.mxu0 0.0
    %3981 = vmatprep.subr.mxu0 0.0
    %3982 = vmatpush1.msra.mxu0 0.0
    %3983 = vmatprep.subr.mxu0 0.0
    %3984 = vmatpush1.msra.mxu0 0.0
    %3985 = vmatprep.subr.mxu0 0.0
    %3986 = vmatpush1.msra.mxu0 0.0
    %3987 = vmatprep.subr.mxu0 0.0
    %3988 = vmatpush1.msra.mxu0 0.0
    %3989 = vmatprep.subr.mxu0 0.0
    %3990 = vmatpush1.msra.mxu0 0.0
    %3991 = vmatprep.subr.mxu0 0.0
    %3992 = vmatpush1.msra.mxu0 0.0
    %3993 = vmatprep.subr.mxu0 0.0
    %3994 = vmatpush1.msra.mxu0 0.0
    %3995 = vmatprep.subr.mxu0 0.0
    %3996 = vmatpush1.msra.mxu0 0.0
    %3997 = vmatprep.subr.mxu0 0.0
    %3998 = vmatpush1.msra.mxu0 %v3882
    %3999 = vmatprep.subr.mxu0 0.0
    %4000 = vmatpush2.msra.mxu0 0.0
    %4001 = vmatprep.subr.mxu0 0.0
    %4002 = vmatpush2.msra.mxu0 0.0
    %4003 = vmatprep.subr.mxu0 0.0
    %4004 = vmatpush2.msra.mxu0 0.0
    %4005 = vmatprep.subr.mxu0 0.0
    %4006 = vmatpush2.msra.mxu0 0.0
    %4007 = vmatprep.subr.mxu0 0.0
    %4008 = vmatpush2.msra.mxu0 0.0
    %4009 = vmatprep.subr.mxu0 0.0
    %4010 = vmatpush2.msra.mxu0 0.0
    %4011 = vmatprep.subr.mxu0 0.0
    %4012 = vmatpush2.msra.mxu0 0.0
    %4013 = vmatprep.subr.mxu0 0.0
    %4014 = vmatpush2.msra.mxu0 0.0
    %4015 = vmatprep.subr.mxu0 0.0
    %4016 = vmatpush2.msra.mxu0 0.0
    %4017 = vmatprep.subr.mxu0 0.0
    %4018 = vmatpush2.msra.mxu0 0.0
    %4019 = vmatprep.subr.mxu0 0.0
    %4020 = vmatpush2.msra.mxu0 0.0
    %4021 = vmatprep.subr.mxu0 0.0
    %4022 = vmatpush2.msra.mxu0 0.0
    %4023 = vmatprep.subr.mxu0 0.0
    %4024 = vmatpush2.msra.mxu0 0.0
    %4025 = vmatprep.subr.mxu0 0.0
    %4026 = vmatpush2.msra.mxu0 0.0
    %4027 = vmatprep.subr.mxu0 0.0
    %4028 = vmatpush2.msra.mxu0 0.0
    %4029 = vmatprep.subr.mxu0 0.0
    %4030 = vmatpush2.msra.mxu0 0.0
    %4031 = vmatprep.mubr.f32.mxu0 0.0
    %4032 = vmatmul.mubr.f32.gmra.mxu0 %v3887
    %v4033 = vpop.f32.mrf.mxu0
    %v4034 = vadd.f32 0.0, %v4033
    %v4035 = vpop.f32.mrf.mxu0
    %4036 = vdwg.mxu0
    %v4037 = vadd.f32 %v3966, %v4034
    %v4038 = vxor.u32 %v4037, 2147483648
    %v4039 = vmul.f32 %v4038, 1.442695
    %v4040 = vpow.pop %v4039
    %v4041 = vadd.f32 %v4040, 1.0
    %v4042 = vrcp.pop %v4041
    %v4043 = vmul.f32 1.0, %v4042
    %v4044 = vld [vmem:[#allocation7 + $0x2] sm:$0x3f]
    %v4046 = vlaneseq
    %v4047 = vshrl.u32 %v4046, 7
    %v4048 = vsub.s32 0, %v4047
    %v4049 = vrot.slane %v3885, %v4048
    %4051 = vmatprep.subr.mxu0 0.0
    %4052 = vmatpush1.msra.mxu0 0.0
    %4053 = vmatprep.subr.mxu0 0.0
    %4054 = vmatpush1.msra.mxu0 0.0
    %4055 = vmatprep.subr.mxu0 0.0
    %4056 = vmatpush1.msra.mxu0 0.0
    %4057 = vmatprep.subr.mxu0 0.0
    %4058 = vmatpush1.msra.mxu0 0.0
    %4059 = vmatprep.subr.mxu0 0.0
    %4060 = vmatpush1.msra.mxu0 0.0
    %4061 = vmatprep.subr.mxu0 0.0
    %4062 = vmatpush1.msra.mxu0 0.0
    %4063 = vmatprep.subr.mxu0 0.0
    %4064 = vmatpush1.msra.mxu0 0.0
    %4065 = vmatprep.subr.mxu0 0.0
    %4066 = vmatpush1.msra.mxu0 0.0
    %4067 = vmatprep.subr.mxu0 0.0
    %4068 = vmatpush1.msra.mxu0 0.0
    %4069 = vmatprep.subr.mxu0 0.0
    %4070 = vmatpush1.msra.mxu0 0.0
    %4071 = vmatprep.subr.mxu0 0.0
    %4072 = vmatpush1.msra.mxu0 0.0
    %4073 = vmatprep.subr.mxu0 0.0
    %4074 = vmatpush1.msra.mxu0 0.0
    %4075 = vmatprep.subr.mxu0 0.0
    %4076 = vmatpush1.msra.mxu0 0.0
    %4077 = vmatprep.subr.mxu0 0.0
    %4078 = vmatpush1.msra.mxu0 0.0
    %4079 = vmatprep.subr.mxu0 0.0
    %4080 = vmatpush1.msra.mxu0 0.0
    %4081 = vmatprep.subr.mxu0 0.0
    %4082 = vmatpush1.msra.mxu0 %v3884
    %4083 = vmatprep.subr.mxu0 0.0
    %4084 = vmatpush2.msra.mxu0 0.0
    %4085 = vmatprep.subr.mxu0 0.0
    %4086 = vmatpush2.msra.mxu0 0.0
    %4087 = vmatprep.subr.mxu0 0.0
    %4088 = vmatpush2.msra.mxu0 0.0
    %4089 = vmatprep.subr.mxu0 0.0
    %4090 = vmatpush2.msra.mxu0 0.0
    %4091 = vmatprep.subr.mxu0 0.0
    %4092 = vmatpush2.msra.mxu0 0.0
    %4093 = vmatprep.subr.mxu0 0.0
    %4094 = vmatpush2.msra.mxu0 0.0
    %4095 = vmatprep.subr.mxu0 0.0
    %4096 = vmatpush2.msra.mxu0 0.0
    %4097 = vmatprep.subr.mxu0 0.0
    %4098 = vmatpush2.msra.mxu0 0.0
    %4099 = vmatprep.subr.mxu0 0.0
    %4100 = vmatpush2.msra.mxu0 0.0
    %4101 = vmatprep.subr.mxu0 0.0
    %4102 = vmatpush2.msra.mxu0 0.0
    %4103 = vmatprep.subr.mxu0 0.0
    %4104 = vmatpush2.msra.mxu0 0.0
    %4105 = vmatprep.subr.mxu0 0.0
    %4106 = vmatpush2.msra.mxu0 0.0
    %4107 = vmatprep.subr.mxu0 0.0
    %4108 = vmatpush2.msra.mxu0 0.0
    %4109 = vmatprep.subr.mxu0 0.0
    %4110 = vmatpush2.msra.mxu0 0.0
    %4111 = vmatprep.subr.mxu0 0.0
    %4112 = vmatpush2.msra.mxu0 0.0
    %4113 = vmatprep.subr.mxu0 0.0
    %4114 = vmatpush2.msra.mxu0 0.0
    %4115 = vmatprep.mubr.f32.mxu0 0.0
    %4116 = vmatmul.mubr.f32.gmra.mxu0 %v3887
    %v4117 = vpop.f32.mrf.mxu0
    %v4118 = vadd.f32 %v4049, %v4117
    %v4119 = vpop.f32.mrf.mxu0
    %4120 = vdwg.mxu0
    %v4121 = vmul.f32 %v3965, %v4118
    %v4122 = vadd.f32 %v4044, %v4121
    %v4123 = vtanh.pop %v4122
    %v4124 = vsub.f32 1.0, %v4043
    %v4125 = vmul.f32 %v4124, %v4123
    %v4126 = vmul.f32 %v4043, 0.0
    %v4127 = vadd.f32 %v4125, %v4126
    %v4128 = vld [vmem:[#allocation5 + $0x8] sm:$0x3f]
    %v4130 = vsel %vm578, %v4127, 0
    %4132 = vmatprep.subr.mxu0 0.0
    %4133 = vmatpush1.msra.mxu0 0.0
    %4134 = vmatprep.subr.mxu0 0.0
    %4135 = vmatpush1.msra.mxu0 0.0
    %4136 = vmatprep.subr.mxu0 0.0
    %4137 = vmatpush1.msra.mxu0 0.0
    %4138 = vmatprep.subr.mxu0 0.0
    %4139 = vmatpush1.msra.mxu0 0.0
    %4140 = vmatprep.subr.mxu0 0.0
    %4141 = vmatpush1.msra.mxu0 0.0
    %4142 = vmatprep.subr.mxu0 0.0
    %4143 = vmatpush1.msra.mxu0 0.0
    %4144 = vmatprep.subr.mxu0 0.0
    %4145 = vmatpush1.msra.mxu0 0.0
    %4146 = vmatprep.subr.mxu0 0.0
    %4147 = vmatpush1.msra.mxu0 0.0
    %4148 = vmatprep.subr.mxu0 0.0
    %4149 = vmatpush1.msra.mxu0 0.0
    %4150 = vmatprep.subr.mxu0 0.0
    %4151 = vmatpush1.msra.mxu0 0.0
    %4152 = vmatprep.subr.mxu0 0.0
    %4153 = vmatpush1.msra.mxu0 0.0
    %4154 = vmatprep.subr.mxu0 0.0
    %4155 = vmatpush1.msra.mxu0 0.0
    %4156 = vmatprep.subr.mxu0 0.0
    %4157 = vmatpush1.msra.mxu0 0.0
    %4158 = vmatprep.subr.mxu0 0.0
    %4159 = vmatpush1.msra.mxu0 0.0
    %4160 = vmatprep.subr.mxu0 0.0
    %4161 = vmatpush1.msra.mxu0 0.0
    %4162 = vmatprep.subr.mxu0 0.0
    %4163 = vmatpush1.msra.mxu0 %v3880
    %4164 = vmatprep.subr.mxu0 0.0
    %4165 = vmatpush2.msra.mxu0 0.0
    %4166 = vmatprep.subr.mxu0 0.0
    %4167 = vmatpush2.msra.mxu0 0.0
    %4168 = vmatprep.subr.mxu0 0.0
    %4169 = vmatpush2.msra.mxu0 0.0
    %4170 = vmatprep.subr.mxu0 0.0
    %4171 = vmatpush2.msra.mxu0 0.0
    %4172 = vmatprep.subr.mxu0 0.0
    %4173 = vmatpush2.msra.mxu0 0.0
    %4174 = vmatprep.subr.mxu0 0.0
    %4175 = vmatpush2.msra.mxu0 0.0
    %4176 = vmatprep.subr.mxu0 0.0
    %4177 = vmatpush2.msra.mxu0 0.0
    %4178 = vmatprep.subr.mxu0 0.0
    %4179 = vmatpush2.msra.mxu0 0.0
    %4180 = vmatprep.subr.mxu0 0.0
    %4181 = vmatpush2.msra.mxu0 0.0
    %4182 = vmatprep.subr.mxu0 0.0
    %4183 = vmatpush2.msra.mxu0 0.0
    %4184 = vmatprep.subr.mxu0 0.0
    %4185 = vmatpush2.msra.mxu0 0.0
    %4186 = vmatprep.subr.mxu0 0.0
    %4187 = vmatpush2.msra.mxu0 0.0
    %4188 = vmatprep.subr.mxu0 0.0
    %4189 = vmatpush2.msra.mxu0 0.0
    %4190 = vmatprep.subr.mxu0 0.0
    %4191 = vmatpush2.msra.mxu0 0.0
    %4192 = vmatprep.subr.mxu0 0.0
    %4193 = vmatpush2.msra.mxu0 0.0
    %4194 = vmatprep.subr.mxu0 0.0
    %4195 = vmatpush2.msra.mxu0 0.0
    %4196 = vmatprep.mubr.f32.mxu0 0.0
    %4197 = vmatmul.mubr.f32.gmra.mxu0 %v4130
    %v4198 = vpop.f32.mrf.mxu0
    %v4199 = vadd.f32 0.0, %v4198
    %v4200 = vpop.f32.mrf.mxu0
    %4201 = vdwg.mxu0
    %v4202 = vadd.f32 %v4128, %v4199
    %v4203 = vxor.u32 %v4202, 2147483648
    %v4204 = vmul.f32 %v4203, 1.442695
    %v4205 = vpow.pop %v4204
    %v4206 = vadd.f32 %v4205, 1.0
    %v4207 = vrcp.pop %v4206
    %v4208 = vmul.f32 1.0, %v4207
    %v4209 = vld [vmem:[#allocation6 + $0x8] sm:$0x3f]
    %4210 = vmatprep.subr.mxu0 0.0
    %4211 = vmatpush1.msra.mxu0 0.0
    %4212 = vmatprep.subr.mxu0 0.0
    %4213 = vmatpush1.msra.mxu0 0.0
    %4214 = vmatprep.subr.mxu0 0.0
    %4215 = vmatpush1.msra.mxu0 0.0
    %4216 = vmatprep.subr.mxu0 0.0
    %4217 = vmatpush1.msra.mxu0 0.0
    %4218 = vmatprep.subr.mxu0 0.0
    %4219 = vmatpush1.msra.mxu0 0.0
    %4220 = vmatprep.subr.mxu0 0.0
    %4221 = vmatpush1.msra.mxu0 0.0
    %4222 = vmatprep.subr.mxu0 0.0
    %4223 = vmatpush1.msra.mxu0 0.0
    %4224 = vmatprep.subr.mxu0 0.0
    %4225 = vmatpush1.msra.mxu0 0.0
    %4226 = vmatprep.subr.mxu0 0.0
    %4227 = vmatpush1.msra.mxu0 0.0
    %4228 = vmatprep.subr.mxu0 0.0
    %4229 = vmatpush1.msra.mxu0 0.0
    %4230 = vmatprep.subr.mxu0 0.0
    %4231 = vmatpush1.msra.mxu0 0.0
    %4232 = vmatprep.subr.mxu0 0.0
    %4233 = vmatpush1.msra.mxu0 0.0
    %4234 = vmatprep.subr.mxu0 0.0
    %4235 = vmatpush1.msra.mxu0 0.0
    %4236 = vmatprep.subr.mxu0 0.0
    %4237 = vmatpush1.msra.mxu0 0.0
    %4238 = vmatprep.subr.mxu0 0.0
    %4239 = vmatpush1.msra.mxu0 0.0
    %4240 = vmatprep.subr.mxu0 0.0
    %4241 = vmatpush1.msra.mxu0 %v3882
    %4242 = vmatprep.subr.mxu0 0.0
    %4243 = vmatpush2.msra.mxu0 0.0
    %4244 = vmatprep.subr.mxu0 0.0
    %4245 = vmatpush2.msra.mxu0 0.0
    %4246 = vmatprep.subr.mxu0 0.0
    %4247 = vmatpush2.msra.mxu0 0.0
    %4248 = vmatprep.subr.mxu0 0.0
    %4249 = vmatpush2.msra.mxu0 0.0
    %4250 = vmatprep.subr.mxu0 0.0
    %4251 = vmatpush2.msra.mxu0 0.0
    %4252 = vmatprep.subr.mxu0 0.0
    %4253 = vmatpush2.msra.mxu0 0.0
    %4254 = vmatprep.subr.mxu0 0.0
    %4255 = vmatpush2.msra.mxu0 0.0
    %4256 = vmatprep.subr.mxu0 0.0
    %4257 = vmatpush2.msra.mxu0 0.0
    %4258 = vmatprep.subr.mxu0 0.0
    %4259 = vmatpush2.msra.mxu0 0.0
    %4260 = vmatprep.subr.mxu0 0.0
    %4261 = vmatpush2.msra.mxu0 0.0
    %4262 = vmatprep.subr.mxu0 0.0
    %4263 = vmatpush2.msra.mxu0 0.0
    %4264 = vmatprep.subr.mxu0 0.0
    %4265 = vmatpush2.msra.mxu0 0.0
    %4266 = vmatprep.subr.mxu0 0.0
    %4267 = vmatpush2.msra.mxu0 0.0
    %4268 = vmatprep.subr.mxu0 0.0
    %4269 = vmatpush2.msra.mxu0 0.0
    %4270 = vmatprep.subr.mxu0 0.0
    %4271 = vmatpush2.msra.mxu0 0.0
    %4272 = vmatprep.subr.mxu0 0.0
    %4273 = vmatpush2.msra.mxu0 0.0
    %4274 = vmatprep.mubr.f32.mxu0 0.0
    %4275 = vmatmul.mubr.f32.gmra.mxu0 %v4130
    %v4276 = vpop.f32.mrf.mxu0
    %v4277 = vadd.f32 0.0, %v4276
    %v4278 = vpop.f32.mrf.mxu0
    %4279 = vdwg.mxu0
    %v4280 = vadd.f32 %v4209, %v4277
    %v4281 = vxor.u32 %v4280, 2147483648
    %v4282 = vmul.f32 %v4281, 1.442695
    %v4283 = vpow.pop %v4282
    %v4284 = vadd.f32 %v4283, 1.0
    %v4285 = vrcp.pop %v4284
    %v4286 = vmul.f32 1.0, %v4285
    %v4287 = vld [vmem:[#allocation7 + $0x8] sm:$0x3f]
    %4288 = vmatprep.subr.mxu0 0.0
    %4289 = vmatpush1.msra.mxu0 0.0
    %4290 = vmatprep.subr.mxu0 0.0
    %4291 = vmatpush1.msra.mxu0 0.0
    %4292 = vmatprep.subr.mxu0 0.0
    %4293 = vmatpush1.msra.mxu0 0.0
    %4294 = vmatprep.subr.mxu0 0.0
    %4295 = vmatpush1.msra.mxu0 0.0
    %4296 = vmatprep.subr.mxu0 0.0
    %4297 = vmatpush1.msra.mxu0 0.0
    %4298 = vmatprep.subr.mxu0 0.0
    %4299 = vmatpush1.msra.mxu0 0.0
    %4300 = vmatprep.subr.mxu0 0.0
    %4301 = vmatpush1.msra.mxu0 0.0
    %4302 = vmatprep.subr.mxu0 0.0
    %4303 = vmatpush1.msra.mxu0 0.0
    %4304 = vmatprep.subr.mxu0 0.0
    %4305 = vmatpush1.msra.mxu0 0.0
    %4306 = vmatprep.subr.mxu0 0.0
    %4307 = vmatpush1.msra.mxu0 0.0
    %4308 = vmatprep.subr.mxu0 0.0
    %4309 = vmatpush1.msra.mxu0 0.0
    %4310 = vmatprep.subr.mxu0 0.0
    %4311 = vmatpush1.msra.mxu0 0.0
    %4312 = vmatprep.subr.mxu0 0.0
    %4313 = vmatpush1.msra.mxu0 0.0
    %4314 = vmatprep.subr.mxu0 0.0
    %4315 = vmatpush1.msra.mxu0 0.0
    %4316 = vmatprep.subr.mxu0 0.0
    %4317 = vmatpush1.msra.mxu0 0.0
    %4318 = vmatprep.subr.mxu0 0.0
    %4319 = vmatpush1.msra.mxu0 %v3884
    %4320 = vmatprep.subr.mxu0 0.0
    %4321 = vmatpush2.msra.mxu0 0.0
    %4322 = vmatprep.subr.mxu0 0.0
    %4323 = vmatpush2.msra.mxu0 0.0
    %4324 = vmatprep.subr.mxu0 0.0
    %4325 = vmatpush2.msra.mxu0 0.0
    %4326 = vmatprep.subr.mxu0 0.0
    %4327 = vmatpush2.msra.mxu0 0.0
    %4328 = vmatprep.subr.mxu0 0.0
    %4329 = vmatpush2.msra.mxu0 0.0
    %4330 = vmatprep.subr.mxu0 0.0
    %4331 = vmatpush2.msra.mxu0 0.0
    %4332 = vmatprep.subr.mxu0 0.0
    %4333 = vmatpush2.msra.mxu0 0.0
    %4334 = vmatprep.subr.mxu0 0.0
    %4335 = vmatpush2.msra.mxu0 0.0
    %4336 = vmatprep.subr.mxu0 0.0
    %4337 = vmatpush2.msra.mxu0 0.0
    %4338 = vmatprep.subr.mxu0 0.0
    %4339 = vmatpush2.msra.mxu0 0.0
    %4340 = vmatprep.subr.mxu0 0.0
    %4341 = vmatpush2.msra.mxu0 0.0
    %4342 = vmatprep.subr.mxu0 0.0
    %4343 = vmatpush2.msra.mxu0 0.0
    %4344 = vmatprep.subr.mxu0 0.0
    %4345 = vmatpush2.msra.mxu0 0.0
    %4346 = vmatprep.subr.mxu0 0.0
    %4347 = vmatpush2.msra.mxu0 0.0
    %4348 = vmatprep.subr.mxu0 0.0
    %4349 = vmatpush2.msra.mxu0 0.0
    %4350 = vmatprep.subr.mxu0 0.0
    %4351 = vmatpush2.msra.mxu0 0.0
    %4352 = vmatprep.mubr.f32.mxu0 0.0
    %4353 = vmatmul.mubr.f32.gmra.mxu0 %v4130
    %v4354 = vpop.f32.mrf.mxu0
    %v4355 = vadd.f32 %v4049, %v4354
    %v4356 = vpop.f32.mrf.mxu0
    %4357 = vdwg.mxu0
    %v4358 = vmul.f32 %v4208, %v4355
    %v4359 = vadd.f32 %v4287, %v4358
    %v4360 = vtanh.pop %v4359
    %v4361 = vsub.f32 1.0, %v4286
    %v4362 = vmul.f32 %v4361, %v4360
    %v4363 = vmul.f32 %v4286, %v4127
    %v4364 = vadd.f32 %v4362, %v4363
    %v4365 = vld [vmem:[#allocation5 + $0xe] sm:$0x3f]
    %v4367 = vsel %vm578, %v4364, 0
    %4369 = vmatprep.subr.mxu0 0.0
    %4370 = vmatpush1.msra.mxu0 0.0
    %4371 = vmatprep.subr.mxu0 0.0
    %4372 = vmatpush1.msra.mxu0 0.0
    %4373 = vmatprep.subr.mxu0 0.0
    %4374 = vmatpush1.msra.mxu0 0.0
    %4375 = vmatprep.subr.mxu0 0.0
    %4376 = vmatpush1.msra.mxu0 0.0
    %4377 = vmatprep.subr.mxu0 0.0
    %4378 = vmatpush1.msra.mxu0 0.0
    %4379 = vmatprep.subr.mxu0 0.0
    %4380 = vmatpush1.msra.mxu0 0.0
    %4381 = vmatprep.subr.mxu0 0.0
    %4382 = vmatpush1.msra.mxu0 0.0
    %4383 = vmatprep.subr.mxu0 0.0
    %4384 = vmatpush1.msra.mxu0 0.0
    %4385 = vmatprep.subr.mxu0 0.0
    %4386 = vmatpush1.msra.mxu0 0.0
    %4387 = vmatprep.subr.mxu0 0.0
    %4388 = vmatpush1.msra.mxu0 0.0
    %4389 = vmatprep.subr.mxu0 0.0
    %4390 = vmatpush1.msra.mxu0 0.0
    %4391 = vmatprep.subr.mxu0 0.0
    %4392 = vmatpush1.msra.mxu0 0.0
    %4393 = vmatprep.subr.mxu0 0.0
    %4394 = vmatpush1.msra.mxu0 0.0
    %4395 = vmatprep.subr.mxu0 0.0
    %4396 = vmatpush1.msra.mxu0 0.0
    %4397 = vmatprep.subr.mxu0 0.0
    %4398 = vmatpush1.msra.mxu0 0.0
    %4399 = vmatprep.subr.mxu0 0.0
    %4400 = vmatpush1.msra.mxu0 %v3880
    %4401 = vmatprep.subr.mxu0 0.0
    %4402 = vmatpush2.msra.mxu0 0.0
    %4403 = vmatprep.subr.mxu0 0.0
    %4404 = vmatpush2.msra.mxu0 0.0
    %4405 = vmatprep.subr.mxu0 0.0
    %4406 = vmatpush2.msra.mxu0 0.0
    %4407 = vmatprep.subr.mxu0 0.0
    %4408 = vmatpush2.msra.mxu0 0.0
    %4409 = vmatprep.subr.mxu0 0.0
    %4410 = vmatpush2.msra.mxu0 0.0
    %4411 = vmatprep.subr.mxu0 0.0
    %4412 = vmatpush2.msra.mxu0 0.0
    %4413 = vmatprep.subr.mxu0 0.0
    %4414 = vmatpush2.msra.mxu0 0.0
    %4415 = vmatprep.subr.mxu0 0.0
    %4416 = vmatpush2.msra.mxu0 0.0
    %4417 = vmatprep.subr.mxu0 0.0
    %4418 = vmatpush2.msra.mxu0 0.0
    %4419 = vmatprep.subr.mxu0 0.0
    %4420 = vmatpush2.msra.mxu0 0.0
    %4421 = vmatprep.subr.mxu0 0.0
    %4422 = vmatpush2.msra.mxu0 0.0
    %4423 = vmatprep.subr.mxu0 0.0
    %4424 = vmatpush2.msra.mxu0 0.0
    %4425 = vmatprep.subr.mxu0 0.0
    %4426 = vmatpush2.msra.mxu0 0.0
    %4427 = vmatprep.subr.mxu0 0.0
    %4428 = vmatpush2.msra.mxu0 0.0
    %4429 = vmatprep.subr.mxu0 0.0
    %4430 = vmatpush2.msra.mxu0 0.0
    %4431 = vmatprep.subr.mxu0 0.0
    %4432 = vmatpush2.msra.mxu0 0.0
    %4433 = vmatprep.mubr.f32.mxu0 0.0
    %4434 = vmatmul.mubr.f32.gmra.mxu0 %v4367
    %v4435 = vpop.f32.mrf.mxu0
    %v4436 = vadd.f32 0.0, %v4435
    %v4437 = vpop.f32.mrf.mxu0
    %4438 = vdwg.mxu0
    %v4439 = vadd.f32 %v4365, %v4436
    %v4440 = vxor.u32 %v4439, 2147483648
    %v4441 = vmul.f32 %v4440, 1.442695
    %v4442 = vpow.pop %v4441
    %v4443 = vadd.f32 %v4442, 1.0
    %v4444 = vrcp.pop %v4443
    %v4445 = vmul.f32 1.0, %v4444
    %v4446 = vld [vmem:[#allocation6 + $0xe] sm:$0x3f]
    %4447 = vmatprep.subr.mxu0 0.0
    %4448 = vmatpush1.msra.mxu0 0.0
    %4449 = vmatprep.subr.mxu0 0.0
    %4450 = vmatpush1.msra.mxu0 0.0
    %4451 = vmatprep.subr.mxu0 0.0
    %4452 = vmatpush1.msra.mxu0 0.0
    %4453 = vmatprep.subr.mxu0 0.0
    %4454 = vmatpush1.msra.mxu0 0.0
    %4455 = vmatprep.subr.mxu0 0.0
    %4456 = vmatpush1.msra.mxu0 0.0
    %4457 = vmatprep.subr.mxu0 0.0
    %4458 = vmatpush1.msra.mxu0 0.0
    %4459 = vmatprep.subr.mxu0 0.0
    %4460 = vmatpush1.msra.mxu0 0.0
    %4461 = vmatprep.subr.mxu0 0.0
    %4462 = vmatpush1.msra.mxu0 0.0
    %4463 = vmatprep.subr.mxu0 0.0
    %4464 = vmatpush1.msra.mxu0 0.0
    %4465 = vmatprep.subr.mxu0 0.0
    %4466 = vmatpush1.msra.mxu0 0.0
    %4467 = vmatprep.subr.mxu0 0.0
    %4468 = vmatpush1.msra.mxu0 0.0
    %4469 = vmatprep.subr.mxu0 0.0
    %4470 = vmatpush1.msra.mxu0 0.0
    %4471 = vmatprep.subr.mxu0 0.0
    %4472 = vmatpush1.msra.mxu0 0.0
    %4473 = vmatprep.subr.mxu0 0.0
    %4474 = vmatpush1.msra.mxu0 0.0
    %4475 = vmatprep.subr.mxu0 0.0
    %4476 = vmatpush1.msra.mxu0 0.0
    %4477 = vmatprep.subr.mxu0 0.0
    %4478 = vmatpush1.msra.mxu0 %v3882
    %4479 = vmatprep.subr.mxu0 0.0
    %4480 = vmatpush2.msra.mxu0 0.0
    %4481 = vmatprep.subr.mxu0 0.0
    %4482 = vmatpush2.msra.mxu0 0.0
    %4483 = vmatprep.subr.mxu0 0.0
    %4484 = vmatpush2.msra.mxu0 0.0
    %4485 = vmatprep.subr.mxu0 0.0
    %4486 = vmatpush2.msra.mxu0 0.0
    %4487 = vmatprep.subr.mxu0 0.0
    %4488 = vmatpush2.msra.mxu0 0.0
    %4489 = vmatprep.subr.mxu0 0.0
    %4490 = vmatpush2.msra.mxu0 0.0
    %4491 = vmatprep.subr.mxu0 0.0
    %4492 = vmatpush2.msra.mxu0 0.0
    %4493 = vmatprep.subr.mxu0 0.0
    %4494 = vmatpush2.msra.mxu0 0.0
    %4495 = vmatprep.subr.mxu0 0.0
    %4496 = vmatpush2.msra.mxu0 0.0
    %4497 = vmatprep.subr.mxu0 0.0
    %4498 = vmatpush2.msra.mxu0 0.0
    %4499 = vmatprep.subr.mxu0 0.0
    %4500 = vmatpush2.msra.mxu0 0.0
    %4501 = vmatprep.subr.mxu0 0.0
    %4502 = vmatpush2.msra.mxu0 0.0
    %4503 = vmatprep.subr.mxu0 0.0
    %4504 = vmatpush2.msra.mxu0 0.0
    %4505 = vmatprep.subr.mxu0 0.0
    %4506 = vmatpush2.msra.mxu0 0.0
    %4507 = vmatprep.subr.mxu0 0.0
    %4508 = vmatpush2.msra.mxu0 0.0
    %4509 = vmatprep.subr.mxu0 0.0
    %4510 = vmatpush2.msra.mxu0 0.0
    %4511 = vmatprep.mubr.f32.mxu0 0.0
    %4512 = vmatmul.mubr.f32.gmra.mxu0 %v4367
    %v4513 = vpop.f32.mrf.mxu0
    %v4514 = vadd.f32 0.0, %v4513
    %v4515 = vpop.f32.mrf.mxu0
    %4516 = vdwg.mxu0
    %v4517 = vadd.f32 %v4446, %v4514
    %v4518 = vxor.u32 %v4517, 2147483648
    %v4519 = vmul.f32 %v4518, 1.442695
    %v4520 = vpow.pop %v4519
    %v4521 = vadd.f32 %v4520, 1.0
    %v4522 = vrcp.pop %v4521
    %v4523 = vmul.f32 1.0, %v4522
    %v4524 = vld [vmem:[#allocation7 + $0xe] sm:$0x3f]
    %4525 = vmatprep.subr.mxu0 0.0
    %4526 = vmatpush1.msra.mxu0 0.0
    %4527 = vmatprep.subr.mxu0 0.0
    %4528 = vmatpush1.msra.mxu0 0.0
    %4529 = vmatprep.subr.mxu0 0.0
    %4530 = vmatpush1.msra.mxu0 0.0
    %4531 = vmatprep.subr.mxu0 0.0
    %4532 = vmatpush1.msra.mxu0 0.0
    %4533 = vmatprep.subr.mxu0 0.0
    %4534 = vmatpush1.msra.mxu0 0.0
    %4535 = vmatprep.subr.mxu0 0.0
    %4536 = vmatpush1.msra.mxu0 0.0
    %4537 = vmatprep.subr.mxu0 0.0
    %4538 = vmatpush1.msra.mxu0 0.0
    %4539 = vmatprep.subr.mxu0 0.0
    %4540 = vmatpush1.msra.mxu0 0.0
    %4541 = vmatprep.subr.mxu0 0.0
    %4542 = vmatpush1.msra.mxu0 0.0
    %4543 = vmatprep.subr.mxu0 0.0
    %4544 = vmatpush1.msra.mxu0 0.0
    %4545 = vmatprep.subr.mxu0 0.0
    %4546 = vmatpush1.msra.mxu0 0.0
    %4547 = vmatprep.subr.mxu0 0.0
    %4548 = vmatpush1.msra.mxu0 0.0
    %4549 = vmatprep.subr.mxu0 0.0
    %4550 = vmatpush1.msra.mxu0 0.0
    %4551 = vmatprep.subr.mxu0 0.0
    %4552 = vmatpush1.msra.mxu0 0.0
    %4553 = vmatprep.subr.mxu0 0.0
    %4554 = vmatpush1.msra.mxu0 0.0
    %4555 = vmatprep.subr.mxu0 0.0
    %4556 = vmatpush1.msra.mxu0 %v3884
    %4557 = vmatprep.subr.mxu0 0.0
    %4558 = vmatpush2.msra.mxu0 0.0
    %4559 = vmatprep.subr.mxu0 0.0
    %4560 = vmatpush2.msra.mxu0 0.0
    %4561 = vmatprep.subr.mxu0 0.0
    %4562 = vmatpush2.msra.mxu0 0.0
    %4563 = vmatprep.subr.mxu0 0.0
    %4564 = vmatpush2.msra.mxu0 0.0
    %4565 = vmatprep.subr.mxu0 0.0
    %4566 = vmatpush2.msra.mxu0 0.0
    %4567 = vmatprep.subr.mxu0 0.0
    %4568 = vmatpush2.msra.mxu0 0.0
    %4569 = vmatprep.subr.mxu0 0.0
    %4570 = vmatpush2.msra.mxu0 0.0
    %4571 = vmatprep.subr.mxu0 0.0
    %4572 = vmatpush2.msra.mxu0 0.0
    %4573 = vmatprep.subr.mxu0 0.0
    %4574 = vmatpush2.msra.mxu0 0.0
    %4575 = vmatprep.subr.mxu0 0.0
    %4576 = vmatpush2.msra.mxu0 0.0
    %4577 = vmatprep.subr.mxu0 0.0
    %4578 = vmatpush2.msra.mxu0 0.0
    %4579 = vmatprep.subr.mxu0 0.0
    %4580 = vmatpush2.msra.mxu0 0.0
    %4581 = vmatprep.subr.mxu0 0.0
    %4582 = vmatpush2.msra.mxu0 0.0
    %4583 = vmatprep.subr.mxu0 0.0
    %4584 = vmatpush2.msra.mxu0 0.0
    %4585 = vmatprep.subr.mxu0 0.0
    %4586 = vmatpush2.msra.mxu0 0.0
    %4587 = vmatprep.subr.mxu0 0.0
    %4588 = vmatpush2.msra.mxu0 0.0
    %4589 = vmatprep.mubr.f32.mxu0 0.0
    %4590 = vmatmul.mubr.f32.gmra.mxu0 %v4367
    %v4591 = vpop.f32.mrf.mxu0
    %v4592 = vadd.f32 %v4049, %v4591
    %v4593 = vpop.f32.mrf.mxu0
    %4594 = vdwg.mxu0
    %v4595 = vmul.f32 %v4445, %v4592
    %v4596 = vadd.f32 %v4524, %v4595
    %v4597 = vtanh.pop %v4596
    %v4598 = vsub.f32 1.0, %v4523
    %v4599 = vmul.f32 %v4598, %v4597
    %v4600 = vmul.f32 %v4523, %v4364
    %v4601 = vadd.f32 %v4599, %v4600
    %v4602 = vld [vmem:[#allocation5 + $0x14] sm:$0x3f]
    %v4604 = vsel %vm578, %v4601, 0
    %4606 = vmatprep.subr.mxu0 0.0
    %4607 = vmatpush1.msra.mxu0 0.0
    %4608 = vmatprep.subr.mxu0 0.0
    %4609 = vmatpush1.msra.mxu0 0.0
    %4610 = vmatprep.subr.mxu0 0.0
    %4611 = vmatpush1.msra.mxu0 0.0
    %4612 = vmatprep.subr.mxu0 0.0
    %4613 = vmatpush1.msra.mxu0 0.0
    %4614 = vmatprep.subr.mxu0 0.0
    %4615 = vmatpush1.msra.mxu0 0.0
    %4616 = vmatprep.subr.mxu0 0.0
    %4617 = vmatpush1.msra.mxu0 0.0
    %4618 = vmatprep.subr.mxu0 0.0
    %4619 = vmatpush1.msra.mxu0 0.0
    %4620 = vmatprep.subr.mxu0 0.0
    %4621 = vmatpush1.msra.mxu0 0.0
    %4622 = vmatprep.subr.mxu0 0.0
    %4623 = vmatpush1.msra.mxu0 0.0
    %4624 = vmatprep.subr.mxu0 0.0
    %4625 = vmatpush1.msra.mxu0 0.0
    %4626 = vmatprep.subr.mxu0 0.0
    %4627 = vmatpush1.msra.mxu0 0.0
    %4628 = vmatprep.subr.mxu0 0.0
    %4629 = vmatpush1.msra.mxu0 0.0
    %4630 = vmatprep.subr.mxu0 0.0
    %4631 = vmatpush1.msra.mxu0 0.0
    %4632 = vmatprep.subr.mxu0 0.0
    %4633 = vmatpush1.msra.mxu0 0.0
    %4634 = vmatprep.subr.mxu0 0.0
    %4635 = vmatpush1.msra.mxu0 0.0
    %4636 = vmatprep.subr.mxu0 0.0
    %4637 = vmatpush1.msra.mxu0 %v3880
    %4638 = vmatprep.subr.mxu0 0.0
    %4639 = vmatpush2.msra.mxu0 0.0
    %4640 = vmatprep.subr.mxu0 0.0
    %4641 = vmatpush2.msra.mxu0 0.0
    %4642 = vmatprep.subr.mxu0 0.0
    %4643 = vmatpush2.msra.mxu0 0.0
    %4644 = vmatprep.subr.mxu0 0.0
    %4645 = vmatpush2.msra.mxu0 0.0
    %4646 = vmatprep.subr.mxu0 0.0
    %4647 = vmatpush2.msra.mxu0 0.0
    %4648 = vmatprep.subr.mxu0 0.0
    %4649 = vmatpush2.msra.mxu0 0.0
    %4650 = vmatprep.subr.mxu0 0.0
    %4651 = vmatpush2.msra.mxu0 0.0
    %4652 = vmatprep.subr.mxu0 0.0
    %4653 = vmatpush2.msra.mxu0 0.0
    %4654 = vmatprep.subr.mxu0 0.0
    %4655 = vmatpush2.msra.mxu0 0.0
    %4656 = vmatprep.subr.mxu0 0.0
    %4657 = vmatpush2.msra.mxu0 0.0
    %4658 = vmatprep.subr.mxu0 0.0
    %4659 = vmatpush2.msra.mxu0 0.0
    %4660 = vmatprep.subr.mxu0 0.0
    %4661 = vmatpush2.msra.mxu0 0.0
    %4662 = vmatprep.subr.mxu0 0.0
    %4663 = vmatpush2.msra.mxu0 0.0
    %4664 = vmatprep.subr.mxu0 0.0
    %4665 = vmatpush2.msra.mxu0 0.0
    %4666 = vmatprep.subr.mxu0 0.0
    %4667 = vmatpush2.msra.mxu0 0.0
    %4668 = vmatprep.subr.mxu0 0.0
    %4669 = vmatpush2.msra.mxu0 0.0
    %4670 = vmatprep.mubr.f32.mxu0 0.0
    %4671 = vmatmul.mubr.f32.gmra.mxu0 %v4604
    %v4672 = vpop.f32.mrf.mxu0
    %v4673 = vadd.f32 0.0, %v4672
    %v4674 = vpop.f32.mrf.mxu0
    %4675 = vdwg.mxu0
    %v4676 = vadd.f32 %v4602, %v4673
    %v4677 = vxor.u32 %v4676, 2147483648
    %v4678 = vmul.f32 %v4677, 1.442695
    %v4679 = vpow.pop %v4678
    %v4680 = vadd.f32 %v4679, 1.0
    %v4681 = vrcp.pop %v4680
    %v4682 = vmul.f32 1.0, %v4681
    %v4683 = vld [vmem:[#allocation6 + $0x14] sm:$0x3f]
    %4684 = vmatprep.subr.mxu0 0.0
    %4685 = vmatpush1.msra.mxu0 0.0
    %4686 = vmatprep.subr.mxu0 0.0
    %4687 = vmatpush1.msra.mxu0 0.0
    %4688 = vmatprep.subr.mxu0 0.0
    %4689 = vmatpush1.msra.mxu0 0.0
    %4690 = vmatprep.subr.mxu0 0.0
    %4691 = vmatpush1.msra.mxu0 0.0
    %4692 = vmatprep.subr.mxu0 0.0
    %4693 = vmatpush1.msra.mxu0 0.0
    %4694 = vmatprep.subr.mxu0 0.0
    %4695 = vmatpush1.msra.mxu0 0.0
    %4696 = vmatprep.subr.mxu0 0.0
    %4697 = vmatpush1.msra.mxu0 0.0
    %4698 = vmatprep.subr.mxu0 0.0
    %4699 = vmatpush1.msra.mxu0 0.0
    %4700 = vmatprep.subr.mxu0 0.0
    %4701 = vmatpush1.msra.mxu0 0.0
    %4702 = vmatprep.subr.mxu0 0.0
    %4703 = vmatpush1.msra.mxu0 0.0
    %4704 = vmatprep.subr.mxu0 0.0
    %4705 = vmatpush1.msra.mxu0 0.0
    %4706 = vmatprep.subr.mxu0 0.0
    %4707 = vmatpush1.msra.mxu0 0.0
    %4708 = vmatprep.subr.mxu0 0.0
    %4709 = vmatpush1.msra.mxu0 0.0
    %4710 = vmatprep.subr.mxu0 0.0
    %4711 = vmatpush1.msra.mxu0 0.0
    %4712 = vmatprep.subr.mxu0 0.0
    %4713 = vmatpush1.msra.mxu0 0.0
    %4714 = vmatprep.subr.mxu0 0.0
    %4715 = vmatpush1.msra.mxu0 %v3882
    %4716 = vmatprep.subr.mxu0 0.0
    %4717 = vmatpush2.msra.mxu0 0.0
    %4718 = vmatprep.subr.mxu0 0.0
    %4719 = vmatpush2.msra.mxu0 0.0
    %4720 = vmatprep.subr.mxu0 0.0
    %4721 = vmatpush2.msra.mxu0 0.0
    %4722 = vmatprep.subr.mxu0 0.0
    %4723 = vmatpush2.msra.mxu0 0.0
    %4724 = vmatprep.subr.mxu0 0.0
    %4725 = vmatpush2.msra.mxu0 0.0
    %4726 = vmatprep.subr.mxu0 0.0
    %4727 = vmatpush2.msra.mxu0 0.0
    %4728 = vmatprep.subr.mxu0 0.0
    %4729 = vmatpush2.msra.mxu0 0.0
    %4730 = vmatprep.subr.mxu0 0.0
    %4731 = vmatpush2.msra.mxu0 0.0
    %4732 = vmatprep.subr.mxu0 0.0
    %4733 = vmatpush2.msra.mxu0 0.0
    %4734 = vmatprep.subr.mxu0 0.0
    %4735 = vmatpush2.msra.mxu0 0.0
    %4736 = vmatprep.subr.mxu0 0.0
    %4737 = vmatpush2.msra.mxu0 0.0
    %4738 = vmatprep.subr.mxu0 0.0
    %4739 = vmatpush2.msra.mxu0 0.0
    %4740 = vmatprep.subr.mxu0 0.0
    %4741 = vmatpush2.msra.mxu0 0.0
    %4742 = vmatprep.subr.mxu0 0.0
    %4743 = vmatpush2.msra.mxu0 0.0
    %4744 = vmatprep.subr.mxu0 0.0
    %4745 = vmatpush2.msra.mxu0 0.0
    %4746 = vmatprep.subr.mxu0 0.0
    %4747 = vmatpush2.msra.mxu0 0.0
    %4748 = vmatprep.mubr.f32.mxu0 0.0
    %4749 = vmatmul.mubr.f32.gmra.mxu0 %v4604
    %v4750 = vpop.f32.mrf.mxu0
    %v4751 = vadd.f32 0.0, %v4750
    %v4752 = vpop.f32.mrf.mxu0
    %4753 = vdwg.mxu0
    %v4754 = vadd.f32 %v4683, %v4751
    %v4755 = vxor.u32 %v4754, 2147483648
    %v4756 = vmul.f32 %v4755, 1.442695
    %v4757 = vpow.pop %v4756
    %v4758 = vadd.f32 %v4757, 1.0
    %v4759 = vrcp.pop %v4758
    %v4760 = vmul.f32 1.0, %v4759
    %v4761 = vld [vmem:[#allocation7 + $0x14] sm:$0x3f]
    %4762 = vmatprep.subr.mxu0 0.0
    %4763 = vmatpush1.msra.mxu0 0.0
    %4764 = vmatprep.subr.mxu0 0.0
    %4765 = vmatpush1.msra.mxu0 0.0
    %4766 = vmatprep.subr.mxu0 0.0
    %4767 = vmatpush1.msra.mxu0 0.0
    %4768 = vmatprep.subr.mxu0 0.0
    %4769 = vmatpush1.msra.mxu0 0.0
    %4770 = vmatprep.subr.mxu0 0.0
    %4771 = vmatpush1.msra.mxu0 0.0
    %4772 = vmatprep.subr.mxu0 0.0
    %4773 = vmatpush1.msra.mxu0 0.0
    %4774 = vmatprep.subr.mxu0 0.0
    %4775 = vmatpush1.msra.mxu0 0.0
    %4776 = vmatprep.subr.mxu0 0.0
    %4777 = vmatpush1.msra.mxu0 0.0
    %4778 = vmatprep.subr.mxu0 0.0
    %4779 = vmatpush1.msra.mxu0 0.0
    %4780 = vmatprep.subr.mxu0 0.0
    %4781 = vmatpush1.msra.mxu0 0.0
    %4782 = vmatprep.subr.mxu0 0.0
    %4783 = vmatpush1.msra.mxu0 0.0
    %4784 = vmatprep.subr.mxu0 0.0
    %4785 = vmatpush1.msra.mxu0 0.0
    %4786 = vmatprep.subr.mxu0 0.0
    %4787 = vmatpush1.msra.mxu0 0.0
    %4788 = vmatprep.subr.mxu0 0.0
    %4789 = vmatpush1.msra.mxu0 0.0
    %4790 = vmatprep.subr.mxu0 0.0
    %4791 = vmatpush1.msra.mxu0 0.0
    %4792 = vmatprep.subr.mxu0 0.0
    %4793 = vmatpush1.msra.mxu0 %v3884
    %4794 = vmatprep.subr.mxu0 0.0
    %4795 = vmatpush2.msra.mxu0 0.0
    %4796 = vmatprep.subr.mxu0 0.0
    %4797 = vmatpush2.msra.mxu0 0.0
    %4798 = vmatprep.subr.mxu0 0.0
    %4799 = vmatpush2.msra.mxu0 0.0
    %4800 = vmatprep.subr.mxu0 0.0
    %4801 = vmatpush2.msra.mxu0 0.0
    %4802 = vmatprep.subr.mxu0 0.0
    %4803 = vmatpush2.msra.mxu0 0.0
    %4804 = vmatprep.subr.mxu0 0.0
    %4805 = vmatpush2.msra.mxu0 0.0
    %4806 = vmatprep.subr.mxu0 0.0
    %4807 = vmatpush2.msra.mxu0 0.0
    %4808 = vmatprep.subr.mxu0 0.0
    %4809 = vmatpush2.msra.mxu0 0.0
    %4810 = vmatprep.subr.mxu0 0.0
    %4811 = vmatpush2.msra.mxu0 0.0
    %4812 = vmatprep.subr.mxu0 0.0
    %4813 = vmatpush2.msra.mxu0 0.0
    %4814 = vmatprep.subr.mxu0 0.0
    %4815 = vmatpush2.msra.mxu0 0.0
    %4816 = vmatprep.subr.mxu0 0.0
    %4817 = vmatpush2.msra.mxu0 0.0
    %4818 = vmatprep.subr.mxu0 0.0
    %4819 = vmatpush2.msra.mxu0 0.0
    %4820 = vmatprep.subr.mxu0 0.0
    %4821 = vmatpush2.msra.mxu0 0.0
    %4822 = vmatprep.subr.mxu0 0.0
    %4823 = vmatpush2.msra.mxu0 0.0
    %4824 = vmatprep.subr.mxu0 0.0
    %4825 = vmatpush2.msra.mxu0 0.0
    %4826 = vmatprep.mubr.f32.mxu0 0.0
    %4827 = vmatmul.mubr.f32.gmra.mxu0 %v4604
    %v4828 = vpop.f32.mrf.mxu0
    %v4829 = vadd.f32 %v4049, %v4828
    %v4830 = vpop.f32.mrf.mxu0
    %4831 = vdwg.mxu0
    %v4832 = vmul.f32 %v4682, %v4829
    %v4833 = vadd.f32 %v4761, %v4832
    %v4834 = vtanh.pop %v4833
    %v4835 = vsub.f32 1.0, %v4760
    %v4836 = vmul.f32 %v4835, %v4834
    %v4837 = vmul.f32 %v4760, %v4601
    %v4838 = vadd.f32 %v4836, %v4837
    %vm4839 = vcmask 62464
    %4840 = vst.msk [vmem:[#allocation8] sm:$0x3f] %vm4839, %v4838
    %v4841 = vld [vmem:[%s12] sm:$0xff]
    %v4842 = vld [vmem:[%s12 + $0x8] sm:$0xff]
    %v4843 = vld [vmem:[%s13] sm:$0x1]
    %v4845 = vlaneseq
    %v4846 = vshrl.u32 %v4845, 7
    %v4847 = vsub.s32 0, %v4846
    %v4848 = vrot.slane %v4843, %v4847
    %v4851 = vsel %vm181, %v3879, 0
    %4853 = vmatprep.subr.mxu0 0.0
    %4854 = vmatpush1.msra.mxu0 0.0
    %4855 = vmatprep.subr.mxu0 0.0
    %4856 = vmatpush1.msra.mxu0 0.0
    %4857 = vmatprep.subr.mxu0 0.0
    %4858 = vmatpush1.msra.mxu0 0.0
    %4859 = vmatprep.subr.mxu0 0.0
    %4860 = vmatpush1.msra.mxu0 0.0
    %4861 = vmatprep.subr.mxu0 0.0
    %4862 = vmatpush1.msra.mxu0 0.0
    %4863 = vmatprep.subr.mxu0 0.0
    %4864 = vmatpush1.msra.mxu0 0.0
    %4865 = vmatprep.subr.mxu0 0.0
    %4866 = vmatpush1.msra.mxu0 0.0
    %4867 = vmatprep.subr.mxu0 0.0
    %4868 = vmatpush1.msra.mxu0 0.0
    %4869 = vmatprep.subr.mxu0 0.0
    %4870 = vmatpush1.msra.mxu0 0.0
    %4871 = vmatprep.subr.mxu0 0.0
    %4872 = vmatpush1.msra.mxu0 0.0
    %4873 = vmatprep.subr.mxu0 0.0
    %4874 = vmatpush1.msra.mxu0 0.0
    %4875 = vmatprep.subr.mxu0 0.0
    %4876 = vmatpush1.msra.mxu0 0.0
    %4877 = vmatprep.subr.mxu0 0.0
    %4878 = vmatpush1.msra.mxu0 0.0
    %4879 = vmatprep.subr.mxu0 0.0
    %4880 = vmatpush1.msra.mxu0 0.0
    %4881 = vmatprep.subr.mxu0 0.0
    %4882 = vmatpush1.msra.mxu0 %v4842
    %4883 = vmatprep.subr.mxu0 0.0
    %4884 = vmatpush1.msra.mxu0 %v4841
    %4885 = vmatprep.subr.mxu0 0.0
    %4886 = vmatpush2.msra.mxu0 0.0
    %4887 = vmatprep.subr.mxu0 0.0
    %4888 = vmatpush2.msra.mxu0 0.0
    %4889 = vmatprep.subr.mxu0 0.0
    %4890 = vmatpush2.msra.mxu0 0.0
    %4891 = vmatprep.subr.mxu0 0.0
    %4892 = vmatpush2.msra.mxu0 0.0
    %4893 = vmatprep.subr.mxu0 0.0
    %4894 = vmatpush2.msra.mxu0 0.0
    %4895 = vmatprep.subr.mxu0 0.0
    %4896 = vmatpush2.msra.mxu0 0.0
    %4897 = vmatprep.subr.mxu0 0.0
    %4898 = vmatpush2.msra.mxu0 0.0
    %4899 = vmatprep.subr.mxu0 0.0
    %4900 = vmatpush2.msra.mxu0 0.0
    %4901 = vmatprep.subr.mxu0 0.0
    %4902 = vmatpush2.msra.mxu0 0.0
    %4903 = vmatprep.subr.mxu0 0.0
    %4904 = vmatpush2.msra.mxu0 0.0
    %4905 = vmatprep.subr.mxu0 0.0
    %4906 = vmatpush2.msra.mxu0 0.0
    %4907 = vmatprep.subr.mxu0 0.0
    %4908 = vmatpush2.msra.mxu0 0.0
    %4909 = vmatprep.subr.mxu0 0.0
    %4910 = vmatpush2.msra.mxu0 0.0
    %4911 = vmatprep.subr.mxu0 0.0
    %4912 = vmatpush2.msra.mxu0 0.0
    %4913 = vmatprep.subr.mxu0 0.0
    %4914 = vmatpush2.msra.mxu0 0.0
    %4915 = vmatprep.subr.mxu0 0.0
    %4916 = vmatpush2.msra.mxu0 0.0
    %4917 = vmatprep.mubr.f32.mxu0 0.0
    %4918 = vmatmul.mubr.f32.gmra.mxu0 %v4851
    %v4919 = vpop.f32.mrf.mxu0
    %v4920 = vadd.f32 %v4848, %v4919
    %v4921 = vpop.f32.mrf.mxu0
    %4922 = vdwg.mxu0
    %v4923 = vld [vmem:[#allocation8] sm:$0x3]
    %v4924 = vld [vmem:[%s12 + $0x10] sm:$0xff]
    %v4926 = vsel %vm578, %v4923, 0
    %4928 = vmatprep.subr.mxu0 0.0
    %4929 = vmatpush1.msra.mxu0 0.0
    %4930 = vmatprep.subr.mxu0 0.0
    %4931 = vmatpush1.msra.mxu0 0.0
    %4932 = vmatprep.subr.mxu0 0.0
    %4933 = vmatpush1.msra.mxu0 0.0
    %4934 = vmatprep.subr.mxu0 0.0
    %4935 = vmatpush1.msra.mxu0 0.0
    %4936 = vmatprep.subr.mxu0 0.0
    %4937 = vmatpush1.msra.mxu0 0.0
    %4938 = vmatprep.subr.mxu0 0.0
    %4939 = vmatpush1.msra.mxu0 0.0
    %4940 = vmatprep.subr.mxu0 0.0
    %4941 = vmatpush1.msra.mxu0 0.0
    %4942 = vmatprep.subr.mxu0 0.0
    %4943 = vmatpush1.msra.mxu0 0.0
    %4944 = vmatprep.subr.mxu0 0.0
    %4945 = vmatpush1.msra.mxu0 0.0
    %4946 = vmatprep.subr.mxu0 0.0
    %4947 = vmatpush1.msra.mxu0 0.0
    %4948 = vmatprep.subr.mxu0 0.0
    %4949 = vmatpush1.msra.mxu0 0.0
    %4950 = vmatprep.subr.mxu0 0.0
    %4951 = vmatpush1.msra.mxu0 0.0
    %4952 = vmatprep.subr.mxu0 0.0
    %4953 = vmatpush1.msra.mxu0 0.0
    %4954 = vmatprep.subr.mxu0 0.0
    %4955 = vmatpush1.msra.mxu0 0.0
    %4956 = vmatprep.subr.mxu0 0.0
    %4957 = vmatpush1.msra.mxu0 0.0
    %4958 = vmatprep.subr.mxu0 0.0
    %4959 = vmatpush1.msra.mxu0 %v4924
    %4960 = vmatprep.subr.mxu0 0.0
    %4961 = vmatpush2.msra.mxu0 0.0
    %4962 = vmatprep.subr.mxu0 0.0
    %4963 = vmatpush2.msra.mxu0 0.0
    %4964 = vmatprep.subr.mxu0 0.0
    %4965 = vmatpush2.msra.mxu0 0.0
    %4966 = vmatprep.subr.mxu0 0.0
    %4967 = vmatpush2.msra.mxu0 0.0
    %4968 = vmatprep.subr.mxu0 0.0
    %4969 = vmatpush2.msra.mxu0 0.0
    %4970 = vmatprep.subr.mxu0 0.0
    %4971 = vmatpush2.msra.mxu0 0.0
    %4972 = vmatprep.subr.mxu0 0.0
    %4973 = vmatpush2.msra.mxu0 0.0
    %4974 = vmatprep.subr.mxu0 0.0
    %4975 = vmatpush2.msra.mxu0 0.0
    %4976 = vmatprep.subr.mxu0 0.0
    %4977 = vmatpush2.msra.mxu0 0.0
    %4978 = vmatprep.subr.mxu0 0.0
    %4979 = vmatpush2.msra.mxu0 0.0
    %4980 = vmatprep.subr.mxu0 0.0
    %4981 = vmatpush2.msra.mxu0 0.0
    %4982 = vmatprep.subr.mxu0 0.0
    %4983 = vmatpush2.msra.mxu0 0.0
    %4984 = vmatprep.subr.mxu0 0.0
    %4985 = vmatpush2.msra.mxu0 0.0
    %4986 = vmatprep.subr.mxu0 0.0
    %4987 = vmatpush2.msra.mxu0 0.0
    %4988 = vmatprep.subr.mxu0 0.0
    %4989 = vmatpush2.msra.mxu0 0.0
    %4990 = vmatprep.subr.mxu0 0.0
    %4991 = vmatpush2.msra.mxu0 0.0
    %4992 = vmatprep.mubr.f32.mxu0 0.0
    %4993 = vmatmul.mubr.f32.gmra.mxu0 %v4926
    %v4994 = vpop.f32.mrf.mxu0
    %v4995 = vadd.f32 0.0, %v4994
    %v4996 = vpop.f32.mrf.mxu0
    %4997 = vdwg.mxu0
    %v4998 = vadd.f32 %v4920, %v4995
    %v4999 = vld [vmem:[#allocation8 + $0x2] sm:$0x3]
    %v5000 = vld [vmem:[%s12 + $0x18] sm:$0xff]
    %v5002 = vsel %vm578, %v4999, 0
    %5004 = vmatprep.subr.mxu0 0.0
    %5005 = vmatpush1.msra.mxu0 0.0
    %5006 = vmatprep.subr.mxu0 0.0
    %5007 = vmatpush1.msra.mxu0 0.0
    %5008 = vmatprep.subr.mxu0 0.0
    %5009 = vmatpush1.msra.mxu0 0.0
    %5010 = vmatprep.subr.mxu0 0.0
    %5011 = vmatpush1.msra.mxu0 0.0
    %5012 = vmatprep.subr.mxu0 0.0
    %5013 = vmatpush1.msra.mxu0 0.0
    %5014 = vmatprep.subr.mxu0 0.0
    %5015 = vmatpush1.msra.mxu0 0.0
    %5016 = vmatprep.subr.mxu0 0.0
    %5017 = vmatpush1.msra.mxu0 0.0
    %5018 = vmatprep.subr.mxu0 0.0
    %5019 = vmatpush1.msra.mxu0 0.0
    %5020 = vmatprep.subr.mxu0 0.0
    %5021 = vmatpush1.msra.mxu0 0.0
    %5022 = vmatprep.subr.mxu0 0.0
    %5023 = vmatpush1.msra.mxu0 0.0
    %5024 = vmatprep.subr.mxu0 0.0
    %5025 = vmatpush1.msra.mxu0 0.0
    %5026 = vmatprep.subr.mxu0 0.0
    %5027 = vmatpush1.msra.mxu0 0.0
    %5028 = vmatprep.subr.mxu0 0.0
    %5029 = vmatpush1.msra.mxu0 0.0
    %5030 = vmatprep.subr.mxu0 0.0
    %5031 = vmatpush1.msra.mxu0 0.0
    %5032 = vmatprep.subr.mxu0 0.0
    %5033 = vmatpush1.msra.mxu0 0.0
    %5034 = vmatprep.subr.mxu0 0.0
    %5035 = vmatpush1.msra.mxu0 %v5000
    %5036 = vmatprep.subr.mxu0 0.0
    %5037 = vmatpush2.msra.mxu0 0.0
    %5038 = vmatprep.subr.mxu0 0.0
    %5039 = vmatpush2.msra.mxu0 0.0
    %5040 = vmatprep.subr.mxu0 0.0
    %5041 = vmatpush2.msra.mxu0 0.0
    %5042 = vmatprep.subr.mxu0 0.0
    %5043 = vmatpush2.msra.mxu0 0.0
    %5044 = vmatprep.subr.mxu0 0.0
    %5045 = vmatpush2.msra.mxu0 0.0
    %5046 = vmatprep.subr.mxu0 0.0
    %5047 = vmatpush2.msra.mxu0 0.0
    %5048 = vmatprep.subr.mxu0 0.0
    %5049 = vmatpush2.msra.mxu0 0.0
    %5050 = vmatprep.subr.mxu0 0.0
    %5051 = vmatpush2.msra.mxu0 0.0
    %5052 = vmatprep.subr.mxu0 0.0
    %5053 = vmatpush2.msra.mxu0 0.0
    %5054 = vmatprep.subr.mxu0 0.0
    %5055 = vmatpush2.msra.mxu0 0.0
    %5056 = vmatprep.subr.mxu0 0.0
    %5057 = vmatpush2.msra.mxu0 0.0
    %5058 = vmatprep.subr.mxu0 0.0
    %5059 = vmatpush2.msra.mxu0 0.0
    %5060 = vmatprep.subr.mxu0 0.0
    %5061 = vmatpush2.msra.mxu0 0.0
    %5062 = vmatprep.subr.mxu0 0.0
    %5063 = vmatpush2.msra.mxu0 0.0
    %5064 = vmatprep.subr.mxu0 0.0
    %5065 = vmatpush2.msra.mxu0 0.0
    %5066 = vmatprep.subr.mxu0 0.0
    %5067 = vmatpush2.msra.mxu0 0.0
    %5068 = vmatprep.mubr.f32.mxu0 0.0
    %5069 = vmatmul.mubr.f32.gmra.mxu0 %v5002
    %v5070 = vpop.f32.mrf.mxu0
    %v5071 = vadd.f32 0.0, %v5070
    %v5072 = vpop.f32.mrf.mxu0
    %5073 = vdwg.mxu0
    %v5074 = vadd.f32 %v4998, %v5071
    %v5075 = vld [vmem:[#allocation8 + $0x4] sm:$0x3]
    %v5076 = vld [vmem:[%s12 + $0x20] sm:$0xff]
    %v5078 = vsel %vm578, %v5075, 0
    %5080 = vmatprep.subr.mxu0 0.0
    %5081 = vmatpush1.msra.mxu0 0.0
    %5082 = vmatprep.subr.mxu0 0.0
    %5083 = vmatpush1.msra.mxu0 0.0
    %5084 = vmatprep.subr.mxu0 0.0
    %5085 = vmatpush1.msra.mxu0 0.0
    %5086 = vmatprep.subr.mxu0 0.0
    %5087 = vmatpush1.msra.mxu0 0.0
    %5088 = vmatprep.subr.mxu0 0.0
    %5089 = vmatpush1.msra.mxu0 0.0
    %5090 = vmatprep.subr.mxu0 0.0
    %5091 = vmatpush1.msra.mxu0 0.0
    %5092 = vmatprep.subr.mxu0 0.0
    %5093 = vmatpush1.msra.mxu0 0.0
    %5094 = vmatprep.subr.mxu0 0.0
    %5095 = vmatpush1.msra.mxu0 0.0
    %5096 = vmatprep.subr.mxu0 0.0
    %5097 = vmatpush1.msra.mxu0 0.0
    %5098 = vmatprep.subr.mxu0 0.0
    %5099 = vmatpush1.msra.mxu0 0.0
    %5100 = vmatprep.subr.mxu0 0.0
    %5101 = vmatpush1.msra.mxu0 0.0
    %5102 = vmatprep.subr.mxu0 0.0
    %5103 = vmatpush1.msra.mxu0 0.0
    %5104 = vmatprep.subr.mxu0 0.0
    %5105 = vmatpush1.msra.mxu0 0.0
    %5106 = vmatprep.subr.mxu0 0.0
    %5107 = vmatpush1.msra.mxu0 0.0
    %5108 = vmatprep.subr.mxu0 0.0
    %5109 = vmatpush1.msra.mxu0 0.0
    %5110 = vmatprep.subr.mxu0 0.0
    %5111 = vmatpush1.msra.mxu0 %v5076
    %5112 = vmatprep.subr.mxu0 0.0
    %5113 = vmatpush2.msra.mxu0 0.0
    %5114 = vmatprep.subr.mxu0 0.0
    %5115 = vmatpush2.msra.mxu0 0.0
    %5116 = vmatprep.subr.mxu0 0.0
    %5117 = vmatpush2.msra.mxu0 0.0
    %5118 = vmatprep.subr.mxu0 0.0
    %5119 = vmatpush2.msra.mxu0 0.0
    %5120 = vmatprep.subr.mxu0 0.0
    %5121 = vmatpush2.msra.mxu0 0.0
    %5122 = vmatprep.subr.mxu0 0.0
    %5123 = vmatpush2.msra.mxu0 0.0
    %5124 = vmatprep.subr.mxu0 0.0
    %5125 = vmatpush2.msra.mxu0 0.0
    %5126 = vmatprep.subr.mxu0 0.0
    %5127 = vmatpush2.msra.mxu0 0.0
    %5128 = vmatprep.subr.mxu0 0.0
    %5129 = vmatpush2.msra.mxu0 0.0
    %5130 = vmatprep.subr.mxu0 0.0
    %5131 = vmatpush2.msra.mxu0 0.0
    %5132 = vmatprep.subr.mxu0 0.0
    %5133 = vmatpush2.msra.mxu0 0.0
    %5134 = vmatprep.subr.mxu0 0.0
    %5135 = vmatpush2.msra.mxu0 0.0
    %5136 = vmatprep.subr.mxu0 0.0
    %5137 = vmatpush2.msra.mxu0 0.0
    %5138 = vmatprep.subr.mxu0 0.0
    %5139 = vmatpush2.msra.mxu0 0.0
    %5140 = vmatprep.subr.mxu0 0.0
    %5141 = vmatpush2.msra.mxu0 0.0
    %5142 = vmatprep.subr.mxu0 0.0
    %5143 = vmatpush2.msra.mxu0 0.0
    %5144 = vmatprep.mubr.f32.mxu0 0.0
    %5145 = vmatmul.mubr.f32.gmra.mxu0 %v5078
    %v5146 = vpop.f32.mrf.mxu0
    %v5147 = vadd.f32 0.0, %v5146
    %v5148 = vpop.f32.mrf.mxu0
    %5149 = vdwg.mxu0
    %v5150 = vadd.f32 %v5074, %v5147
    %v5151 = vld [vmem:[%s1] sm:$0xf]
    %v5152 = vld [vmem:[%s1 + $0x4] sm:$0xf]
    %v5153 = vld [vmem:[%s14] sm:$0xf]
    %5155 = vset.pattern.permute.xlu0 0
    %5156 = vperm.xlu0 %5155, %v5153
    %v5157 = vpop.permute.xlu0 %5156
    %v5159 = vmul.f32 %v5151, %v5157
    %v5160 = vmul.f32 %v5152, %v5157
    %vm5161 = vcmask 60416
    %v5162 = vsel %vm5161, %v5159, 0.0
    %v5163 = vrot.slane %v5162, 4
    %v5164 = vadd.f32 %v5162, %v5163
    %v5165 = vrot.slane %v5164, 2
    %v5166 = vadd.f32 %v5164, %v5165
    %v5167 = vrot.slane %v5166, 1
    %v5168 = vadd.f32 %v5166, %v5167
    %v5169 = vsel %vm5161, %v5160, 0.0
    %v5170 = vrot.slane %v5169, 4
    %v5171 = vadd.f32 %v5169, %v5170
    %v5172 = vrot.slane %v5171, 2
    %v5173 = vadd.f32 %v5171, %v5172
    %v5174 = vrot.slane %v5173, 1
    %v5175 = vadd.f32 %v5173, %v5174
    %s5176 = sld [smem:[#allocation9]]
    %v5177 = vstv %s5176
    %v5178 = vadd.f32 %v5168, %v5177
    %v5179 = vadd.f32 %v5175, %v5177
    %vm5182 = vcmask 1041409
    %v5183 = vsel %vm5182, %v5179, %v5178
    %v5185 = vadd.f32 %v5150, %v5183
    %v5186 = vxor.u32 %v5185, 2147483648
    %v5187 = vmul.f32 %v5186, 1.442695
    %v5188 = vpow.pop %v5187
    %v5189 = vadd.f32 %v5188, 1.0
    %v5190 = vrcp.pop %v5189
    %v5191 = vmul.f32 1.0, %v5190
    %5192 = vst.msk [vmem:[#allocation10] sm:$0x3] %vm582, %v5191
    // Predicated region
    $region66: #{lstnet_forward.1} parent=1 // pred_check
      _
    $region67: #{lstnet_forward.1} parent=1 // pred_check_branch
      %5194 = sbr.rel (0) target = $region69
    $region68: #{lstnet_forward.1} parent=1 // pred_region
      %s5196 = ssub.s32 32, 32
      %5197 = vsyncadd [#allocation11], %s5196
      %s5199 = sshll.u32 [#allocation10], 4
      %s5200 = int_to_ptr.vmem [resolvable:$true] %s5199
      %5202 = dma.vmem_to_hbm [thread:$0]  %s5200, 32, %s16, [#allocation11]
    $region69: #{lstnet_forward.1} parent=1 // pred_fallthru
      _
    // Predicated region
    $region70: #{lstnet_forward.1} parent=1 // pred_check
      _
    $region71: #{lstnet_forward.1} parent=1 // pred_check_branch
      %5204 = sbr.rel (0) target = $region73
    $region72: #{lstnet_forward.1} parent=1 // pred_region
      %5205 = dma.done [#allocation11], 32
    $region73: #{lstnet_forward.1} parent=1 // pred_fallthru
      _
    %5206 = vsyncpa [#allocation11], 1

</llo_original>
